<compile_context>
chip_gen: v5e
topology: v5e:2x2
jax: 0.10.0
libtpu: 0.0.40
codegen_flags: <defaults>
</compile_context>

<pallas_src>
import functools

import jax
import jax.numpy as jnp
from jax.experimental import pallas as pl
from jax.experimental.pallas import tpu as pltpu

ACT_SCALE = 6.0 / 255.0          # 8-bit unsigned step for QuantReLU(max_val=6)
INV_ACT_SCALE = 255.0 / 6.0
HEAD_LANES = 128                 # lane-dense padded width for the fused head matmul


def _round_up(x, m):
    return ((x + m - 1) // m) * m


# ----------------------------------------------------------------------------- kernels
def _conv_tap_relu6_kernel(x_ref, w_ref, b_ref, o_ref, *, img_w, ksize):
    """Tap-accumulated 'same-width' valid conv + bias + ReLU6 + 8-bit fake quant.

    x_ref: [1, H*W + pad, Cin]        flattened row-major padded image (bf16)
    w_ref: [ksize*ksize, Cin, Cout]   fake-quantized weights (bf16)
    b_ref: [1, Cout]                  bias (f32)
    o_ref: [1, (H-ksize+1)*W, Cout]   'same-width' output rows (bf16)
    """
    m_out = o_ref.shape[1]
    c_out = o_ref.shape[2]
    acc = jnp.zeros((m_out, c_out), jnp.float32)
    for di in range(ksize):
        for dj in range(ksize):
            off = di * img_w + dj                       # static python int
            xs = x_ref[0, off:off + m_out, :]           # [m_out, Cin] contiguous slice
            wt = w_ref[di * ksize + dj]                 # [Cin, Cout]
            acc = acc + jnp.dot(xs, wt, preferred_element_type=jnp.float32)
    acc = acc + b_ref[...]
    # QuantReLU(quant_type=INT, bit_width=8, max_val=6): ReLU6 + uniform fake quant.
    # TODO(synk): exact brevitas scaling-impl / zero-point / rounding mode not reproduced.
    acc = jnp.clip(acc, 0.0, 6.0)
    acc = jnp.round(acc * INV_ACT_SCALE) * ACT_SCALE
    o_ref[0] = acc.astype(o_ref.dtype)


def _head_matmul_kernel(x_ref, w_ref, b_ref, o_ref):
    """Fused 1x1-conv heads: out = x @ w_padded + b_padded (lane-dense, f32 out)."""
    acc = jnp.dot(x_ref[...], w_ref[...], preferred_element_type=jnp.float32)
    o_ref[...] = (acc + b_ref[...]).astype(o_ref.dtype)


# ----------------------------------------------------------------------------- wrappers
def quant_conv2d_relu6(x, w_taps, b, ksize):
    """Valid ksize x ksize conv (stride 1) + bias + QuantReLU6 on NHWC input."""
    B, H, W, Cin = x.shape
    Ho, Wo = H - ksize + 1, W - ksize + 1
    m_same = Ho * W                                   # same-width output rows
    pad = (ksize - 1) * W + (ksize - 1)               # tail so every tap slice is in-bounds
    Cout = w_taps.shape[-1]

    x_flat = x.reshape(B, H * W, Cin).astype(jnp.bfloat16)
    x_flat = jnp.pad(x_flat, ((0, 0), (0, pad), (0, 0)))

    kernel = functools.partial(_conv_tap_relu6_kernel, img_w=W, ksize=ksize)
    out = pl.pallas_call(
        kernel,
        out_shape=jax.ShapeDtypeStruct((B, m_same, Cout), jnp.bfloat16),
        grid=(B,),
        in_specs=[
            pl.BlockSpec((1, H * W + pad, Cin), lambda i: (i, 0, 0)),
            pl.BlockSpec((ksize * ksize, Cin, Cout), lambda i: (0, 0, 0)),
            pl.BlockSpec((1, Cout), lambda i: (0, 0)),
        ],
        out_specs=pl.BlockSpec((1, m_same, Cout), lambda i: (i, 0, 0)),
        compiler_params=pltpu.CompilerParams(dimension_semantics=("parallel",)),
    )(x_flat, w_taps, b)

    # Drop the ksize-1 garbage columns of every same-width output row.
    return out.reshape(B, Ho, W, Cout)[:, :, :Wo, :]


def head_matmul(x2d, w_pad, b_pad, tm=512):
    """conv4_1 + conv4_2 fused: [M, 32] @ [32, 128] (zero-padded lanes), M-tiled."""
    M, K = x2d.shape
    N = w_pad.shape[1]
    TM = min(tm, _round_up(M, 8))
    Mp = _round_up(M, TM)
    xb = x2d.astype(jnp.bfloat16)
    if Mp != M:
        xb = jnp.pad(xb, ((0, Mp - M), (0, 0)))
    out = pl.pallas_call(
        _head_matmul_kernel,
        out_shape=jax.ShapeDtypeStruct((Mp, N), jnp.float32),
        grid=(Mp // TM,),
        in_specs=[
            pl.BlockSpec((TM, K), lambda i: (i, 0)),
            pl.BlockSpec((K, N), lambda i: (0, 0)),
            pl.BlockSpec((1, N), lambda i: (0, 0)),
        ],
        out_specs=pl.BlockSpec((TM, N), lambda i: (i, 0)),
        compiler_params=pltpu.CompilerParams(dimension_semantics=("parallel",)),
    )(xb, w_pad, b_pad)
    return out[:M]


def maxpool2d_2x2(x):
    """MaxPool2d(2, 2, ceil_mode=False) on NHWC as a fused jnp.maximum tree.
    Per perf review: XLA fuses the strided slices -> input read once, no k*k
    window stack materialized in HBM (so no Pallas kernel needed here)."""
    B, H, W, C = x.shape
    Hc, Wc = (H // 2) * 2, (W // 2) * 2
    x = x[:, :Hc, :Wc, :]
    m0 = jnp.maximum(x[:, 0::2, 0::2, :], x[:, 0::2, 1::2, :])
    m1 = jnp.maximum(x[:, 1::2, 0::2, :], x[:, 1::2, 1::2, :])
    return jnp.maximum(m0, m1)


# ----------------------------------------------------------------------------- params
def fake_quant_weight_int8(w):
    """Per-tensor symmetric INT8 weight fake-quant (QuantType.INT, bit_width=8).
    TODO(synk): brevitas per-channel / learned-scale / narrow-range details not reproduced."""
    scale = jnp.maximum(jnp.max(jnp.abs(w)), 1e-8) / 127.0
    return jnp.clip(jnp.round(w / scale), -127.0, 127.0) * scale


def init_params(key):
    """Deterministic synthetic parameters.  Conv weights are stored as
    [KH, KW, Cin, Cout] (PyTorch's [Cout, Cin, KH, KW] maps via w.permute(2, 3, 1, 0));
    the 1x1 head weights as [Cin, Cout]."""
    ks = jax.random.split(key, 10)

    def w(k, shape, scale=0.1):
        return jax.random.normal(k, shape, jnp.float32) * scale

    return {
        "conv1_w": w(ks[0], (3, 3, 3, 10)),   "conv1_b": w(ks[1], (10,), 0.01),
        "conv2_w": w(ks[2], (3, 3, 10, 16)),  "conv2_b": w(ks[3], (16,), 0.01),
        "conv3_w": w(ks[4], (3, 3, 16, 32)),  "conv3_b": w(ks[5], (32,), 0.01),
        "conv4_1_w": w(ks[6], (32, 2)),       "conv4_1_b": w(ks[7], (2,), 0.01),
        "conv4_2_w": w(ks[8], (32, 4)),       "conv4_2_b": w(ks[9], (4,), 0.01),
    }


def prepare_params(params):
    """Hoisted weight prep (run once, not per forward): fake-quantize, cast to bf16,
    pack conv weights as [KH*KW, Cin, Cout] and fuse + lane-pad the two 1x1 heads."""
    packed = {}
    for i in (1, 2, 3):
        w = fake_quant_weight_int8(params[f"conv{i}_w"])
        kh, kw, cin, cout = w.shape
        packed[f"conv{i}_w"] = w.reshape(kh * kw, cin, cout).astype(jnp.bfloat16)
        packed[f"conv{i}_b"] = params[f"conv{i}_b"].reshape(1, cout).astype(jnp.float32)

    w1 = fake_quant_weight_int8(params["conv4_1_w"])          # [32, 2] -> scores
    w2 = fake_quant_weight_int8(params["conv4_2_w"])          # [32, 4] -> offsets
    w_head = jnp.concatenate([w1, w2], axis=1)                # [32, 6]
    w_head = jnp.pad(w_head, ((0, 0), (0, HEAD_LANES - w_head.shape[1])))
    b_head = jnp.concatenate([params["conv4_1_b"], params["conv4_2_b"]])
    b_head = jnp.pad(b_head, (0, HEAD_LANES - b_head.shape[0]))
    packed["head_w"] = w_head.astype(jnp.bfloat16)
    packed["head_b"] = b_head.reshape(1, HEAD_LANES).astype(jnp.float32)
    return packed


# ----------------------------------------------------------------------------- forward
def pnet_forward(x_nchw, packed, is_train=False):
    """PNet forward.  Input NCHW [B, 3, H, W]; returns (scores [B,2,h,w], offsets [B,4,h,w])."""
    del is_train  # reference returns raw conv4_1 logits in both modes (see note below)
    x = jnp.transpose(x_nchw, (0, 2, 3, 1)).astype(jnp.bfloat16)        # -> NHWC

    x = quant_conv2d_relu6(x, packed["conv1_w"], packed["conv1_b"], 3)  # [B,H-2,W-2,10]
    x = maxpool2d_2x2(x)                                                # [B,(H-2)//2,..,10]
    x = quant_conv2d_relu6(x, packed["conv2_w"], packed["conv2_b"], 3)  # [...,16]
    x = quant_conv2d_relu6(x, packed["conv3_w"], packed["conv3_b"], 3)  # [...,32]

    B, Ho, Wo, C = x.shape
    out = head_matmul(x.reshape(B * Ho * Wo, C), packed["head_w"], packed["head_b"])
    scores = out[:, 0:2].reshape(B, Ho, Wo, 2).transpose(0, 3, 1, 2)    # NCHW, [B,2,h,w]
    offsets = out[:, 2:6].reshape(B, Ho, Wo, 4).transpose(0, 3, 1, 2)   # NCHW, [B,4,h,w]
    # NOTE: the reference forward() assigns F.softmax(scores, dim=1) to a misspelled
    # local ('socres') that is never returned, so raw logits are returned in both
    # train and eval mode.  Behaviour reproduced faithfully (no softmax applied).
    return scores, offsets


if __name__ == "__main__":
    key = jax.random.PRNGKey(0)
    k_x, k_p = jax.random.split(key)

    B, H, W = 2, 24, 24
    x = jax.random.normal(k_x, (B, 3, H, W), jnp.float32)
    packed = prepare_params(init_params(k_p))

    forward = jax.jit(pnet_forward)
    scores, offsets = forward(x, packed)
    jax.block_until_ready((scores, offsets))

    h_out = (H - 2) // 2 - 4      # PNet: conv1 -> pool(2,2) -> conv2 -> conv3
    w_out = (W - 2) // 2 - 4
    assert scores.shape == (B, 2, h_out, w_out), scores.shape
    assert offsets.shape == (B, 4, h_out, w_out), offsets.shape
    assert bool(jnp.all(jnp.isfinite(scores))) and bool(jnp.all(jnp.isfinite(offsets)))
    print("KERNEL_OK")
</pallas_src>

<mosaic_0001>
module attributes {stable_mosaic.version = 11 : i64} {
  func.func @_conv_tap_relu6_kernel(%arg0: i32, %arg1: memref<1x626x3xbf16, #tpu.memory_space<vmem>>, %arg2: memref<9x3x10xbf16, #tpu.memory_space<vmem>>, %arg3: memref<1x10xf32, #tpu.memory_space<vmem>>, %arg4: memref<1x528x10xbf16, #tpu.memory_space<vmem>>) attributes {dimension_semantics = [#tpu.dimension_semantics<parallel>], iteration_bounds = array<i64: 2>, scalar_prefetch = 0 : i64, scratch_operands = 0 : i64, tpu.core_type = #tpu.core_type<tc>, window_params = [{transform_indices = @transform_0, window_bounds = array<i64: 1, 626, 3>}, {pipeline_mode = #tpu.pipeline_mode<synchronous>, transform_indices = @transform_1, window_bounds = array<i64: 9, 3, 10>}, {pipeline_mode = #tpu.pipeline_mode<synchronous>, transform_indices = @transform_2, window_bounds = array<i64: 1, 10>}, {transform_indices = @transform_3, window_bounds = array<i64: 1, 528, 10>}]} {
    %cst = arith.constant 0.000000e+00 : f32
    %0 = vector.broadcast %cst : f32 to vector<528x10xf32>
    %c0 = arith.constant 0 : index
    %c0_0 = arith.constant 0 : index
    %c0_1 = arith.constant 0 : index
    %1 = vector.load %arg1[%c0, %c0_0, %c0_1] : memref<1x626x3xbf16, #tpu.memory_space<vmem>>, vector<1x528x3xbf16>
    %2 = vector.shape_cast %1 : vector<1x528x3xbf16> to vector<528x3xbf16>
    %c0_2 = arith.constant 0 : index
    %c0_3 = arith.constant 0 : index
    %c0_4 = arith.constant 0 : index
    %3 = vector.load %arg2[%c0_2, %c0_3, %c0_4] : memref<9x3x10xbf16, #tpu.memory_space<vmem>>, vector<1x3x10xbf16>
    %4 = vector.shape_cast %3 : vector<1x3x10xbf16> to vector<3x10xbf16>
    %cst_5 = arith.constant dense<0.000000e+00> : vector<528x10xf32>
    %5 = tpu.matmul %2, %4, %cst_5 {dimension_numbers = #tpu.dot_dimension_numbers<[1], [0], [0], [1], [0, 0, 1, 1], [], []>} : vector<528x3xbf16>, vector<3x10xbf16>, vector<528x10xf32> -> vector<528x10xf32>
    %6 = arith.addf %0, %5 : vector<528x10xf32>
    %c0_6 = arith.constant 0 : index
    %c1 = arith.constant 1 : index
    %c0_7 = arith.constant 0 : index
    %7 = vector.load %arg1[%c0_6, %c1, %c0_7] : memref<1x626x3xbf16, #tpu.memory_space<vmem>>, vector<1x528x3xbf16>
    %8 = vector.shape_cast %7 : vector<1x528x3xbf16> to vector<528x3xbf16>
    %c1_8 = arith.constant 1 : index
    %c0_9 = arith.constant 0 : index
    %c0_10 = arith.constant 0 : index
    %9 = vector.load %arg2[%c1_8, %c0_9, %c0_10] : memref<9x3x10xbf16, #tpu.memory_space<vmem>>, vector<1x3x10xbf16>
    %10 = vector.shape_cast %9 : vector<1x3x10xbf16> to vector<3x10xbf16>
    %cst_11 = arith.constant dense<0.000000e+00> : vector<528x10xf32>
    %11 = tpu.matmul %8, %10, %cst_11 {dimension_numbers = #tpu.dot_dimension_numbers<[1], [0], [0], [1], [0, 0, 1, 1], [], []>} : vector<528x3xbf16>, vector<3x10xbf16>, vector<528x10xf32> -> vector<528x10xf32>
    %12 = arith.addf %6, %11 : vector<528x10xf32>
    %c0_12 = arith.constant 0 : index
    %c2 = arith.constant 2 : index
    %c0_13 = arith.constant 0 : index
    %13 = vector.load %arg1[%c0_12, %c2, %c0_13] : memref<1x626x3xbf16, #tpu.memory_space<vmem>>, vector<1x528x3xbf16>
    %14 = vector.shape_cast %13 : vector<1x528x3xbf16> to vector<528x3xbf16>
    %c2_14 = arith.constant 2 : index
    %c0_15 = arith.constant 0 : index
    %c0_16 = arith.constant 0 : index
    %15 = vector.load %arg2[%c2_14, %c0_15, %c0_16] : memref<9x3x10xbf16, #tpu.memory_space<vmem>>, vector<1x3x10xbf16>
    %16 = vector.shape_cast %15 : vector<1x3x10xbf16> to vector<3x10xbf16>
    %cst_17 = arith.constant dense<0.000000e+00> : vector<528x10xf32>
    %17 = tpu.matmul %14, %16, %cst_17 {dimension_numbers = #tpu.dot_dimension_numbers<[1], [0], [0], [1], [0, 0, 1, 1], [], []>} : vector<528x3xbf16>, vector<3x10xbf16>, vector<528x10xf32> -> vector<528x10xf32>
    %18 = arith.addf %12, %17 : vector<528x10xf32>
    %c0_18 = arith.constant 0 : index
    %c24 = arith.constant 24 : index
    %c0_19 = arith.constant 0 : index
    %19 = vector.load %arg1[%c0_18, %c24, %c0_19] : memref<1x626x3xbf16, #tpu.memory_space<vmem>>, vector<1x528x3xbf16>
    %20 = vector.shape_cast %19 : vector<1x528x3xbf16> to vector<528x3xbf16>
    %c3 = arith.constant 3 : index
    %c0_20 = arith.constant 0 : index
    %c0_21 = arith.constant 0 : index
    %21 = vector.load %arg2[%c3, %c0_20, %c0_21] : memref<9x3x10xbf16, #tpu.memory_space<vmem>>, vector<1x3x10xbf16>
    %22 = vector.shape_cast %21 : vector<1x3x10xbf16> to vector<3x10xbf16>
    %cst_22 = arith.constant dense<0.000000e+00> : vector<528x10xf32>
    %23 = tpu.matmul %20, %22, %cst_22 {dimension_numbers = #tpu.dot_dimension_numbers<[1], [0], [0], [1], [0, 0, 1, 1], [], []>} : vector<528x3xbf16>, vector<3x10xbf16>, vector<528x10xf32> -> vector<528x10xf32>
    %24 = arith.addf %18, %23 : vector<528x10xf32>
    %c0_23 = arith.constant 0 : index
    %c25 = arith.constant 25 : index
    %c0_24 = arith.constant 0 : index
    %25 = vector.load %arg1[%c0_23, %c25, %c0_24] : memref<1x626x3xbf16, #tpu.memory_space<vmem>>, vector<1x528x3xbf16>
    %26 = vector.shape_cast %25 : vector<1x528x3xbf16> to vector<528x3xbf16>
    %c4 = arith.constant 4 : index
    %c0_25 = arith.constant 0 : index
    %c0_26 = arith.constant 0 : index
    %27 = vector.load %arg2[%c4, %c0_25, %c0_26] : memref<9x3x10xbf16, #tpu.memory_space<vmem>>, vector<1x3x10xbf16>
    %28 = vector.shape_cast %27 : vector<1x3x10xbf16> to vector<3x10xbf16>
    %cst_27 = arith.constant dense<0.000000e+00> : vector<528x10xf32>
    %29 = tpu.matmul %26, %28, %cst_27 {dimension_numbers = #tpu.dot_dimension_numbers<[1], [0], [0], [1], [0, 0, 1, 1], [], []>} : vector<528x3xbf16>, vector<3x10xbf16>, vector<528x10xf32> -> vector<528x10xf32>
    %30 = arith.addf %24, %29 : vector<528x10xf32>
    %c0_28 = arith.constant 0 : index
    %c26 = arith.constant 26 : index
    %c0_29 = arith.constant 0 : index
    %31 = vector.load %arg1[%c0_28, %c26, %c0_29] : memref<1x626x3xbf16, #tpu.memory_space<vmem>>, vector<1x528x3xbf16>
    %32 = vector.shape_cast %31 : vector<1x528x3xbf16> to vector<528x3xbf16>
    %c5 = arith.constant 5 : index
    %c0_30 = arith.constant 0 : index
    %c0_31 = arith.constant 0 : index
    %33 = vector.load %arg2[%c5, %c0_30, %c0_31] : memref<9x3x10xbf16, #tpu.memory_space<vmem>>, vector<1x3x10xbf16>
    %34 = vector.shape_cast %33 : vector<1x3x10xbf16> to vector<3x10xbf16>
    %cst_32 = arith.constant dense<0.000000e+00> : vector<528x10xf32>
    %35 = tpu.matmul %32, %34, %cst_32 {dimension_numbers = #tpu.dot_dimension_numbers<[1], [0], [0], [1], [0, 0, 1, 1], [], []>} : vector<528x3xbf16>, vector<3x10xbf16>, vector<528x10xf32> -> vector<528x10xf32>
    %36 = arith.addf %30, %35 : vector<528x10xf32>
    %c0_33 = arith.constant 0 : index
    %c48 = arith.constant 48 : index
    %c0_34 = arith.constant 0 : index
    %37 = vector.load %arg1[%c0_33, %c48, %c0_34] : memref<1x626x3xbf16, #tpu.memory_space<vmem>>, vector<1x528x3xbf16>
    %38 = vector.shape_cast %37 : vector<1x528x3xbf16> to vector<528x3xbf16>
    %c6 = arith.constant 6 : index
    %c0_35 = arith.constant 0 : index
    %c0_36 = arith.constant 0 : index
    %39 = vector.load %arg2[%c6, %c0_35, %c0_36] : memref<9x3x10xbf16, #tpu.memory_space<vmem>>, vector<1x3x10xbf16>
    %40 = vector.shape_cast %39 : vector<1x3x10xbf16> to vector<3x10xbf16>
    %cst_37 = arith.constant dense<0.000000e+00> : vector<528x10xf32>
    %41 = tpu.matmul %38, %40, %cst_37 {dimension_numbers = #tpu.dot_dimension_numbers<[1], [0], [0], [1], [0, 0, 1, 1], [], []>} : vector<528x3xbf16>, vector<3x10xbf16>, vector<528x10xf32> -> vector<528x10xf32>
    %42 = arith.addf %36, %41 : vector<528x10xf32>
    %c0_38 = arith.constant 0 : index
    %c49 = arith.constant 49 : index
    %c0_39 = arith.constant 0 : index
    %43 = vector.load %arg1[%c0_38, %c49, %c0_39] : memref<1x626x3xbf16, #tpu.memory_space<vmem>>, vector<1x528x3xbf16>
    %44 = vector.shape_cast %43 : vector<1x528x3xbf16> to vector<528x3xbf16>
    %c7 = arith.constant 7 : index
    %c0_40 = arith.constant 0 : index
    %c0_41 = arith.constant 0 : index
    %45 = vector.load %arg2[%c7, %c0_40, %c0_41] : memref<9x3x10xbf16, #tpu.memory_space<vmem>>, vector<1x3x10xbf16>
    %46 = vector.shape_cast %45 : vector<1x3x10xbf16> to vector<3x10xbf16>
    %cst_42 = arith.constant dense<0.000000e+00> : vector<528x10xf32>
    %47 = tpu.matmul %44, %46, %cst_42 {dimension_numbers = #tpu.dot_dimension_numbers<[1], [0], [0], [1], [0, 0, 1, 1], [], []>} : vector<528x3xbf16>, vector<3x10xbf16>, vector<528x10xf32> -> vector<528x10xf32>
    %48 = arith.addf %42, %47 : vector<528x10xf32>
    %c0_43 = arith.constant 0 : index
    %c50 = arith.constant 50 : index
    %c0_44 = arith.constant 0 : index
    %49 = vector.load %arg1[%c0_43, %c50, %c0_44] : memref<1x626x3xbf16, #tpu.memory_space<vmem>>, vector<1x528x3xbf16>
    %50 = vector.shape_cast %49 : vector<1x528x3xbf16> to vector<528x3xbf16>
    %c8 = arith.constant 8 : index
    %c0_45 = arith.constant 0 : index
    %c0_46 = arith.constant 0 : index
    %51 = vector.load %arg2[%c8, %c0_45, %c0_46] : memref<9x3x10xbf16, #tpu.memory_space<vmem>>, vector<1x3x10xbf16>
    %52 = vector.shape_cast %51 : vector<1x3x10xbf16> to vector<3x10xbf16>
    %cst_47 = arith.constant dense<0.000000e+00> : vector<528x10xf32>
    %53 = tpu.matmul %50, %52, %cst_47 {dimension_numbers = #tpu.dot_dimension_numbers<[1], [0], [0], [1], [0, 0, 1, 1], [], []>} : vector<528x3xbf16>, vector<3x10xbf16>, vector<528x10xf32> -> vector<528x10xf32>
    %54 = arith.addf %48, %53 : vector<528x10xf32>
    %c0_48 = arith.constant 0 : index
    %c0_49 = arith.constant 0 : index
    %55 = vector.load %arg3[%c0_48, %c0_49] : memref<1x10xf32, #tpu.memory_space<vmem>>, vector<1x10xf32>
    %56 = vector.broadcast %55 : vector<1x10xf32> to vector<528x10xf32>
    %57 = arith.addf %54, %56 : vector<528x10xf32>
    %cst_50 = arith.constant 0.000000e+00 : f32
    %cst_51 = arith.constant 6.000000e+00 : f32
    %58 = vector.broadcast %cst_50 : f32 to vector<528x10xf32>
    %59 = arith.maximumf %58, %57 : vector<528x10xf32>
    %60 = vector.broadcast %cst_51 : f32 to vector<528x10xf32>
    %61 = arith.minimumf %60, %59 : vector<528x10xf32>
    %cst_52 = arith.constant 4.250000e+01 : f32
    %62 = vector.broadcast %cst_52 : f32 to vector<528x10xf32>
    %63 = arith.mulf %61, %62 : vector<528x10xf32>
    %64 = math.roundeven %63 : vector<528x10xf32>
    %cst_53 = arith.constant 0.0235294122 : f32
    %65 = vector.broadcast %cst_53 : f32 to vector<528x10xf32>
    %66 = arith.mulf %64, %65 : vector<528x10xf32>
    %67 = arith.truncf %66 : vector<528x10xf32> to vector<528x10xbf16>
    %c0_54 = arith.constant 0 : index
    %c0_55 = arith.constant 0 : index
    %c0_56 = arith.constant 0 : index
    %68 = vector.load %arg4[%c0_54, %c0_55, %c0_56] : memref<1x528x10xbf16, #tpu.memory_space<vmem>>, vector<1x528x10xbf16>
    %69 = vector.shape_cast %68 : vector<1x528x10xbf16> to vector<528x10xbf16>
    %70 = vector.shape_cast %67 : vector<528x10xbf16> to vector<1x528x10xbf16>
    tpu.vector_store %arg4[%c0_54, %c0_55, %c0_56], %70 {strides = array<i32>} : memref<1x528x10xbf16, #tpu.memory_space<vmem>>, vector<1x528x10xbf16>,
    return
  }
  func.func @transform_0(%arg0: i32) -> (i32, i32, i32) {
    %c0_i32 = arith.constant 0 : i32
    %c0_i32_0 = arith.constant 0 : i32
    %c0_i32_1 = arith.constant 0 : i32
    return %arg0, %c0_i32, %c0_i32_0 : i32, i32, i32
  }
  func.func @transform_1(%arg0: i32) -> (i32, i32, i32) {
    %c0_i32 = arith.constant 0 : i32
    %c0_i32_0 = arith.constant 0 : i32
    %c0_i32_1 = arith.constant 0 : i32
    %c0_i32_2 = arith.constant 0 : i32
    return %c0_i32, %c0_i32_0, %c0_i32_1 : i32, i32, i32
  }
  func.func @transform_2(%arg0: i32) -> (i32, i32) {
    %c0_i32 = arith.constant 0 : i32
    %c0_i32_0 = arith.constant 0 : i32
    %c0_i32_1 = arith.constant 0 : i32
    return %c0_i32, %c0_i32_0 : i32, i32
  }
  func.func @transform_3(%arg0: i32) -> (i32, i32, i32) {
    %c0_i32 = arith.constant 0 : i32
    %c0_i32_0 = arith.constant 0 : i32
    %c0_i32_1 = arith.constant 0 : i32
    return %arg0, %c0_i32, %c0_i32_0 : i32, i32, i32
  }
}

module attributes {stable_mosaic.version = 11 : i64} {
  func.func @_conv_tap_relu6_kernel(%arg0: i32, %arg1: memref<1x145x10xbf16, #tpu.memory_space<vmem>>, %arg2: memref<9x10x16xbf16, #tpu.memory_space<vmem>>, %arg3: memref<1x16xf32, #tpu.memory_space<vmem>>, %arg4: memref<1x99x16xbf16, #tpu.memory_space<vmem>>) attributes {dimension_semantics = [#tpu.dimension_semantics<parallel>], iteration_bounds = array<i64: 2>, scalar_prefetch = 0 : i64, scratch_operands = 0 : i64, tpu.core_type = #tpu.core_type<tc>, window_params = [{transform_indices = @transform_0, window_bounds = array<i64: 1, 145, 10>}, {pipeline_mode = #tpu.pipeline_mode<synchronous>, transform_indices = @transform_1, window_bounds = array<i64: 9, 10, 16>}, {pipeline_mode = #tpu.pipeline_mode<synchronous>, transform_indices = @transform_2, window_bounds = array<i64: 1, 16>}, {transform_indices = @transform_3, window_bounds = array<i64: 1, 99, 16>}]} {
    %cst = arith.constant 0.000000e+00 : f32
    %0 = vector.broadcast %cst : f32 to vector<99x16xf32>
    %c0 = arith.constant 0 : index
    %c0_0 = arith.constant 0 : index
    %c0_1 = arith.constant 0 : index
    %1 = vector.load %arg1[%c0, %c0_0, %c0_1] : memref<1x145x10xbf16, #tpu.memory_space<vmem>>, vector<1x99x10xbf16>
    %2 = vector.shape_cast %1 : vector<1x99x10xbf16> to vector<99x10xbf16>
    %c0_2 = arith.constant 0 : index
    %c0_3 = arith.constant 0 : index
    %c0_4 = arith.constant 0 : index
    %3 = vector.load %arg2[%c0_2, %c0_3, %c0_4] : memref<9x10x16xbf16, #tpu.memory_space<vmem>>, vector<1x10x16xbf16>
    %4 = vector.shape_cast %3 : vector<1x10x16xbf16> to vector<10x16xbf16>
    %cst_5 = arith.constant dense<0.000000e+00> : vector<99x16xf32>
    %5 = tpu.matmul %2, %4, %cst_5 {dimension_numbers = #tpu.dot_dimension_numbers<[1], [0], [0], [1], [0, 0, 1, 1], [], []>} : vector<99x10xbf16>, vector<10x16xbf16>, vector<99x16xf32> -> vector<99x16xf32>
    %6 = arith.addf %0, %5 : vector<99x16xf32>
    %c0_6 = arith.constant 0 : index
    %c1 = arith.constant 1 : index
    %c0_7 = arith.constant 0 : index
    %7 = vector.load %arg1[%c0_6, %c1, %c0_7] : memref<1x145x10xbf16, #tpu.memory_space<vmem>>, vector<1x99x10xbf16>
    %8 = vector.shape_cast %7 : vector<1x99x10xbf16> to vector<99x10xbf16>
    %c1_8 = arith.constant 1 : index
    %c0_9 = arith.constant 0 : index
    %c0_10 = arith.constant 0 : index
    %9 = vector.load %arg2[%c1_8, %c0_9, %c0_10] : memref<9x10x16xbf16, #tpu.memory_space<vmem>>, vector<1x10x16xbf16>
    %10 = vector.shape_cast %9 : vector<1x10x16xbf16> to vector<10x16xbf16>
    %cst_11 = arith.constant dense<0.000000e+00> : vector<99x16xf32>
    %11 = tpu.matmul %8, %10, %cst_11 {dimension_numbers = #tpu.dot_dimension_numbers<[1], [0], [0], [1], [0, 0, 1, 1], [], []>} : vector<99x10xbf16>, vector<10x16xbf16>, vector<99x16xf32> -> vector<99x16xf32>
    %12 = arith.addf %6, %11 : vector<99x16xf32>
    %c0_12 = arith.constant 0 : index
    %c2 = arith.constant 2 : index
    %c0_13 = arith.constant 0 : index
    %13 = vector.load %arg1[%c0_12, %c2, %c0_13] : memref<1x145x10xbf16, #tpu.memory_space<vmem>>, vector<1x99x10xbf16>
    %14 = vector.shape_cast %13 : vector<1x99x10xbf16> to vector<99x10xbf16>
    %c2_14 = arith.constant 2 : index
    %c0_15 = arith.constant 0 : index
    %c0_16 = arith.constant 0 : index
    %15 = vector.load %arg2[%c2_14, %c0_15, %c0_16] : memref<9x10x16xbf16, #tpu.memory_space<vmem>>, vector<1x10x16xbf16>
    %16 = vector.shape_cast %15 : vector<1x10x16xbf16> to vector<10x16xbf16>
    %cst_17 = arith.constant dense<0.000000e+00> : vector<99x16xf32>
    %17 = tpu.matmul %14, %16, %cst_17 {dimension_numbers = #tpu.dot_dimension_numbers<[1], [0], [0], [1], [0, 0, 1, 1], [], []>} : vector<99x10xbf16>, vector<10x16xbf16>, vector<99x16xf32> -> vector<99x16xf32>
    %18 = arith.addf %12, %17 : vector<99x16xf32>
    %c0_18 = arith.constant 0 : index
    %c11 = arith.constant 11 : index
    %c0_19 = arith.constant 0 : index
    %19 = vector.load %arg1[%c0_18, %c11, %c0_19] : memref<1x145x10xbf16, #tpu.memory_space<vmem>>, vector<1x99x10xbf16>
    %20 = vector.shape_cast %19 : vector<1x99x10xbf16> to vector<99x10xbf16>
    %c3 = arith.constant 3 : index
    %c0_20 = arith.constant 0 : index
    %c0_21 = arith.constant 0 : index
    %21 = vector.load %arg2[%c3, %c0_20, %c0_21] : memref<9x10x16xbf16, #tpu.memory_space<vmem>>, vector<1x10x16xbf16>
    %22 = vector.shape_cast %21 : vector<1x10x16xbf16> to vector<10x16xbf16>
    %cst_22 = arith.constant dense<0.000000e+00> : vector<99x16xf32>
    %23 = tpu.matmul %20, %22, %cst_22 {dimension_numbers = #tpu.dot_dimension_numbers<[1], [0], [0], [1], [0, 0, 1, 1], [], []>} : vector<99x10xbf16>, vector<10x16xbf16>, vector<99x16xf32> -> vector<99x16xf32>
    %24 = arith.addf %18, %23 : vector<99x16xf32>
    %c0_23 = arith.constant 0 : index
    %c12 = arith.constant 12 : index
    %c0_24 = arith.constant 0 : index
    %25 = vector.load %arg1[%c0_23, %c12, %c0_24] : memref<1x145x10xbf16, #tpu.memory_space<vmem>>, vector<1x99x10xbf16>
    %26 = vector.shape_cast %25 : vector<1x99x10xbf16> to vector<99x10xbf16>
    %c4 = arith.constant 4 : index
    %c0_25 = arith.constant 0 : index
    %c0_26 = arith.constant 0 : index
    %27 = vector.load %arg2[%c4, %c0_25, %c0_26] : memref<9x10x16xbf16, #tpu.memory_space<vmem>>, vector<1x10x16xbf16>
    %28 = vector.shape_cast %27 : vector<1x10x16xbf16> to vector<10x16xbf16>
    %cst_27 = arith.constant dense<0.000000e+00> : vector<99x16xf32>
    %29 = tpu.matmul %26, %28, %cst_27 {dimension_numbers = #tpu.dot_dimension_numbers<[1], [0], [0], [1], [0, 0, 1, 1], [], []>} : vector<99x10xbf16>, vector<10x16xbf16>, vector<99x16xf32> -> vector<99x16xf32>
    %30 = arith.addf %24, %29 : vector<99x16xf32>
    %c0_28 = arith.constant 0 : index
    %c13 = arith.constant 13 : index
    %c0_29 = arith.constant 0 : index
    %31 = vector.load %arg1[%c0_28, %c13, %c0_29] : memref<1x145x10xbf16, #tpu.memory_space<vmem>>, vector<1x99x10xbf16>
    %32 = vector.shape_cast %31 : vector<1x99x10xbf16> to vector<99x10xbf16>
    %c5 = arith.constant 5 : index
    %c0_30 = arith.constant 0 : index
    %c0_31 = arith.constant 0 : index
    %33 = vector.load %arg2[%c5, %c0_30, %c0_31] : memref<9x10x16xbf16, #tpu.memory_space<vmem>>, vector<1x10x16xbf16>
    %34 = vector.shape_cast %33 : vector<1x10x16xbf16> to vector<10x16xbf16>
    %cst_32 = arith.constant dense<0.000000e+00> : vector<99x16xf32>
    %35 = tpu.matmul %32, %34, %cst_32 {dimension_numbers = #tpu.dot_dimension_numbers<[1], [0], [0], [1], [0, 0, 1, 1], [], []>} : vector<99x10xbf16>, vector<10x16xbf16>, vector<99x16xf32> -> vector<99x16xf32>
    %36 = arith.addf %30, %35 : vector<99x16xf32>
    %c0_33 = arith.constant 0 : index
    %c22 = arith.constant 22 : index
    %c0_34 = arith.constant 0 : index
    %37 = vector.load %arg1[%c0_33, %c22, %c0_34] : memref<1x145x10xbf16, #tpu.memory_space<vmem>>, vector<1x99x10xbf16>
    %38 = vector.shape_cast %37 : vector<1x99x10xbf16> to vector<99x10xbf16>
    %c6 = arith.constant 6 : index
    %c0_35 = arith.constant 0 : index
    %c0_36 = arith.constant 0 : index
    %39 = vector.load %arg2[%c6, %c0_35, %c0_36] : memref<9x10x16xbf16, #tpu.memory_space<vmem>>, vector<1x10x16xbf16>
    %40 = vector.shape_cast %39 : vector<1x10x16xbf16> to vector<10x16xbf16>
    %cst_37 = arith.constant dense<0.000000e+00> : vector<99x16xf32>
    %41 = tpu.matmul %38, %40, %cst_37 {dimension_numbers = #tpu.dot_dimension_numbers<[1], [0], [0], [1], [0, 0, 1, 1], [], []>} : vector<99x10xbf16>, vector<10x16xbf16>, vector<99x16xf32> -> vector<99x16xf32>
    %42 = arith.addf %36, %41 : vector<99x16xf32>
    %c0_38 = arith.constant 0 : index
    %c23 = arith.constant 23 : index
    %c0_39 = arith.constant 0 : index
    %43 = vector.load %arg1[%c0_38, %c23, %c0_39] : memref<1x145x10xbf16, #tpu.memory_space<vmem>>, vector<1x99x10xbf16>
    %44 = vector.shape_cast %43 : vector<1x99x10xbf16> to vector<99x10xbf16>
    %c7 = arith.constant 7 : index
    %c0_40 = arith.constant 0 : index
    %c0_41 = arith.constant 0 : index
    %45 = vector.load %arg2[%c7, %c0_40, %c0_41] : memref<9x10x16xbf16, #tpu.memory_space<vmem>>, vector<1x10x16xbf16>
    %46 = vector.shape_cast %45 : vector<1x10x16xbf16> to vector<10x16xbf16>
    %cst_42 = arith.constant dense<0.000000e+00> : vector<99x16xf32>
    %47 = tpu.matmul %44, %46, %cst_42 {dimension_numbers = #tpu.dot_dimension_numbers<[1], [0], [0], [1], [0, 0, 1, 1], [], []>} : vector<99x10xbf16>, vector<10x16xbf16>, vector<99x16xf32> -> vector<99x16xf32>
    %48 = arith.addf %42, %47 : vector<99x16xf32>
    %c0_43 = arith.constant 0 : index
    %c24 = arith.constant 24 : index
    %c0_44 = arith.constant 0 : index
    %49 = vector.load %arg1[%c0_43, %c24, %c0_44] : memref<1x145x10xbf16, #tpu.memory_space<vmem>>, vector<1x99x10xbf16>
    %50 = vector.shape_cast %49 : vector<1x99x10xbf16> to vector<99x10xbf16>
    %c8 = arith.constant 8 : index
    %c0_45 = arith.constant 0 : index
    %c0_46 = arith.constant 0 : index
    %51 = vector.load %arg2[%c8, %c0_45, %c0_46] : memref<9x10x16xbf16, #tpu.memory_space<vmem>>, vector<1x10x16xbf16>
    %52 = vector.shape_cast %51 : vector<1x10x16xbf16> to vector<10x16xbf16>
    %cst_47 = arith.constant dense<0.000000e+00> : vector<99x16xf32>
    %53 = tpu.matmul %50, %52, %cst_47 {dimension_numbers = #tpu.dot_dimension_numbers<[1], [0], [0], [1], [0, 0, 1, 1], [], []>} : vector<99x10xbf16>, vector<10x16xbf16>, vector<99x16xf32> -> vector<99x16xf32>
    %54 = arith.addf %48, %53 : vector<99x16xf32>
    %c0_48 = arith.constant 0 : index
    %c0_49 = arith.constant 0 : index
    %55 = vector.load %arg3[%c0_48, %c0_49] : memref<1x16xf32, #tpu.memory_space<vmem>>, vector<1x16xf32>
    %56 = vector.broadcast %55 : vector<1x16xf32> to vector<99x16xf32>
    %57 = arith.addf %54, %56 : vector<99x16xf32>
    %cst_50 = arith.constant 0.000000e+00 : f32
    %cst_51 = arith.constant 6.000000e+00 : f32
    %58 = vector.broadcast %cst_50 : f32 to vector<99x16xf32>
    %59 = arith.maximumf %58, %57 : vector<99x16xf32>
    %60 = vector.broadcast %cst_51 : f32 to vector<99x16xf32>
    %61 = arith.minimumf %60, %59 : vector<99x16xf32>
    %cst_52 = arith.constant 4.250000e+01 : f32
    %62 = vector.broadcast %cst_52 : f32 to vector<99x16xf32>
    %63 = arith.mulf %61, %62 : vector<99x16xf32>
    %64 = math.roundeven %63 : vector<99x16xf32>
    %cst_53 = arith.constant 0.0235294122 : f32
    %65 = vector.broadcast %cst_53 : f32 to vector<99x16xf32>
    %66 = arith.mulf %64, %65 : vector<99x16xf32>
    %67 = arith.truncf %66 : vector<99x16xf32> to vector<99x16xbf16>
    %c0_54 = arith.constant 0 : index
    %c0_55 = arith.constant 0 : index
    %c0_56 = arith.constant 0 : index
    %68 = vector.load %arg4[%c0_54, %c0_55, %c0_56] : memref<1x99x16xbf16, #tpu.memory_space<vmem>>, vector<1x99x16xbf16>
    %69 = vector.shape_cast %68 : vector<1x99x16xbf16> to vector<99x16xbf16>
    %70 = vector.shape_cast %67 : vector<99x16xbf16> to vector<1x99x16xbf16>
    tpu.vector_store %arg4[%c0_54, %c0_55, %c0_56], %70 {strides = array<i32>} : memref<1x99x16xbf16, #tpu.memory_space<vmem>>, vector<1x99x16xbf16>,
    return
  }
  func.func @transform_0(%arg0: i32) -> (i32, i32, i32) {
    %c0_i32 = arith.constant 0 : i32
    %c0_i32_0 = arith.constant 0 : i32
    %c0_i32_1 = arith.constant 0 : i32
    return %arg0, %c0_i32, %c0_i32_0 : i32, i32, i32
  }
  func.func @transform_1(%arg0: i32) -> (i32, i32, i32) {
    %c0_i32 = arith.constant 0 : i32
    %c0_i32_0 = arith.constant 0 : i32
    %c0_i32_1 = arith.constant 0 : i32
    %c0_i32_2 = arith.constant 0 : i32
    return %c0_i32, %c0_i32_0, %c0_i32_1 : i32, i32, i32
  }
  func.func @transform_2(%arg0: i32) -> (i32, i32) {
    %c0_i32 = arith.constant 0 : i32
    %c0_i32_0 = arith.constant 0 : i32
    %c0_i32_1 = arith.constant 0 : i32
    return %c0_i32, %c0_i32_0 : i32, i32
  }
  func.func @transform_3(%arg0: i32) -> (i32, i32, i32) {
    %c0_i32 = arith.constant 0 : i32
    %c0_i32_0 = arith.constant 0 : i32
    %c0_i32_1 = arith.constant 0 : i32
    return %arg0, %c0_i32, %c0_i32_0 : i32, i32, i32
  }
}

module attributes {stable_mosaic.version = 11 : i64} {
  func.func @_conv_tap_relu6_kernel(%arg0: i32, %arg1: memref<1x101x16xbf16, #tpu.memory_space<vmem>>, %arg2: memref<9x16x32xbf16, #tpu.memory_space<vmem>>, %arg3: memref<1x32xf32, #tpu.memory_space<vmem>>, %arg4: memref<1x63x32xbf16, #tpu.memory_space<vmem>>) attributes {dimension_semantics = [#tpu.dimension_semantics<parallel>], iteration_bounds = array<i64: 2>, scalar_prefetch = 0 : i64, scratch_operands = 0 : i64, tpu.core_type = #tpu.core_type<tc>, window_params = [{transform_indices = @transform_0, window_bounds = array<i64: 1, 101, 16>}, {pipeline_mode = #tpu.pipeline_mode<synchronous>, transform_indices = @transform_1, window_bounds = array<i64: 9, 16, 32>}, {pipeline_mode = #tpu.pipeline_mode<synchronous>, transform_indices = @transform_2, window_bounds = array<i64: 1, 32>}, {transform_indices = @transform_3, window_bounds = array<i64: 1, 63, 32>}]} {
    %cst = arith.constant 0.000000e+00 : f32
    %0 = vector.broadcast %cst : f32 to vector<63x32xf32>
    %c0 = arith.constant 0 : index
    %c0_0 = arith.constant 0 : index
    %c0_1 = arith.constant 0 : index
    %1 = vector.load %arg1[%c0, %c0_0, %c0_1] : memref<1x101x16xbf16, #tpu.memory_space<vmem>>, vector<1x63x16xbf16>
    %2 = vector.shape_cast %1 : vector<1x63x16xbf16> to vector<63x16xbf16>
    %c0_2 = arith.constant 0 : index
    %c0_3 = arith.constant 0 : index
    %c0_4 = arith.constant 0 : index
    %3 = vector.load %arg2[%c0_2, %c0_3, %c0_4] : memref<9x16x32xbf16, #tpu.memory_space<vmem>>, vector<1x16x32xbf16>
    %4 = vector.shape_cast %3 : vector<1x16x32xbf16> to vector<16x32xbf16>
    %cst_5 = arith.constant dense<0.000000e+00> : vector<63x32xf32>
    %5 = tpu.matmul %2, %4, %cst_5 {dimension_numbers = #tpu.dot_dimension_numbers<[1], [0], [0], [1], [0, 0, 1, 1], [], []>} : vector<63x16xbf16>, vector<16x32xbf16>, vector<63x32xf32> -> vector<63x32xf32>
    %6 = arith.addf %0, %5 : vector<63x32xf32>
    %c0_6 = arith.constant 0 : index
    %c1 = arith.constant 1 : index
    %c0_7 = arith.constant 0 : index
    %7 = vector.load %arg1[%c0_6, %c1, %c0_7] : memref<1x101x16xbf16, #tpu.memory_space<vmem>>, vector<1x63x16xbf16>
    %8 = vector.shape_cast %7 : vector<1x63x16xbf16> to vector<63x16xbf16>
    %c1_8 = arith.constant 1 : index
    %c0_9 = arith.constant 0 : index
    %c0_10 = arith.constant 0 : index
    %9 = vector.load %arg2[%c1_8, %c0_9, %c0_10] : memref<9x16x32xbf16, #tpu.memory_space<vmem>>, vector<1x16x32xbf16>
    %10 = vector.shape_cast %9 : vector<1x16x32xbf16> to vector<16x32xbf16>
    %cst_11 = arith.constant dense<0.000000e+00> : vector<63x32xf32>
    %11 = tpu.matmul %8, %10, %cst_11 {dimension_numbers = #tpu.dot_dimension_numbers<[1], [0], [0], [1], [0, 0, 1, 1], [], []>} : vector<63x16xbf16>, vector<16x32xbf16>, vector<63x32xf32> -> vector<63x32xf32>
    %12 = arith.addf %6, %11 : vector<63x32xf32>
    %c0_12 = arith.constant 0 : index
    %c2 = arith.constant 2 : index
    %c0_13 = arith.constant 0 : index
    %13 = vector.load %arg1[%c0_12, %c2, %c0_13] : memref<1x101x16xbf16, #tpu.memory_space<vmem>>, vector<1x63x16xbf16>
    %14 = vector.shape_cast %13 : vector<1x63x16xbf16> to vector<63x16xbf16>
    %c2_14 = arith.constant 2 : index
    %c0_15 = arith.constant 0 : index
    %c0_16 = arith.constant 0 : index
    %15 = vector.load %arg2[%c2_14, %c0_15, %c0_16] : memref<9x16x32xbf16, #tpu.memory_space<vmem>>, vector<1x16x32xbf16>
    %16 = vector.shape_cast %15 : vector<1x16x32xbf16> to vector<16x32xbf16>
    %cst_17 = arith.constant dense<0.000000e+00> : vector<63x32xf32>
    %17 = tpu.matmul %14, %16, %cst_17 {dimension_numbers = #tpu.dot_dimension_numbers<[1], [0], [0], [1], [0, 0, 1, 1], [], []>} : vector<63x16xbf16>, vector<16x32xbf16>, vector<63x32xf32> -> vector<63x32xf32>
    %18 = arith.addf %12, %17 : vector<63x32xf32>
    %c0_18 = arith.constant 0 : index
    %c9 = arith.constant 9 : index
    %c0_19 = arith.constant 0 : index
    %19 = vector.load %arg1[%c0_18, %c9, %c0_19] : memref<1x101x16xbf16, #tpu.memory_space<vmem>>, vector<1x63x16xbf16>
    %20 = vector.shape_cast %19 : vector<1x63x16xbf16> to vector<63x16xbf16>
    %c3 = arith.constant 3 : index
    %c0_20 = arith.constant 0 : index
    %c0_21 = arith.constant 0 : index
    %21 = vector.load %arg2[%c3, %c0_20, %c0_21] : memref<9x16x32xbf16, #tpu.memory_space<vmem>>, vector<1x16x32xbf16>
    %22 = vector.shape_cast %21 : vector<1x16x32xbf16> to vector<16x32xbf16>
    %cst_22 = arith.constant dense<0.000000e+00> : vector<63x32xf32>
    %23 = tpu.matmul %20, %22, %cst_22 {dimension_numbers = #tpu.dot_dimension_numbers<[1], [0], [0], [1], [0, 0, 1, 1], [], []>} : vector<63x16xbf16>, vector<16x32xbf16>, vector<63x32xf32> -> vector<63x32xf32>
    %24 = arith.addf %18, %23 : vector<63x32xf32>
    %c0_23 = arith.constant 0 : index
    %c10 = arith.constant 10 : index
    %c0_24 = arith.constant 0 : index
    %25 = vector.load %arg1[%c0_23, %c10, %c0_24] : memref<1x101x16xbf16, #tpu.memory_space<vmem>>, vector<1x63x16xbf16>
    %26 = vector.shape_cast %25 : vector<1x63x16xbf16> to vector<63x16xbf16>
    %c4 = arith.constant 4 : index
    %c0_25 = arith.constant 0 : index
    %c0_26 = arith.constant 0 : index
    %27 = vector.load %arg2[%c4, %c0_25, %c0_26] : memref<9x16x32xbf16, #tpu.memory_space<vmem>>, vector<1x16x32xbf16>
    %28 = vector.shape_cast %27 : vector<1x16x32xbf16> to vector<16x32xbf16>
    %cst_27 = arith.constant dense<0.000000e+00> : vector<63x32xf32>
    %29 = tpu.matmul %26, %28, %cst_27 {dimension_numbers = #tpu.dot_dimension_numbers<[1], [0], [0], [1], [0, 0, 1, 1], [], []>} : vector<63x16xbf16>, vector<16x32xbf16>, vector<63x32xf32> -> vector<63x32xf32>
    %30 = arith.addf %24, %29 : vector<63x32xf32>
    %c0_28 = arith.constant 0 : index
    %c11 = arith.constant 11 : index
    %c0_29 = arith.constant 0 : index
    %31 = vector.load %arg1[%c0_28, %c11, %c0_29] : memref<1x101x16xbf16, #tpu.memory_space<vmem>>, vector<1x63x16xbf16>
    %32 = vector.shape_cast %31 : vector<1x63x16xbf16> to vector<63x16xbf16>
    %c5 = arith.constant 5 : index
    %c0_30 = arith.constant 0 : index
    %c0_31 = arith.constant 0 : index
    %33 = vector.load %arg2[%c5, %c0_30, %c0_31] : memref<9x16x32xbf16, #tpu.memory_space<vmem>>, vector<1x16x32xbf16>
    %34 = vector.shape_cast %33 : vector<1x16x32xbf16> to vector<16x32xbf16>
    %cst_32 = arith.constant dense<0.000000e+00> : vector<63x32xf32>
    %35 = tpu.matmul %32, %34, %cst_32 {dimension_numbers = #tpu.dot_dimension_numbers<[1], [0], [0], [1], [0, 0, 1, 1], [], []>} : vector<63x16xbf16>, vector<16x32xbf16>, vector<63x32xf32> -> vector<63x32xf32>
    %36 = arith.addf %30, %35 : vector<63x32xf32>
    %c0_33 = arith.constant 0 : index
    %c18 = arith.constant 18 : index
    %c0_34 = arith.constant 0 : index
    %37 = vector.load %arg1[%c0_33, %c18, %c0_34] : memref<1x101x16xbf16, #tpu.memory_space<vmem>>, vector<1x63x16xbf16>
    %38 = vector.shape_cast %37 : vector<1x63x16xbf16> to vector<63x16xbf16>
    %c6 = arith.constant 6 : index
    %c0_35 = arith.constant 0 : index
    %c0_36 = arith.constant 0 : index
    %39 = vector.load %arg2[%c6, %c0_35, %c0_36] : memref<9x16x32xbf16, #tpu.memory_space<vmem>>, vector<1x16x32xbf16>
    %40 = vector.shape_cast %39 : vector<1x16x32xbf16> to vector<16x32xbf16>
    %cst_37 = arith.constant dense<0.000000e+00> : vector<63x32xf32>
    %41 = tpu.matmul %38, %40, %cst_37 {dimension_numbers = #tpu.dot_dimension_numbers<[1], [0], [0], [1], [0, 0, 1, 1], [], []>} : vector<63x16xbf16>, vector<16x32xbf16>, vector<63x32xf32> -> vector<63x32xf32>
    %42 = arith.addf %36, %41 : vector<63x32xf32>
    %c0_38 = arith.constant 0 : index
    %c19 = arith.constant 19 : index
    %c0_39 = arith.constant 0 : index
    %43 = vector.load %arg1[%c0_38, %c19, %c0_39] : memref<1x101x16xbf16, #tpu.memory_space<vmem>>, vector<1x63x16xbf16>
    %44 = vector.shape_cast %43 : vector<1x63x16xbf16> to vector<63x16xbf16>
    %c7 = arith.constant 7 : index
    %c0_40 = arith.constant 0 : index
    %c0_41 = arith.constant 0 : index
    %45 = vector.load %arg2[%c7, %c0_40, %c0_41] : memref<9x16x32xbf16, #tpu.memory_space<vmem>>, vector<1x16x32xbf16>
    %46 = vector.shape_cast %45 : vector<1x16x32xbf16> to vector<16x32xbf16>
    %cst_42 = arith.constant dense<0.000000e+00> : vector<63x32xf32>
    %47 = tpu.matmul %44, %46, %cst_42 {dimension_numbers = #tpu.dot_dimension_numbers<[1], [0], [0], [1], [0, 0, 1, 1], [], []>} : vector<63x16xbf16>, vector<16x32xbf16>, vector<63x32xf32> -> vector<63x32xf32>
    %48 = arith.addf %42, %47 : vector<63x32xf32>
    %c0_43 = arith.constant 0 : index
    %c20 = arith.constant 20 : index
    %c0_44 = arith.constant 0 : index
    %49 = vector.load %arg1[%c0_43, %c20, %c0_44] : memref<1x101x16xbf16, #tpu.memory_space<vmem>>, vector<1x63x16xbf16>
    %50 = vector.shape_cast %49 : vector<1x63x16xbf16> to vector<63x16xbf16>
    %c8 = arith.constant 8 : index
    %c0_45 = arith.constant 0 : index
    %c0_46 = arith.constant 0 : index
    %51 = vector.load %arg2[%c8, %c0_45, %c0_46] : memref<9x16x32xbf16, #tpu.memory_space<vmem>>, vector<1x16x32xbf16>
    %52 = vector.shape_cast %51 : vector<1x16x32xbf16> to vector<16x32xbf16>
    %cst_47 = arith.constant dense<0.000000e+00> : vector<63x32xf32>
    %53 = tpu.matmul %50, %52, %cst_47 {dimension_numbers = #tpu.dot_dimension_numbers<[1], [0], [0], [1], [0, 0, 1, 1], [], []>} : vector<63x16xbf16>, vector<16x32xbf16>, vector<63x32xf32> -> vector<63x32xf32>
    %54 = arith.addf %48, %53 : vector<63x32xf32>
    %c0_48 = arith.constant 0 : index
    %c0_49 = arith.constant 0 : index
    %55 = vector.load %arg3[%c0_48, %c0_49] : memref<1x32xf32, #tpu.memory_space<vmem>>, vector<1x32xf32>
    %56 = vector.broadcast %55 : vector<1x32xf32> to vector<63x32xf32>
    %57 = arith.addf %54, %56 : vector<63x32xf32>
    %cst_50 = arith.constant 0.000000e+00 : f32
    %cst_51 = arith.constant 6.000000e+00 : f32
    %58 = vector.broadcast %cst_50 : f32 to vector<63x32xf32>
    %59 = arith.maximumf %58, %57 : vector<63x32xf32>
    %60 = vector.broadcast %cst_51 : f32 to vector<63x32xf32>
    %61 = arith.minimumf %60, %59 : vector<63x32xf32>
    %cst_52 = arith.constant 4.250000e+01 : f32
    %62 = vector.broadcast %cst_52 : f32 to vector<63x32xf32>
    %63 = arith.mulf %61, %62 : vector<63x32xf32>
    %64 = math.roundeven %63 : vector<63x32xf32>
    %cst_53 = arith.constant 0.0235294122 : f32
    %65 = vector.broadcast %cst_53 : f32 to vector<63x32xf32>
    %66 = arith.mulf %64, %65 : vector<63x32xf32>
    %67 = arith.truncf %66 : vector<63x32xf32> to vector<63x32xbf16>
    %c0_54 = arith.constant 0 : index
    %c0_55 = arith.constant 0 : index
    %c0_56 = arith.constant 0 : index
    %68 = vector.load %arg4[%c0_54, %c0_55, %c0_56] : memref<1x63x32xbf16, #tpu.memory_space<vmem>>, vector<1x63x32xbf16>
    %69 = vector.shape_cast %68 : vector<1x63x32xbf16> to vector<63x32xbf16>
    %70 = vector.shape_cast %67 : vector<63x32xbf16> to vector<1x63x32xbf16>
    tpu.vector_store %arg4[%c0_54, %c0_55, %c0_56], %70 {strides = array<i32>} : memref<1x63x32xbf16, #tpu.memory_space<vmem>>, vector<1x63x32xbf16>,
    return
  }
  func.func @transform_0(%arg0: i32) -> (i32, i32, i32) {
    %c0_i32 = arith.constant 0 : i32
    %c0_i32_0 = arith.constant 0 : i32
    %c0_i32_1 = arith.constant 0 : i32
    return %arg0, %c0_i32, %c0_i32_0 : i32, i32, i32
  }
  func.func @transform_1(%arg0: i32) -> (i32, i32, i32) {
    %c0_i32 = arith.constant 0 : i32
    %c0_i32_0 = arith.constant 0 : i32
    %c0_i32_1 = arith.constant 0 : i32
    %c0_i32_2 = arith.constant 0 : i32
    return %c0_i32, %c0_i32_0, %c0_i32_1 : i32, i32, i32
  }
  func.func @transform_2(%arg0: i32) -> (i32, i32) {
    %c0_i32 = arith.constant 0 : i32
    %c0_i32_0 = arith.constant 0 : i32
    %c0_i32_1 = arith.constant 0 : i32
    return %c0_i32, %c0_i32_0 : i32, i32
  }
  func.func @transform_3(%arg0: i32) -> (i32, i32, i32) {
    %c0_i32 = arith.constant 0 : i32
    %c0_i32_0 = arith.constant 0 : i32
    %c0_i32_1 = arith.constant 0 : i32
    return %arg0, %c0_i32, %c0_i32_0 : i32, i32, i32
  }
}

module attributes {stable_mosaic.version = 11 : i64} {
  func.func @_head_matmul_kernel(%arg0: i32, %arg1: memref<104x32xbf16, #tpu.memory_space<vmem>>, %arg2: memref<32x128xbf16, #tpu.memory_space<vmem>>, %arg3: memref<1x128xf32, #tpu.memory_space<vmem>>, %arg4: memref<104x128xf32, #tpu.memory_space<vmem>>) attributes {dimension_semantics = [#tpu.dimension_semantics<parallel>], iteration_bounds = array<i64: 1>, scalar_prefetch = 0 : i64, scratch_operands = 0 : i64, tpu.core_type = #tpu.core_type<tc>, window_params = [{transform_indices = @transform_0, window_bounds = array<i64: 104, 32>}, {pipeline_mode = #tpu.pipeline_mode<synchronous>, transform_indices = @transform_1, window_bounds = array<i64: 32, 128>}, {pipeline_mode = #tpu.pipeline_mode<synchronous>, transform_indices = @transform_2, window_bounds = array<i64: 1, 128>}, {transform_indices = @transform_3, window_bounds = array<i64: 104, 128>}]} {
    %c0 = arith.constant 0 : index
    %c0_0 = arith.constant 0 : index
    %0 = vector.load %arg1[%c0, %c0_0] : memref<104x32xbf16, #tpu.memory_space<vmem>>, vector<104x32xbf16>
    %c0_1 = arith.constant 0 : index
    %c0_2 = arith.constant 0 : index
    %1 = vector.load %arg2[%c0_1, %c0_2] : memref<32x128xbf16, #tpu.memory_space<vmem>>, vector<32x128xbf16>
    %cst = arith.constant dense<0.000000e+00> : vector<104x128xf32>
    %2 = tpu.matmul %0, %1, %cst {dimension_numbers = #tpu.dot_dimension_numbers<[1], [0], [0], [1], [0, 0, 1, 1], [], []>} : vector<104x32xbf16>, vector<32x128xbf16>, vector<104x128xf32> -> vector<104x128xf32>
    %c0_3 = arith.constant 0 : index
    %c0_4 = arith.constant 0 : index
    %3 = vector.load %arg3[%c0_3, %c0_4] : memref<1x128xf32, #tpu.memory_space<vmem>>, vector<1x128xf32>
    %4 = vector.broadcast %3 : vector<1x128xf32> to vector<104x128xf32>
    %5 = arith.addf %2, %4 : vector<104x128xf32>
    %c0_5 = arith.constant 0 : index
    %c0_6 = arith.constant 0 : index
    %6 = vector.load %arg4[%c0_5, %c0_6] : memref<104x128xf32, #tpu.memory_space<vmem>>, vector<104x128xf32>
    tpu.vector_store %arg4[%c0_5, %c0_6], %5 {strides = array<i32>} : memref<104x128xf32, #tpu.memory_space<vmem>>, vector<104x128xf32>,
    return
  }
  func.func @transform_0(%arg0: i32) -> (i32, i32) {
    %c0_i32 = arith.constant 0 : i32
    %c0_i32_0 = arith.constant 0 : i32
    return %arg0, %c0_i32 : i32, i32
  }
  func.func @transform_1(%arg0: i32) -> (i32, i32) {
    %c0_i32 = arith.constant 0 : i32
    %c0_i32_0 = arith.constant 0 : i32
    %c0_i32_1 = arith.constant 0 : i32
    return %c0_i32, %c0_i32_0 : i32, i32
  }
  func.func @transform_2(%arg0: i32) -> (i32, i32) {
    %c0_i32 = arith.constant 0 : i32
    %c0_i32_0 = arith.constant 0 : i32
    %c0_i32_1 = arith.constant 0 : i32
    return %c0_i32, %c0_i32_0 : i32, i32
  }
  func.func @transform_3(%arg0: i32) -> (i32, i32) {
    %c0_i32 = arith.constant 0 : i32
    %c0_i32_0 = arith.constant 0 : i32
    return %arg0, %c0_i32 : i32, i32
  }
}

</mosaic_0001>

<llo_original>
// kernel: pnet_forward.5
$region0: #{pnet_forward.5}
  #allocation0 [shape = 'u32[]', space=smem, size = 0x4, offset = 0x4, fixed_abs, tag = 'smem constant byte address 0x4 - core index']
  #allocation1 [shape = 'u32[72,128]{1,0:T(1,128)}', space=vmem, size = 0x9000, scoped, tag = 'internal scratch']
  %s0 = inlined_call_operand.vmem [shape: bf16[2,145,10], index: 0, kind: input, shape index: {}]
  %s1 = inlined_call_operand.vmem [shape: bf16[9,10,16], index: 1, kind: input, shape index: {}]
  %s2 = inlined_call_operand.vmem [shape: f32[1,16], index: 2, kind: input, shape index: {}]
  %s3 = inlined_call_operand.vmem [shape: bf16[2,99,16], index: 3, kind: output, shape index: {}]
  %s4 = sld [smem:[#allocation0]]
  $region45: #{pnet_forward.5} parent=0
    _
  %s6 = ssub.s32 1, %s4
  %s7 = scalar_select 0, %s6, %s4
  loop: start=0, step=1, limit=4
  $region2: #{pnet_forward.5} parent=0 // loop_pre_header
    _
  $region3: #{pnet_forward.5} parent=0 // loop_header
    %s9 = sphi 0, %s13
    %p10 = scmp.ge.s32.totalorder %s9, 4
    %s19 = sphi 0, %s21
    %s22 = sphi 0, %s19
    %s23 = sphi 0, %s22
    %s39 = sphi 0, %s23
    %s43 = sphi 0, %s43
    %s45 = sphi 0, %s43
    %s46 = sphi 0, %s45
    %s60 = sphi 0, %s46
    %s64 = sphi 0, %s64
    %s66 = sphi 0, %s64
    %s67 = sphi 0, %s66
    %s81 = sphi 0, %s67
    %s87 = sphi 0, %s89
    %s90 = sphi 0, %s87
    %s91 = sphi 0, %s90
    %s107 = sphi 0, %s91
  $region4: #{pnet_forward.5} parent=0 // loop_header_branch
    %12 = sbr.rel (%p10) target = $region8
  $region5: #{pnet_forward.5} parent=0 // loop_body
    %s14 = ssub.s32 %s9, 1
    %s15 = ssub.s32 %s9, 2
    %s16 = sadd.s32 %s9, 1
    %s17 = ssub.s32 %s9, %s16
    %p18 = scmp.eq.s32.totalorder %s17, 0
    %s20 = sadd.s32 %s19, 1
    %s21 = scalar_select %p18, %s19, %s20
    %p24 = pneg %p18
    %p25 = scmp.eq.s32.totalorder %s9, 1
    %p26 = por %p24, %p25
    %p27 = scmp.ne.s32.totalorder %s19, %s22
    %p28 = scmp.eq.s32.totalorder %s9, 0
    %p29 = por %p27, %p28
    %p30 = scmp.ne.s32.totalorder %s19, %s22
    %p31 = scmp.eq.s32.totalorder %s14, 1
    %p32 = por %p30, %p31
    %p33 = scmp.ne.s32.totalorder %s22, %s23
    %p34 = scmp.eq.s32.totalorder %s14, 0
    %p35 = por %p33, %p34
    %p36 = scmp.ne.s32.totalorder %s22, %s23
    %p37 = scmp.eq.s32.totalorder %s15, 1
    %p38 = por %p36, %p37
    %p40 = scmp.ne.s32.totalorder %s23, %s39
    %p41 = scmp.eq.s32.totalorder %s15, 0
    %p42 = por %p40, %p41
    %s44 = sadd.s32 %s43, 1
    %p47 = scmp.eq.s32.totalorder %s9, 1
    %p48 = scmp.ne.s32.totalorder %s43, %s45
    %p49 = scmp.eq.s32.totalorder %s9, 0
    %p50 = por %p48, %p49
    %p51 = scmp.ne.s32.totalorder %s43, %s45
    %p52 = scmp.eq.s32.totalorder %s14, 1
    %p53 = por %p51, %p52
    %p54 = scmp.ne.s32.totalorder %s45, %s46
    %p55 = scmp.eq.s32.totalorder %s14, 0
    %p56 = por %p54, %p55
    %p57 = scmp.ne.s32.totalorder %s45, %s46
    %p58 = scmp.eq.s32.totalorder %s15, 1
    %p59 = por %p57, %p58
    %p61 = scmp.ne.s32.totalorder %s46, %s60
    %p62 = scmp.eq.s32.totalorder %s15, 0
    %p63 = por %p61, %p62
    %s65 = sadd.s32 %s64, 1
    %p68 = scmp.eq.s32.totalorder %s9, 1
    %p69 = scmp.ne.s32.totalorder %s64, %s66
    %p70 = scmp.eq.s32.totalorder %s9, 0
    %p71 = por %p69, %p70
    %p72 = scmp.ne.s32.totalorder %s64, %s66
    %p73 = scmp.eq.s32.totalorder %s14, 1
    %p74 = por %p72, %p73
    %p75 = scmp.ne.s32.totalorder %s66, %s67
    %p76 = scmp.eq.s32.totalorder %s14, 0
    %p77 = por %p75, %p76
    %p78 = scmp.ne.s32.totalorder %s66, %s67
    %p79 = scmp.eq.s32.totalorder %s15, 1
    %p80 = por %p78, %p79
    %p82 = scmp.ne.s32.totalorder %s67, %s81
    %p83 = scmp.eq.s32.totalorder %s15, 0
    %p84 = por %p82, %p83
    %s85 = ssub.s32 %s9, %s16
    %p86 = scmp.eq.s32.totalorder %s85, 0
    %s88 = sadd.s32 %s87, 1
    %s89 = scalar_select %p86, %s87, %s88
    %p92 = pneg %p86
    %p93 = scmp.eq.s32.totalorder %s9, 1
    %p94 = por %p92, %p93
    %p95 = scmp.ne.s32.totalorder %s87, %s90
    %p96 = scmp.eq.s32.totalorder %s9, 0
    %p97 = por %p95, %p96
    %p98 = scmp.ne.s32.totalorder %s87, %s90
    %p99 = scmp.eq.s32.totalorder %s14, 1
    %p100 = por %p98, %p99
    %p101 = scmp.ne.s32.totalorder %s90, %s91
    %p102 = scmp.eq.s32.totalorder %s14, 0
    %p103 = por %p101, %p102
    %p104 = scmp.ne.s32.totalorder %s90, %s91
    %p105 = scmp.eq.s32.totalorder %s15, 1
    %p106 = por %p104, %p105
    %p108 = scmp.ne.s32.totalorder %s91, %s107
    %p109 = scmp.eq.s32.totalorder %s15, 0
    %p110 = por %p108, %p109
    %p111 = scmp.le.s32.totalorder 1, %s9
    %p112 = scmp.lt.s32.totalorder %s9, 3
    %p113 = pnand %p111, %p112
    %p114 = pneg %p113
    // Predicated region
    $region9: #{pnet_forward.5} parent=5 // pred_check
      _
    $region10: #{pnet_forward.5} parent=5 // pred_check_branch
      %116 = sbr.rel (%p113) target = $region12
    $region11: #{pnet_forward.5} parent=5 // pred_region
      %s117 = ssub.s32 %s9, 1
      // Predicated region
      $region13: #{pnet_forward.5} parent=11 // pred_check
        %p118 = pneg %p56
      $region14: #{pnet_forward.5} parent=11 // pred_check_branch
        %120 = sbr.rel (%p118) target = $region16
      $region15: #{pnet_forward.5} parent=11 // pred_region
        _
      $region16: #{pnet_forward.5} parent=11 // pred_fallthru
        _
      // Predicated region
      $region17: #{pnet_forward.5} parent=11 // pred_check
        %p121 = pneg %p77
      $region18: #{pnet_forward.5} parent=11 // pred_check_branch
        %123 = sbr.rel (%p121) target = $region20
      $region19: #{pnet_forward.5} parent=11 // pred_region
        _
      $region20: #{pnet_forward.5} parent=11 // pred_fallthru
        _
    $region12: #{pnet_forward.5} parent=5 // pred_fallthru
      _
    %p124 = scmp.lt.s32.totalorder %s9, 2
    // Predicated region
    $region21: #{pnet_forward.5} parent=5 // pred_check
      %p125 = pneg %p124
    $region22: #{pnet_forward.5} parent=5 // pred_check_branch
      %127 = sbr.rel (%p125) target = $region24
    $region23: #{pnet_forward.5} parent=5 // pred_region
      // Predicated region
      $region25: #{pnet_forward.5} parent=23 // pred_check
        %p128 = pneg %p29
      $region26: #{pnet_forward.5} parent=23 // pred_check_branch
        %130 = sbr.rel (%p128) target = $region28
      $region27: #{pnet_forward.5} parent=23 // pred_region
        %p131 = scmp.lt.s32.totalorder %s9, 1
        %s132 = scalar_select %p131, %s9, 1
        %s133 = smul.addr %s132, 19
        %s134 = smul.addr %s133, 4
        %s135 = scalar_lea.vmem %s0, %s134
      $region28: #{pnet_forward.5} parent=23 // pred_fallthru
        _
    $region24: #{pnet_forward.5} parent=5 // pred_fallthru
      _
    %p136 = scmp.le.s32.totalorder 1, %s9
    %p137 = scmp.lt.s32.totalorder %s9, 3
    %p138 = pnand %p136, %p137
    %p139 = pneg %p138
    // Predicated region
    $region29: #{pnet_forward.5} parent=5 // pred_check
      _
    $region30: #{pnet_forward.5} parent=5 // pred_check_branch
      %141 = sbr.rel (%p138) target = $region32
    $region31: #{pnet_forward.5} parent=5 // pred_region
      %s142 = ssub.s32 %s9, 1
      %p143 = scmp.lt.s32.totalorder %s14, 1
      %s144 = scalar_select %p143, %s14, 1
      %s145 = smul.addr %s144, 19
      %s146 = smul.addr %s145, 4
      %s147 = scalar_lea.vmem %s0, %s146
      %p148 = pneg %p35
      %p149 = pneg %p32
      %p150 = pneg %p56
      %p151 = pneg %p53
      %p152 = pneg %p77
      %p153 = pneg %p74
      %p154 = pneg %p103
      %p155 = pneg %p100
      %p156 = scmp.lt.s32.totalorder %s14, 1
      %s157 = scalar_select %p156, %s14, 1
      %s158 = smul.addr %s157, 13
      %s159 = smul.addr %s158, 4
      %s160 = scalar_lea.vmem %s3, %s159
      %p161 = scmp.lt.s32.totalorder %s14, 1
      %s162 = scalar_select %p161, %s14, 1
      %s163 = smul.addr %s162, 19
      %s164 = smul.addr %s163, 4
      %s165 = scalar_lea.vmem %s0, %s164
      %p166 = scmp.lt.s32.totalorder %s14, 1
      %s167 = scalar_select %p166, %s14, 1
      %s168 = smul.addr %s167, 13
      %s169 = smul.addr %s168, 4
      %s170 = scalar_lea.vmem %s3, %s169
      %v172 = vld [vmem:[%s165] sm:$0xf]
      %v173 = vld [vmem:[%s165 + $0x4] sm:$0xf]
      %v174 = vld [vmem:[%s165 + $0x8] sm:$0xf]
      %v175 = vld [vmem:[%s165 + $0xc] sm:$0xf]
      %v176 = vld [vmem:[%s165 + $0x10] sm:$0xf]
      %v177 = vld [vmem:[%s165 + $0x14] sm:$0xf]
      %v178 = vld [vmem:[%s165 + $0x18] sm:$0xf]
      %v179 = vld [vmem:[%s165 + $0x1c] sm:$0xf]
      %v180 = vld [vmem:[%s165 + $0x20] sm:$0xf]
      %v181 = vld [vmem:[%s165 + $0x24] sm:$0xf]
      %v182 = vld [vmem:[%s165 + $0x28] sm:$0xf]
      %v183 = vld [vmem:[%s165 + $0x2c] sm:$0xf]
      %v184 = vld [vmem:[%s165 + $0x30] sm:$0x3]
      %v185 = vld [vmem:[%s1] sm:$0xf]
      %v186 = vld [vmem:[%s1 + $0x4] sm:$0x1]
      %s187 = scalar_lea.vmem %s1, 8
      %v188 = vld [vmem:[%s187] sm:$0xf]
      %v189 = vld [vmem:[%s187 + $0x4] sm:$0x1]
      %v203 = vunpack.c.l.b16 %v172
      %v204 = vunpack.c.l.b16 %v173
      %v205 = vunpack.c.l.b16 %v174
      %v206 = vunpack.c.l.b16 %v175
      %v207 = vunpack.c.l.b16 %v176
      %v208 = vunpack.c.l.b16 %v177
      %v209 = vunpack.c.l.b16 %v178
      %v210 = vunpack.c.l.b16 %v179
      %v211 = vunpack.c.l.b16 %v180
      %v212 = vunpack.c.l.b16 %v181
      %v213 = vunpack.c.l.b16 %v182
      %v214 = vunpack.c.l.b16 %v183
      %v215 = vunpack.c.l.b16 %v184
      %v216 = vpack.c.b16 %v204, %v203
      %v217 = vpack.c.b16 %v206, %v205
      %v218 = vpack.c.b16 %v208, %v207
      %v219 = vpack.c.b16 %v210, %v209
      %v220 = vpack.c.b16 %v212, %v211
      %v221 = vpack.c.b16 %v214, %v213
      %v222 = vpack.c.b16 %v215, %v215
      %vm223 = vsmask.f32 7424
      %v225 = vshrl.u32 %v216, 16
      %v227 = vshll.u32 %v216, 16
      %v229 = vrot.slane %v227, 1
      %v230 = vor.u32 %v225, %v229
      %v232 = vshll.u32 %v217, 16
      %v234 = vrot.slane %v232, 1
      %v235 = vsel %vm223, %v230, %v234
      %v236 = vshrl.u32 %v217, 16
      %v238 = vor.u32 %v236, %v234
      %v240 = vshll.u32 %v218, 16
      %v242 = vrot.slane %v240, 1
      %v243 = vsel %vm223, %v238, %v242
      %v244 = vshrl.u32 %v218, 16
      %v246 = vor.u32 %v244, %v242
      %v248 = vshll.u32 %v219, 16
      %v250 = vrot.slane %v248, 1
      %v251 = vsel %vm223, %v246, %v250
      %v252 = vshrl.u32 %v219, 16
      %v254 = vor.u32 %v252, %v250
      %v256 = vshll.u32 %v220, 16
      %v258 = vrot.slane %v256, 1
      %v259 = vsel %vm223, %v254, %v258
      %v260 = vshrl.u32 %v220, 16
      %v262 = vor.u32 %v260, %v258
      %v264 = vshll.u32 %v221, 16
      %v266 = vrot.slane %v264, 1
      %v267 = vsel %vm223, %v262, %v266
      %v268 = vshrl.u32 %v221, 16
      %v270 = vor.u32 %v268, %v266
      %v272 = vshll.u32 %v222, 16
      %v274 = vrot.slane %v272, 1
      %v275 = vsel %vm223, %v270, %v274
      %v276 = vshrl.u32 %v222, 16
      %v278 = vor.u32 %v276, %v274
      %v281 = vunpack.c.l.b16 %v188
      %v282 = vunpack.c.l.b16 %v189
      %v283 = vpack.c.b16 %v282, %v281
      %vm284 = vcmask 80896
      %v286 = vsel %vm284, %v235, 0
      %v289 = vsel %vm284, %v243, 0
      %v292 = vsel %vm284, %v251, 0
      %v295 = vsel %vm284, %v259, 0
      %v298 = vsel %vm284, %v267, 0
      %v301 = vsel %vm284, %v275, 0
      %v304 = vsel %vm284, %v278, 0
      %vm306 = vcmask 1044480
      %v308 = vsel %vm306, %v283, 0
      %310 = vmatpush.bf16.msra.mxu0 0
      %311 = vmatpush.bf16.msra.mxu0 0
      %312 = vmatpush.bf16.msra.mxu0 0
      %313 = vmatpush.bf16.msra.mxu0 0
      %314 = vmatpush.bf16.msra.mxu0 0
      %315 = vmatpush.bf16.msra.mxu0 0
      %316 = vmatpush.bf16.msra.mxu0 0
      %317 = vmatpush.bf16.msra.mxu0 %v308
      %318 = vmatmul.bf16.gmra.mxu0 %v286
      %v319 = vpop.f32.mrf.mxu0
      %v320 = vadd.f32 0.0, %v319
      %v321 = vpop.f32.mrf.mxu0
      %v322 = vadd.f32 0.0, %v321
      %323 = vmatmul.bf16.gmra.mxu0 %v289
      %v324 = vpop.f32.mrf.mxu0
      %v325 = vadd.f32 0.0, %v324
      %v326 = vpop.f32.mrf.mxu0
      %v327 = vadd.f32 0.0, %v326
      %328 = vmatmul.bf16.gmra.mxu0 %v292
      %v329 = vpop.f32.mrf.mxu0
      %v330 = vadd.f32 0.0, %v329
      %v331 = vpop.f32.mrf.mxu0
      %v332 = vadd.f32 0.0, %v331
      %333 = vmatmul.bf16.gmra.mxu0 %v295
      %v334 = vpop.f32.mrf.mxu0
      %v335 = vadd.f32 0.0, %v334
      %v336 = vpop.f32.mrf.mxu0
      %v337 = vadd.f32 0.0, %v336
      %338 = vmatmul.bf16.gmra.mxu0 %v298
      %v339 = vpop.f32.mrf.mxu0
      %v340 = vadd.f32 0.0, %v339
      %v341 = vpop.f32.mrf.mxu0
      %v342 = vadd.f32 0.0, %v341
      %343 = vmatmul.bf16.gmra.mxu0 %v301
      %v344 = vpop.f32.mrf.mxu0
      %v345 = vadd.f32 0.0, %v344
      %v346 = vpop.f32.mrf.mxu0
      %v347 = vadd.f32 0.0, %v346
      %348 = vmatmul.bf16.gmra.mxu0 %v304
      %v349 = vpop.f32.mrf.mxu0
      %v350 = vadd.f32 0.0, %v349
      %v351 = vpop.f32.mrf.mxu0
      %352 = vdwg.mxu0
      %v355 = vunpack.c.l.b16 %v185
      %v356 = vunpack.c.l.b16 %v186
      %v357 = vpack.c.b16 %v356, %v355
      %v358 = vsel %vm284, %v216, 0
      %v360 = vsel %vm284, %v217, 0
      %v362 = vsel %vm284, %v218, 0
      %v364 = vsel %vm284, %v219, 0
      %v366 = vsel %vm284, %v220, 0
      %v368 = vsel %vm284, %v221, 0
      %v370 = vsel %vm284, %v222, 0
      %v373 = vsel %vm306, %v357, 0
      %375 = vmatpush.bf16.msra.mxu0 0
      %376 = vmatpush.bf16.msra.mxu0 0
      %377 = vmatpush.bf16.msra.mxu0 0
      %378 = vmatpush.bf16.msra.mxu0 0
      %379 = vmatpush.bf16.msra.mxu0 0
      %380 = vmatpush.bf16.msra.mxu0 0
      %381 = vmatpush.bf16.msra.mxu0 0
      %382 = vmatpush.bf16.msra.mxu0 %v373
      %383 = vmatmul.bf16.gmra.mxu0 %v358
      %v384 = vpop.f32.mrf.mxu0
      %v385 = vadd.f32 %v320, %v384
      %v386 = vpop.f32.mrf.mxu0
      %v387 = vadd.f32 %v322, %v386
      %388 = vmatmul.bf16.gmra.mxu0 %v360
      %v389 = vpop.f32.mrf.mxu0
      %v390 = vadd.f32 %v325, %v389
      %v391 = vpop.f32.mrf.mxu0
      %v392 = vadd.f32 %v327, %v391
      %393 = vmatmul.bf16.gmra.mxu0 %v362
      %v394 = vpop.f32.mrf.mxu0
      %v395 = vadd.f32 %v330, %v394
      %v396 = vpop.f32.mrf.mxu0
      %v397 = vadd.f32 %v332, %v396
      %398 = vmatmul.bf16.gmra.mxu0 %v364
      %v399 = vpop.f32.mrf.mxu0
      %v400 = vadd.f32 %v335, %v399
      %v401 = vpop.f32.mrf.mxu0
      %v402 = vadd.f32 %v337, %v401
      %403 = vmatmul.bf16.gmra.mxu0 %v366
      %v404 = vpop.f32.mrf.mxu0
      %v405 = vadd.f32 %v340, %v404
      %v406 = vpop.f32.mrf.mxu0
      %v407 = vadd.f32 %v342, %v406
      %408 = vmatmul.bf16.gmra.mxu0 %v368
      %v409 = vpop.f32.mrf.mxu0
      %v410 = vadd.f32 %v345, %v409
      %v411 = vpop.f32.mrf.mxu0
      %v412 = vadd.f32 %v347, %v411
      %413 = vmatmul.bf16.gmra.mxu0 %v370
      %v414 = vpop.f32.mrf.mxu0
      %v415 = vadd.f32 %v350, %v414
      %v416 = vpop.f32.mrf.mxu0
      %417 = vdwg.mxu0
      %v418 = vld [vmem:[%s165] sm:$0xe]
      %v419 = vld [vmem:[%s165 + $0x30] sm:$0x7]
      %s420 = scalar_lea.vmem %s1, 16
      %v421 = vld [vmem:[%s420] sm:$0xf]
      %v422 = vld [vmem:[%s420 + $0x4] sm:$0x1]
      %v425 = vunpack.c.l.b16 %v418
      %v426 = vunpack.c.l.b16 %v419
      %v427 = vpack.c.b16 %v204, %v425
      %v428 = vpack.c.b16 %v426, %v426
      %vm429 = vcmask 1046528
      %v430 = vrot.slane %v427, 1
      %v431 = vrot.slane %v217, 1
      %v432 = vsel %vm429, %v430, %v431
      %v433 = vrot.slane %v218, 1
      %v434 = vsel %vm429, %v431, %v433
      %v435 = vrot.slane %v219, 1
      %v436 = vsel %vm429, %v433, %v435
      %v437 = vrot.slane %v220, 1
      %v438 = vsel %vm429, %v435, %v437
      %v439 = vrot.slane %v221, 1
      %v440 = vsel %vm429, %v437, %v439
      %v441 = vrot.slane %v428, 1
      %v442 = vsel %vm429, %v439, %v441
      %v445 = vunpack.c.l.b16 %v421
      %v446 = vunpack.c.l.b16 %v422
      %v447 = vpack.c.b16 %v446, %v445
      %v449 = vsel %vm284, %v432, 0
      %v452 = vsel %vm284, %v434, 0
      %v455 = vsel %vm284, %v436, 0
      %v458 = vsel %vm284, %v438, 0
      %v461 = vsel %vm284, %v440, 0
      %v464 = vsel %vm284, %v442, 0
      %v467 = vsel %vm284, %v441, 0
      %v470 = vsel %vm306, %v447, 0
      %472 = vmatpush.bf16.msra.mxu0 0
      %473 = vmatpush.bf16.msra.mxu0 0
      %474 = vmatpush.bf16.msra.mxu0 0
      %475 = vmatpush.bf16.msra.mxu0 0
      %476 = vmatpush.bf16.msra.mxu0 0
      %477 = vmatpush.bf16.msra.mxu0 0
      %478 = vmatpush.bf16.msra.mxu0 0
      %479 = vmatpush.bf16.msra.mxu0 %v470
      %480 = vmatmul.bf16.gmra.mxu0 %v449
      %v481 = vpop.f32.mrf.mxu0
      %v482 = vadd.f32 0.0, %v481
      %v483 = vpop.f32.mrf.mxu0
      %v484 = vadd.f32 0.0, %v483
      %485 = vmatmul.bf16.gmra.mxu0 %v452
      %v486 = vpop.f32.mrf.mxu0
      %v487 = vadd.f32 0.0, %v486
      %v488 = vpop.f32.mrf.mxu0
      %v489 = vadd.f32 0.0, %v488
      %490 = vmatmul.bf16.gmra.mxu0 %v455
      %v491 = vpop.f32.mrf.mxu0
      %v492 = vadd.f32 0.0, %v491
      %v493 = vpop.f32.mrf.mxu0
      %v494 = vadd.f32 0.0, %v493
      %495 = vmatmul.bf16.gmra.mxu0 %v458
      %v496 = vpop.f32.mrf.mxu0
      %v497 = vadd.f32 0.0, %v496
      %v498 = vpop.f32.mrf.mxu0
      %v499 = vadd.f32 0.0, %v498
      %500 = vmatmul.bf16.gmra.mxu0 %v461
      %v501 = vpop.f32.mrf.mxu0
      %v502 = vadd.f32 0.0, %v501
      %v503 = vpop.f32.mrf.mxu0
      %v504 = vadd.f32 0.0, %v503
      %505 = vmatmul.bf16.gmra.mxu0 %v464
      %v506 = vpop.f32.mrf.mxu0
      %v507 = vadd.f32 0.0, %v506
      %v508 = vpop.f32.mrf.mxu0
      %v509 = vadd.f32 0.0, %v508
      %510 = vmatmul.bf16.gmra.mxu0 %v467
      %v511 = vpop.f32.mrf.mxu0
      %v512 = vadd.f32 0.0, %v511
      %v513 = vpop.f32.mrf.mxu0
      %514 = vdwg.mxu0
      %v515 = vadd.f32 %v385, %v482
      %v516 = vadd.f32 %v387, %v484
      %v517 = vadd.f32 %v390, %v487
      %v518 = vadd.f32 %v392, %v489
      %v519 = vadd.f32 %v395, %v492
      %v520 = vadd.f32 %v397, %v494
      %v521 = vadd.f32 %v400, %v497
      %v522 = vadd.f32 %v402, %v499
      %v523 = vadd.f32 %v405, %v502
      %v524 = vadd.f32 %v407, %v504
      %v525 = vadd.f32 %v410, %v507
      %v526 = vadd.f32 %v412, %v509
      %v527 = vadd.f32 %v415, %v512
      %v528 = vld [vmem:[%s165 + $0x4] sm:$0xe]
      %v529 = vld [vmem:[%s165 + $0x8] sm:$0xf]
      %v530 = vld [vmem:[%s165 + $0xc] sm:$0xf]
      %v531 = vld [vmem:[%s165 + $0x10] sm:$0xf]
      %v532 = vld [vmem:[%s165 + $0x14] sm:$0xf]
      %v533 = vld [vmem:[%s165 + $0x18] sm:$0xf]
      %v534 = vld [vmem:[%s165 + $0x1c] sm:$0xf]
      %v535 = vld [vmem:[%s165 + $0x20] sm:$0xf]
      %v536 = vld [vmem:[%s165 + $0x24] sm:$0xf]
      %v537 = vld [vmem:[%s165 + $0x28] sm:$0xf]
      %v538 = vld [vmem:[%s165 + $0x2c] sm:$0xf]
      %v539 = vld [vmem:[%s165 + $0x30] sm:$0xf]
      %v540 = vld [vmem:[%s165 + $0x34] sm:$0x7]
      %s541 = scalar_lea.vmem %s1, 24
      %v542 = vld [vmem:[%s541] sm:$0xf]
      %v543 = vld [vmem:[%s541 + $0x4] sm:$0x1]
      %v557 = vunpack.c.l.b16 %v528
      %v558 = vunpack.c.l.b16 %v529
      %v559 = vunpack.c.l.b16 %v530
      %v560 = vunpack.c.l.b16 %v531
      %v561 = vunpack.c.l.b16 %v532
      %v562 = vunpack.c.l.b16 %v533
      %v563 = vunpack.c.l.b16 %v534
      %v564 = vunpack.c.l.b16 %v535
      %v565 = vunpack.c.l.b16 %v536
      %v566 = vunpack.c.l.b16 %v537
      %v567 = vunpack.c.l.b16 %v538
      %v568 = vunpack.c.l.b16 %v539
      %v569 = vunpack.c.l.b16 %v540
      %v570 = vpack.c.b16 %v558, %v557
      %v571 = vpack.c.b16 %v560, %v559
      %v572 = vpack.c.b16 %v562, %v561
      %v573 = vpack.c.b16 %v564, %v563
      %v574 = vpack.c.b16 %v566, %v565
      %v575 = vpack.c.b16 %v568, %v567
      %v576 = vpack.c.b16 %v569, %v569
      %vm577 = vsmask.f32 6400
      %v579 = vshrl.u32 %v570, 16
      %v581 = vrot.slane %v579, 1
      %v582 = vshll.u32 %v570, 16
      %v584 = vrot.slane %v582, 2
      %v585 = vor.u32 %v581, %v584
      %v587 = vshrl.u32 %v571, 16
      %v589 = vrot.slane %v587, 1
      %v590 = vshll.u32 %v571, 16
      %v592 = vrot.slane %v590, 2
      %v593 = vor.u32 %v589, %v592
      %v594 = vsel %vm577, %v585, %v593
      %v596 = vshrl.u32 %v572, 16
      %v598 = vrot.slane %v596, 1
      %v599 = vshll.u32 %v572, 16
      %v601 = vrot.slane %v599, 2
      %v602 = vor.u32 %v598, %v601
      %v603 = vsel %vm577, %v593, %v602
      %v605 = vshrl.u32 %v573, 16
      %v607 = vrot.slane %v605, 1
      %v608 = vshll.u32 %v573, 16
      %v610 = vrot.slane %v608, 2
      %v611 = vor.u32 %v607, %v610
      %v612 = vsel %vm577, %v602, %v611
      %v614 = vshrl.u32 %v574, 16
      %v616 = vrot.slane %v614, 1
      %v617 = vshll.u32 %v574, 16
      %v619 = vrot.slane %v617, 2
      %v620 = vor.u32 %v616, %v619
      %v621 = vsel %vm577, %v611, %v620
      %v623 = vshrl.u32 %v575, 16
      %v625 = vrot.slane %v623, 1
      %v626 = vshll.u32 %v575, 16
      %v628 = vrot.slane %v626, 2
      %v629 = vor.u32 %v625, %v628
      %v630 = vsel %vm577, %v620, %v629
      %v632 = vshrl.u32 %v576, 16
      %v634 = vrot.slane %v632, 1
      %v635 = vshll.u32 %v576, 16
      %v637 = vrot.slane %v635, 2
      %v638 = vor.u32 %v634, %v637
      %v639 = vsel %vm577, %v629, %v638
      %v642 = vunpack.c.l.b16 %v542
      %v643 = vunpack.c.l.b16 %v543
      %v644 = vpack.c.b16 %v643, %v642
      %v646 = vsel %vm284, %v594, 0
      %v649 = vsel %vm284, %v603, 0
      %v652 = vsel %vm284, %v612, 0
      %v655 = vsel %vm284, %v621, 0
      %v658 = vsel %vm284, %v630, 0
      %v661 = vsel %vm284, %v639, 0
      %v664 = vsel %vm284, %v638, 0
      %v667 = vsel %vm306, %v644, 0
      %669 = vmatpush.bf16.msra.mxu0 0
      %670 = vmatpush.bf16.msra.mxu0 0
      %671 = vmatpush.bf16.msra.mxu0 0
      %672 = vmatpush.bf16.msra.mxu0 0
      %673 = vmatpush.bf16.msra.mxu0 0
      %674 = vmatpush.bf16.msra.mxu0 0
      %675 = vmatpush.bf16.msra.mxu0 0
      %676 = vmatpush.bf16.msra.mxu0 %v667
      %677 = vmatmul.bf16.gmra.mxu0 %v646
      %v678 = vpop.f32.mrf.mxu0
      %v679 = vadd.f32 0.0, %v678
      %v680 = vpop.f32.mrf.mxu0
      %v681 = vadd.f32 0.0, %v680
      %682 = vmatmul.bf16.gmra.mxu0 %v649
      %v683 = vpop.f32.mrf.mxu0
      %v684 = vadd.f32 0.0, %v683
      %v685 = vpop.f32.mrf.mxu0
      %v686 = vadd.f32 0.0, %v685
      %687 = vmatmul.bf16.gmra.mxu0 %v652
      %v688 = vpop.f32.mrf.mxu0
      %v689 = vadd.f32 0.0, %v688
      %v690 = vpop.f32.mrf.mxu0
      %v691 = vadd.f32 0.0, %v690
      %692 = vmatmul.bf16.gmra.mxu0 %v655
      %v693 = vpop.f32.mrf.mxu0
      %v694 = vadd.f32 0.0, %v693
      %v695 = vpop.f32.mrf.mxu0
      %v696 = vadd.f32 0.0, %v695
      %697 = vmatmul.bf16.gmra.mxu0 %v658
      %v698 = vpop.f32.mrf.mxu0
      %v699 = vadd.f32 0.0, %v698
      %v700 = vpop.f32.mrf.mxu0
      %v701 = vadd.f32 0.0, %v700
      %702 = vmatmul.bf16.gmra.mxu0 %v661
      %v703 = vpop.f32.mrf.mxu0
      %v704 = vadd.f32 0.0, %v703
      %v705 = vpop.f32.mrf.mxu0
      %v706 = vadd.f32 0.0, %v705
      %707 = vmatmul.bf16.gmra.mxu0 %v664
      %v708 = vpop.f32.mrf.mxu0
      %v709 = vadd.f32 0.0, %v708
      %v710 = vpop.f32.mrf.mxu0
      %711 = vdwg.mxu0
      %v712 = vadd.f32 %v515, %v679
      %v713 = vadd.f32 %v516, %v681
      %v714 = vadd.f32 %v517, %v684
      %v715 = vadd.f32 %v518, %v686
      %v716 = vadd.f32 %v519, %v689
      %v717 = vadd.f32 %v520, %v691
      %v718 = vadd.f32 %v521, %v694
      %v719 = vadd.f32 %v522, %v696
      %v720 = vadd.f32 %v523, %v699
      %v721 = vadd.f32 %v524, %v701
      %v722 = vadd.f32 %v525, %v704
      %v723 = vadd.f32 %v526, %v706
      %v724 = vadd.f32 %v527, %v709
      %v725 = vld [vmem:[%s165 + $0x4] sm:$0xc]
      %v726 = vld [vmem:[%s165 + $0x34] sm:$0xf]
      %s727 = scalar_lea.vmem %s1, 32
      %v728 = vld [vmem:[%s727] sm:$0xf]
      %v729 = vld [vmem:[%s727 + $0x4] sm:$0x1]
      %v732 = vunpack.c.l.b16 %v725
      %v733 = vunpack.c.l.b16 %v726
      %v734 = vpack.c.b16 %v558, %v732
      %v735 = vpack.c.b16 %v733, %v733
      %vm736 = vcmask 1045504
      %v737 = vrot.slane %v734, 2
      %v738 = vrot.slane %v571, 2
      %v739 = vsel %vm736, %v737, %v738
      %v740 = vrot.slane %v572, 2
      %v741 = vsel %vm736, %v738, %v740
      %v742 = vrot.slane %v573, 2
      %v743 = vsel %vm736, %v740, %v742
      %v744 = vrot.slane %v574, 2
      %v745 = vsel %vm736, %v742, %v744
      %v746 = vrot.slane %v575, 2
      %v747 = vsel %vm736, %v744, %v746
      %v748 = vrot.slane %v735, 2
      %v749 = vsel %vm736, %v746, %v748
      %v752 = vunpack.c.l.b16 %v728
      %v753 = vunpack.c.l.b16 %v729
      %v754 = vpack.c.b16 %v753, %v752
      %v756 = vsel %vm284, %v739, 0
      %v759 = vsel %vm284, %v741, 0
      %v762 = vsel %vm284, %v743, 0
      %v765 = vsel %vm284, %v745, 0
      %v768 = vsel %vm284, %v747, 0
      %v771 = vsel %vm284, %v749, 0
      %v774 = vsel %vm284, %v748, 0
      %v777 = vsel %vm306, %v754, 0
      %779 = vmatpush.bf16.msra.mxu0 0
      %780 = vmatpush.bf16.msra.mxu0 0
      %781 = vmatpush.bf16.msra.mxu0 0
      %782 = vmatpush.bf16.msra.mxu0 0
      %783 = vmatpush.bf16.msra.mxu0 0
      %784 = vmatpush.bf16.msra.mxu0 0
      %785 = vmatpush.bf16.msra.mxu0 0
      %786 = vmatpush.bf16.msra.mxu0 %v777
      %787 = vmatmul.bf16.gmra.mxu0 %v756
      %v788 = vpop.f32.mrf.mxu0
      %v789 = vadd.f32 0.0, %v788
      %v790 = vpop.f32.mrf.mxu0
      %v791 = vadd.f32 0.0, %v790
      %792 = vmatmul.bf16.gmra.mxu0 %v759
      %v793 = vpop.f32.mrf.mxu0
      %v794 = vadd.f32 0.0, %v793
      %v795 = vpop.f32.mrf.mxu0
      %v796 = vadd.f32 0.0, %v795
      %797 = vmatmul.bf16.gmra.mxu0 %v762
      %v798 = vpop.f32.mrf.mxu0
      %v799 = vadd.f32 0.0, %v798
      %v800 = vpop.f32.mrf.mxu0
      %v801 = vadd.f32 0.0, %v800
      %802 = vmatmul.bf16.gmra.mxu0 %v765
      %v803 = vpop.f32.mrf.mxu0
      %v804 = vadd.f32 0.0, %v803
      %v805 = vpop.f32.mrf.mxu0
      %v806 = vadd.f32 0.0, %v805
      %807 = vmatmul.bf16.gmra.mxu0 %v768
      %v808 = vpop.f32.mrf.mxu0
      %v809 = vadd.f32 0.0, %v808
      %v810 = vpop.f32.mrf.mxu0
      %v811 = vadd.f32 0.0, %v810
      %812 = vmatmul.bf16.gmra.mxu0 %v771
      %v813 = vpop.f32.mrf.mxu0
      %v814 = vadd.f32 0.0, %v813
      %v815 = vpop.f32.mrf.mxu0
      %v816 = vadd.f32 0.0, %v815
      %817 = vmatmul.bf16.gmra.mxu0 %v774
      %v818 = vpop.f32.mrf.mxu0
      %v819 = vadd.f32 0.0, %v818
      %v820 = vpop.f32.mrf.mxu0
      %821 = vdwg.mxu0
      %v822 = vadd.f32 %v712, %v789
      %v823 = vadd.f32 %v713, %v791
      %v824 = vadd.f32 %v714, %v794
      %v825 = vadd.f32 %v715, %v796
      %v826 = vadd.f32 %v716, %v799
      %v827 = vadd.f32 %v717, %v801
      %v828 = vadd.f32 %v718, %v804
      %v829 = vadd.f32 %v719, %v806
      %v830 = vadd.f32 %v720, %v809
      %v831 = vadd.f32 %v721, %v811
      %v832 = vadd.f32 %v722, %v814
      %v833 = vadd.f32 %v723, %v816
      %v834 = vadd.f32 %v724, %v819
      %s835 = scalar_lea.vmem %s1, 40
      %v836 = vld [vmem:[%s835] sm:$0xf]
      %v837 = vld [vmem:[%s835 + $0x4] sm:$0x1]
      %vm838 = vsmask.f32 5376
      %v840 = vshrl.u32 %v734, 16
      %v842 = vrot.slane %v840, 2
      %v843 = vshll.u32 %v734, 16
      %v845 = vrot.slane %v843, 3
      %v846 = vor.u32 %v842, %v845
      %v847 = vrot.slane %v587, 2
      %v848 = vrot.slane %v590, 3
      %v849 = vor.u32 %v847, %v848
      %v850 = vsel %vm838, %v846, %v849
      %v851 = vrot.slane %v596, 2
      %v852 = vrot.slane %v599, 3
      %v853 = vor.u32 %v851, %v852
      %v854 = vsel %vm838, %v849, %v853
      %v855 = vrot.slane %v605, 2
      %v856 = vrot.slane %v608, 3
      %v857 = vor.u32 %v855, %v856
      %v858 = vsel %vm838, %v853, %v857
      %v859 = vrot.slane %v614, 2
      %v860 = vrot.slane %v617, 3
      %v861 = vor.u32 %v859, %v860
      %v862 = vsel %vm838, %v857, %v861
      %v863 = vrot.slane %v623, 2
      %v864 = vrot.slane %v626, 3
      %v865 = vor.u32 %v863, %v864
      %v866 = vsel %vm838, %v861, %v865
      %v868 = vshrl.u32 %v735, 16
      %v870 = vrot.slane %v868, 2
      %v871 = vshll.u32 %v735, 16
      %v873 = vrot.slane %v871, 3
      %v874 = vor.u32 %v870, %v873
      %v875 = vsel %vm838, %v865, %v874
      %v878 = vunpack.c.l.b16 %v836
      %v879 = vunpack.c.l.b16 %v837
      %v880 = vpack.c.b16 %v879, %v878
      %v882 = vsel %vm284, %v850, 0
      %v885 = vsel %vm284, %v854, 0
      %v888 = vsel %vm284, %v858, 0
      %v891 = vsel %vm284, %v862, 0
      %v894 = vsel %vm284, %v866, 0
      %v897 = vsel %vm284, %v875, 0
      %v900 = vsel %vm284, %v874, 0
      %v903 = vsel %vm306, %v880, 0
      %905 = vmatpush.bf16.msra.mxu0 0
      %906 = vmatpush.bf16.msra.mxu0 0
      %907 = vmatpush.bf16.msra.mxu0 0
      %908 = vmatpush.bf16.msra.mxu0 0
      %909 = vmatpush.bf16.msra.mxu0 0
      %910 = vmatpush.bf16.msra.mxu0 0
      %911 = vmatpush.bf16.msra.mxu0 0
      %912 = vmatpush.bf16.msra.mxu0 %v903
      %913 = vmatmul.bf16.gmra.mxu0 %v882
      %v914 = vpop.f32.mrf.mxu0
      %v915 = vadd.f32 0.0, %v914
      %v916 = vpop.f32.mrf.mxu0
      %v917 = vadd.f32 0.0, %v916
      %918 = vmatmul.bf16.gmra.mxu0 %v885
      %v919 = vpop.f32.mrf.mxu0
      %v920 = vadd.f32 0.0, %v919
      %v921 = vpop.f32.mrf.mxu0
      %v922 = vadd.f32 0.0, %v921
      %923 = vmatmul.bf16.gmra.mxu0 %v888
      %v924 = vpop.f32.mrf.mxu0
      %v925 = vadd.f32 0.0, %v924
      %v926 = vpop.f32.mrf.mxu0
      %v927 = vadd.f32 0.0, %v926
      %928 = vmatmul.bf16.gmra.mxu0 %v891
      %v929 = vpop.f32.mrf.mxu0
      %v930 = vadd.f32 0.0, %v929
      %v931 = vpop.f32.mrf.mxu0
      %v932 = vadd.f32 0.0, %v931
      %933 = vmatmul.bf16.gmra.mxu0 %v894
      %v934 = vpop.f32.mrf.mxu0
      %v935 = vadd.f32 0.0, %v934
      %v936 = vpop.f32.mrf.mxu0
      %v937 = vadd.f32 0.0, %v936
      %938 = vmatmul.bf16.gmra.mxu0 %v897
      %v939 = vpop.f32.mrf.mxu0
      %v940 = vadd.f32 0.0, %v939
      %v941 = vpop.f32.mrf.mxu0
      %v942 = vadd.f32 0.0, %v941
      %943 = vmatmul.bf16.gmra.mxu0 %v900
      %v944 = vpop.f32.mrf.mxu0
      %v945 = vadd.f32 0.0, %v944
      %v946 = vpop.f32.mrf.mxu0
      %947 = vdwg.mxu0
      %v948 = vadd.f32 %v822, %v915
      %v949 = vadd.f32 %v823, %v917
      %v950 = vadd.f32 %v824, %v920
      %v951 = vadd.f32 %v825, %v922
      %v952 = vadd.f32 %v826, %v925
      %v953 = vadd.f32 %v827, %v927
      %v954 = vadd.f32 %v828, %v930
      %v955 = vadd.f32 %v829, %v932
      %v956 = vadd.f32 %v830, %v935
      %v957 = vadd.f32 %v831, %v937
      %v958 = vadd.f32 %v832, %v940
      %v959 = vadd.f32 %v833, %v942
      %v960 = vadd.f32 %v834, %v945
      %v961 = vld [vmem:[%s165 + $0x8] sm:$0x8]
      %v962 = vld [vmem:[%s165 + $0xc] sm:$0xf]
      %v963 = vld [vmem:[%s165 + $0x10] sm:$0xf]
      %v964 = vld [vmem:[%s165 + $0x14] sm:$0xf]
      %v965 = vld [vmem:[%s165 + $0x18] sm:$0xf]
      %v966 = vld [vmem:[%s165 + $0x1c] sm:$0xf]
      %v967 = vld [vmem:[%s165 + $0x20] sm:$0xf]
      %v968 = vld [vmem:[%s165 + $0x24] sm:$0xf]
      %v969 = vld [vmem:[%s165 + $0x28] sm:$0xf]
      %v970 = vld [vmem:[%s165 + $0x2c] sm:$0xf]
      %v971 = vld [vmem:[%s165 + $0x30] sm:$0xf]
      %v972 = vld [vmem:[%s165 + $0x34] sm:$0xf]
      %v973 = vld [vmem:[%s165 + $0x38] sm:$0xf]
      %v974 = vld [vmem:[%s165 + $0x3c] sm:$0x1]
      %s975 = scalar_lea.vmem %s1, 48
      %v976 = vld [vmem:[%s975] sm:$0xf]
      %v977 = vld [vmem:[%s975 + $0x4] sm:$0x1]
      %v992 = vunpack.c.l.b16 %v961
      %v993 = vunpack.c.l.b16 %v962
      %v994 = vunpack.c.l.b16 %v963
      %v995 = vunpack.c.l.b16 %v964
      %v996 = vunpack.c.l.b16 %v965
      %v997 = vunpack.c.l.b16 %v966
      %v998 = vunpack.c.l.b16 %v967
      %v999 = vunpack.c.l.b16 %v968
      %v1000 = vunpack.c.l.b16 %v969
      %v1001 = vunpack.c.l.b16 %v970
      %v1002 = vunpack.c.l.b16 %v971
      %v1003 = vunpack.c.l.b16 %v972
      %v1004 = vunpack.c.l.b16 %v973
      %v1005 = vunpack.c.l.b16 %v974
      %v1006 = vpack.c.b16 %v993, %v992
      %v1007 = vpack.c.b16 %v995, %v994
      %v1008 = vpack.c.b16 %v997, %v996
      %v1009 = vpack.c.b16 %v999, %v998
      %v1010 = vpack.c.b16 %v1001, %v1000
      %v1011 = vpack.c.b16 %v1003, %v1002
      %v1012 = vpack.c.b16 %v1005, %v1004
      %vm1013 = vcmask 1044480
      %v1014 = vrot.slane %v1006, 3
      %v1015 = vrot.slane %v1007, 3
      %v1016 = vsel %vm1013, %v1014, %v1015
      %v1017 = vrot.slane %v1008, 3
      %v1018 = vsel %vm1013, %v1015, %v1017
      %v1019 = vrot.slane %v1009, 3
      %v1020 = vsel %vm1013, %v1017, %v1019
      %v1021 = vrot.slane %v1010, 3
      %v1022 = vsel %vm1013, %v1019, %v1021
      %v1023 = vrot.slane %v1011, 3
      %v1024 = vsel %vm1013, %v1021, %v1023
      %v1025 = vrot.slane %v1012, 3
      %v1026 = vsel %vm1013, %v1023, %v1025
      %v1029 = vunpack.c.l.b16 %v976
      %v1030 = vunpack.c.l.b16 %v977
      %v1031 = vpack.c.b16 %v1030, %v1029
      %v1033 = vsel %vm284, %v1016, 0
      %v1036 = vsel %vm284, %v1018, 0
      %v1039 = vsel %vm284, %v1020, 0
      %v1042 = vsel %vm284, %v1022, 0
      %v1045 = vsel %vm284, %v1024, 0
      %v1048 = vsel %vm284, %v1026, 0
      %v1051 = vsel %vm284, %v1025, 0
      %v1054 = vsel %vm306, %v1031, 0
      %1056 = vmatpush.bf16.msra.mxu0 0
      %1057 = vmatpush.bf16.msra.mxu0 0
      %1058 = vmatpush.bf16.msra.mxu0 0
      %1059 = vmatpush.bf16.msra.mxu0 0
      %1060 = vmatpush.bf16.msra.mxu0 0
      %1061 = vmatpush.bf16.msra.mxu0 0
      %1062 = vmatpush.bf16.msra.mxu0 0
      %1063 = vmatpush.bf16.msra.mxu0 %v1054
      %1064 = vmatmul.bf16.gmra.mxu0 %v1033
      %v1065 = vpop.f32.mrf.mxu0
      %v1066 = vadd.f32 0.0, %v1065
      %v1067 = vpop.f32.mrf.mxu0
      %v1068 = vadd.f32 0.0, %v1067
      %1069 = vmatmul.bf16.gmra.mxu0 %v1036
      %v1070 = vpop.f32.mrf.mxu0
      %v1071 = vadd.f32 0.0, %v1070
      %v1072 = vpop.f32.mrf.mxu0
      %v1073 = vadd.f32 0.0, %v1072
      %1074 = vmatmul.bf16.gmra.mxu0 %v1039
      %v1075 = vpop.f32.mrf.mxu0
      %v1076 = vadd.f32 0.0, %v1075
      %v1077 = vpop.f32.mrf.mxu0
      %v1078 = vadd.f32 0.0, %v1077
      %1079 = vmatmul.bf16.gmra.mxu0 %v1042
      %v1080 = vpop.f32.mrf.mxu0
      %v1081 = vadd.f32 0.0, %v1080
      %v1082 = vpop.f32.mrf.mxu0
      %v1083 = vadd.f32 0.0, %v1082
      %1084 = vmatmul.bf16.gmra.mxu0 %v1045
      %v1085 = vpop.f32.mrf.mxu0
      %v1086 = vadd.f32 0.0, %v1085
      %v1087 = vpop.f32.mrf.mxu0
      %v1088 = vadd.f32 0.0, %v1087
      %1089 = vmatmul.bf16.gmra.mxu0 %v1048
      %v1090 = vpop.f32.mrf.mxu0
      %v1091 = vadd.f32 0.0, %v1090
      %v1092 = vpop.f32.mrf.mxu0
      %v1093 = vadd.f32 0.0, %v1092
      %1094 = vmatmul.bf16.gmra.mxu0 %v1051
      %v1095 = vpop.f32.mrf.mxu0
      %v1096 = vadd.f32 0.0, %v1095
      %v1097 = vpop.f32.mrf.mxu0
      %1098 = vdwg.mxu0
      %v1099 = vadd.f32 %v948, %v1066
      %v1100 = vadd.f32 %v949, %v1068
      %v1101 = vadd.f32 %v950, %v1071
      %v1102 = vadd.f32 %v951, %v1073
      %v1103 = vadd.f32 %v952, %v1076
      %v1104 = vadd.f32 %v953, %v1078
      %v1105 = vadd.f32 %v954, %v1081
      %v1106 = vadd.f32 %v955, %v1083
      %v1107 = vadd.f32 %v956, %v1086
      %v1108 = vadd.f32 %v957, %v1088
      %v1109 = vadd.f32 %v958, %v1091
      %v1110 = vadd.f32 %v959, %v1093
      %v1111 = vadd.f32 %v960, %v1096
      %s1112 = scalar_lea.vmem %s1, 56
      %v1113 = vld [vmem:[%s1112] sm:$0xf]
      %v1114 = vld [vmem:[%s1112 + $0x4] sm:$0x1]
      %vm1115 = vsmask.f32 4352
      %v1117 = vshrl.u32 %v1006, 16
      %v1119 = vrot.slane %v1117, 3
      %v1120 = vshll.u32 %v1006, 16
      %v1122 = vrot.slane %v1120, 4
      %v1123 = vor.u32 %v1119, %v1122
      %v1125 = vshrl.u32 %v1007, 16
      %v1127 = vrot.slane %v1125, 3
      %v1128 = vshll.u32 %v1007, 16
      %v1130 = vrot.slane %v1128, 4
      %v1131 = vor.u32 %v1127, %v1130
      %v1132 = vsel %vm1115, %v1123, %v1131
      %v1134 = vshrl.u32 %v1008, 16
      %v1136 = vrot.slane %v1134, 3
      %v1137 = vshll.u32 %v1008, 16
      %v1139 = vrot.slane %v1137, 4
      %v1140 = vor.u32 %v1136, %v1139
      %v1141 = vsel %vm1115, %v1131, %v1140
      %v1143 = vshrl.u32 %v1009, 16
      %v1145 = vrot.slane %v1143, 3
      %v1146 = vshll.u32 %v1009, 16
      %v1148 = vrot.slane %v1146, 4
      %v1149 = vor.u32 %v1145, %v1148
      %v1150 = vsel %vm1115, %v1140, %v1149
      %v1152 = vshrl.u32 %v1010, 16
      %v1154 = vrot.slane %v1152, 3
      %v1155 = vshll.u32 %v1010, 16
      %v1157 = vrot.slane %v1155, 4
      %v1158 = vor.u32 %v1154, %v1157
      %v1159 = vsel %vm1115, %v1149, %v1158
      %v1161 = vshrl.u32 %v1011, 16
      %v1163 = vrot.slane %v1161, 3
      %v1164 = vshll.u32 %v1011, 16
      %v1166 = vrot.slane %v1164, 4
      %v1167 = vor.u32 %v1163, %v1166
      %v1168 = vsel %vm1115, %v1158, %v1167
      %v1170 = vshrl.u32 %v1012, 16
      %v1172 = vrot.slane %v1170, 3
      %v1173 = vshll.u32 %v1012, 16
      %v1175 = vrot.slane %v1173, 4
      %v1176 = vor.u32 %v1172, %v1175
      %v1177 = vsel %vm1115, %v1167, %v1176
      %v1180 = vunpack.c.l.b16 %v1113
      %v1181 = vunpack.c.l.b16 %v1114
      %v1182 = vpack.c.b16 %v1181, %v1180
      %v1184 = vsel %vm284, %v1132, 0
      %v1187 = vsel %vm284, %v1141, 0
      %v1190 = vsel %vm284, %v1150, 0
      %v1193 = vsel %vm284, %v1159, 0
      %v1196 = vsel %vm284, %v1168, 0
      %v1199 = vsel %vm284, %v1177, 0
      %v1202 = vsel %vm284, %v1176, 0
      %v1205 = vsel %vm306, %v1182, 0
      %1207 = vmatpush.bf16.msra.mxu0 0
      %1208 = vmatpush.bf16.msra.mxu0 0
      %1209 = vmatpush.bf16.msra.mxu0 0
      %1210 = vmatpush.bf16.msra.mxu0 0
      %1211 = vmatpush.bf16.msra.mxu0 0
      %1212 = vmatpush.bf16.msra.mxu0 0
      %1213 = vmatpush.bf16.msra.mxu0 0
      %1214 = vmatpush.bf16.msra.mxu0 %v1205
      %1215 = vmatmul.bf16.gmra.mxu0 %v1184
      %v1216 = vpop.f32.mrf.mxu0
      %v1217 = vadd.f32 0.0, %v1216
      %v1218 = vpop.f32.mrf.mxu0
      %v1219 = vadd.f32 0.0, %v1218
      %1220 = vmatmul.bf16.gmra.mxu0 %v1187
      %v1221 = vpop.f32.mrf.mxu0
      %v1222 = vadd.f32 0.0, %v1221
      %v1223 = vpop.f32.mrf.mxu0
      %v1224 = vadd.f32 0.0, %v1223
      %1225 = vmatmul.bf16.gmra.mxu0 %v1190
      %v1226 = vpop.f32.mrf.mxu0
      %v1227 = vadd.f32 0.0, %v1226
      %v1228 = vpop.f32.mrf.mxu0
      %v1229 = vadd.f32 0.0, %v1228
      %1230 = vmatmul.bf16.gmra.mxu0 %v1193
      %v1231 = vpop.f32.mrf.mxu0
      %v1232 = vadd.f32 0.0, %v1231
      %v1233 = vpop.f32.mrf.mxu0
      %v1234 = vadd.f32 0.0, %v1233
      %1235 = vmatmul.bf16.gmra.mxu0 %v1196
      %v1236 = vpop.f32.mrf.mxu0
      %v1237 = vadd.f32 0.0, %v1236
      %v1238 = vpop.f32.mrf.mxu0
      %v1239 = vadd.f32 0.0, %v1238
      %1240 = vmatmul.bf16.gmra.mxu0 %v1199
      %v1241 = vpop.f32.mrf.mxu0
      %v1242 = vadd.f32 0.0, %v1241
      %v1243 = vpop.f32.mrf.mxu0
      %v1244 = vadd.f32 0.0, %v1243
      %1245 = vmatmul.bf16.gmra.mxu0 %v1202
      %v1246 = vpop.f32.mrf.mxu0
      %v1247 = vadd.f32 0.0, %v1246
      %v1248 = vpop.f32.mrf.mxu0
      %1249 = vdwg.mxu0
      %v1250 = vadd.f32 %v1099, %v1217
      %v1251 = vadd.f32 %v1100, %v1219
      %v1252 = vadd.f32 %v1101, %v1222
      %v1253 = vadd.f32 %v1102, %v1224
      %v1254 = vadd.f32 %v1103, %v1227
      %v1255 = vadd.f32 %v1104, %v1229
      %v1256 = vadd.f32 %v1105, %v1232
      %v1257 = vadd.f32 %v1106, %v1234
      %v1258 = vadd.f32 %v1107, %v1237
      %v1259 = vadd.f32 %v1108, %v1239
      %v1260 = vadd.f32 %v1109, %v1242
      %v1261 = vadd.f32 %v1110, %v1244
      %v1262 = vadd.f32 %v1111, %v1247
      %v1263 = vld [vmem:[%s165 + $0x3c] sm:$0x3]
      %s1264 = scalar_lea.vmem %s1, 64
      %v1265 = vld [vmem:[%s1264] sm:$0xf]
      %v1266 = vld [vmem:[%s1264 + $0x4] sm:$0x1]
      %v1268 = vunpack.c.l.b16 %v1263
      %v1269 = vpack.c.b16 %v994, %v993
      %v1270 = vpack.c.b16 %v996, %v995
      %v1271 = vpack.c.b16 %v998, %v997
      %v1272 = vpack.c.b16 %v1000, %v999
      %v1273 = vpack.c.b16 %v1002, %v1001
      %v1274 = vpack.c.b16 %v1004, %v1003
      %v1275 = vpack.c.b16 %v1268, %v1268
      %v1278 = vunpack.c.l.b16 %v1265
      %v1279 = vunpack.c.l.b16 %v1266
      %v1280 = vpack.c.b16 %v1279, %v1278
      %v1282 = vsel %vm284, %v1269, 0
      %v1285 = vsel %vm284, %v1270, 0
      %v1288 = vsel %vm284, %v1271, 0
      %v1291 = vsel %vm284, %v1272, 0
      %v1294 = vsel %vm284, %v1273, 0
      %v1297 = vsel %vm284, %v1274, 0
      %v1300 = vsel %vm284, %v1275, 0
      %v1303 = vsel %vm306, %v1280, 0
      %1305 = vmatpush.bf16.msra.mxu0 0
      %1306 = vmatpush.bf16.msra.mxu0 0
      %1307 = vmatpush.bf16.msra.mxu0 0
      %1308 = vmatpush.bf16.msra.mxu0 0
      %1309 = vmatpush.bf16.msra.mxu0 0
      %1310 = vmatpush.bf16.msra.mxu0 0
      %1311 = vmatpush.bf16.msra.mxu0 0
      %1312 = vmatpush.bf16.msra.mxu0 %v1303
      %1313 = vmatmul.bf16.gmra.mxu0 %v1282
      %v1314 = vpop.f32.mrf.mxu0
      %v1315 = vadd.f32 0.0, %v1314
      %v1316 = vpop.f32.mrf.mxu0
      %v1317 = vadd.f32 0.0, %v1316
      %1318 = vmatmul.bf16.gmra.mxu0 %v1285
      %v1319 = vpop.f32.mrf.mxu0
      %v1320 = vadd.f32 0.0, %v1319
      %v1321 = vpop.f32.mrf.mxu0
      %v1322 = vadd.f32 0.0, %v1321
      %1323 = vmatmul.bf16.gmra.mxu0 %v1288
      %v1324 = vpop.f32.mrf.mxu0
      %v1325 = vadd.f32 0.0, %v1324
      %v1326 = vpop.f32.mrf.mxu0
      %v1327 = vadd.f32 0.0, %v1326
      %1328 = vmatmul.bf16.gmra.mxu0 %v1291
      %v1329 = vpop.f32.mrf.mxu0
      %v1330 = vadd.f32 0.0, %v1329
      %v1331 = vpop.f32.mrf.mxu0
      %v1332 = vadd.f32 0.0, %v1331
      %1333 = vmatmul.bf16.gmra.mxu0 %v1294
      %v1334 = vpop.f32.mrf.mxu0
      %v1335 = vadd.f32 0.0, %v1334
      %v1336 = vpop.f32.mrf.mxu0
      %v1337 = vadd.f32 0.0, %v1336
      %1338 = vmatmul.bf16.gmra.mxu0 %v1297
      %v1339 = vpop.f32.mrf.mxu0
      %v1340 = vadd.f32 0.0, %v1339
      %v1341 = vpop.f32.mrf.mxu0
      %v1342 = vadd.f32 0.0, %v1341
      %1343 = vmatmul.bf16.gmra.mxu0 %v1300
      %v1344 = vpop.f32.mrf.mxu0
      %v1345 = vadd.f32 0.0, %v1344
      %v1346 = vpop.f32.mrf.mxu0
      %1347 = vdwg.mxu0
      %v1348 = vadd.f32 %v1250, %v1315
      %v1349 = vadd.f32 %v1251, %v1317
      %v1350 = vadd.f32 %v1252, %v1320
      %v1351 = vadd.f32 %v1253, %v1322
      %v1352 = vadd.f32 %v1254, %v1325
      %v1353 = vadd.f32 %v1255, %v1327
      %v1354 = vadd.f32 %v1256, %v1330
      %v1355 = vadd.f32 %v1257, %v1332
      %v1356 = vadd.f32 %v1258, %v1335
      %v1357 = vadd.f32 %v1259, %v1337
      %v1358 = vadd.f32 %v1260, %v1340
      %v1359 = vadd.f32 %v1261, %v1342
      %v1360 = vadd.f32 %v1262, %v1345
      %v1361 = vld [vmem:[%s2] sm:$0x1]
      %v1363 = vperm.slane %v1361, 0
      %v1365 = vadd.f32 %v1348, %v1363
      %v1366 = vadd.f32 %v1349, %v1363
      %v1367 = vadd.f32 %v1350, %v1363
      %v1368 = vadd.f32 %v1351, %v1363
      %v1369 = vadd.f32 %v1352, %v1363
      %v1370 = vadd.f32 %v1353, %v1363
      %v1371 = vadd.f32 %v1354, %v1363
      %v1372 = vadd.f32 %v1355, %v1363
      %v1373 = vadd.f32 %v1356, %v1363
      %v1374 = vadd.f32 %v1357, %v1363
      %v1375 = vadd.f32 %v1358, %v1363
      %v1376 = vadd.f32 %v1359, %v1363
      %v1377 = vadd.f32 %v1360, %v1363
      %v1378 = vmax.f32 %v1365, 0.0
      %v1379 = vmax.f32 %v1366, 0.0
      %v1380 = vmax.f32 %v1367, 0.0
      %v1381 = vmax.f32 %v1368, 0.0
      %v1382 = vmax.f32 %v1369, 0.0
      %v1383 = vmax.f32 %v1370, 0.0
      %v1384 = vmax.f32 %v1371, 0.0
      %v1385 = vmax.f32 %v1372, 0.0
      %v1386 = vmax.f32 %v1373, 0.0
      %v1387 = vmax.f32 %v1374, 0.0
      %v1388 = vmax.f32 %v1375, 0.0
      %v1389 = vmax.f32 %v1376, 0.0
      %v1390 = vmax.f32 %v1377, 0.0
      %v1391 = vmin.f32 %v1378, 6.0
      %v1392 = vmin.f32 %v1379, 6.0
      %v1393 = vmin.f32 %v1380, 6.0
      %v1394 = vmin.f32 %v1381, 6.0
      %v1395 = vmin.f32 %v1382, 6.0
      %v1396 = vmin.f32 %v1383, 6.0
      %v1397 = vmin.f32 %v1384, 6.0
      %v1398 = vmin.f32 %v1385, 6.0
      %v1399 = vmin.f32 %v1386, 6.0
      %v1400 = vmin.f32 %v1387, 6.0
      %v1401 = vmin.f32 %v1388, 6.0
      %v1402 = vmin.f32 %v1389, 6.0
      %v1403 = vmin.f32 %v1390, 6.0
      %v1404 = vmul.f32 %v1391, 42.5
      %v1405 = vmul.f32 %v1392, 42.5
      %v1406 = vmul.f32 %v1393, 42.5
      %v1407 = vmul.f32 %v1394, 42.5
      %v1408 = vmul.f32 %v1395, 42.5
      %v1409 = vmul.f32 %v1396, 42.5
      %v1410 = vmul.f32 %v1397, 42.5
      %v1411 = vmul.f32 %v1398, 42.5
      %v1412 = vmul.f32 %v1399, 42.5
      %v1413 = vmul.f32 %v1400, 42.5
      %v1414 = vmul.f32 %v1401, 42.5
      %v1415 = vmul.f32 %v1402, 42.5
      %v1416 = vmul.f32 %v1403, 42.5
      %v1417 = vround.ne.pseudo %v1404
      %v1418 = vround.ne.pseudo %v1405
      %v1419 = vround.ne.pseudo %v1406
      %v1420 = vround.ne.pseudo %v1407
      %v1421 = vround.ne.pseudo %v1408
      %v1422 = vround.ne.pseudo %v1409
      %v1423 = vround.ne.pseudo %v1410
      %v1424 = vround.ne.pseudo %v1411
      %v1425 = vround.ne.pseudo %v1412
      %v1426 = vround.ne.pseudo %v1413
      %v1427 = vround.ne.pseudo %v1414
      %v1428 = vround.ne.pseudo %v1415
      %v1429 = vround.ne.pseudo %v1416
      %v1430 = vmul.f32 %v1417, 0.023529412
      %v1431 = vmul.f32 %v1418, 0.023529412
      %v1432 = vmul.f32 %v1419, 0.023529412
      %v1433 = vmul.f32 %v1420, 0.023529412
      %v1434 = vmul.f32 %v1421, 0.023529412
      %v1435 = vmul.f32 %v1422, 0.023529412
      %v1436 = vmul.f32 %v1423, 0.023529412
      %v1437 = vmul.f32 %v1424, 0.023529412
      %v1438 = vmul.f32 %v1425, 0.023529412
      %v1439 = vmul.f32 %v1426, 0.023529412
      %v1440 = vmul.f32 %v1427, 0.023529412
      %v1441 = vmul.f32 %v1428, 0.023529412
      %v1442 = vmul.f32 %v1429, 0.023529412
      %v1443 = vpack.c.bf16 %v1430, %v1430
      %v1444 = vpack.c.bf16 %v1431, %v1431
      %v1445 = vpack.c.bf16 %v1432, %v1432
      %v1446 = vpack.c.bf16 %v1433, %v1433
      %v1447 = vpack.c.bf16 %v1434, %v1434
      %v1448 = vpack.c.bf16 %v1435, %v1435
      %v1449 = vpack.c.bf16 %v1436, %v1436
      %v1450 = vpack.c.bf16 %v1437, %v1437
      %v1451 = vpack.c.bf16 %v1438, %v1438
      %v1452 = vpack.c.bf16 %v1439, %v1439
      %v1453 = vpack.c.bf16 %v1440, %v1440
      %v1454 = vpack.c.bf16 %v1441, %v1441
      %v1455 = vpack.c.bf16 %v1442, %v1442
      %vm1456 = vcmask 125952
      %1457 = vst.msk [vmem:[%s170] sm:$0xf] %vm1456, %v1443
      %1458 = vst.msk [vmem:[%s170 + $0x4] sm:$0xf] %vm1456, %v1444
      %1459 = vst.msk [vmem:[%s170 + $0x8] sm:$0xf] %vm1456, %v1445
      %1460 = vst.msk [vmem:[%s170 + $0xc] sm:$0xf] %vm1456, %v1446
      %1461 = vst.msk [vmem:[%s170 + $0x10] sm:$0xf] %vm1456, %v1447
      %1462 = vst.msk [vmem:[%s170 + $0x14] sm:$0xf] %vm1456, %v1448
      %1463 = vst.msk [vmem:[%s170 + $0x18] sm:$0xf] %vm1456, %v1449
      %1464 = vst.msk [vmem:[%s170 + $0x1c] sm:$0xf] %vm1456, %v1450
      %1465 = vst.msk [vmem:[%s170 + $0x20] sm:$0xf] %vm1456, %v1451
      %1466 = vst.msk [vmem:[%s170 + $0x24] sm:$0xf] %vm1456, %v1452
      %1467 = vst.msk [vmem:[%s170 + $0x28] sm:$0xf] %vm1456, %v1453
      %1468 = vst.msk [vmem:[%s170 + $0x2c] sm:$0xf] %vm1456, %v1454
      %vm1469 = vcmask 123904
      %vm1470 = vsmask.f32 1280
      %vm1471 = vmand %vm1469, %vm1470
      %v1472 = vld [vmem:[%s170 + $0x30] sm:$0x3]
      %v1473 = vsel %vm1471, %v1455, %v1472
      %1474 = vst [vmem:[%s170 + $0x30] sm:$0x3] %v1473
      %p1475 = scmp.lt.s32.totalorder %s14, 1
      %s1476 = scalar_select %p1475, %s14, 1
      %s1477 = smul.addr %s1476, 13
      %s1478 = smul.addr %s1477, 4
      %s1479 = scalar_lea.vmem %s3, %s1478
      // Predicated region
      $region33: #{pnet_forward.5} parent=31 // pred_check
        %p1480 = pneg %p100
      $region34: #{pnet_forward.5} parent=31 // pred_check_branch
        %1482 = sbr.rel (%p1480) target = $region36
      $region35: #{pnet_forward.5} parent=31 // pred_region
        _
      $region36: #{pnet_forward.5} parent=31 // pred_fallthru
        _
    $region32: #{pnet_forward.5} parent=5 // pred_fallthru
      _
    %p1483 = scmp.le.s32.totalorder 2, %s9
    // Predicated region
    $region37: #{pnet_forward.5} parent=5 // pred_check
      %p1484 = pneg %p1483
    $region38: #{pnet_forward.5} parent=5 // pred_check_branch
      %1486 = sbr.rel (%p1484) target = $region40
    $region39: #{pnet_forward.5} parent=5 // pred_region
      %s1487 = ssub.s32 %s9, 2
      // Predicated region
      $region41: #{pnet_forward.5} parent=39 // pred_check
        %p1488 = pneg %p106
      $region42: #{pnet_forward.5} parent=39 // pred_check_branch
        %1490 = sbr.rel (%p1488) target = $region44
      $region43: #{pnet_forward.5} parent=39 // pred_region
        %p1491 = scmp.lt.s32.totalorder %s15, 1
        %s1492 = scalar_select %p1491, %s15, 1
        %s1493 = smul.addr %s1492, 13
        %s1494 = smul.addr %s1493, 4
        %s1495 = scalar_lea.vmem %s3, %s1494
      $region44: #{pnet_forward.5} parent=39 // pred_fallthru
        _
    $region40: #{pnet_forward.5} parent=5 // pred_fallthru
      _
  $region6: #{pnet_forward.5} parent=0 // loop_footer
    %s13 = sadd.s32 1, %s9
  $region7: #{pnet_forward.5} parent=0 // loop_footer_branch
    %8 = sbr.rel target = $region3
  $region8: #{pnet_forward.5} parent=0 // loop_exit
    _

// kernel: pnet_forward.6
$region0: #{pnet_forward.6}
  #allocation0 [shape = 'u32[]', space=smem, size = 0x4, offset = 0x4, fixed_abs, tag = 'smem constant byte address 0x4 - core index']
  #allocation1 [shape = 'u32[72,128]{1,0:T(1,128)}', space=vmem, size = 0x9000, scoped, tag = 'internal scratch']
  %s0 = inlined_call_operand.vmem [shape: bf16[2,101,16], index: 0, kind: input, shape index: {}]
  %s1 = inlined_call_operand.vmem [shape: bf16[9,16,32], index: 1, kind: input, shape index: {}]
  %s2 = inlined_call_operand.vmem [shape: f32[1,32], index: 2, kind: input, shape index: {}]
  %s3 = inlined_call_operand.vmem [shape: bf16[2,63,32], index: 3, kind: output, shape index: {}]
  %s4 = sld [smem:[#allocation0]]
  $region45: #{pnet_forward.6} parent=0
    _
  %s6 = ssub.s32 1, %s4
  %s7 = scalar_select 0, %s6, %s4
  loop: start=0, step=1, limit=4
  $region2: #{pnet_forward.6} parent=0 // loop_pre_header
    _
  $region3: #{pnet_forward.6} parent=0 // loop_header
    %s9 = sphi 0, %s13
    %p10 = scmp.ge.s32.totalorder %s9, 4
    %s19 = sphi 0, %s21
    %s22 = sphi 0, %s19
    %s23 = sphi 0, %s22
    %s39 = sphi 0, %s23
    %s43 = sphi 0, %s43
    %s45 = sphi 0, %s43
    %s46 = sphi 0, %s45
    %s60 = sphi 0, %s46
    %s64 = sphi 0, %s64
    %s66 = sphi 0, %s64
    %s67 = sphi 0, %s66
    %s81 = sphi 0, %s67
    %s87 = sphi 0, %s89
    %s90 = sphi 0, %s87
    %s91 = sphi 0, %s90
    %s107 = sphi 0, %s91
  $region4: #{pnet_forward.6} parent=0 // loop_header_branch
    %12 = sbr.rel (%p10) target = $region8
  $region5: #{pnet_forward.6} parent=0 // loop_body
    %s14 = ssub.s32 %s9, 1
    %s15 = ssub.s32 %s9, 2
    %s16 = sadd.s32 %s9, 1
    %s17 = ssub.s32 %s9, %s16
    %p18 = scmp.eq.s32.totalorder %s17, 0
    %s20 = sadd.s32 %s19, 1
    %s21 = scalar_select %p18, %s19, %s20
    %p24 = pneg %p18
    %p25 = scmp.eq.s32.totalorder %s9, 1
    %p26 = por %p24, %p25
    %p27 = scmp.ne.s32.totalorder %s19, %s22
    %p28 = scmp.eq.s32.totalorder %s9, 0
    %p29 = por %p27, %p28
    %p30 = scmp.ne.s32.totalorder %s19, %s22
    %p31 = scmp.eq.s32.totalorder %s14, 1
    %p32 = por %p30, %p31
    %p33 = scmp.ne.s32.totalorder %s22, %s23
    %p34 = scmp.eq.s32.totalorder %s14, 0
    %p35 = por %p33, %p34
    %p36 = scmp.ne.s32.totalorder %s22, %s23
    %p37 = scmp.eq.s32.totalorder %s15, 1
    %p38 = por %p36, %p37
    %p40 = scmp.ne.s32.totalorder %s23, %s39
    %p41 = scmp.eq.s32.totalorder %s15, 0
    %p42 = por %p40, %p41
    %s44 = sadd.s32 %s43, 1
    %p47 = scmp.eq.s32.totalorder %s9, 1
    %p48 = scmp.ne.s32.totalorder %s43, %s45
    %p49 = scmp.eq.s32.totalorder %s9, 0
    %p50 = por %p48, %p49
    %p51 = scmp.ne.s32.totalorder %s43, %s45
    %p52 = scmp.eq.s32.totalorder %s14, 1
    %p53 = por %p51, %p52
    %p54 = scmp.ne.s32.totalorder %s45, %s46
    %p55 = scmp.eq.s32.totalorder %s14, 0
    %p56 = por %p54, %p55
    %p57 = scmp.ne.s32.totalorder %s45, %s46
    %p58 = scmp.eq.s32.totalorder %s15, 1
    %p59 = por %p57, %p58
    %p61 = scmp.ne.s32.totalorder %s46, %s60
    %p62 = scmp.eq.s32.totalorder %s15, 0
    %p63 = por %p61, %p62
    %s65 = sadd.s32 %s64, 1
    %p68 = scmp.eq.s32.totalorder %s9, 1
    %p69 = scmp.ne.s32.totalorder %s64, %s66
    %p70 = scmp.eq.s32.totalorder %s9, 0
    %p71 = por %p69, %p70
    %p72 = scmp.ne.s32.totalorder %s64, %s66
    %p73 = scmp.eq.s32.totalorder %s14, 1
    %p74 = por %p72, %p73
    %p75 = scmp.ne.s32.totalorder %s66, %s67
    %p76 = scmp.eq.s32.totalorder %s14, 0
    %p77 = por %p75, %p76
    %p78 = scmp.ne.s32.totalorder %s66, %s67
    %p79 = scmp.eq.s32.totalorder %s15, 1
    %p80 = por %p78, %p79
    %p82 = scmp.ne.s32.totalorder %s67, %s81
    %p83 = scmp.eq.s32.totalorder %s15, 0
    %p84 = por %p82, %p83
    %s85 = ssub.s32 %s9, %s16
    %p86 = scmp.eq.s32.totalorder %s85, 0
    %s88 = sadd.s32 %s87, 1
    %s89 = scalar_select %p86, %s87, %s88
    %p92 = pneg %p86
    %p93 = scmp.eq.s32.totalorder %s9, 1
    %p94 = por %p92, %p93
    %p95 = scmp.ne.s32.totalorder %s87, %s90
    %p96 = scmp.eq.s32.totalorder %s9, 0
    %p97 = por %p95, %p96
    %p98 = scmp.ne.s32.totalorder %s87, %s90
    %p99 = scmp.eq.s32.totalorder %s14, 1
    %p100 = por %p98, %p99
    %p101 = scmp.ne.s32.totalorder %s90, %s91
    %p102 = scmp.eq.s32.totalorder %s14, 0
    %p103 = por %p101, %p102
    %p104 = scmp.ne.s32.totalorder %s90, %s91
    %p105 = scmp.eq.s32.totalorder %s15, 1
    %p106 = por %p104, %p105
    %p108 = scmp.ne.s32.totalorder %s91, %s107
    %p109 = scmp.eq.s32.totalorder %s15, 0
    %p110 = por %p108, %p109
    %p111 = scmp.le.s32.totalorder 1, %s9
    %p112 = scmp.lt.s32.totalorder %s9, 3
    %p113 = pnand %p111, %p112
    %p114 = pneg %p113
    // Predicated region
    $region9: #{pnet_forward.6} parent=5 // pred_check
      _
    $region10: #{pnet_forward.6} parent=5 // pred_check_branch
      %116 = sbr.rel (%p113) target = $region12
    $region11: #{pnet_forward.6} parent=5 // pred_region
      %s117 = ssub.s32 %s9, 1
      // Predicated region
      $region13: #{pnet_forward.6} parent=11 // pred_check
        %p118 = pneg %p56
      $region14: #{pnet_forward.6} parent=11 // pred_check_branch
        %120 = sbr.rel (%p118) target = $region16
      $region15: #{pnet_forward.6} parent=11 // pred_region
        _
      $region16: #{pnet_forward.6} parent=11 // pred_fallthru
        _
      // Predicated region
      $region17: #{pnet_forward.6} parent=11 // pred_check
        %p121 = pneg %p77
      $region18: #{pnet_forward.6} parent=11 // pred_check_branch
        %123 = sbr.rel (%p121) target = $region20
      $region19: #{pnet_forward.6} parent=11 // pred_region
        _
      $region20: #{pnet_forward.6} parent=11 // pred_fallthru
        _
    $region12: #{pnet_forward.6} parent=5 // pred_fallthru
      _
    %p124 = scmp.lt.s32.totalorder %s9, 2
    // Predicated region
    $region21: #{pnet_forward.6} parent=5 // pred_check
      %p125 = pneg %p124
    $region22: #{pnet_forward.6} parent=5 // pred_check_branch
      %127 = sbr.rel (%p125) target = $region24
    $region23: #{pnet_forward.6} parent=5 // pred_region
      // Predicated region
      $region25: #{pnet_forward.6} parent=23 // pred_check
        %p128 = pneg %p29
      $region26: #{pnet_forward.6} parent=23 // pred_check_branch
        %130 = sbr.rel (%p128) target = $region28
      $region27: #{pnet_forward.6} parent=23 // pred_region
        %p131 = scmp.lt.s32.totalorder %s9, 1
        %s132 = scalar_select %p131, %s9, 1
        %s133 = smul.addr %s132, 13
        %s134 = smul.addr %s133, 4
        %s135 = scalar_lea.vmem %s0, %s134
      $region28: #{pnet_forward.6} parent=23 // pred_fallthru
        _
    $region24: #{pnet_forward.6} parent=5 // pred_fallthru
      _
    %p136 = scmp.le.s32.totalorder 1, %s9
    %p137 = scmp.lt.s32.totalorder %s9, 3
    %p138 = pnand %p136, %p137
    %p139 = pneg %p138
    // Predicated region
    $region29: #{pnet_forward.6} parent=5 // pred_check
      _
    $region30: #{pnet_forward.6} parent=5 // pred_check_branch
      %141 = sbr.rel (%p138) target = $region32
    $region31: #{pnet_forward.6} parent=5 // pred_region
      %s142 = ssub.s32 %s9, 1
      %p143 = scmp.lt.s32.totalorder %s14, 1
      %s144 = scalar_select %p143, %s14, 1
      %s145 = smul.addr %s144, 13
      %s146 = smul.addr %s145, 4
      %s147 = scalar_lea.vmem %s0, %s146
      %p148 = pneg %p35
      %p149 = pneg %p32
      %p150 = pneg %p56
      %p151 = pneg %p53
      %p152 = pneg %p77
      %p153 = pneg %p74
      %p154 = pneg %p103
      %p155 = pneg %p100
      %p156 = scmp.lt.s32.totalorder %s14, 1
      %s157 = scalar_select %p156, %s14, 1
      %s158 = smul.addr %s157, 8
      %s159 = smul.addr %s158, 4
      %s160 = scalar_lea.vmem %s3, %s159
      %p161 = scmp.lt.s32.totalorder %s14, 1
      %s162 = scalar_select %p161, %s14, 1
      %s163 = smul.addr %s162, 13
      %s164 = smul.addr %s163, 4
      %s165 = scalar_lea.vmem %s0, %s164
      %p166 = scmp.lt.s32.totalorder %s14, 1
      %s167 = scalar_select %p166, %s14, 1
      %s168 = smul.addr %s167, 8
      %s169 = smul.addr %s168, 4
      %s170 = scalar_lea.vmem %s3, %s169
      %v172 = vld [vmem:[%s165] sm:$0xf]
      %v173 = vld [vmem:[%s165 + $0x4] sm:$0xf]
      %v174 = vld [vmem:[%s165 + $0x8] sm:$0xf]
      %v175 = vld [vmem:[%s165 + $0xc] sm:$0xf]
      %v176 = vld [vmem:[%s165 + $0x10] sm:$0xf]
      %v177 = vld [vmem:[%s165 + $0x14] sm:$0xf]
      %v178 = vld [vmem:[%s165 + $0x18] sm:$0xf]
      %v179 = vld [vmem:[%s165 + $0x1c] sm:$0xf]
      %v180 = vld [vmem:[%s1] sm:$0xf]
      %v181 = vld [vmem:[%s1 + $0x4] sm:$0xf]
      %s182 = scalar_lea.vmem %s1, 8
      %v183 = vld [vmem:[%s182] sm:$0xf]
      %v184 = vld [vmem:[%s182 + $0x4] sm:$0xf]
      %v193 = vunpack.c.l.b16 %v172
      %v194 = vunpack.c.l.b16 %v173
      %v195 = vunpack.c.l.b16 %v174
      %v196 = vunpack.c.l.b16 %v175
      %v197 = vunpack.c.l.b16 %v176
      %v198 = vunpack.c.l.b16 %v177
      %v199 = vunpack.c.l.b16 %v178
      %v200 = vunpack.c.l.b16 %v179
      %v201 = vpack.c.b16 %v194, %v193
      %v202 = vpack.c.b16 %v196, %v195
      %v203 = vpack.c.b16 %v198, %v197
      %v204 = vpack.c.b16 %v200, %v199
      %vm205 = vsmask.f32 7424
      %v207 = vshrl.u32 %v201, 16
      %v209 = vshll.u32 %v201, 16
      %v211 = vrot.slane %v209, 1
      %v212 = vor.u32 %v207, %v211
      %v214 = vshll.u32 %v202, 16
      %v216 = vrot.slane %v214, 1
      %v217 = vsel %vm205, %v212, %v216
      %v218 = vshrl.u32 %v202, 16
      %v220 = vor.u32 %v218, %v216
      %v222 = vshll.u32 %v203, 16
      %v224 = vrot.slane %v222, 1
      %v225 = vsel %vm205, %v220, %v224
      %v226 = vshrl.u32 %v203, 16
      %v228 = vor.u32 %v226, %v224
      %v230 = vshll.u32 %v204, 16
      %v232 = vrot.slane %v230, 1
      %v233 = vsel %vm205, %v228, %v232
      %v234 = vshrl.u32 %v204, 16
      %v236 = vor.u32 %v234, %v232
      %v239 = vunpack.c.l.b16 %v183
      %v240 = vunpack.c.l.b16 %v184
      %v241 = vpack.c.b16 %v240, %v239
      %vm243 = vcmask 130048
      %v245 = vsel %vm243, %v217, 0
      %v248 = vsel %vm243, %v225, 0
      %v251 = vsel %vm243, %v233, 0
      %v254 = vsel %vm243, %v236, 0
      %256 = vmatpush.bf16.msra.mxu0 0
      %257 = vmatpush.bf16.msra.mxu0 0
      %258 = vmatpush.bf16.msra.mxu0 0
      %259 = vmatpush.bf16.msra.mxu0 0
      %260 = vmatpush.bf16.msra.mxu0 0
      %261 = vmatpush.bf16.msra.mxu0 0
      %262 = vmatpush.bf16.msra.mxu0 0
      %263 = vmatpush.bf16.msra.mxu0 %v241
      %264 = vmatmul.bf16.gmra.mxu0 %v245
      %v265 = vpop.f32.mrf.mxu0
      %v266 = vadd.f32 0.0, %v265
      %v267 = vpop.f32.mrf.mxu0
      %v268 = vadd.f32 0.0, %v267
      %269 = vmatmul.bf16.gmra.mxu0 %v248
      %v270 = vpop.f32.mrf.mxu0
      %v271 = vadd.f32 0.0, %v270
      %v272 = vpop.f32.mrf.mxu0
      %v273 = vadd.f32 0.0, %v272
      %274 = vmatmul.bf16.gmra.mxu0 %v251
      %v275 = vpop.f32.mrf.mxu0
      %v276 = vadd.f32 0.0, %v275
      %v277 = vpop.f32.mrf.mxu0
      %v278 = vadd.f32 0.0, %v277
      %279 = vmatmul.bf16.gmra.mxu0 %v254
      %v280 = vpop.f32.mrf.mxu0
      %v281 = vadd.f32 0.0, %v280
      %v282 = vpop.f32.mrf.mxu0
      %v283 = vadd.f32 0.0, %v282
      %284 = vdwg.mxu0
      %v287 = vunpack.c.l.b16 %v180
      %v288 = vunpack.c.l.b16 %v181
      %v289 = vpack.c.b16 %v288, %v287
      %v291 = vsel %vm243, %v201, 0
      %v293 = vsel %vm243, %v202, 0
      %v295 = vsel %vm243, %v203, 0
      %v297 = vsel %vm243, %v204, 0
      %299 = vmatpush.bf16.msra.mxu0 0
      %300 = vmatpush.bf16.msra.mxu0 0
      %301 = vmatpush.bf16.msra.mxu0 0
      %302 = vmatpush.bf16.msra.mxu0 0
      %303 = vmatpush.bf16.msra.mxu0 0
      %304 = vmatpush.bf16.msra.mxu0 0
      %305 = vmatpush.bf16.msra.mxu0 0
      %306 = vmatpush.bf16.msra.mxu0 %v289
      %307 = vmatmul.bf16.gmra.mxu0 %v291
      %v308 = vpop.f32.mrf.mxu0
      %v309 = vadd.f32 %v266, %v308
      %v310 = vpop.f32.mrf.mxu0
      %v311 = vadd.f32 %v268, %v310
      %312 = vmatmul.bf16.gmra.mxu0 %v293
      %v313 = vpop.f32.mrf.mxu0
      %v314 = vadd.f32 %v271, %v313
      %v315 = vpop.f32.mrf.mxu0
      %v316 = vadd.f32 %v273, %v315
      %317 = vmatmul.bf16.gmra.mxu0 %v295
      %v318 = vpop.f32.mrf.mxu0
      %v319 = vadd.f32 %v276, %v318
      %v320 = vpop.f32.mrf.mxu0
      %v321 = vadd.f32 %v278, %v320
      %322 = vmatmul.bf16.gmra.mxu0 %v297
      %v323 = vpop.f32.mrf.mxu0
      %v324 = vadd.f32 %v281, %v323
      %v325 = vpop.f32.mrf.mxu0
      %v326 = vadd.f32 %v283, %v325
      %327 = vdwg.mxu0
      %v328 = vld [vmem:[%s165] sm:$0xe]
      %v329 = vld [vmem:[%s165 + $0x4] sm:$0xf]
      %v330 = vld [vmem:[%s165 + $0x8] sm:$0xf]
      %v331 = vld [vmem:[%s165 + $0xc] sm:$0xf]
      %v332 = vld [vmem:[%s165 + $0x10] sm:$0xf]
      %v333 = vld [vmem:[%s165 + $0x14] sm:$0xf]
      %v334 = vld [vmem:[%s165 + $0x18] sm:$0xf]
      %v335 = vld [vmem:[%s165 + $0x1c] sm:$0xf]
      %v336 = vld [vmem:[%s165 + $0x20] sm:$0x1]
      %s337 = scalar_lea.vmem %s1, 16
      %v338 = vld [vmem:[%s337] sm:$0xf]
      %v339 = vld [vmem:[%s337 + $0x4] sm:$0xf]
      %v349 = vunpack.c.l.b16 %v328
      %v350 = vunpack.c.l.b16 %v329
      %v351 = vunpack.c.l.b16 %v330
      %v352 = vunpack.c.l.b16 %v331
      %v353 = vunpack.c.l.b16 %v332
      %v354 = vunpack.c.l.b16 %v333
      %v355 = vunpack.c.l.b16 %v334
      %v356 = vunpack.c.l.b16 %v335
      %v357 = vunpack.c.l.b16 %v336
      %v358 = vpack.c.b16 %v350, %v349
      %v359 = vpack.c.b16 %v352, %v351
      %v360 = vpack.c.b16 %v354, %v353
      %v361 = vpack.c.b16 %v356, %v355
      %v362 = vpack.c.b16 %v357, %v357
      %vm363 = vcmask 1046528
      %v364 = vrot.slane %v358, 1
      %v365 = vrot.slane %v359, 1
      %v366 = vsel %vm363, %v364, %v365
      %v367 = vrot.slane %v360, 1
      %v368 = vsel %vm363, %v365, %v367
      %v369 = vrot.slane %v361, 1
      %v370 = vsel %vm363, %v367, %v369
      %v371 = vrot.slane %v362, 1
      %v372 = vsel %vm363, %v369, %v371
      %v375 = vunpack.c.l.b16 %v338
      %v376 = vunpack.c.l.b16 %v339
      %v377 = vpack.c.b16 %v376, %v375
      %v380 = vsel %vm243, %v366, 0
      %v383 = vsel %vm243, %v368, 0
      %v386 = vsel %vm243, %v370, 0
      %v389 = vsel %vm243, %v372, 0
      %391 = vmatpush.bf16.msra.mxu0 0
      %392 = vmatpush.bf16.msra.mxu0 0
      %393 = vmatpush.bf16.msra.mxu0 0
      %394 = vmatpush.bf16.msra.mxu0 0
      %395 = vmatpush.bf16.msra.mxu0 0
      %396 = vmatpush.bf16.msra.mxu0 0
      %397 = vmatpush.bf16.msra.mxu0 0
      %398 = vmatpush.bf16.msra.mxu0 %v377
      %399 = vmatmul.bf16.gmra.mxu0 %v380
      %v400 = vpop.f32.mrf.mxu0
      %v401 = vadd.f32 0.0, %v400
      %v402 = vpop.f32.mrf.mxu0
      %v403 = vadd.f32 0.0, %v402
      %404 = vmatmul.bf16.gmra.mxu0 %v383
      %v405 = vpop.f32.mrf.mxu0
      %v406 = vadd.f32 0.0, %v405
      %v407 = vpop.f32.mrf.mxu0
      %v408 = vadd.f32 0.0, %v407
      %409 = vmatmul.bf16.gmra.mxu0 %v386
      %v410 = vpop.f32.mrf.mxu0
      %v411 = vadd.f32 0.0, %v410
      %v412 = vpop.f32.mrf.mxu0
      %v413 = vadd.f32 0.0, %v412
      %414 = vmatmul.bf16.gmra.mxu0 %v389
      %v415 = vpop.f32.mrf.mxu0
      %v416 = vadd.f32 0.0, %v415
      %v417 = vpop.f32.mrf.mxu0
      %v418 = vadd.f32 0.0, %v417
      %419 = vdwg.mxu0
      %v420 = vadd.f32 %v309, %v401
      %v421 = vadd.f32 %v311, %v403
      %v422 = vadd.f32 %v314, %v406
      %v423 = vadd.f32 %v316, %v408
      %v424 = vadd.f32 %v319, %v411
      %v425 = vadd.f32 %v321, %v413
      %v426 = vadd.f32 %v324, %v416
      %v427 = vadd.f32 %v326, %v418
      %v428 = vld [vmem:[%s165 + $0x20] sm:$0xf]
      %s429 = scalar_lea.vmem %s1, 24
      %v430 = vld [vmem:[%s429] sm:$0xf]
      %v431 = vld [vmem:[%s429 + $0x4] sm:$0xf]
      %v433 = vunpack.c.l.b16 %v428
      %v434 = vpack.c.b16 %v351, %v350
      %v435 = vpack.c.b16 %v353, %v352
      %v436 = vpack.c.b16 %v355, %v354
      %v437 = vpack.c.b16 %v433, %v356
      %v439 = vshrl.u32 %v434, 16
      %v441 = vshll.u32 %v434, 16
      %v443 = vrot.slane %v441, 1
      %v444 = vor.u32 %v439, %v443
      %v446 = vshll.u32 %v435, 16
      %v448 = vrot.slane %v446, 1
      %v449 = vsel %vm205, %v444, %v448
      %v450 = vshrl.u32 %v435, 16
      %v452 = vor.u32 %v450, %v448
      %v454 = vshll.u32 %v436, 16
      %v456 = vrot.slane %v454, 1
      %v457 = vsel %vm205, %v452, %v456
      %v458 = vshrl.u32 %v436, 16
      %v460 = vor.u32 %v458, %v456
      %v462 = vshll.u32 %v437, 16
      %v464 = vrot.slane %v462, 1
      %v465 = vsel %vm205, %v460, %v464
      %v466 = vshrl.u32 %v437, 16
      %v468 = vor.u32 %v466, %v464
      %v471 = vunpack.c.l.b16 %v430
      %v472 = vunpack.c.l.b16 %v431
      %v473 = vpack.c.b16 %v472, %v471
      %v476 = vsel %vm243, %v449, 0
      %v479 = vsel %vm243, %v457, 0
      %v482 = vsel %vm243, %v465, 0
      %v485 = vsel %vm243, %v468, 0
      %487 = vmatpush.bf16.msra.mxu0 0
      %488 = vmatpush.bf16.msra.mxu0 0
      %489 = vmatpush.bf16.msra.mxu0 0
      %490 = vmatpush.bf16.msra.mxu0 0
      %491 = vmatpush.bf16.msra.mxu0 0
      %492 = vmatpush.bf16.msra.mxu0 0
      %493 = vmatpush.bf16.msra.mxu0 0
      %494 = vmatpush.bf16.msra.mxu0 %v473
      %495 = vmatmul.bf16.gmra.mxu0 %v476
      %v496 = vpop.f32.mrf.mxu0
      %v497 = vadd.f32 0.0, %v496
      %v498 = vpop.f32.mrf.mxu0
      %v499 = vadd.f32 0.0, %v498
      %500 = vmatmul.bf16.gmra.mxu0 %v479
      %v501 = vpop.f32.mrf.mxu0
      %v502 = vadd.f32 0.0, %v501
      %v503 = vpop.f32.mrf.mxu0
      %v504 = vadd.f32 0.0, %v503
      %505 = vmatmul.bf16.gmra.mxu0 %v482
      %v506 = vpop.f32.mrf.mxu0
      %v507 = vadd.f32 0.0, %v506
      %v508 = vpop.f32.mrf.mxu0
      %v509 = vadd.f32 0.0, %v508
      %510 = vmatmul.bf16.gmra.mxu0 %v485
      %v511 = vpop.f32.mrf.mxu0
      %v512 = vadd.f32 0.0, %v511
      %v513 = vpop.f32.mrf.mxu0
      %v514 = vadd.f32 0.0, %v513
      %515 = vdwg.mxu0
      %v516 = vadd.f32 %v420, %v497
      %v517 = vadd.f32 %v421, %v499
      %v518 = vadd.f32 %v422, %v502
      %v519 = vadd.f32 %v423, %v504
      %v520 = vadd.f32 %v424, %v507
      %v521 = vadd.f32 %v425, %v509
      %v522 = vadd.f32 %v426, %v512
      %v523 = vadd.f32 %v427, %v514
      %v524 = vld [vmem:[%s165 + $0x4] sm:$0xe]
      %v525 = vld [vmem:[%s165 + $0x8] sm:$0xf]
      %v526 = vld [vmem:[%s165 + $0xc] sm:$0xf]
      %v527 = vld [vmem:[%s165 + $0x10] sm:$0xf]
      %v528 = vld [vmem:[%s165 + $0x14] sm:$0xf]
      %v529 = vld [vmem:[%s165 + $0x18] sm:$0xf]
      %v530 = vld [vmem:[%s165 + $0x1c] sm:$0xf]
      %v531 = vld [vmem:[%s165 + $0x20] sm:$0xf]
      %v532 = vld [vmem:[%s165 + $0x24] sm:$0x1]
      %s533 = scalar_lea.vmem %s1, 32
      %v534 = vld [vmem:[%s533] sm:$0xf]
      %v535 = vld [vmem:[%s533 + $0x4] sm:$0xf]
      %v545 = vunpack.c.l.b16 %v524
      %v546 = vunpack.c.l.b16 %v525
      %v547 = vunpack.c.l.b16 %v526
      %v548 = vunpack.c.l.b16 %v527
      %v549 = vunpack.c.l.b16 %v528
      %v550 = vunpack.c.l.b16 %v529
      %v551 = vunpack.c.l.b16 %v530
      %v552 = vunpack.c.l.b16 %v531
      %v553 = vunpack.c.l.b16 %v532
      %v554 = vpack.c.b16 %v546, %v545
      %v555 = vpack.c.b16 %v548, %v547
      %v556 = vpack.c.b16 %v550, %v549
      %v557 = vpack.c.b16 %v552, %v551
      %v558 = vpack.c.b16 %v553, %v553
      %v559 = vrot.slane %v554, 1
      %v560 = vrot.slane %v555, 1
      %v561 = vsel %vm363, %v559, %v560
      %v562 = vrot.slane %v556, 1
      %v563 = vsel %vm363, %v560, %v562
      %v564 = vrot.slane %v557, 1
      %v565 = vsel %vm363, %v562, %v564
      %v566 = vrot.slane %v558, 1
      %v567 = vsel %vm363, %v564, %v566
      %v570 = vunpack.c.l.b16 %v534
      %v571 = vunpack.c.l.b16 %v535
      %v572 = vpack.c.b16 %v571, %v570
      %v575 = vsel %vm243, %v561, 0
      %v578 = vsel %vm243, %v563, 0
      %v581 = vsel %vm243, %v565, 0
      %v584 = vsel %vm243, %v567, 0
      %586 = vmatpush.bf16.msra.mxu0 0
      %587 = vmatpush.bf16.msra.mxu0 0
      %588 = vmatpush.bf16.msra.mxu0 0
      %589 = vmatpush.bf16.msra.mxu0 0
      %590 = vmatpush.bf16.msra.mxu0 0
      %591 = vmatpush.bf16.msra.mxu0 0
      %592 = vmatpush.bf16.msra.mxu0 0
      %593 = vmatpush.bf16.msra.mxu0 %v572
      %594 = vmatmul.bf16.gmra.mxu0 %v575
      %v595 = vpop.f32.mrf.mxu0
      %v596 = vadd.f32 0.0, %v595
      %v597 = vpop.f32.mrf.mxu0
      %v598 = vadd.f32 0.0, %v597
      %599 = vmatmul.bf16.gmra.mxu0 %v578
      %v600 = vpop.f32.mrf.mxu0
      %v601 = vadd.f32 0.0, %v600
      %v602 = vpop.f32.mrf.mxu0
      %v603 = vadd.f32 0.0, %v602
      %604 = vmatmul.bf16.gmra.mxu0 %v581
      %v605 = vpop.f32.mrf.mxu0
      %v606 = vadd.f32 0.0, %v605
      %v607 = vpop.f32.mrf.mxu0
      %v608 = vadd.f32 0.0, %v607
      %609 = vmatmul.bf16.gmra.mxu0 %v584
      %v610 = vpop.f32.mrf.mxu0
      %v611 = vadd.f32 0.0, %v610
      %v612 = vpop.f32.mrf.mxu0
      %v613 = vadd.f32 0.0, %v612
      %614 = vdwg.mxu0
      %v615 = vadd.f32 %v516, %v596
      %v616 = vadd.f32 %v517, %v598
      %v617 = vadd.f32 %v518, %v601
      %v618 = vadd.f32 %v519, %v603
      %v619 = vadd.f32 %v520, %v606
      %v620 = vadd.f32 %v521, %v608
      %v621 = vadd.f32 %v522, %v611
      %v622 = vadd.f32 %v523, %v613
      %s623 = scalar_lea.vmem %s1, 40
      %v624 = vld [vmem:[%s623] sm:$0xf]
      %v625 = vld [vmem:[%s623 + $0x4] sm:$0xf]
      %vm626 = vsmask.f32 6400
      %v628 = vshrl.u32 %v554, 16
      %v630 = vrot.slane %v628, 1
      %v631 = vshll.u32 %v554, 16
      %v633 = vrot.slane %v631, 2
      %v634 = vor.u32 %v630, %v633
      %v636 = vshrl.u32 %v555, 16
      %v638 = vrot.slane %v636, 1
      %v639 = vshll.u32 %v555, 16
      %v641 = vrot.slane %v639, 2
      %v642 = vor.u32 %v638, %v641
      %v643 = vsel %vm626, %v634, %v642
      %v645 = vshrl.u32 %v556, 16
      %v647 = vrot.slane %v645, 1
      %v648 = vshll.u32 %v556, 16
      %v650 = vrot.slane %v648, 2
      %v651 = vor.u32 %v647, %v650
      %v652 = vsel %vm626, %v642, %v651
      %v654 = vshrl.u32 %v557, 16
      %v656 = vrot.slane %v654, 1
      %v657 = vshll.u32 %v557, 16
      %v659 = vrot.slane %v657, 2
      %v660 = vor.u32 %v656, %v659
      %v661 = vsel %vm626, %v651, %v660
      %v663 = vshrl.u32 %v558, 16
      %v665 = vrot.slane %v663, 1
      %v666 = vshll.u32 %v558, 16
      %v668 = vrot.slane %v666, 2
      %v669 = vor.u32 %v665, %v668
      %v670 = vsel %vm626, %v660, %v669
      %v673 = vunpack.c.l.b16 %v624
      %v674 = vunpack.c.l.b16 %v625
      %v675 = vpack.c.b16 %v674, %v673
      %v678 = vsel %vm243, %v643, 0
      %v681 = vsel %vm243, %v652, 0
      %v684 = vsel %vm243, %v661, 0
      %v687 = vsel %vm243, %v670, 0
      %689 = vmatpush.bf16.msra.mxu0 0
      %690 = vmatpush.bf16.msra.mxu0 0
      %691 = vmatpush.bf16.msra.mxu0 0
      %692 = vmatpush.bf16.msra.mxu0 0
      %693 = vmatpush.bf16.msra.mxu0 0
      %694 = vmatpush.bf16.msra.mxu0 0
      %695 = vmatpush.bf16.msra.mxu0 0
      %696 = vmatpush.bf16.msra.mxu0 %v675
      %697 = vmatmul.bf16.gmra.mxu0 %v678
      %v698 = vpop.f32.mrf.mxu0
      %v699 = vadd.f32 0.0, %v698
      %v700 = vpop.f32.mrf.mxu0
      %v701 = vadd.f32 0.0, %v700
      %702 = vmatmul.bf16.gmra.mxu0 %v681
      %v703 = vpop.f32.mrf.mxu0
      %v704 = vadd.f32 0.0, %v703
      %v705 = vpop.f32.mrf.mxu0
      %v706 = vadd.f32 0.0, %v705
      %707 = vmatmul.bf16.gmra.mxu0 %v684
      %v708 = vpop.f32.mrf.mxu0
      %v709 = vadd.f32 0.0, %v708
      %v710 = vpop.f32.mrf.mxu0
      %v711 = vadd.f32 0.0, %v710
      %712 = vmatmul.bf16.gmra.mxu0 %v687
      %v713 = vpop.f32.mrf.mxu0
      %v714 = vadd.f32 0.0, %v713
      %v715 = vpop.f32.mrf.mxu0
      %v716 = vadd.f32 0.0, %v715
      %717 = vdwg.mxu0
      %v718 = vadd.f32 %v615, %v699
      %v719 = vadd.f32 %v616, %v701
      %v720 = vadd.f32 %v617, %v704
      %v721 = vadd.f32 %v618, %v706
      %v722 = vadd.f32 %v619, %v709
      %v723 = vadd.f32 %v620, %v711
      %v724 = vadd.f32 %v621, %v714
      %v725 = vadd.f32 %v622, %v716
      %v726 = vld [vmem:[%s165 + $0x8] sm:$0xe]
      %v727 = vld [vmem:[%s165 + $0xc] sm:$0xf]
      %v728 = vld [vmem:[%s165 + $0x10] sm:$0xf]
      %v729 = vld [vmem:[%s165 + $0x14] sm:$0xf]
      %v730 = vld [vmem:[%s165 + $0x18] sm:$0xf]
      %v731 = vld [vmem:[%s165 + $0x1c] sm:$0xf]
      %v732 = vld [vmem:[%s165 + $0x20] sm:$0xf]
      %v733 = vld [vmem:[%s165 + $0x24] sm:$0xf]
      %v734 = vld [vmem:[%s165 + $0x28] sm:$0x1]
      %s735 = scalar_lea.vmem %s1, 48
      %v736 = vld [vmem:[%s735] sm:$0xf]
      %v737 = vld [vmem:[%s735 + $0x4] sm:$0xf]
      %v747 = vunpack.c.l.b16 %v726
      %v748 = vunpack.c.l.b16 %v727
      %v749 = vunpack.c.l.b16 %v728
      %v750 = vunpack.c.l.b16 %v729
      %v751 = vunpack.c.l.b16 %v730
      %v752 = vunpack.c.l.b16 %v731
      %v753 = vunpack.c.l.b16 %v732
      %v754 = vunpack.c.l.b16 %v733
      %v755 = vunpack.c.l.b16 %v734
      %v756 = vpack.c.b16 %v748, %v747
      %v757 = vpack.c.b16 %v750, %v749
      %v758 = vpack.c.b16 %v752, %v751
      %v759 = vpack.c.b16 %v754, %v753
      %v760 = vpack.c.b16 %v755, %v755
      %v761 = vrot.slane %v756, 1
      %v762 = vrot.slane %v757, 1
      %v763 = vsel %vm363, %v761, %v762
      %v764 = vrot.slane %v758, 1
      %v765 = vsel %vm363, %v762, %v764
      %v766 = vrot.slane %v759, 1
      %v767 = vsel %vm363, %v764, %v766
      %v768 = vrot.slane %v760, 1
      %v769 = vsel %vm363, %v766, %v768
      %v772 = vunpack.c.l.b16 %v736
      %v773 = vunpack.c.l.b16 %v737
      %v774 = vpack.c.b16 %v773, %v772
      %v777 = vsel %vm243, %v763, 0
      %v780 = vsel %vm243, %v765, 0
      %v783 = vsel %vm243, %v767, 0
      %v786 = vsel %vm243, %v769, 0
      %788 = vmatpush.bf16.msra.mxu0 0
      %789 = vmatpush.bf16.msra.mxu0 0
      %790 = vmatpush.bf16.msra.mxu0 0
      %791 = vmatpush.bf16.msra.mxu0 0
      %792 = vmatpush.bf16.msra.mxu0 0
      %793 = vmatpush.bf16.msra.mxu0 0
      %794 = vmatpush.bf16.msra.mxu0 0
      %795 = vmatpush.bf16.msra.mxu0 %v774
      %796 = vmatmul.bf16.gmra.mxu0 %v777
      %v797 = vpop.f32.mrf.mxu0
      %v798 = vadd.f32 0.0, %v797
      %v799 = vpop.f32.mrf.mxu0
      %v800 = vadd.f32 0.0, %v799
      %801 = vmatmul.bf16.gmra.mxu0 %v780
      %v802 = vpop.f32.mrf.mxu0
      %v803 = vadd.f32 0.0, %v802
      %v804 = vpop.f32.mrf.mxu0
      %v805 = vadd.f32 0.0, %v804
      %806 = vmatmul.bf16.gmra.mxu0 %v783
      %v807 = vpop.f32.mrf.mxu0
      %v808 = vadd.f32 0.0, %v807
      %v809 = vpop.f32.mrf.mxu0
      %v810 = vadd.f32 0.0, %v809
      %811 = vmatmul.bf16.gmra.mxu0 %v786
      %v812 = vpop.f32.mrf.mxu0
      %v813 = vadd.f32 0.0, %v812
      %v814 = vpop.f32.mrf.mxu0
      %v815 = vadd.f32 0.0, %v814
      %816 = vdwg.mxu0
      %v817 = vadd.f32 %v718, %v798
      %v818 = vadd.f32 %v719, %v800
      %v819 = vadd.f32 %v720, %v803
      %v820 = vadd.f32 %v721, %v805
      %v821 = vadd.f32 %v722, %v808
      %v822 = vadd.f32 %v723, %v810
      %v823 = vadd.f32 %v724, %v813
      %v824 = vadd.f32 %v725, %v815
      %s825 = scalar_lea.vmem %s1, 56
      %v826 = vld [vmem:[%s825] sm:$0xf]
      %v827 = vld [vmem:[%s825 + $0x4] sm:$0xf]
      %v829 = vshrl.u32 %v756, 16
      %v831 = vrot.slane %v829, 1
      %v832 = vshll.u32 %v756, 16
      %v834 = vrot.slane %v832, 2
      %v835 = vor.u32 %v831, %v834
      %v837 = vshrl.u32 %v757, 16
      %v839 = vrot.slane %v837, 1
      %v840 = vshll.u32 %v757, 16
      %v842 = vrot.slane %v840, 2
      %v843 = vor.u32 %v839, %v842
      %v844 = vsel %vm626, %v835, %v843
      %v846 = vshrl.u32 %v758, 16
      %v848 = vrot.slane %v846, 1
      %v849 = vshll.u32 %v758, 16
      %v851 = vrot.slane %v849, 2
      %v852 = vor.u32 %v848, %v851
      %v853 = vsel %vm626, %v843, %v852
      %v855 = vshrl.u32 %v759, 16
      %v857 = vrot.slane %v855, 1
      %v858 = vshll.u32 %v759, 16
      %v860 = vrot.slane %v858, 2
      %v861 = vor.u32 %v857, %v860
      %v862 = vsel %vm626, %v852, %v861
      %v864 = vshrl.u32 %v760, 16
      %v866 = vrot.slane %v864, 1
      %v867 = vshll.u32 %v760, 16
      %v869 = vrot.slane %v867, 2
      %v870 = vor.u32 %v866, %v869
      %v871 = vsel %vm626, %v861, %v870
      %v874 = vunpack.c.l.b16 %v826
      %v875 = vunpack.c.l.b16 %v827
      %v876 = vpack.c.b16 %v875, %v874
      %v879 = vsel %vm243, %v844, 0
      %v882 = vsel %vm243, %v853, 0
      %v885 = vsel %vm243, %v862, 0
      %v888 = vsel %vm243, %v871, 0
      %890 = vmatpush.bf16.msra.mxu0 0
      %891 = vmatpush.bf16.msra.mxu0 0
      %892 = vmatpush.bf16.msra.mxu0 0
      %893 = vmatpush.bf16.msra.mxu0 0
      %894 = vmatpush.bf16.msra.mxu0 0
      %895 = vmatpush.bf16.msra.mxu0 0
      %896 = vmatpush.bf16.msra.mxu0 0
      %897 = vmatpush.bf16.msra.mxu0 %v876
      %898 = vmatmul.bf16.gmra.mxu0 %v879
      %v899 = vpop.f32.mrf.mxu0
      %v900 = vadd.f32 0.0, %v899
      %v901 = vpop.f32.mrf.mxu0
      %v902 = vadd.f32 0.0, %v901
      %903 = vmatmul.bf16.gmra.mxu0 %v882
      %v904 = vpop.f32.mrf.mxu0
      %v905 = vadd.f32 0.0, %v904
      %v906 = vpop.f32.mrf.mxu0
      %v907 = vadd.f32 0.0, %v906
      %908 = vmatmul.bf16.gmra.mxu0 %v885
      %v909 = vpop.f32.mrf.mxu0
      %v910 = vadd.f32 0.0, %v909
      %v911 = vpop.f32.mrf.mxu0
      %v912 = vadd.f32 0.0, %v911
      %913 = vmatmul.bf16.gmra.mxu0 %v888
      %v914 = vpop.f32.mrf.mxu0
      %v915 = vadd.f32 0.0, %v914
      %v916 = vpop.f32.mrf.mxu0
      %v917 = vadd.f32 0.0, %v916
      %918 = vdwg.mxu0
      %v919 = vadd.f32 %v817, %v900
      %v920 = vadd.f32 %v818, %v902
      %v921 = vadd.f32 %v819, %v905
      %v922 = vadd.f32 %v820, %v907
      %v923 = vadd.f32 %v821, %v910
      %v924 = vadd.f32 %v822, %v912
      %v925 = vadd.f32 %v823, %v915
      %v926 = vadd.f32 %v824, %v917
      %v927 = vld [vmem:[%s165 + $0x8] sm:$0xc]
      %v928 = vld [vmem:[%s165 + $0x28] sm:$0x3]
      %s929 = scalar_lea.vmem %s1, 64
      %v930 = vld [vmem:[%s929] sm:$0xf]
      %v931 = vld [vmem:[%s929 + $0x4] sm:$0xf]
      %v934 = vunpack.c.l.b16 %v927
      %v935 = vunpack.c.l.b16 %v928
      %v936 = vpack.c.b16 %v748, %v934
      %v937 = vpack.c.b16 %v935, %v935
      %vm938 = vcmask 1045504
      %v939 = vrot.slane %v936, 2
      %v940 = vrot.slane %v757, 2
      %v941 = vsel %vm938, %v939, %v940
      %v942 = vrot.slane %v758, 2
      %v943 = vsel %vm938, %v940, %v942
      %v944 = vrot.slane %v759, 2
      %v945 = vsel %vm938, %v942, %v944
      %v946 = vrot.slane %v937, 2
      %v947 = vsel %vm938, %v944, %v946
      %v950 = vunpack.c.l.b16 %v930
      %v951 = vunpack.c.l.b16 %v931
      %v952 = vpack.c.b16 %v951, %v950
      %v955 = vsel %vm243, %v941, 0
      %v958 = vsel %vm243, %v943, 0
      %v961 = vsel %vm243, %v945, 0
      %v964 = vsel %vm243, %v947, 0
      %966 = vmatpush.bf16.msra.mxu0 0
      %967 = vmatpush.bf16.msra.mxu0 0
      %968 = vmatpush.bf16.msra.mxu0 0
      %969 = vmatpush.bf16.msra.mxu0 0
      %970 = vmatpush.bf16.msra.mxu0 0
      %971 = vmatpush.bf16.msra.mxu0 0
      %972 = vmatpush.bf16.msra.mxu0 0
      %973 = vmatpush.bf16.msra.mxu0 %v952
      %974 = vmatmul.bf16.gmra.mxu0 %v955
      %v975 = vpop.f32.mrf.mxu0
      %v976 = vadd.f32 0.0, %v975
      %v977 = vpop.f32.mrf.mxu0
      %v978 = vadd.f32 0.0, %v977
      %979 = vmatmul.bf16.gmra.mxu0 %v958
      %v980 = vpop.f32.mrf.mxu0
      %v981 = vadd.f32 0.0, %v980
      %v982 = vpop.f32.mrf.mxu0
      %v983 = vadd.f32 0.0, %v982
      %984 = vmatmul.bf16.gmra.mxu0 %v961
      %v985 = vpop.f32.mrf.mxu0
      %v986 = vadd.f32 0.0, %v985
      %v987 = vpop.f32.mrf.mxu0
      %v988 = vadd.f32 0.0, %v987
      %989 = vmatmul.bf16.gmra.mxu0 %v964
      %v990 = vpop.f32.mrf.mxu0
      %v991 = vadd.f32 0.0, %v990
      %v992 = vpop.f32.mrf.mxu0
      %v993 = vadd.f32 0.0, %v992
      %994 = vdwg.mxu0
      %v995 = vadd.f32 %v919, %v976
      %v996 = vadd.f32 %v920, %v978
      %v997 = vadd.f32 %v921, %v981
      %v998 = vadd.f32 %v922, %v983
      %v999 = vadd.f32 %v923, %v986
      %v1000 = vadd.f32 %v924, %v988
      %v1001 = vadd.f32 %v925, %v991
      %v1002 = vadd.f32 %v926, %v993
      %v1003 = vld [vmem:[%s2] sm:$0x1]
      %v1005 = vperm.slane %v1003, 0
      %v1007 = vadd.f32 %v995, %v1005
      %v1008 = vadd.f32 %v996, %v1005
      %v1009 = vadd.f32 %v997, %v1005
      %v1010 = vadd.f32 %v998, %v1005
      %v1011 = vadd.f32 %v999, %v1005
      %v1012 = vadd.f32 %v1000, %v1005
      %v1013 = vadd.f32 %v1001, %v1005
      %v1014 = vadd.f32 %v1002, %v1005
      %v1015 = vmax.f32 %v1007, 0.0
      %v1016 = vmax.f32 %v1008, 0.0
      %v1017 = vmax.f32 %v1009, 0.0
      %v1018 = vmax.f32 %v1010, 0.0
      %v1019 = vmax.f32 %v1011, 0.0
      %v1020 = vmax.f32 %v1012, 0.0
      %v1021 = vmax.f32 %v1013, 0.0
      %v1022 = vmax.f32 %v1014, 0.0
      %v1023 = vmin.f32 %v1015, 6.0
      %v1024 = vmin.f32 %v1016, 6.0
      %v1025 = vmin.f32 %v1017, 6.0
      %v1026 = vmin.f32 %v1018, 6.0
      %v1027 = vmin.f32 %v1019, 6.0
      %v1028 = vmin.f32 %v1020, 6.0
      %v1029 = vmin.f32 %v1021, 6.0
      %v1030 = vmin.f32 %v1022, 6.0
      %v1031 = vmul.f32 %v1023, 42.5
      %v1032 = vmul.f32 %v1024, 42.5
      %v1033 = vmul.f32 %v1025, 42.5
      %v1034 = vmul.f32 %v1026, 42.5
      %v1035 = vmul.f32 %v1027, 42.5
      %v1036 = vmul.f32 %v1028, 42.5
      %v1037 = vmul.f32 %v1029, 42.5
      %v1038 = vmul.f32 %v1030, 42.5
      %v1039 = vround.ne.pseudo %v1031
      %v1040 = vround.ne.pseudo %v1032
      %v1041 = vround.ne.pseudo %v1033
      %v1042 = vround.ne.pseudo %v1034
      %v1043 = vround.ne.pseudo %v1035
      %v1044 = vround.ne.pseudo %v1036
      %v1045 = vround.ne.pseudo %v1037
      %v1046 = vround.ne.pseudo %v1038
      %v1047 = vmul.f32 %v1039, 0.023529412
      %v1048 = vmul.f32 %v1040, 0.023529412
      %v1049 = vmul.f32 %v1041, 0.023529412
      %v1050 = vmul.f32 %v1042, 0.023529412
      %v1051 = vmul.f32 %v1043, 0.023529412
      %v1052 = vmul.f32 %v1044, 0.023529412
      %v1053 = vmul.f32 %v1045, 0.023529412
      %v1054 = vmul.f32 %v1046, 0.023529412
      %v1055 = vpack.c.bf16 %v1047, %v1047
      %v1056 = vpack.c.bf16 %v1048, %v1048
      %v1057 = vpack.c.bf16 %v1049, %v1049
      %v1058 = vpack.c.bf16 %v1050, %v1050
      %v1059 = vpack.c.bf16 %v1051, %v1051
      %v1060 = vpack.c.bf16 %v1052, %v1052
      %v1061 = vpack.c.bf16 %v1053, %v1053
      %v1062 = vpack.c.bf16 %v1054, %v1054
      %vm1063 = vcmask 257024
      %1064 = vst.msk [vmem:[%s170] sm:$0xf] %vm1063, %v1055
      %1065 = vst.msk [vmem:[%s170 + $0x4] sm:$0xf] %vm1063, %v1056
      %1066 = vst.msk [vmem:[%s170 + $0x8] sm:$0xf] %vm1063, %v1057
      %1067 = vst.msk [vmem:[%s170 + $0xc] sm:$0xf] %vm1063, %v1058
      %1068 = vst.msk [vmem:[%s170 + $0x10] sm:$0xf] %vm1063, %v1059
      %1069 = vst.msk [vmem:[%s170 + $0x14] sm:$0xf] %vm1063, %v1060
      %1070 = vst.msk [vmem:[%s170 + $0x18] sm:$0xf] %vm1063, %v1061
      %vm1071 = vcmask 257024
      %vm1072 = vsmask.f32 3328
      %vm1073 = vmand %vm1071, %vm1072
      %v1074 = vld [vmem:[%s170 + $0x1c] sm:$0xf]
      %v1075 = vsel %vm1073, %v1062, %v1074
      %1076 = vst [vmem:[%s170 + $0x1c] sm:$0xf] %v1075
      %p1077 = scmp.lt.s32.totalorder %s14, 1
      %s1078 = scalar_select %p1077, %s14, 1
      %s1079 = smul.addr %s1078, 8
      %s1080 = smul.addr %s1079, 4
      %s1081 = scalar_lea.vmem %s3, %s1080
      // Predicated region
      $region33: #{pnet_forward.6} parent=31 // pred_check
        %p1082 = pneg %p100
      $region34: #{pnet_forward.6} parent=31 // pred_check_branch
        %1084 = sbr.rel (%p1082) target = $region36
      $region35: #{pnet_forward.6} parent=31 // pred_region
        _
      $region36: #{pnet_forward.6} parent=31 // pred_fallthru
        _
    $region32: #{pnet_forward.6} parent=5 // pred_fallthru
      _
    %p1085 = scmp.le.s32.totalorder 2, %s9
    // Predicated region
    $region37: #{pnet_forward.6} parent=5 // pred_check
      %p1086 = pneg %p1085
    $region38: #{pnet_forward.6} parent=5 // pred_check_branch
      %1088 = sbr.rel (%p1086) target = $region40
    $region39: #{pnet_forward.6} parent=5 // pred_region
      %s1089 = ssub.s32 %s9, 2
      // Predicated region
      $region41: #{pnet_forward.6} parent=39 // pred_check
        %p1090 = pneg %p106
      $region42: #{pnet_forward.6} parent=39 // pred_check_branch
        %1092 = sbr.rel (%p1090) target = $region44
      $region43: #{pnet_forward.6} parent=39 // pred_region
        %p1093 = scmp.lt.s32.totalorder %s15, 1
        %s1094 = scalar_select %p1093, %s15, 1
        %s1095 = smul.addr %s1094, 8
        %s1096 = smul.addr %s1095, 4
        %s1097 = scalar_lea.vmem %s3, %s1096
      $region44: #{pnet_forward.6} parent=39 // pred_fallthru
        _
    $region40: #{pnet_forward.6} parent=5 // pred_fallthru
      _
  $region6: #{pnet_forward.6} parent=0 // loop_footer
    %s13 = sadd.s32 1, %s9
  $region7: #{pnet_forward.6} parent=0 // loop_footer_branch
    %8 = sbr.rel target = $region3
  $region8: #{pnet_forward.6} parent=0 // loop_exit
    _

// kernel: pnet_forward.7
$region0: #{pnet_forward.7}
  #allocation0 [shape = 'u32[]', space=smem, size = 0x4, offset = 0x4, fixed_abs, tag = 'smem constant byte address 0x4 - core index']
  #allocation1 [shape = 'u32[72,128]{1,0:T(1,128)}', space=vmem, size = 0x9000, scoped, tag = 'internal scratch']
  %s0 = inlined_call_operand.vmem [shape: bf16[104,32], index: 0, kind: input, shape index: {}]
  %s1 = inlined_call_operand.vmem [shape: bf16[32,128], index: 1, kind: input, shape index: {}]
  %s2 = inlined_call_operand.vmem [shape: f32[1,128], index: 2, kind: input, shape index: {}]
  %s3 = inlined_call_operand.vmem [shape: f32[104,128], index: 3, kind: output, shape index: {}]
  %s4 = sld [smem:[#allocation0]]
  $region22: #{pnet_forward.7} parent=0
    _
  %s6 = ssub.s32 1, %s4
  %s7 = scalar_select 0, %s6, %s4
  // Predicated region
  $region2: #{pnet_forward.7} parent=0 // pred_check
    _
  $region3: #{pnet_forward.7} parent=0 // pred_check_branch
    %9 = sbr.rel (0) target = $region5
  $region4: #{pnet_forward.7} parent=0 // pred_region
    _
  $region5: #{pnet_forward.7} parent=0 // pred_fallthru
    _
  // Predicated region
  $region6: #{pnet_forward.7} parent=0 // pred_check
    _
  $region7: #{pnet_forward.7} parent=0 // pred_check_branch
    %11 = sbr.rel (0) target = $region9
  $region8: #{pnet_forward.7} parent=0 // pred_region
    _
  $region9: #{pnet_forward.7} parent=0 // pred_fallthru
    _
  // Predicated region
  $region10: #{pnet_forward.7} parent=0 // pred_check
    _
  $region11: #{pnet_forward.7} parent=0 // pred_check_branch
    %13 = sbr.rel (0) target = $region13
  $region12: #{pnet_forward.7} parent=0 // pred_region
    _
  $region13: #{pnet_forward.7} parent=0 // pred_fallthru
    _
  %v15 = vld [vmem:[%s0] sm:$0xf]
  %v16 = vld [vmem:[%s0 + $0x4] sm:$0xf]
  %v17 = vld [vmem:[%s0 + $0x8] sm:$0xf]
  %v18 = vld [vmem:[%s0 + $0xc] sm:$0xf]
  %v19 = vld [vmem:[%s0 + $0x10] sm:$0xf]
  %v20 = vld [vmem:[%s0 + $0x14] sm:$0xf]
  %v21 = vld [vmem:[%s0 + $0x18] sm:$0xf]
  %v22 = vld [vmem:[%s0 + $0x1c] sm:$0xf]
  %v23 = vld [vmem:[%s0 + $0x20] sm:$0xf]
  %v24 = vld [vmem:[%s0 + $0x24] sm:$0xf]
  %v25 = vld [vmem:[%s0 + $0x28] sm:$0xf]
  %v26 = vld [vmem:[%s0 + $0x2c] sm:$0xf]
  %v27 = vld [vmem:[%s0 + $0x30] sm:$0xf]
  %v28 = vld [vmem:[%s1] sm:$0xf]
  %v29 = vld [vmem:[%s1 + $0x4] sm:$0xf]
  %v30 = vld [vmem:[%s1 + $0x8] sm:$0xf]
  %v31 = vld [vmem:[%s1 + $0xc] sm:$0xf]
  %v32 = vld [vmem:[%s2] sm:$0x1]
  %v34 = vperm.slane %v32, 0
  %v49 = vunpack.c.l.b16 %v15
  %v50 = vunpack.c.l.b16 %v16
  %v51 = vunpack.c.l.b16 %v17
  %v52 = vunpack.c.l.b16 %v18
  %v53 = vunpack.c.l.b16 %v19
  %v54 = vunpack.c.l.b16 %v20
  %v55 = vunpack.c.l.b16 %v21
  %v56 = vunpack.c.l.b16 %v22
  %v57 = vunpack.c.l.b16 %v23
  %v58 = vunpack.c.l.b16 %v24
  %v59 = vunpack.c.l.b16 %v25
  %v60 = vunpack.c.l.b16 %v26
  %v61 = vunpack.c.l.b16 %v27
  %v62 = vpack.c.b16 %v50, %v49
  %v63 = vpack.c.b16 %v52, %v51
  %v64 = vpack.c.b16 %v54, %v53
  %v65 = vpack.c.b16 %v56, %v55
  %v66 = vpack.c.b16 %v58, %v57
  %v67 = vpack.c.b16 %v60, %v59
  %v68 = vpack.c.b16 %v61, %v61
  %v73 = vunpack.c.l.b16 %v28
  %v74 = vunpack.c.l.b16 %v29
  %v75 = vunpack.c.l.b16 %v30
  %v76 = vunpack.c.l.b16 %v31
  %v77 = vpack.c.b16 %v74, %v73
  %v78 = vpack.c.b16 %v76, %v75
  %vm81 = vcmask 261120
  %v83 = vsel %vm81, %v62, 0
  %v86 = vsel %vm81, %v63, 0
  %v89 = vsel %vm81, %v64, 0
  %v92 = vsel %vm81, %v65, 0
  %v95 = vsel %vm81, %v66, 0
  %v98 = vsel %vm81, %v67, 0
  %v101 = vsel %vm81, %v68, 0
  %103 = vmatpush.bf16.msra.mxu0 0
  %104 = vmatpush.bf16.msra.mxu0 0
  %105 = vmatpush.bf16.msra.mxu0 0
  %106 = vmatpush.bf16.msra.mxu0 0
  %107 = vmatpush.bf16.msra.mxu0 0
  %108 = vmatpush.bf16.msra.mxu0 0
  %109 = vmatpush.bf16.msra.mxu0 %v78
  %110 = vmatpush.bf16.msra.mxu0 %v77
  %111 = vmatmul.bf16.gmra.mxu0 %v83
  %v112 = vpop.f32.mrf.mxu0
  %v113 = vadd.f32 %v34, %v112
  %v114 = vpop.f32.mrf.mxu0
  %v115 = vadd.f32 %v34, %v114
  %116 = vmatmul.bf16.gmra.mxu0 %v86
  %v117 = vpop.f32.mrf.mxu0
  %v118 = vadd.f32 %v34, %v117
  %v119 = vpop.f32.mrf.mxu0
  %v120 = vadd.f32 %v34, %v119
  %121 = vmatmul.bf16.gmra.mxu0 %v89
  %v122 = vpop.f32.mrf.mxu0
  %v123 = vadd.f32 %v34, %v122
  %v124 = vpop.f32.mrf.mxu0
  %v125 = vadd.f32 %v34, %v124
  %126 = vmatmul.bf16.gmra.mxu0 %v92
  %v127 = vpop.f32.mrf.mxu0
  %v128 = vadd.f32 %v34, %v127
  %v129 = vpop.f32.mrf.mxu0
  %v130 = vadd.f32 %v34, %v129
  %131 = vmatmul.bf16.gmra.mxu0 %v95
  %v132 = vpop.f32.mrf.mxu0
  %v133 = vadd.f32 %v34, %v132
  %v134 = vpop.f32.mrf.mxu0
  %v135 = vadd.f32 %v34, %v134
  %136 = vmatmul.bf16.gmra.mxu0 %v98
  %v137 = vpop.f32.mrf.mxu0
  %v138 = vadd.f32 %v34, %v137
  %v139 = vpop.f32.mrf.mxu0
  %v140 = vadd.f32 %v34, %v139
  %141 = vmatmul.bf16.gmra.mxu0 %v101
  %v142 = vpop.f32.mrf.mxu0
  %v143 = vadd.f32 %v34, %v142
  %v144 = vpop.f32.mrf.mxu0
  %145 = vdwg.mxu0
  %146 = vst [vmem:[%s3] sm:$0xff] %v113
  %147 = vst [vmem:[%s3 + $0x8] sm:$0xff] %v115
  %148 = vst [vmem:[%s3 + $0x10] sm:$0xff] %v118
  %149 = vst [vmem:[%s3 + $0x18] sm:$0xff] %v120
  %150 = vst [vmem:[%s3 + $0x20] sm:$0xff] %v123
  %151 = vst [vmem:[%s3 + $0x28] sm:$0xff] %v125
  %152 = vst [vmem:[%s3 + $0x30] sm:$0xff] %v128
  %153 = vst [vmem:[%s3 + $0x38] sm:$0xff] %v130
  %154 = vst [vmem:[%s3 + $0x40] sm:$0xff] %v133
  %155 = vst [vmem:[%s3 + $0x48] sm:$0xff] %v135
  %156 = vst [vmem:[%s3 + $0x50] sm:$0xff] %v138
  %157 = vst [vmem:[%s3 + $0x58] sm:$0xff] %v140
  %158 = vst [vmem:[%s3 + $0x60] sm:$0xff] %v143
  // Predicated region
  $region14: #{pnet_forward.7} parent=0 // pred_check
    _
  $region15: #{pnet_forward.7} parent=0 // pred_check_branch
    %160 = sbr.rel (0) target = $region17
  $region16: #{pnet_forward.7} parent=0 // pred_region
    _
  $region17: #{pnet_forward.7} parent=0 // pred_fallthru
    _
  // Predicated region
  $region18: #{pnet_forward.7} parent=0 // pred_check
    _
  $region19: #{pnet_forward.7} parent=0 // pred_check_branch
    %162 = sbr.rel (0) target = $region21
  $region20: #{pnet_forward.7} parent=0 // pred_region
    _
  $region21: #{pnet_forward.7} parent=0 // pred_fallthru
    _

// kernel: pnet_forward.4
$region0: #{pnet_forward.4}
  #allocation0 [shape = 'u32[]', space=smem, size = 0x4, offset = 0x4, fixed_abs, tag = 'smem constant byte address 0x4 - core index']
  #allocation1 [shape = 'u32[72,128]{1,0:T(1,128)}', space=vmem, size = 0x9000, scoped, tag = 'internal scratch']
  %s0 = inlined_call_operand.vmem [shape: bf16[2,626,3], index: 0, kind: input, shape index: {}]
  %s1 = inlined_call_operand.vmem [shape: bf16[9,3,10], index: 1, kind: input, shape index: {}]
  %s2 = inlined_call_operand.vmem [shape: f32[1,10], index: 2, kind: input, shape index: {}]
  %s3 = inlined_call_operand.vmem [shape: bf16[2,528,10], index: 3, kind: output, shape index: {}]
  %s4 = sld [smem:[#allocation0]]
  $region45: #{pnet_forward.4} parent=0
    _
  %s6 = ssub.s32 1, %s4
  %s7 = scalar_select 0, %s6, %s4
  loop: start=0, step=1, limit=4
  $region2: #{pnet_forward.4} parent=0 // loop_pre_header
    _
  $region3: #{pnet_forward.4} parent=0 // loop_header
    %s9 = sphi 0, %s13
    %p10 = scmp.ge.s32.totalorder %s9, 4
    %s19 = sphi 0, %s21
    %s22 = sphi 0, %s19
    %s23 = sphi 0, %s22
    %s39 = sphi 0, %s23
    %s43 = sphi 0, %s43
    %s45 = sphi 0, %s43
    %s46 = sphi 0, %s45
    %s60 = sphi 0, %s46
    %s64 = sphi 0, %s64
    %s66 = sphi 0, %s64
    %s67 = sphi 0, %s66
    %s81 = sphi 0, %s67
    %s87 = sphi 0, %s89
    %s90 = sphi 0, %s87
    %s91 = sphi 0, %s90
    %s107 = sphi 0, %s91
  $region4: #{pnet_forward.4} parent=0 // loop_header_branch
    %12 = sbr.rel (%p10) target = $region8
  $region5: #{pnet_forward.4} parent=0 // loop_body
    %s14 = ssub.s32 %s9, 1
    %s15 = ssub.s32 %s9, 2
    %s16 = sadd.s32 %s9, 1
    %s17 = ssub.s32 %s9, %s16
    %p18 = scmp.eq.s32.totalorder %s17, 0
    %s20 = sadd.s32 %s19, 1
    %s21 = scalar_select %p18, %s19, %s20
    %p24 = pneg %p18
    %p25 = scmp.eq.s32.totalorder %s9, 1
    %p26 = por %p24, %p25
    %p27 = scmp.ne.s32.totalorder %s19, %s22
    %p28 = scmp.eq.s32.totalorder %s9, 0
    %p29 = por %p27, %p28
    %p30 = scmp.ne.s32.totalorder %s19, %s22
    %p31 = scmp.eq.s32.totalorder %s14, 1
    %p32 = por %p30, %p31
    %p33 = scmp.ne.s32.totalorder %s22, %s23
    %p34 = scmp.eq.s32.totalorder %s14, 0
    %p35 = por %p33, %p34
    %p36 = scmp.ne.s32.totalorder %s22, %s23
    %p37 = scmp.eq.s32.totalorder %s15, 1
    %p38 = por %p36, %p37
    %p40 = scmp.ne.s32.totalorder %s23, %s39
    %p41 = scmp.eq.s32.totalorder %s15, 0
    %p42 = por %p40, %p41
    %s44 = sadd.s32 %s43, 1
    %p47 = scmp.eq.s32.totalorder %s9, 1
    %p48 = scmp.ne.s32.totalorder %s43, %s45
    %p49 = scmp.eq.s32.totalorder %s9, 0
    %p50 = por %p48, %p49
    %p51 = scmp.ne.s32.totalorder %s43, %s45
    %p52 = scmp.eq.s32.totalorder %s14, 1
    %p53 = por %p51, %p52
    %p54 = scmp.ne.s32.totalorder %s45, %s46
    %p55 = scmp.eq.s32.totalorder %s14, 0
    %p56 = por %p54, %p55
    %p57 = scmp.ne.s32.totalorder %s45, %s46
    %p58 = scmp.eq.s32.totalorder %s15, 1
    %p59 = por %p57, %p58
    %p61 = scmp.ne.s32.totalorder %s46, %s60
    %p62 = scmp.eq.s32.totalorder %s15, 0
    %p63 = por %p61, %p62
    %s65 = sadd.s32 %s64, 1
    %p68 = scmp.eq.s32.totalorder %s9, 1
    %p69 = scmp.ne.s32.totalorder %s64, %s66
    %p70 = scmp.eq.s32.totalorder %s9, 0
    %p71 = por %p69, %p70
    %p72 = scmp.ne.s32.totalorder %s64, %s66
    %p73 = scmp.eq.s32.totalorder %s14, 1
    %p74 = por %p72, %p73
    %p75 = scmp.ne.s32.totalorder %s66, %s67
    %p76 = scmp.eq.s32.totalorder %s14, 0
    %p77 = por %p75, %p76
    %p78 = scmp.ne.s32.totalorder %s66, %s67
    %p79 = scmp.eq.s32.totalorder %s15, 1
    %p80 = por %p78, %p79
    %p82 = scmp.ne.s32.totalorder %s67, %s81
    %p83 = scmp.eq.s32.totalorder %s15, 0
    %p84 = por %p82, %p83
    %s85 = ssub.s32 %s9, %s16
    %p86 = scmp.eq.s32.totalorder %s85, 0
    %s88 = sadd.s32 %s87, 1
    %s89 = scalar_select %p86, %s87, %s88
    %p92 = pneg %p86
    %p93 = scmp.eq.s32.totalorder %s9, 1
    %p94 = por %p92, %p93
    %p95 = scmp.ne.s32.totalorder %s87, %s90
    %p96 = scmp.eq.s32.totalorder %s9, 0
    %p97 = por %p95, %p96
    %p98 = scmp.ne.s32.totalorder %s87, %s90
    %p99 = scmp.eq.s32.totalorder %s14, 1
    %p100 = por %p98, %p99
    %p101 = scmp.ne.s32.totalorder %s90, %s91
    %p102 = scmp.eq.s32.totalorder %s14, 0
    %p103 = por %p101, %p102
    %p104 = scmp.ne.s32.totalorder %s90, %s91
    %p105 = scmp.eq.s32.totalorder %s15, 1
    %p106 = por %p104, %p105
    %p108 = scmp.ne.s32.totalorder %s91, %s107
    %p109 = scmp.eq.s32.totalorder %s15, 0
    %p110 = por %p108, %p109
    %p111 = scmp.le.s32.totalorder 1, %s9
    %p112 = scmp.lt.s32.totalorder %s9, 3
    %p113 = pnand %p111, %p112
    %p114 = pneg %p113
    // Predicated region
    $region9: #{pnet_forward.4} parent=5 // pred_check
      _
    $region10: #{pnet_forward.4} parent=5 // pred_check_branch
      %116 = sbr.rel (%p113) target = $region12
    $region11: #{pnet_forward.4} parent=5 // pred_region
      %s117 = ssub.s32 %s9, 1
      // Predicated region
      $region13: #{pnet_forward.4} parent=11 // pred_check
        %p118 = pneg %p56
      $region14: #{pnet_forward.4} parent=11 // pred_check_branch
        %120 = sbr.rel (%p118) target = $region16
      $region15: #{pnet_forward.4} parent=11 // pred_region
        _
      $region16: #{pnet_forward.4} parent=11 // pred_fallthru
        _
      // Predicated region
      $region17: #{pnet_forward.4} parent=11 // pred_check
        %p121 = pneg %p77
      $region18: #{pnet_forward.4} parent=11 // pred_check_branch
        %123 = sbr.rel (%p121) target = $region20
      $region19: #{pnet_forward.4} parent=11 // pred_region
        _
      $region20: #{pnet_forward.4} parent=11 // pred_fallthru
        _
    $region12: #{pnet_forward.4} parent=5 // pred_fallthru
      _
    %p124 = scmp.lt.s32.totalorder %s9, 2
    // Predicated region
    $region21: #{pnet_forward.4} parent=5 // pred_check
      %p125 = pneg %p124
    $region22: #{pnet_forward.4} parent=5 // pred_check_branch
      %127 = sbr.rel (%p125) target = $region24
    $region23: #{pnet_forward.4} parent=5 // pred_region
      // Predicated region
      $region25: #{pnet_forward.4} parent=23 // pred_check
        %p128 = pneg %p29
      $region26: #{pnet_forward.4} parent=23 // pred_check_branch
        %130 = sbr.rel (%p128) target = $region28
      $region27: #{pnet_forward.4} parent=23 // pred_region
        %p131 = scmp.lt.s32.totalorder %s9, 1
        %s132 = scalar_select %p131, %s9, 1
        %s133 = smul.addr %s132, 79
        %s134 = smul.addr %s133, 4
        %s135 = scalar_lea.vmem %s0, %s134
      $region28: #{pnet_forward.4} parent=23 // pred_fallthru
        _
    $region24: #{pnet_forward.4} parent=5 // pred_fallthru
      _
    %p136 = scmp.le.s32.totalorder 1, %s9
    %p137 = scmp.lt.s32.totalorder %s9, 3
    %p138 = pnand %p136, %p137
    %p139 = pneg %p138
    // Predicated region
    $region29: #{pnet_forward.4} parent=5 // pred_check
      _
    $region30: #{pnet_forward.4} parent=5 // pred_check_branch
      %141 = sbr.rel (%p138) target = $region32
    $region31: #{pnet_forward.4} parent=5 // pred_region
      %s142 = ssub.s32 %s9, 1
      %p143 = scmp.lt.s32.totalorder %s14, 1
      %s144 = scalar_select %p143, %s14, 1
      %s145 = smul.addr %s144, 79
      %s146 = smul.addr %s145, 4
      %s147 = scalar_lea.vmem %s0, %s146
      %p148 = pneg %p35
      %p149 = pneg %p32
      %p150 = pneg %p56
      %p151 = pneg %p53
      %p152 = pneg %p77
      %p153 = pneg %p74
      %p154 = pneg %p103
      %p155 = pneg %p100
      %p156 = scmp.lt.s32.totalorder %s14, 1
      %s157 = scalar_select %p156, %s14, 1
      %s158 = smul.addr %s157, 66
      %s159 = smul.addr %s158, 4
      %s160 = scalar_lea.vmem %s3, %s159
      %p161 = scmp.lt.s32.totalorder %s14, 1
      %s162 = scalar_select %p161, %s14, 1
      %s163 = smul.addr %s162, 79
      %s164 = smul.addr %s163, 4
      %s165 = scalar_lea.vmem %s0, %s164
      %p166 = scmp.lt.s32.totalorder %s14, 1
      %s167 = scalar_select %p166, %s14, 1
      %s168 = smul.addr %s167, 66
      %s169 = smul.addr %s168, 4
      %s170 = scalar_lea.vmem %s3, %s169
      %v172 = vld [vmem:[%s165] sm:$0xf]
      %v173 = vld [vmem:[%s165 + $0x4] sm:$0xf]
      %v174 = vld [vmem:[%s165 + $0x8] sm:$0xf]
      %v175 = vld [vmem:[%s165 + $0xc] sm:$0xf]
      %v176 = vld [vmem:[%s165 + $0x10] sm:$0xf]
      %v177 = vld [vmem:[%s165 + $0x14] sm:$0xf]
      %v178 = vld [vmem:[%s165 + $0x18] sm:$0xf]
      %v179 = vld [vmem:[%s165 + $0x1c] sm:$0xf]
      %v180 = vld [vmem:[%s165 + $0x20] sm:$0xf]
      %v181 = vld [vmem:[%s165 + $0x24] sm:$0xf]
      %v182 = vld [vmem:[%s165 + $0x28] sm:$0xf]
      %v183 = vld [vmem:[%s165 + $0x2c] sm:$0xf]
      %v184 = vld [vmem:[%s165 + $0x30] sm:$0xf]
      %v185 = vld [vmem:[%s165 + $0x34] sm:$0xf]
      %v186 = vld [vmem:[%s165 + $0x38] sm:$0xf]
      %v187 = vld [vmem:[%s165 + $0x3c] sm:$0xf]
      %v188 = vld [vmem:[%s165 + $0x40] sm:$0xf]
      %v189 = vld [vmem:[%s165 + $0x44] sm:$0xf]
      %v190 = vld [vmem:[%s165 + $0x48] sm:$0xf]
      %v191 = vld [vmem:[%s165 + $0x4c] sm:$0xf]
      %v192 = vld [vmem:[%s165 + $0x50] sm:$0xf]
      %v193 = vld [vmem:[%s165 + $0x54] sm:$0xf]
      %v194 = vld [vmem:[%s165 + $0x58] sm:$0xf]
      %v195 = vld [vmem:[%s165 + $0x5c] sm:$0xf]
      %v196 = vld [vmem:[%s165 + $0x60] sm:$0xf]
      %v197 = vld [vmem:[%s165 + $0x64] sm:$0xf]
      %v198 = vld [vmem:[%s165 + $0x68] sm:$0xf]
      %v199 = vld [vmem:[%s165 + $0x6c] sm:$0xf]
      %v200 = vld [vmem:[%s165 + $0x70] sm:$0xf]
      %v201 = vld [vmem:[%s165 + $0x74] sm:$0xf]
      %v202 = vld [vmem:[%s165 + $0x78] sm:$0xf]
      %v203 = vld [vmem:[%s165 + $0x7c] sm:$0xf]
      %v204 = vld [vmem:[%s165 + $0x80] sm:$0xf]
      %v205 = vld [vmem:[%s165 + $0x84] sm:$0xf]
      %v206 = vld [vmem:[%s165 + $0x88] sm:$0xf]
      %v207 = vld [vmem:[%s165 + $0x8c] sm:$0xf]
      %v208 = vld [vmem:[%s165 + $0x90] sm:$0xf]
      %v209 = vld [vmem:[%s165 + $0x94] sm:$0xf]
      %v210 = vld [vmem:[%s165 + $0x98] sm:$0xf]
      %v211 = vld [vmem:[%s165 + $0x9c] sm:$0xf]
      %v212 = vld [vmem:[%s165 + $0xa0] sm:$0xf]
      %v213 = vld [vmem:[%s165 + $0xa4] sm:$0xf]
      %v214 = vld [vmem:[%s165 + $0xa8] sm:$0xf]
      %v215 = vld [vmem:[%s165 + $0xac] sm:$0xf]
      %v216 = vld [vmem:[%s165 + $0xb0] sm:$0xf]
      %v217 = vld [vmem:[%s165 + $0xb4] sm:$0xf]
      %v218 = vld [vmem:[%s165 + $0xb8] sm:$0xf]
      %v219 = vld [vmem:[%s165 + $0xbc] sm:$0xf]
      %v220 = vld [vmem:[%s165 + $0xc0] sm:$0xf]
      %v221 = vld [vmem:[%s165 + $0xc4] sm:$0xf]
      %v222 = vld [vmem:[%s165 + $0xc8] sm:$0xf]
      %v223 = vld [vmem:[%s165 + $0xcc] sm:$0xf]
      %v224 = vld [vmem:[%s165 + $0xd0] sm:$0xf]
      %v225 = vld [vmem:[%s165 + $0xd4] sm:$0xf]
      %v226 = vld [vmem:[%s165 + $0xd8] sm:$0xf]
      %v227 = vld [vmem:[%s165 + $0xdc] sm:$0xf]
      %v228 = vld [vmem:[%s165 + $0xe0] sm:$0xf]
      %v229 = vld [vmem:[%s165 + $0xe4] sm:$0xf]
      %v230 = vld [vmem:[%s165 + $0xe8] sm:$0xf]
      %v231 = vld [vmem:[%s165 + $0xec] sm:$0xf]
      %v232 = vld [vmem:[%s165 + $0xf0] sm:$0xf]
      %v233 = vld [vmem:[%s165 + $0xf4] sm:$0xf]
      %v234 = vld [vmem:[%s165 + $0xf8] sm:$0xf]
      %v235 = vld [vmem:[%s165 + $0xfc] sm:$0xf]
      %v236 = vld [vmem:[%s165 + $0x100] sm:$0xf]
      %v237 = vld [vmem:[%s165 + $0x104] sm:$0xf]
      %v238 = vld [vmem:[%s1] sm:$0x3]
      %v239 = vld [vmem:[%s165 + $0x108] sm:$0x1]
      %s240 = scalar_lea.vmem %s1, 2
      %v241 = vld [vmem:[%s240] sm:$0x3]
      %v309 = vunpack.c.l.b16 %v172
      %v310 = vunpack.c.l.b16 %v173
      %v311 = vunpack.c.l.b16 %v174
      %v312 = vunpack.c.l.b16 %v175
      %v313 = vunpack.c.l.b16 %v176
      %v314 = vunpack.c.l.b16 %v177
      %v315 = vunpack.c.l.b16 %v178
      %v316 = vunpack.c.l.b16 %v179
      %v317 = vunpack.c.l.b16 %v180
      %v318 = vunpack.c.l.b16 %v181
      %v319 = vunpack.c.l.b16 %v182
      %v320 = vunpack.c.l.b16 %v183
      %v321 = vunpack.c.l.b16 %v184
      %v322 = vunpack.c.l.b16 %v185
      %v323 = vunpack.c.l.b16 %v186
      %v324 = vunpack.c.l.b16 %v187
      %v325 = vunpack.c.l.b16 %v188
      %v326 = vunpack.c.l.b16 %v189
      %v327 = vunpack.c.l.b16 %v190
      %v328 = vunpack.c.l.b16 %v191
      %v329 = vunpack.c.l.b16 %v192
      %v330 = vunpack.c.l.b16 %v193
      %v331 = vunpack.c.l.b16 %v194
      %v332 = vunpack.c.l.b16 %v195
      %v333 = vunpack.c.l.b16 %v196
      %v334 = vunpack.c.l.b16 %v197
      %v335 = vunpack.c.l.b16 %v198
      %v336 = vunpack.c.l.b16 %v199
      %v337 = vunpack.c.l.b16 %v200
      %v338 = vunpack.c.l.b16 %v201
      %v339 = vunpack.c.l.b16 %v202
      %v340 = vunpack.c.l.b16 %v203
      %v341 = vunpack.c.l.b16 %v204
      %v342 = vunpack.c.l.b16 %v205
      %v343 = vunpack.c.l.b16 %v206
      %v344 = vunpack.c.l.b16 %v207
      %v345 = vunpack.c.l.b16 %v208
      %v346 = vunpack.c.l.b16 %v209
      %v347 = vunpack.c.l.b16 %v210
      %v348 = vunpack.c.l.b16 %v211
      %v349 = vunpack.c.l.b16 %v212
      %v350 = vunpack.c.l.b16 %v213
      %v351 = vunpack.c.l.b16 %v214
      %v352 = vunpack.c.l.b16 %v215
      %v353 = vunpack.c.l.b16 %v216
      %v354 = vunpack.c.l.b16 %v217
      %v355 = vunpack.c.l.b16 %v218
      %v356 = vunpack.c.l.b16 %v219
      %v357 = vunpack.c.l.b16 %v220
      %v358 = vunpack.c.l.b16 %v221
      %v359 = vunpack.c.l.b16 %v222
      %v360 = vunpack.c.l.b16 %v223
      %v361 = vunpack.c.l.b16 %v224
      %v362 = vunpack.c.l.b16 %v225
      %v363 = vunpack.c.l.b16 %v226
      %v364 = vunpack.c.l.b16 %v227
      %v365 = vunpack.c.l.b16 %v228
      %v366 = vunpack.c.l.b16 %v229
      %v367 = vunpack.c.l.b16 %v230
      %v368 = vunpack.c.l.b16 %v231
      %v369 = vunpack.c.l.b16 %v232
      %v370 = vunpack.c.l.b16 %v233
      %v371 = vunpack.c.l.b16 %v234
      %v372 = vunpack.c.l.b16 %v235
      %v373 = vunpack.c.l.b16 %v236
      %v374 = vunpack.c.l.b16 %v237
      %v375 = vunpack.c.l.b16 %v239
      %v376 = vpack.c.b16 %v310, %v309
      %v377 = vpack.c.b16 %v312, %v311
      %v378 = vpack.c.b16 %v314, %v313
      %v379 = vpack.c.b16 %v316, %v315
      %v380 = vpack.c.b16 %v318, %v317
      %v381 = vpack.c.b16 %v320, %v319
      %v382 = vpack.c.b16 %v322, %v321
      %v383 = vpack.c.b16 %v324, %v323
      %v384 = vpack.c.b16 %v326, %v325
      %v385 = vpack.c.b16 %v328, %v327
      %v386 = vpack.c.b16 %v330, %v329
      %v387 = vpack.c.b16 %v332, %v331
      %v388 = vpack.c.b16 %v334, %v333
      %v389 = vpack.c.b16 %v336, %v335
      %v390 = vpack.c.b16 %v338, %v337
      %v391 = vpack.c.b16 %v340, %v339
      %v392 = vpack.c.b16 %v342, %v341
      %v393 = vpack.c.b16 %v344, %v343
      %v394 = vpack.c.b16 %v346, %v345
      %v395 = vpack.c.b16 %v348, %v347
      %v396 = vpack.c.b16 %v350, %v349
      %v397 = vpack.c.b16 %v352, %v351
      %v398 = vpack.c.b16 %v354, %v353
      %v399 = vpack.c.b16 %v356, %v355
      %v400 = vpack.c.b16 %v358, %v357
      %v401 = vpack.c.b16 %v360, %v359
      %v402 = vpack.c.b16 %v362, %v361
      %v403 = vpack.c.b16 %v364, %v363
      %v404 = vpack.c.b16 %v366, %v365
      %v405 = vpack.c.b16 %v368, %v367
      %v406 = vpack.c.b16 %v370, %v369
      %v407 = vpack.c.b16 %v372, %v371
      %v408 = vpack.c.b16 %v374, %v373
      %v409 = vpack.c.b16 %v375, %v375
      %vm410 = vsmask.f32 7424
      %v412 = vshrl.u32 %v376, 16
      %v414 = vshll.u32 %v376, 16
      %v416 = vrot.slane %v414, 1
      %v417 = vor.u32 %v412, %v416
      %v419 = vshll.u32 %v377, 16
      %v421 = vrot.slane %v419, 1
      %v422 = vsel %vm410, %v417, %v421
      %v423 = vshrl.u32 %v377, 16
      %v425 = vor.u32 %v423, %v421
      %v427 = vshll.u32 %v378, 16
      %v429 = vrot.slane %v427, 1
      %v430 = vsel %vm410, %v425, %v429
      %v431 = vshrl.u32 %v378, 16
      %v433 = vor.u32 %v431, %v429
      %v435 = vshll.u32 %v379, 16
      %v437 = vrot.slane %v435, 1
      %v438 = vsel %vm410, %v433, %v437
      %v439 = vshrl.u32 %v379, 16
      %v441 = vor.u32 %v439, %v437
      %v443 = vshll.u32 %v380, 16
      %v445 = vrot.slane %v443, 1
      %v446 = vsel %vm410, %v441, %v445
      %v447 = vshrl.u32 %v380, 16
      %v449 = vor.u32 %v447, %v445
      %v451 = vshll.u32 %v381, 16
      %v453 = vrot.slane %v451, 1
      %v454 = vsel %vm410, %v449, %v453
      %v455 = vshrl.u32 %v381, 16
      %v457 = vor.u32 %v455, %v453
      %v459 = vshll.u32 %v382, 16
      %v461 = vrot.slane %v459, 1
      %v462 = vsel %vm410, %v457, %v461
      %v463 = vshrl.u32 %v382, 16
      %v465 = vor.u32 %v463, %v461
      %v467 = vshll.u32 %v383, 16
      %v469 = vrot.slane %v467, 1
      %v470 = vsel %vm410, %v465, %v469
      %v471 = vshrl.u32 %v383, 16
      %v473 = vor.u32 %v471, %v469
      %v475 = vshll.u32 %v384, 16
      %v477 = vrot.slane %v475, 1
      %v478 = vsel %vm410, %v473, %v477
      %v479 = vshrl.u32 %v384, 16
      %v481 = vor.u32 %v479, %v477
      %v483 = vshll.u32 %v385, 16
      %v485 = vrot.slane %v483, 1
      %v486 = vsel %vm410, %v481, %v485
      %v487 = vshrl.u32 %v385, 16
      %v489 = vor.u32 %v487, %v485
      %v491 = vshll.u32 %v386, 16
      %v493 = vrot.slane %v491, 1
      %v494 = vsel %vm410, %v489, %v493
      %v495 = vshrl.u32 %v386, 16
      %v497 = vor.u32 %v495, %v493
      %v499 = vshll.u32 %v387, 16
      %v501 = vrot.slane %v499, 1
      %v502 = vsel %vm410, %v497, %v501
      %v503 = vshrl.u32 %v387, 16
      %v505 = vor.u32 %v503, %v501
      %v507 = vshll.u32 %v388, 16
      %v509 = vrot.slane %v507, 1
      %v510 = vsel %vm410, %v505, %v509
      %v511 = vshrl.u32 %v388, 16
      %v513 = vor.u32 %v511, %v509
      %v515 = vshll.u32 %v389, 16
      %v517 = vrot.slane %v515, 1
      %v518 = vsel %vm410, %v513, %v517
      %v519 = vshrl.u32 %v389, 16
      %v521 = vor.u32 %v519, %v517
      %v523 = vshll.u32 %v390, 16
      %v525 = vrot.slane %v523, 1
      %v526 = vsel %vm410, %v521, %v525
      %v527 = vshrl.u32 %v390, 16
      %v529 = vor.u32 %v527, %v525
      %v531 = vshll.u32 %v391, 16
      %v533 = vrot.slane %v531, 1
      %v534 = vsel %vm410, %v529, %v533
      %v535 = vshrl.u32 %v391, 16
      %v537 = vor.u32 %v535, %v533
      %v539 = vshll.u32 %v392, 16
      %v541 = vrot.slane %v539, 1
      %v542 = vsel %vm410, %v537, %v541
      %v543 = vshrl.u32 %v392, 16
      %v545 = vor.u32 %v543, %v541
      %v547 = vshll.u32 %v393, 16
      %v549 = vrot.slane %v547, 1
      %v550 = vsel %vm410, %v545, %v549
      %v551 = vshrl.u32 %v393, 16
      %v553 = vor.u32 %v551, %v549
      %v555 = vshll.u32 %v394, 16
      %v557 = vrot.slane %v555, 1
      %v558 = vsel %vm410, %v553, %v557
      %v559 = vshrl.u32 %v394, 16
      %v561 = vor.u32 %v559, %v557
      %v563 = vshll.u32 %v395, 16
      %v565 = vrot.slane %v563, 1
      %v566 = vsel %vm410, %v561, %v565
      %v567 = vshrl.u32 %v395, 16
      %v569 = vor.u32 %v567, %v565
      %v571 = vshll.u32 %v396, 16
      %v573 = vrot.slane %v571, 1
      %v574 = vsel %vm410, %v569, %v573
      %v575 = vshrl.u32 %v396, 16
      %v577 = vor.u32 %v575, %v573
      %v579 = vshll.u32 %v397, 16
      %v581 = vrot.slane %v579, 1
      %v582 = vsel %vm410, %v577, %v581
      %v583 = vshrl.u32 %v397, 16
      %v585 = vor.u32 %v583, %v581
      %v587 = vshll.u32 %v398, 16
      %v589 = vrot.slane %v587, 1
      %v590 = vsel %vm410, %v585, %v589
      %v591 = vshrl.u32 %v398, 16
      %v593 = vor.u32 %v591, %v589
      %v595 = vshll.u32 %v399, 16
      %v597 = vrot.slane %v595, 1
      %v598 = vsel %vm410, %v593, %v597
      %v599 = vshrl.u32 %v399, 16
      %v601 = vor.u32 %v599, %v597
      %v603 = vshll.u32 %v400, 16
      %v605 = vrot.slane %v603, 1
      %v606 = vsel %vm410, %v601, %v605
      %v607 = vshrl.u32 %v400, 16
      %v609 = vor.u32 %v607, %v605
      %v611 = vshll.u32 %v401, 16
      %v613 = vrot.slane %v611, 1
      %v614 = vsel %vm410, %v609, %v613
      %v615 = vshrl.u32 %v401, 16
      %v617 = vor.u32 %v615, %v613
      %v619 = vshll.u32 %v402, 16
      %v621 = vrot.slane %v619, 1
      %v622 = vsel %vm410, %v617, %v621
      %v623 = vshrl.u32 %v402, 16
      %v625 = vor.u32 %v623, %v621
      %v627 = vshll.u32 %v403, 16
      %v629 = vrot.slane %v627, 1
      %v630 = vsel %vm410, %v625, %v629
      %v631 = vshrl.u32 %v403, 16
      %v633 = vor.u32 %v631, %v629
      %v635 = vshll.u32 %v404, 16
      %v637 = vrot.slane %v635, 1
      %v638 = vsel %vm410, %v633, %v637
      %v639 = vshrl.u32 %v404, 16
      %v641 = vor.u32 %v639, %v637
      %v643 = vshll.u32 %v405, 16
      %v645 = vrot.slane %v643, 1
      %v646 = vsel %vm410, %v641, %v645
      %v647 = vshrl.u32 %v405, 16
      %v649 = vor.u32 %v647, %v645
      %v651 = vshll.u32 %v406, 16
      %v653 = vrot.slane %v651, 1
      %v654 = vsel %vm410, %v649, %v653
      %v655 = vshrl.u32 %v406, 16
      %v657 = vor.u32 %v655, %v653
      %v659 = vshll.u32 %v407, 16
      %v661 = vrot.slane %v659, 1
      %v662 = vsel %vm410, %v657, %v661
      %v663 = vshrl.u32 %v407, 16
      %v665 = vor.u32 %v663, %v661
      %v667 = vshll.u32 %v408, 16
      %v669 = vrot.slane %v667, 1
      %v670 = vsel %vm410, %v665, %v669
      %v671 = vshrl.u32 %v408, 16
      %v673 = vor.u32 %v671, %v669
      %v675 = vshll.u32 %v409, 16
      %v677 = vrot.slane %v675, 1
      %v678 = vsel %vm410, %v673, %v677
      %vm679 = vcmask 23552
      %v681 = vsel %vm679, %v422, 0
      %v684 = vsel %vm679, %v430, 0
      %v687 = vsel %vm679, %v438, 0
      %v690 = vsel %vm679, %v446, 0
      %v693 = vsel %vm679, %v454, 0
      %v696 = vsel %vm679, %v462, 0
      %v699 = vsel %vm679, %v470, 0
      %v702 = vsel %vm679, %v478, 0
      %v705 = vsel %vm679, %v486, 0
      %v708 = vsel %vm679, %v494, 0
      %v711 = vsel %vm679, %v502, 0
      %v714 = vsel %vm679, %v510, 0
      %v717 = vsel %vm679, %v518, 0
      %v720 = vsel %vm679, %v526, 0
      %v723 = vsel %vm679, %v534, 0
      %v726 = vsel %vm679, %v542, 0
      %v729 = vsel %vm679, %v550, 0
      %v732 = vsel %vm679, %v558, 0
      %v735 = vsel %vm679, %v566, 0
      %v738 = vsel %vm679, %v574, 0
      %v741 = vsel %vm679, %v582, 0
      %v744 = vsel %vm679, %v590, 0
      %v747 = vsel %vm679, %v598, 0
      %v750 = vsel %vm679, %v606, 0
      %v753 = vsel %vm679, %v614, 0
      %v756 = vsel %vm679, %v622, 0
      %v759 = vsel %vm679, %v630, 0
      %v762 = vsel %vm679, %v638, 0
      %v765 = vsel %vm679, %v646, 0
      %v768 = vsel %vm679, %v654, 0
      %v771 = vsel %vm679, %v662, 0
      %v774 = vsel %vm679, %v670, 0
      %v777 = vsel %vm679, %v678, 0
      %vm779 = vcmask 1040384
      %vm780 = vcmask 1041408
      %v781 = vsel %vm779, 4294967295, 65535
      %v782 = vsel %vm780, %v781, 0
      %v784 = vand.u32 %v241, %v782
      %786 = vmatpush.bf16.msra.mxu0 0
      %787 = vmatpush.bf16.msra.mxu0 0
      %788 = vmatpush.bf16.msra.mxu0 0
      %789 = vmatpush.bf16.msra.mxu0 0
      %790 = vmatpush.bf16.msra.mxu0 0
      %791 = vmatpush.bf16.msra.mxu0 0
      %792 = vmatpush.bf16.msra.mxu0 0
      %793 = vmatpush.bf16.msra.mxu0 %v784
      %794 = vmatmul.bf16.gmra.mxu0 %v681
      %v795 = vpop.f32.mrf.mxu0
      %v796 = vadd.f32 0.0, %v795
      %v797 = vpop.f32.mrf.mxu0
      %v798 = vadd.f32 0.0, %v797
      %799 = vmatmul.bf16.gmra.mxu0 %v684
      %v800 = vpop.f32.mrf.mxu0
      %v801 = vadd.f32 0.0, %v800
      %v802 = vpop.f32.mrf.mxu0
      %v803 = vadd.f32 0.0, %v802
      %804 = vmatmul.bf16.gmra.mxu0 %v687
      %v805 = vpop.f32.mrf.mxu0
      %v806 = vadd.f32 0.0, %v805
      %v807 = vpop.f32.mrf.mxu0
      %v808 = vadd.f32 0.0, %v807
      %809 = vmatmul.bf16.gmra.mxu0 %v690
      %v810 = vpop.f32.mrf.mxu0
      %v811 = vadd.f32 0.0, %v810
      %v812 = vpop.f32.mrf.mxu0
      %v813 = vadd.f32 0.0, %v812
      %814 = vmatmul.bf16.gmra.mxu0 %v693
      %v815 = vpop.f32.mrf.mxu0
      %v816 = vadd.f32 0.0, %v815
      %v817 = vpop.f32.mrf.mxu0
      %v818 = vadd.f32 0.0, %v817
      %819 = vmatmul.bf16.gmra.mxu0 %v696
      %v820 = vpop.f32.mrf.mxu0
      %v821 = vadd.f32 0.0, %v820
      %v822 = vpop.f32.mrf.mxu0
      %v823 = vadd.f32 0.0, %v822
      %824 = vmatmul.bf16.gmra.mxu0 %v699
      %v825 = vpop.f32.mrf.mxu0
      %v826 = vadd.f32 0.0, %v825
      %v827 = vpop.f32.mrf.mxu0
      %v828 = vadd.f32 0.0, %v827
      %829 = vmatmul.bf16.gmra.mxu0 %v702
      %v830 = vpop.f32.mrf.mxu0
      %v831 = vadd.f32 0.0, %v830
      %v832 = vpop.f32.mrf.mxu0
      %v833 = vadd.f32 0.0, %v832
      %834 = vmatmul.bf16.gmra.mxu0 %v705
      %v835 = vpop.f32.mrf.mxu0
      %v836 = vadd.f32 0.0, %v835
      %v837 = vpop.f32.mrf.mxu0
      %v838 = vadd.f32 0.0, %v837
      %839 = vmatmul.bf16.gmra.mxu0 %v708
      %v840 = vpop.f32.mrf.mxu0
      %v841 = vadd.f32 0.0, %v840
      %v842 = vpop.f32.mrf.mxu0
      %v843 = vadd.f32 0.0, %v842
      %844 = vmatmul.bf16.gmra.mxu0 %v711
      %v845 = vpop.f32.mrf.mxu0
      %v846 = vadd.f32 0.0, %v845
      %v847 = vpop.f32.mrf.mxu0
      %v848 = vadd.f32 0.0, %v847
      %849 = vmatmul.bf16.gmra.mxu0 %v714
      %v850 = vpop.f32.mrf.mxu0
      %v851 = vadd.f32 0.0, %v850
      %v852 = vpop.f32.mrf.mxu0
      %v853 = vadd.f32 0.0, %v852
      %854 = vmatmul.bf16.gmra.mxu0 %v717
      %v855 = vpop.f32.mrf.mxu0
      %v856 = vadd.f32 0.0, %v855
      %v857 = vpop.f32.mrf.mxu0
      %v858 = vadd.f32 0.0, %v857
      %859 = vmatmul.bf16.gmra.mxu0 %v720
      %v860 = vpop.f32.mrf.mxu0
      %v861 = vadd.f32 0.0, %v860
      %v862 = vpop.f32.mrf.mxu0
      %v863 = vadd.f32 0.0, %v862
      %864 = vmatmul.bf16.gmra.mxu0 %v723
      %v865 = vpop.f32.mrf.mxu0
      %v866 = vadd.f32 0.0, %v865
      %v867 = vpop.f32.mrf.mxu0
      %v868 = vadd.f32 0.0, %v867
      %869 = vmatmul.bf16.gmra.mxu0 %v726
      %v870 = vpop.f32.mrf.mxu0
      %v871 = vadd.f32 0.0, %v870
      %v872 = vpop.f32.mrf.mxu0
      %v873 = vadd.f32 0.0, %v872
      %874 = vmatmul.bf16.gmra.mxu0 %v729
      %v875 = vpop.f32.mrf.mxu0
      %v876 = vadd.f32 0.0, %v875
      %v877 = vpop.f32.mrf.mxu0
      %v878 = vadd.f32 0.0, %v877
      %879 = vmatmul.bf16.gmra.mxu0 %v732
      %v880 = vpop.f32.mrf.mxu0
      %v881 = vadd.f32 0.0, %v880
      %v882 = vpop.f32.mrf.mxu0
      %v883 = vadd.f32 0.0, %v882
      %884 = vmatmul.bf16.gmra.mxu0 %v735
      %v885 = vpop.f32.mrf.mxu0
      %v886 = vadd.f32 0.0, %v885
      %v887 = vpop.f32.mrf.mxu0
      %v888 = vadd.f32 0.0, %v887
      %889 = vmatmul.bf16.gmra.mxu0 %v738
      %v890 = vpop.f32.mrf.mxu0
      %v891 = vadd.f32 0.0, %v890
      %v892 = vpop.f32.mrf.mxu0
      %v893 = vadd.f32 0.0, %v892
      %894 = vmatmul.bf16.gmra.mxu0 %v741
      %v895 = vpop.f32.mrf.mxu0
      %v896 = vadd.f32 0.0, %v895
      %v897 = vpop.f32.mrf.mxu0
      %v898 = vadd.f32 0.0, %v897
      %899 = vmatmul.bf16.gmra.mxu0 %v744
      %v900 = vpop.f32.mrf.mxu0
      %v901 = vadd.f32 0.0, %v900
      %v902 = vpop.f32.mrf.mxu0
      %v903 = vadd.f32 0.0, %v902
      %904 = vmatmul.bf16.gmra.mxu0 %v747
      %v905 = vpop.f32.mrf.mxu0
      %v906 = vadd.f32 0.0, %v905
      %v907 = vpop.f32.mrf.mxu0
      %v908 = vadd.f32 0.0, %v907
      %909 = vmatmul.bf16.gmra.mxu0 %v750
      %v910 = vpop.f32.mrf.mxu0
      %v911 = vadd.f32 0.0, %v910
      %v912 = vpop.f32.mrf.mxu0
      %v913 = vadd.f32 0.0, %v912
      %914 = vmatmul.bf16.gmra.mxu0 %v753
      %v915 = vpop.f32.mrf.mxu0
      %v916 = vadd.f32 0.0, %v915
      %v917 = vpop.f32.mrf.mxu0
      %v918 = vadd.f32 0.0, %v917
      %919 = vmatmul.bf16.gmra.mxu0 %v756
      %v920 = vpop.f32.mrf.mxu0
      %v921 = vadd.f32 0.0, %v920
      %v922 = vpop.f32.mrf.mxu0
      %v923 = vadd.f32 0.0, %v922
      %924 = vmatmul.bf16.gmra.mxu0 %v759
      %v925 = vpop.f32.mrf.mxu0
      %v926 = vadd.f32 0.0, %v925
      %v927 = vpop.f32.mrf.mxu0
      %v928 = vadd.f32 0.0, %v927
      %929 = vmatmul.bf16.gmra.mxu0 %v762
      %v930 = vpop.f32.mrf.mxu0
      %v931 = vadd.f32 0.0, %v930
      %v932 = vpop.f32.mrf.mxu0
      %v933 = vadd.f32 0.0, %v932
      %934 = vmatmul.bf16.gmra.mxu0 %v765
      %v935 = vpop.f32.mrf.mxu0
      %v936 = vadd.f32 0.0, %v935
      %v937 = vpop.f32.mrf.mxu0
      %v938 = vadd.f32 0.0, %v937
      %939 = vmatmul.bf16.gmra.mxu0 %v768
      %v940 = vpop.f32.mrf.mxu0
      %v941 = vadd.f32 0.0, %v940
      %v942 = vpop.f32.mrf.mxu0
      %v943 = vadd.f32 0.0, %v942
      %944 = vmatmul.bf16.gmra.mxu0 %v771
      %v945 = vpop.f32.mrf.mxu0
      %v946 = vadd.f32 0.0, %v945
      %v947 = vpop.f32.mrf.mxu0
      %v948 = vadd.f32 0.0, %v947
      %949 = vmatmul.bf16.gmra.mxu0 %v774
      %v950 = vpop.f32.mrf.mxu0
      %v951 = vadd.f32 0.0, %v950
      %v952 = vpop.f32.mrf.mxu0
      %v953 = vadd.f32 0.0, %v952
      %954 = vmatmul.bf16.gmra.mxu0 %v777
      %v955 = vpop.f32.mrf.mxu0
      %v956 = vadd.f32 0.0, %v955
      %v957 = vpop.f32.mrf.mxu0
      %v958 = vadd.f32 0.0, %v957
      %959 = vdwg.mxu0
      %v960 = vsel %vm679, %v376, 0
      %v962 = vsel %vm679, %v377, 0
      %v964 = vsel %vm679, %v378, 0
      %v966 = vsel %vm679, %v379, 0
      %v968 = vsel %vm679, %v380, 0
      %v970 = vsel %vm679, %v381, 0
      %v972 = vsel %vm679, %v382, 0
      %v974 = vsel %vm679, %v383, 0
      %v976 = vsel %vm679, %v384, 0
      %v978 = vsel %vm679, %v385, 0
      %v980 = vsel %vm679, %v386, 0
      %v982 = vsel %vm679, %v387, 0
      %v984 = vsel %vm679, %v388, 0
      %v986 = vsel %vm679, %v389, 0
      %v988 = vsel %vm679, %v390, 0
      %v990 = vsel %vm679, %v391, 0
      %v992 = vsel %vm679, %v392, 0
      %v994 = vsel %vm679, %v393, 0
      %v996 = vsel %vm679, %v394, 0
      %v998 = vsel %vm679, %v395, 0
      %v1000 = vsel %vm679, %v396, 0
      %v1002 = vsel %vm679, %v397, 0
      %v1004 = vsel %vm679, %v398, 0
      %v1006 = vsel %vm679, %v399, 0
      %v1008 = vsel %vm679, %v400, 0
      %v1010 = vsel %vm679, %v401, 0
      %v1012 = vsel %vm679, %v402, 0
      %v1014 = vsel %vm679, %v403, 0
      %v1016 = vsel %vm679, %v404, 0
      %v1018 = vsel %vm679, %v405, 0
      %v1020 = vsel %vm679, %v406, 0
      %v1022 = vsel %vm679, %v407, 0
      %v1024 = vsel %vm679, %v408, 0
      %v1027 = vand.u32 %v238, %v782
      %1029 = vmatpush.bf16.msra.mxu0 0
      %1030 = vmatpush.bf16.msra.mxu0 0
      %1031 = vmatpush.bf16.msra.mxu0 0
      %1032 = vmatpush.bf16.msra.mxu0 0
      %1033 = vmatpush.bf16.msra.mxu0 0
      %1034 = vmatpush.bf16.msra.mxu0 0
      %1035 = vmatpush.bf16.msra.mxu0 0
      %1036 = vmatpush.bf16.msra.mxu0 %v1027
      %1037 = vmatmul.bf16.gmra.mxu0 %v960
      %v1038 = vpop.f32.mrf.mxu0
      %v1039 = vadd.f32 %v796, %v1038
      %v1040 = vpop.f32.mrf.mxu0
      %v1041 = vadd.f32 %v798, %v1040
      %1042 = vmatmul.bf16.gmra.mxu0 %v962
      %v1043 = vpop.f32.mrf.mxu0
      %v1044 = vadd.f32 %v801, %v1043
      %v1045 = vpop.f32.mrf.mxu0
      %v1046 = vadd.f32 %v803, %v1045
      %1047 = vmatmul.bf16.gmra.mxu0 %v964
      %v1048 = vpop.f32.mrf.mxu0
      %v1049 = vadd.f32 %v806, %v1048
      %v1050 = vpop.f32.mrf.mxu0
      %v1051 = vadd.f32 %v808, %v1050
      %1052 = vmatmul.bf16.gmra.mxu0 %v966
      %v1053 = vpop.f32.mrf.mxu0
      %v1054 = vadd.f32 %v811, %v1053
      %v1055 = vpop.f32.mrf.mxu0
      %v1056 = vadd.f32 %v813, %v1055
      %1057 = vmatmul.bf16.gmra.mxu0 %v968
      %v1058 = vpop.f32.mrf.mxu0
      %v1059 = vadd.f32 %v816, %v1058
      %v1060 = vpop.f32.mrf.mxu0
      %v1061 = vadd.f32 %v818, %v1060
      %1062 = vmatmul.bf16.gmra.mxu0 %v970
      %v1063 = vpop.f32.mrf.mxu0
      %v1064 = vadd.f32 %v821, %v1063
      %v1065 = vpop.f32.mrf.mxu0
      %v1066 = vadd.f32 %v823, %v1065
      %1067 = vmatmul.bf16.gmra.mxu0 %v972
      %v1068 = vpop.f32.mrf.mxu0
      %v1069 = vadd.f32 %v826, %v1068
      %v1070 = vpop.f32.mrf.mxu0
      %v1071 = vadd.f32 %v828, %v1070
      %1072 = vmatmul.bf16.gmra.mxu0 %v974
      %v1073 = vpop.f32.mrf.mxu0
      %v1074 = vadd.f32 %v831, %v1073
      %v1075 = vpop.f32.mrf.mxu0
      %v1076 = vadd.f32 %v833, %v1075
      %1077 = vmatmul.bf16.gmra.mxu0 %v976
      %v1078 = vpop.f32.mrf.mxu0
      %v1079 = vadd.f32 %v836, %v1078
      %v1080 = vpop.f32.mrf.mxu0
      %v1081 = vadd.f32 %v838, %v1080
      %1082 = vmatmul.bf16.gmra.mxu0 %v978
      %v1083 = vpop.f32.mrf.mxu0
      %v1084 = vadd.f32 %v841, %v1083
      %v1085 = vpop.f32.mrf.mxu0
      %v1086 = vadd.f32 %v843, %v1085
      %1087 = vmatmul.bf16.gmra.mxu0 %v980
      %v1088 = vpop.f32.mrf.mxu0
      %v1089 = vadd.f32 %v846, %v1088
      %v1090 = vpop.f32.mrf.mxu0
      %v1091 = vadd.f32 %v848, %v1090
      %1092 = vmatmul.bf16.gmra.mxu0 %v982
      %v1093 = vpop.f32.mrf.mxu0
      %v1094 = vadd.f32 %v851, %v1093
      %v1095 = vpop.f32.mrf.mxu0
      %v1096 = vadd.f32 %v853, %v1095
      %1097 = vmatmul.bf16.gmra.mxu0 %v984
      %v1098 = vpop.f32.mrf.mxu0
      %v1099 = vadd.f32 %v856, %v1098
      %v1100 = vpop.f32.mrf.mxu0
      %v1101 = vadd.f32 %v858, %v1100
      %1102 = vmatmul.bf16.gmra.mxu0 %v986
      %v1103 = vpop.f32.mrf.mxu0
      %v1104 = vadd.f32 %v861, %v1103
      %v1105 = vpop.f32.mrf.mxu0
      %v1106 = vadd.f32 %v863, %v1105
      %1107 = vmatmul.bf16.gmra.mxu0 %v988
      %v1108 = vpop.f32.mrf.mxu0
      %v1109 = vadd.f32 %v866, %v1108
      %v1110 = vpop.f32.mrf.mxu0
      %v1111 = vadd.f32 %v868, %v1110
      %1112 = vmatmul.bf16.gmra.mxu0 %v990
      %v1113 = vpop.f32.mrf.mxu0
      %v1114 = vadd.f32 %v871, %v1113
      %v1115 = vpop.f32.mrf.mxu0
      %v1116 = vadd.f32 %v873, %v1115
      %1117 = vmatmul.bf16.gmra.mxu0 %v992
      %v1118 = vpop.f32.mrf.mxu0
      %v1119 = vadd.f32 %v876, %v1118
      %v1120 = vpop.f32.mrf.mxu0
      %v1121 = vadd.f32 %v878, %v1120
      %1122 = vmatmul.bf16.gmra.mxu0 %v994
      %v1123 = vpop.f32.mrf.mxu0
      %v1124 = vadd.f32 %v881, %v1123
      %v1125 = vpop.f32.mrf.mxu0
      %v1126 = vadd.f32 %v883, %v1125
      %1127 = vmatmul.bf16.gmra.mxu0 %v996
      %v1128 = vpop.f32.mrf.mxu0
      %v1129 = vadd.f32 %v886, %v1128
      %v1130 = vpop.f32.mrf.mxu0
      %v1131 = vadd.f32 %v888, %v1130
      %1132 = vmatmul.bf16.gmra.mxu0 %v998
      %v1133 = vpop.f32.mrf.mxu0
      %v1134 = vadd.f32 %v891, %v1133
      %v1135 = vpop.f32.mrf.mxu0
      %v1136 = vadd.f32 %v893, %v1135
      %1137 = vmatmul.bf16.gmra.mxu0 %v1000
      %v1138 = vpop.f32.mrf.mxu0
      %v1139 = vadd.f32 %v896, %v1138
      %v1140 = vpop.f32.mrf.mxu0
      %v1141 = vadd.f32 %v898, %v1140
      %1142 = vmatmul.bf16.gmra.mxu0 %v1002
      %v1143 = vpop.f32.mrf.mxu0
      %v1144 = vadd.f32 %v901, %v1143
      %v1145 = vpop.f32.mrf.mxu0
      %v1146 = vadd.f32 %v903, %v1145
      %1147 = vmatmul.bf16.gmra.mxu0 %v1004
      %v1148 = vpop.f32.mrf.mxu0
      %v1149 = vadd.f32 %v906, %v1148
      %v1150 = vpop.f32.mrf.mxu0
      %v1151 = vadd.f32 %v908, %v1150
      %1152 = vmatmul.bf16.gmra.mxu0 %v1006
      %v1153 = vpop.f32.mrf.mxu0
      %v1154 = vadd.f32 %v911, %v1153
      %v1155 = vpop.f32.mrf.mxu0
      %v1156 = vadd.f32 %v913, %v1155
      %1157 = vmatmul.bf16.gmra.mxu0 %v1008
      %v1158 = vpop.f32.mrf.mxu0
      %v1159 = vadd.f32 %v916, %v1158
      %v1160 = vpop.f32.mrf.mxu0
      %v1161 = vadd.f32 %v918, %v1160
      %1162 = vmatmul.bf16.gmra.mxu0 %v1010
      %v1163 = vpop.f32.mrf.mxu0
      %v1164 = vadd.f32 %v921, %v1163
      %v1165 = vpop.f32.mrf.mxu0
      %v1166 = vadd.f32 %v923, %v1165
      %1167 = vmatmul.bf16.gmra.mxu0 %v1012
      %v1168 = vpop.f32.mrf.mxu0
      %v1169 = vadd.f32 %v926, %v1168
      %v1170 = vpop.f32.mrf.mxu0
      %v1171 = vadd.f32 %v928, %v1170
      %1172 = vmatmul.bf16.gmra.mxu0 %v1014
      %v1173 = vpop.f32.mrf.mxu0
      %v1174 = vadd.f32 %v931, %v1173
      %v1175 = vpop.f32.mrf.mxu0
      %v1176 = vadd.f32 %v933, %v1175
      %1177 = vmatmul.bf16.gmra.mxu0 %v1016
      %v1178 = vpop.f32.mrf.mxu0
      %v1179 = vadd.f32 %v936, %v1178
      %v1180 = vpop.f32.mrf.mxu0
      %v1181 = vadd.f32 %v938, %v1180
      %1182 = vmatmul.bf16.gmra.mxu0 %v1018
      %v1183 = vpop.f32.mrf.mxu0
      %v1184 = vadd.f32 %v941, %v1183
      %v1185 = vpop.f32.mrf.mxu0
      %v1186 = vadd.f32 %v943, %v1185
      %1187 = vmatmul.bf16.gmra.mxu0 %v1020
      %v1188 = vpop.f32.mrf.mxu0
      %v1189 = vadd.f32 %v946, %v1188
      %v1190 = vpop.f32.mrf.mxu0
      %v1191 = vadd.f32 %v948, %v1190
      %1192 = vmatmul.bf16.gmra.mxu0 %v1022
      %v1193 = vpop.f32.mrf.mxu0
      %v1194 = vadd.f32 %v951, %v1193
      %v1195 = vpop.f32.mrf.mxu0
      %v1196 = vadd.f32 %v953, %v1195
      %1197 = vmatmul.bf16.gmra.mxu0 %v1024
      %v1198 = vpop.f32.mrf.mxu0
      %v1199 = vadd.f32 %v956, %v1198
      %v1200 = vpop.f32.mrf.mxu0
      %v1201 = vadd.f32 %v958, %v1200
      %1202 = vdwg.mxu0
      %v1203 = vld [vmem:[%s165] sm:$0xe]
      %s1204 = scalar_lea.vmem %s1, 4
      %v1205 = vld [vmem:[%s1204] sm:$0x3]
      %v1207 = vunpack.c.l.b16 %v1203
      %v1208 = vpack.c.b16 %v310, %v1207
      %vm1209 = vcmask 1046528
      %v1210 = vrot.slane %v1208, 1
      %v1211 = vrot.slane %v377, 1
      %v1212 = vsel %vm1209, %v1210, %v1211
      %v1213 = vrot.slane %v378, 1
      %v1214 = vsel %vm1209, %v1211, %v1213
      %v1215 = vrot.slane %v379, 1
      %v1216 = vsel %vm1209, %v1213, %v1215
      %v1217 = vrot.slane %v380, 1
      %v1218 = vsel %vm1209, %v1215, %v1217
      %v1219 = vrot.slane %v381, 1
      %v1220 = vsel %vm1209, %v1217, %v1219
      %v1221 = vrot.slane %v382, 1
      %v1222 = vsel %vm1209, %v1219, %v1221
      %v1223 = vrot.slane %v383, 1
      %v1224 = vsel %vm1209, %v1221, %v1223
      %v1225 = vrot.slane %v384, 1
      %v1226 = vsel %vm1209, %v1223, %v1225
      %v1227 = vrot.slane %v385, 1
      %v1228 = vsel %vm1209, %v1225, %v1227
      %v1229 = vrot.slane %v386, 1
      %v1230 = vsel %vm1209, %v1227, %v1229
      %v1231 = vrot.slane %v387, 1
      %v1232 = vsel %vm1209, %v1229, %v1231
      %v1233 = vrot.slane %v388, 1
      %v1234 = vsel %vm1209, %v1231, %v1233
      %v1235 = vrot.slane %v389, 1
      %v1236 = vsel %vm1209, %v1233, %v1235
      %v1237 = vrot.slane %v390, 1
      %v1238 = vsel %vm1209, %v1235, %v1237
      %v1239 = vrot.slane %v391, 1
      %v1240 = vsel %vm1209, %v1237, %v1239
      %v1241 = vrot.slane %v392, 1
      %v1242 = vsel %vm1209, %v1239, %v1241
      %v1243 = vrot.slane %v393, 1
      %v1244 = vsel %vm1209, %v1241, %v1243
      %v1245 = vrot.slane %v394, 1
      %v1246 = vsel %vm1209, %v1243, %v1245
      %v1247 = vrot.slane %v395, 1
      %v1248 = vsel %vm1209, %v1245, %v1247
      %v1249 = vrot.slane %v396, 1
      %v1250 = vsel %vm1209, %v1247, %v1249
      %v1251 = vrot.slane %v397, 1
      %v1252 = vsel %vm1209, %v1249, %v1251
      %v1253 = vrot.slane %v398, 1
      %v1254 = vsel %vm1209, %v1251, %v1253
      %v1255 = vrot.slane %v399, 1
      %v1256 = vsel %vm1209, %v1253, %v1255
      %v1257 = vrot.slane %v400, 1
      %v1258 = vsel %vm1209, %v1255, %v1257
      %v1259 = vrot.slane %v401, 1
      %v1260 = vsel %vm1209, %v1257, %v1259
      %v1261 = vrot.slane %v402, 1
      %v1262 = vsel %vm1209, %v1259, %v1261
      %v1263 = vrot.slane %v403, 1
      %v1264 = vsel %vm1209, %v1261, %v1263
      %v1265 = vrot.slane %v404, 1
      %v1266 = vsel %vm1209, %v1263, %v1265
      %v1267 = vrot.slane %v405, 1
      %v1268 = vsel %vm1209, %v1265, %v1267
      %v1269 = vrot.slane %v406, 1
      %v1270 = vsel %vm1209, %v1267, %v1269
      %v1271 = vrot.slane %v407, 1
      %v1272 = vsel %vm1209, %v1269, %v1271
      %v1273 = vrot.slane %v408, 1
      %v1274 = vsel %vm1209, %v1271, %v1273
      %v1275 = vrot.slane %v409, 1
      %v1276 = vsel %vm1209, %v1273, %v1275
      %v1278 = vsel %vm679, %v1212, 0
      %v1281 = vsel %vm679, %v1214, 0
      %v1284 = vsel %vm679, %v1216, 0
      %v1287 = vsel %vm679, %v1218, 0
      %v1290 = vsel %vm679, %v1220, 0
      %v1293 = vsel %vm679, %v1222, 0
      %v1296 = vsel %vm679, %v1224, 0
      %v1299 = vsel %vm679, %v1226, 0
      %v1302 = vsel %vm679, %v1228, 0
      %v1305 = vsel %vm679, %v1230, 0
      %v1308 = vsel %vm679, %v1232, 0
      %v1311 = vsel %vm679, %v1234, 0
      %v1314 = vsel %vm679, %v1236, 0
      %v1317 = vsel %vm679, %v1238, 0
      %v1320 = vsel %vm679, %v1240, 0
      %v1323 = vsel %vm679, %v1242, 0
      %v1326 = vsel %vm679, %v1244, 0
      %v1329 = vsel %vm679, %v1246, 0
      %v1332 = vsel %vm679, %v1248, 0
      %v1335 = vsel %vm679, %v1250, 0
      %v1338 = vsel %vm679, %v1252, 0
      %v1341 = vsel %vm679, %v1254, 0
      %v1344 = vsel %vm679, %v1256, 0
      %v1347 = vsel %vm679, %v1258, 0
      %v1350 = vsel %vm679, %v1260, 0
      %v1353 = vsel %vm679, %v1262, 0
      %v1356 = vsel %vm679, %v1264, 0
      %v1359 = vsel %vm679, %v1266, 0
      %v1362 = vsel %vm679, %v1268, 0
      %v1365 = vsel %vm679, %v1270, 0
      %v1368 = vsel %vm679, %v1272, 0
      %v1371 = vsel %vm679, %v1274, 0
      %v1374 = vsel %vm679, %v1276, 0
      %v1377 = vand.u32 %v1205, %v782
      %1379 = vmatpush.bf16.msra.mxu0 0
      %1380 = vmatpush.bf16.msra.mxu0 0
      %1381 = vmatpush.bf16.msra.mxu0 0
      %1382 = vmatpush.bf16.msra.mxu0 0
      %1383 = vmatpush.bf16.msra.mxu0 0
      %1384 = vmatpush.bf16.msra.mxu0 0
      %1385 = vmatpush.bf16.msra.mxu0 0
      %1386 = vmatpush.bf16.msra.mxu0 %v1377
      %1387 = vmatmul.bf16.gmra.mxu0 %v1278
      %v1388 = vpop.f32.mrf.mxu0
      %v1389 = vadd.f32 0.0, %v1388
      %v1390 = vpop.f32.mrf.mxu0
      %v1391 = vadd.f32 0.0, %v1390
      %1392 = vmatmul.bf16.gmra.mxu0 %v1281
      %v1393 = vpop.f32.mrf.mxu0
      %v1394 = vadd.f32 0.0, %v1393
      %v1395 = vpop.f32.mrf.mxu0
      %v1396 = vadd.f32 0.0, %v1395
      %1397 = vmatmul.bf16.gmra.mxu0 %v1284
      %v1398 = vpop.f32.mrf.mxu0
      %v1399 = vadd.f32 0.0, %v1398
      %v1400 = vpop.f32.mrf.mxu0
      %v1401 = vadd.f32 0.0, %v1400
      %1402 = vmatmul.bf16.gmra.mxu0 %v1287
      %v1403 = vpop.f32.mrf.mxu0
      %v1404 = vadd.f32 0.0, %v1403
      %v1405 = vpop.f32.mrf.mxu0
      %v1406 = vadd.f32 0.0, %v1405
      %1407 = vmatmul.bf16.gmra.mxu0 %v1290
      %v1408 = vpop.f32.mrf.mxu0
      %v1409 = vadd.f32 0.0, %v1408
      %v1410 = vpop.f32.mrf.mxu0
      %v1411 = vadd.f32 0.0, %v1410
      %1412 = vmatmul.bf16.gmra.mxu0 %v1293
      %v1413 = vpop.f32.mrf.mxu0
      %v1414 = vadd.f32 0.0, %v1413
      %v1415 = vpop.f32.mrf.mxu0
      %v1416 = vadd.f32 0.0, %v1415
      %1417 = vmatmul.bf16.gmra.mxu0 %v1296
      %v1418 = vpop.f32.mrf.mxu0
      %v1419 = vadd.f32 0.0, %v1418
      %v1420 = vpop.f32.mrf.mxu0
      %v1421 = vadd.f32 0.0, %v1420
      %1422 = vmatmul.bf16.gmra.mxu0 %v1299
      %v1423 = vpop.f32.mrf.mxu0
      %v1424 = vadd.f32 0.0, %v1423
      %v1425 = vpop.f32.mrf.mxu0
      %v1426 = vadd.f32 0.0, %v1425
      %1427 = vmatmul.bf16.gmra.mxu0 %v1302
      %v1428 = vpop.f32.mrf.mxu0
      %v1429 = vadd.f32 0.0, %v1428
      %v1430 = vpop.f32.mrf.mxu0
      %v1431 = vadd.f32 0.0, %v1430
      %1432 = vmatmul.bf16.gmra.mxu0 %v1305
      %v1433 = vpop.f32.mrf.mxu0
      %v1434 = vadd.f32 0.0, %v1433
      %v1435 = vpop.f32.mrf.mxu0
      %v1436 = vadd.f32 0.0, %v1435
      %1437 = vmatmul.bf16.gmra.mxu0 %v1308
      %v1438 = vpop.f32.mrf.mxu0
      %v1439 = vadd.f32 0.0, %v1438
      %v1440 = vpop.f32.mrf.mxu0
      %v1441 = vadd.f32 0.0, %v1440
      %1442 = vmatmul.bf16.gmra.mxu0 %v1311
      %v1443 = vpop.f32.mrf.mxu0
      %v1444 = vadd.f32 0.0, %v1443
      %v1445 = vpop.f32.mrf.mxu0
      %v1446 = vadd.f32 0.0, %v1445
      %1447 = vmatmul.bf16.gmra.mxu0 %v1314
      %v1448 = vpop.f32.mrf.mxu0
      %v1449 = vadd.f32 0.0, %v1448
      %v1450 = vpop.f32.mrf.mxu0
      %v1451 = vadd.f32 0.0, %v1450
      %1452 = vmatmul.bf16.gmra.mxu0 %v1317
      %v1453 = vpop.f32.mrf.mxu0
      %v1454 = vadd.f32 0.0, %v1453
      %v1455 = vpop.f32.mrf.mxu0
      %v1456 = vadd.f32 0.0, %v1455
      %1457 = vmatmul.bf16.gmra.mxu0 %v1320
      %v1458 = vpop.f32.mrf.mxu0
      %v1459 = vadd.f32 0.0, %v1458
      %v1460 = vpop.f32.mrf.mxu0
      %v1461 = vadd.f32 0.0, %v1460
      %1462 = vmatmul.bf16.gmra.mxu0 %v1323
      %v1463 = vpop.f32.mrf.mxu0
      %v1464 = vadd.f32 0.0, %v1463
      %v1465 = vpop.f32.mrf.mxu0
      %v1466 = vadd.f32 0.0, %v1465
      %1467 = vmatmul.bf16.gmra.mxu0 %v1326
      %v1468 = vpop.f32.mrf.mxu0
      %v1469 = vadd.f32 0.0, %v1468
      %v1470 = vpop.f32.mrf.mxu0
      %v1471 = vadd.f32 0.0, %v1470
      %1472 = vmatmul.bf16.gmra.mxu0 %v1329
      %v1473 = vpop.f32.mrf.mxu0
      %v1474 = vadd.f32 0.0, %v1473
      %v1475 = vpop.f32.mrf.mxu0
      %v1476 = vadd.f32 0.0, %v1475
      %1477 = vmatmul.bf16.gmra.mxu0 %v1332
      %v1478 = vpop.f32.mrf.mxu0
      %v1479 = vadd.f32 0.0, %v1478
      %v1480 = vpop.f32.mrf.mxu0
      %v1481 = vadd.f32 0.0, %v1480
      %1482 = vmatmul.bf16.gmra.mxu0 %v1335
      %v1483 = vpop.f32.mrf.mxu0
      %v1484 = vadd.f32 0.0, %v1483
      %v1485 = vpop.f32.mrf.mxu0
      %v1486 = vadd.f32 0.0, %v1485
      %1487 = vmatmul.bf16.gmra.mxu0 %v1338
      %v1488 = vpop.f32.mrf.mxu0
      %v1489 = vadd.f32 0.0, %v1488
      %v1490 = vpop.f32.mrf.mxu0
      %v1491 = vadd.f32 0.0, %v1490
      %1492 = vmatmul.bf16.gmra.mxu0 %v1341
      %v1493 = vpop.f32.mrf.mxu0
      %v1494 = vadd.f32 0.0, %v1493
      %v1495 = vpop.f32.mrf.mxu0
      %v1496 = vadd.f32 0.0, %v1495
      %1497 = vmatmul.bf16.gmra.mxu0 %v1344
      %v1498 = vpop.f32.mrf.mxu0
      %v1499 = vadd.f32 0.0, %v1498
      %v1500 = vpop.f32.mrf.mxu0
      %v1501 = vadd.f32 0.0, %v1500
      %1502 = vmatmul.bf16.gmra.mxu0 %v1347
      %v1503 = vpop.f32.mrf.mxu0
      %v1504 = vadd.f32 0.0, %v1503
      %v1505 = vpop.f32.mrf.mxu0
      %v1506 = vadd.f32 0.0, %v1505
      %1507 = vmatmul.bf16.gmra.mxu0 %v1350
      %v1508 = vpop.f32.mrf.mxu0
      %v1509 = vadd.f32 0.0, %v1508
      %v1510 = vpop.f32.mrf.mxu0
      %v1511 = vadd.f32 0.0, %v1510
      %1512 = vmatmul.bf16.gmra.mxu0 %v1353
      %v1513 = vpop.f32.mrf.mxu0
      %v1514 = vadd.f32 0.0, %v1513
      %v1515 = vpop.f32.mrf.mxu0
      %v1516 = vadd.f32 0.0, %v1515
      %1517 = vmatmul.bf16.gmra.mxu0 %v1356
      %v1518 = vpop.f32.mrf.mxu0
      %v1519 = vadd.f32 0.0, %v1518
      %v1520 = vpop.f32.mrf.mxu0
      %v1521 = vadd.f32 0.0, %v1520
      %1522 = vmatmul.bf16.gmra.mxu0 %v1359
      %v1523 = vpop.f32.mrf.mxu0
      %v1524 = vadd.f32 0.0, %v1523
      %v1525 = vpop.f32.mrf.mxu0
      %v1526 = vadd.f32 0.0, %v1525
      %1527 = vmatmul.bf16.gmra.mxu0 %v1362
      %v1528 = vpop.f32.mrf.mxu0
      %v1529 = vadd.f32 0.0, %v1528
      %v1530 = vpop.f32.mrf.mxu0
      %v1531 = vadd.f32 0.0, %v1530
      %1532 = vmatmul.bf16.gmra.mxu0 %v1365
      %v1533 = vpop.f32.mrf.mxu0
      %v1534 = vadd.f32 0.0, %v1533
      %v1535 = vpop.f32.mrf.mxu0
      %v1536 = vadd.f32 0.0, %v1535
      %1537 = vmatmul.bf16.gmra.mxu0 %v1368
      %v1538 = vpop.f32.mrf.mxu0
      %v1539 = vadd.f32 0.0, %v1538
      %v1540 = vpop.f32.mrf.mxu0
      %v1541 = vadd.f32 0.0, %v1540
      %1542 = vmatmul.bf16.gmra.mxu0 %v1371
      %v1543 = vpop.f32.mrf.mxu0
      %v1544 = vadd.f32 0.0, %v1543
      %v1545 = vpop.f32.mrf.mxu0
      %v1546 = vadd.f32 0.0, %v1545
      %1547 = vmatmul.bf16.gmra.mxu0 %v1374
      %v1548 = vpop.f32.mrf.mxu0
      %v1549 = vadd.f32 0.0, %v1548
      %v1550 = vpop.f32.mrf.mxu0
      %v1551 = vadd.f32 0.0, %v1550
      %1552 = vdwg.mxu0
      %v1553 = vadd.f32 %v1039, %v1389
      %v1554 = vadd.f32 %v1041, %v1391
      %v1555 = vadd.f32 %v1044, %v1394
      %v1556 = vadd.f32 %v1046, %v1396
      %v1557 = vadd.f32 %v1049, %v1399
      %v1558 = vadd.f32 %v1051, %v1401
      %v1559 = vadd.f32 %v1054, %v1404
      %v1560 = vadd.f32 %v1056, %v1406
      %v1561 = vadd.f32 %v1059, %v1409
      %v1562 = vadd.f32 %v1061, %v1411
      %v1563 = vadd.f32 %v1064, %v1414
      %v1564 = vadd.f32 %v1066, %v1416
      %v1565 = vadd.f32 %v1069, %v1419
      %v1566 = vadd.f32 %v1071, %v1421
      %v1567 = vadd.f32 %v1074, %v1424
      %v1568 = vadd.f32 %v1076, %v1426
      %v1569 = vadd.f32 %v1079, %v1429
      %v1570 = vadd.f32 %v1081, %v1431
      %v1571 = vadd.f32 %v1084, %v1434
      %v1572 = vadd.f32 %v1086, %v1436
      %v1573 = vadd.f32 %v1089, %v1439
      %v1574 = vadd.f32 %v1091, %v1441
      %v1575 = vadd.f32 %v1094, %v1444
      %v1576 = vadd.f32 %v1096, %v1446
      %v1577 = vadd.f32 %v1099, %v1449
      %v1578 = vadd.f32 %v1101, %v1451
      %v1579 = vadd.f32 %v1104, %v1454
      %v1580 = vadd.f32 %v1106, %v1456
      %v1581 = vadd.f32 %v1109, %v1459
      %v1582 = vadd.f32 %v1111, %v1461
      %v1583 = vadd.f32 %v1114, %v1464
      %v1584 = vadd.f32 %v1116, %v1466
      %v1585 = vadd.f32 %v1119, %v1469
      %v1586 = vadd.f32 %v1121, %v1471
      %v1587 = vadd.f32 %v1124, %v1474
      %v1588 = vadd.f32 %v1126, %v1476
      %v1589 = vadd.f32 %v1129, %v1479
      %v1590 = vadd.f32 %v1131, %v1481
      %v1591 = vadd.f32 %v1134, %v1484
      %v1592 = vadd.f32 %v1136, %v1486
      %v1593 = vadd.f32 %v1139, %v1489
      %v1594 = vadd.f32 %v1141, %v1491
      %v1595 = vadd.f32 %v1144, %v1494
      %v1596 = vadd.f32 %v1146, %v1496
      %v1597 = vadd.f32 %v1149, %v1499
      %v1598 = vadd.f32 %v1151, %v1501
      %v1599 = vadd.f32 %v1154, %v1504
      %v1600 = vadd.f32 %v1156, %v1506
      %v1601 = vadd.f32 %v1159, %v1509
      %v1602 = vadd.f32 %v1161, %v1511
      %v1603 = vadd.f32 %v1164, %v1514
      %v1604 = vadd.f32 %v1166, %v1516
      %v1605 = vadd.f32 %v1169, %v1519
      %v1606 = vadd.f32 %v1171, %v1521
      %v1607 = vadd.f32 %v1174, %v1524
      %v1608 = vadd.f32 %v1176, %v1526
      %v1609 = vadd.f32 %v1179, %v1529
      %v1610 = vadd.f32 %v1181, %v1531
      %v1611 = vadd.f32 %v1184, %v1534
      %v1612 = vadd.f32 %v1186, %v1536
      %v1613 = vadd.f32 %v1189, %v1539
      %v1614 = vadd.f32 %v1191, %v1541
      %v1615 = vadd.f32 %v1194, %v1544
      %v1616 = vadd.f32 %v1196, %v1546
      %v1617 = vadd.f32 %v1199, %v1549
      %v1618 = vadd.f32 %v1201, %v1551
      %v1619 = vld [vmem:[%s165 + $0xc] sm:$0xf]
      %v1620 = vld [vmem:[%s165 + $0x10] sm:$0xf]
      %v1621 = vld [vmem:[%s165 + $0x14] sm:$0xf]
      %v1622 = vld [vmem:[%s165 + $0x18] sm:$0xf]
      %v1623 = vld [vmem:[%s165 + $0x1c] sm:$0xf]
      %v1624 = vld [vmem:[%s165 + $0x20] sm:$0xf]
      %v1625 = vld [vmem:[%s165 + $0x24] sm:$0xf]
      %v1626 = vld [vmem:[%s165 + $0x28] sm:$0xf]
      %v1627 = vld [vmem:[%s165 + $0x2c] sm:$0xf]
      %v1628 = vld [vmem:[%s165 + $0x30] sm:$0xf]
      %v1629 = vld [vmem:[%s165 + $0x34] sm:$0xf]
      %v1630 = vld [vmem:[%s165 + $0x38] sm:$0xf]
      %v1631 = vld [vmem:[%s165 + $0x3c] sm:$0xf]
      %v1632 = vld [vmem:[%s165 + $0x40] sm:$0xf]
      %v1633 = vld [vmem:[%s165 + $0x44] sm:$0xf]
      %v1634 = vld [vmem:[%s165 + $0x48] sm:$0xf]
      %v1635 = vld [vmem:[%s165 + $0x4c] sm:$0xf]
      %v1636 = vld [vmem:[%s165 + $0x50] sm:$0xf]
      %v1637 = vld [vmem:[%s165 + $0x54] sm:$0xf]
      %v1638 = vld [vmem:[%s165 + $0x58] sm:$0xf]
      %v1639 = vld [vmem:[%s165 + $0x5c] sm:$0xf]
      %v1640 = vld [vmem:[%s165 + $0x60] sm:$0xf]
      %v1641 = vld [vmem:[%s165 + $0x64] sm:$0xf]
      %v1642 = vld [vmem:[%s165 + $0x68] sm:$0xf]
      %v1643 = vld [vmem:[%s165 + $0x6c] sm:$0xf]
      %v1644 = vld [vmem:[%s165 + $0x70] sm:$0xf]
      %v1645 = vld [vmem:[%s165 + $0x74] sm:$0xf]
      %v1646 = vld [vmem:[%s165 + $0x78] sm:$0xf]
      %v1647 = vld [vmem:[%s165 + $0x7c] sm:$0xf]
      %v1648 = vld [vmem:[%s165 + $0x80] sm:$0xf]
      %v1649 = vld [vmem:[%s165 + $0x84] sm:$0xf]
      %v1650 = vld [vmem:[%s165 + $0x88] sm:$0xf]
      %v1651 = vld [vmem:[%s165 + $0x8c] sm:$0xf]
      %v1652 = vld [vmem:[%s165 + $0x90] sm:$0xf]
      %v1653 = vld [vmem:[%s165 + $0x94] sm:$0xf]
      %v1654 = vld [vmem:[%s165 + $0x98] sm:$0xf]
      %v1655 = vld [vmem:[%s165 + $0x9c] sm:$0xf]
      %v1656 = vld [vmem:[%s165 + $0xa0] sm:$0xf]
      %v1657 = vld [vmem:[%s165 + $0xa4] sm:$0xf]
      %v1658 = vld [vmem:[%s165 + $0xa8] sm:$0xf]
      %v1659 = vld [vmem:[%s165 + $0xac] sm:$0xf]
      %v1660 = vld [vmem:[%s165 + $0xb0] sm:$0xf]
      %v1661 = vld [vmem:[%s165 + $0xb4] sm:$0xf]
      %v1662 = vld [vmem:[%s165 + $0xb8] sm:$0xf]
      %v1663 = vld [vmem:[%s165 + $0xbc] sm:$0xf]
      %v1664 = vld [vmem:[%s165 + $0xc0] sm:$0xf]
      %v1665 = vld [vmem:[%s165 + $0xc4] sm:$0xf]
      %v1666 = vld [vmem:[%s165 + $0xc8] sm:$0xf]
      %v1667 = vld [vmem:[%s165 + $0xcc] sm:$0xf]
      %v1668 = vld [vmem:[%s165 + $0xd0] sm:$0xf]
      %v1669 = vld [vmem:[%s165 + $0xd4] sm:$0xf]
      %v1670 = vld [vmem:[%s165 + $0xd8] sm:$0xf]
      %v1671 = vld [vmem:[%s165 + $0xdc] sm:$0xf]
      %v1672 = vld [vmem:[%s165 + $0xe0] sm:$0xf]
      %v1673 = vld [vmem:[%s165 + $0xe4] sm:$0xf]
      %v1674 = vld [vmem:[%s165 + $0xe8] sm:$0xf]
      %v1675 = vld [vmem:[%s165 + $0xec] sm:$0xf]
      %v1676 = vld [vmem:[%s165 + $0xf0] sm:$0xf]
      %v1677 = vld [vmem:[%s165 + $0xf4] sm:$0xf]
      %v1678 = vld [vmem:[%s165 + $0xf8] sm:$0xf]
      %v1679 = vld [vmem:[%s165 + $0xfc] sm:$0xf]
      %v1680 = vld [vmem:[%s165 + $0x100] sm:$0xf]
      %v1681 = vld [vmem:[%s165 + $0x104] sm:$0xf]
      %v1682 = vld [vmem:[%s165 + $0x108] sm:$0xf]
      %v1683 = vld [vmem:[%s165 + $0x10c] sm:$0xf]
      %v1684 = vld [vmem:[%s165 + $0x110] sm:$0xf]
      %s1685 = scalar_lea.vmem %s1, 6
      %v1686 = vld [vmem:[%s1685] sm:$0x3]
      %v1753 = vunpack.c.l.b16 %v1619
      %v1754 = vunpack.c.l.b16 %v1620
      %v1755 = vunpack.c.l.b16 %v1621
      %v1756 = vunpack.c.l.b16 %v1622
      %v1757 = vunpack.c.l.b16 %v1623
      %v1758 = vunpack.c.l.b16 %v1624
      %v1759 = vunpack.c.l.b16 %v1625
      %v1760 = vunpack.c.l.b16 %v1626
      %v1761 = vunpack.c.l.b16 %v1627
      %v1762 = vunpack.c.l.b16 %v1628
      %v1763 = vunpack.c.l.b16 %v1629
      %v1764 = vunpack.c.l.b16 %v1630
      %v1765 = vunpack.c.l.b16 %v1631
      %v1766 = vunpack.c.l.b16 %v1632
      %v1767 = vunpack.c.l.b16 %v1633
      %v1768 = vunpack.c.l.b16 %v1634
      %v1769 = vunpack.c.l.b16 %v1635
      %v1770 = vunpack.c.l.b16 %v1636
      %v1771 = vunpack.c.l.b16 %v1637
      %v1772 = vunpack.c.l.b16 %v1638
      %v1773 = vunpack.c.l.b16 %v1639
      %v1774 = vunpack.c.l.b16 %v1640
      %v1775 = vunpack.c.l.b16 %v1641
      %v1776 = vunpack.c.l.b16 %v1642
      %v1777 = vunpack.c.l.b16 %v1643
      %v1778 = vunpack.c.l.b16 %v1644
      %v1779 = vunpack.c.l.b16 %v1645
      %v1780 = vunpack.c.l.b16 %v1646
      %v1781 = vunpack.c.l.b16 %v1647
      %v1782 = vunpack.c.l.b16 %v1648
      %v1783 = vunpack.c.l.b16 %v1649
      %v1784 = vunpack.c.l.b16 %v1650
      %v1785 = vunpack.c.l.b16 %v1651
      %v1786 = vunpack.c.l.b16 %v1652
      %v1787 = vunpack.c.l.b16 %v1653
      %v1788 = vunpack.c.l.b16 %v1654
      %v1789 = vunpack.c.l.b16 %v1655
      %v1790 = vunpack.c.l.b16 %v1656
      %v1791 = vunpack.c.l.b16 %v1657
      %v1792 = vunpack.c.l.b16 %v1658
      %v1793 = vunpack.c.l.b16 %v1659
      %v1794 = vunpack.c.l.b16 %v1660
      %v1795 = vunpack.c.l.b16 %v1661
      %v1796 = vunpack.c.l.b16 %v1662
      %v1797 = vunpack.c.l.b16 %v1663
      %v1798 = vunpack.c.l.b16 %v1664
      %v1799 = vunpack.c.l.b16 %v1665
      %v1800 = vunpack.c.l.b16 %v1666
      %v1801 = vunpack.c.l.b16 %v1667
      %v1802 = vunpack.c.l.b16 %v1668
      %v1803 = vunpack.c.l.b16 %v1669
      %v1804 = vunpack.c.l.b16 %v1670
      %v1805 = vunpack.c.l.b16 %v1671
      %v1806 = vunpack.c.l.b16 %v1672
      %v1807 = vunpack.c.l.b16 %v1673
      %v1808 = vunpack.c.l.b16 %v1674
      %v1809 = vunpack.c.l.b16 %v1675
      %v1810 = vunpack.c.l.b16 %v1676
      %v1811 = vunpack.c.l.b16 %v1677
      %v1812 = vunpack.c.l.b16 %v1678
      %v1813 = vunpack.c.l.b16 %v1679
      %v1814 = vunpack.c.l.b16 %v1680
      %v1815 = vunpack.c.l.b16 %v1681
      %v1816 = vunpack.c.l.b16 %v1682
      %v1817 = vunpack.c.l.b16 %v1683
      %v1818 = vunpack.c.l.b16 %v1684
      %v1819 = vpack.c.b16 %v1754, %v1753
      %v1820 = vpack.c.b16 %v1756, %v1755
      %v1821 = vpack.c.b16 %v1758, %v1757
      %v1822 = vpack.c.b16 %v1760, %v1759
      %v1823 = vpack.c.b16 %v1762, %v1761
      %v1824 = vpack.c.b16 %v1764, %v1763
      %v1825 = vpack.c.b16 %v1766, %v1765
      %v1826 = vpack.c.b16 %v1768, %v1767
      %v1827 = vpack.c.b16 %v1770, %v1769
      %v1828 = vpack.c.b16 %v1772, %v1771
      %v1829 = vpack.c.b16 %v1774, %v1773
      %v1830 = vpack.c.b16 %v1776, %v1775
      %v1831 = vpack.c.b16 %v1778, %v1777
      %v1832 = vpack.c.b16 %v1780, %v1779
      %v1833 = vpack.c.b16 %v1782, %v1781
      %v1834 = vpack.c.b16 %v1784, %v1783
      %v1835 = vpack.c.b16 %v1786, %v1785
      %v1836 = vpack.c.b16 %v1788, %v1787
      %v1837 = vpack.c.b16 %v1790, %v1789
      %v1838 = vpack.c.b16 %v1792, %v1791
      %v1839 = vpack.c.b16 %v1794, %v1793
      %v1840 = vpack.c.b16 %v1796, %v1795
      %v1841 = vpack.c.b16 %v1798, %v1797
      %v1842 = vpack.c.b16 %v1800, %v1799
      %v1843 = vpack.c.b16 %v1802, %v1801
      %v1844 = vpack.c.b16 %v1804, %v1803
      %v1845 = vpack.c.b16 %v1806, %v1805
      %v1846 = vpack.c.b16 %v1808, %v1807
      %v1847 = vpack.c.b16 %v1810, %v1809
      %v1848 = vpack.c.b16 %v1812, %v1811
      %v1849 = vpack.c.b16 %v1814, %v1813
      %v1850 = vpack.c.b16 %v1816, %v1815
      %v1851 = vpack.c.b16 %v1818, %v1817
      %v1853 = vsel %vm679, %v1819, 0
      %v1856 = vsel %vm679, %v1820, 0
      %v1859 = vsel %vm679, %v1821, 0
      %v1862 = vsel %vm679, %v1822, 0
      %v1865 = vsel %vm679, %v1823, 0
      %v1868 = vsel %vm679, %v1824, 0
      %v1871 = vsel %vm679, %v1825, 0
      %v1874 = vsel %vm679, %v1826, 0
      %v1877 = vsel %vm679, %v1827, 0
      %v1880 = vsel %vm679, %v1828, 0
      %v1883 = vsel %vm679, %v1829, 0
      %v1886 = vsel %vm679, %v1830, 0
      %v1889 = vsel %vm679, %v1831, 0
      %v1892 = vsel %vm679, %v1832, 0
      %v1895 = vsel %vm679, %v1833, 0
      %v1898 = vsel %vm679, %v1834, 0
      %v1901 = vsel %vm679, %v1835, 0
      %v1904 = vsel %vm679, %v1836, 0
      %v1907 = vsel %vm679, %v1837, 0
      %v1910 = vsel %vm679, %v1838, 0
      %v1913 = vsel %vm679, %v1839, 0
      %v1916 = vsel %vm679, %v1840, 0
      %v1919 = vsel %vm679, %v1841, 0
      %v1922 = vsel %vm679, %v1842, 0
      %v1925 = vsel %vm679, %v1843, 0
      %v1928 = vsel %vm679, %v1844, 0
      %v1931 = vsel %vm679, %v1845, 0
      %v1934 = vsel %vm679, %v1846, 0
      %v1937 = vsel %vm679, %v1847, 0
      %v1940 = vsel %vm679, %v1848, 0
      %v1943 = vsel %vm679, %v1849, 0
      %v1946 = vsel %vm679, %v1850, 0
      %v1949 = vsel %vm679, %v1851, 0
      %v1952 = vand.u32 %v1686, %v782
      %1954 = vmatpush.bf16.msra.mxu0 0
      %1955 = vmatpush.bf16.msra.mxu0 0
      %1956 = vmatpush.bf16.msra.mxu0 0
      %1957 = vmatpush.bf16.msra.mxu0 0
      %1958 = vmatpush.bf16.msra.mxu0 0
      %1959 = vmatpush.bf16.msra.mxu0 0
      %1960 = vmatpush.bf16.msra.mxu0 0
      %1961 = vmatpush.bf16.msra.mxu0 %v1952
      %1962 = vmatmul.bf16.gmra.mxu0 %v1853
      %v1963 = vpop.f32.mrf.mxu0
      %v1964 = vadd.f32 0.0, %v1963
      %v1965 = vpop.f32.mrf.mxu0
      %v1966 = vadd.f32 0.0, %v1965
      %1967 = vmatmul.bf16.gmra.mxu0 %v1856
      %v1968 = vpop.f32.mrf.mxu0
      %v1969 = vadd.f32 0.0, %v1968
      %v1970 = vpop.f32.mrf.mxu0
      %v1971 = vadd.f32 0.0, %v1970
      %1972 = vmatmul.bf16.gmra.mxu0 %v1859
      %v1973 = vpop.f32.mrf.mxu0
      %v1974 = vadd.f32 0.0, %v1973
      %v1975 = vpop.f32.mrf.mxu0
      %v1976 = vadd.f32 0.0, %v1975
      %1977 = vmatmul.bf16.gmra.mxu0 %v1862
      %v1978 = vpop.f32.mrf.mxu0
      %v1979 = vadd.f32 0.0, %v1978
      %v1980 = vpop.f32.mrf.mxu0
      %v1981 = vadd.f32 0.0, %v1980
      %1982 = vmatmul.bf16.gmra.mxu0 %v1865
      %v1983 = vpop.f32.mrf.mxu0
      %v1984 = vadd.f32 0.0, %v1983
      %v1985 = vpop.f32.mrf.mxu0
      %v1986 = vadd.f32 0.0, %v1985
      %1987 = vmatmul.bf16.gmra.mxu0 %v1868
      %v1988 = vpop.f32.mrf.mxu0
      %v1989 = vadd.f32 0.0, %v1988
      %v1990 = vpop.f32.mrf.mxu0
      %v1991 = vadd.f32 0.0, %v1990
      %1992 = vmatmul.bf16.gmra.mxu0 %v1871
      %v1993 = vpop.f32.mrf.mxu0
      %v1994 = vadd.f32 0.0, %v1993
      %v1995 = vpop.f32.mrf.mxu0
      %v1996 = vadd.f32 0.0, %v1995
      %1997 = vmatmul.bf16.gmra.mxu0 %v1874
      %v1998 = vpop.f32.mrf.mxu0
      %v1999 = vadd.f32 0.0, %v1998
      %v2000 = vpop.f32.mrf.mxu0
      %v2001 = vadd.f32 0.0, %v2000
      %2002 = vmatmul.bf16.gmra.mxu0 %v1877
      %v2003 = vpop.f32.mrf.mxu0
      %v2004 = vadd.f32 0.0, %v2003
      %v2005 = vpop.f32.mrf.mxu0
      %v2006 = vadd.f32 0.0, %v2005
      %2007 = vmatmul.bf16.gmra.mxu0 %v1880
      %v2008 = vpop.f32.mrf.mxu0
      %v2009 = vadd.f32 0.0, %v2008
      %v2010 = vpop.f32.mrf.mxu0
      %v2011 = vadd.f32 0.0, %v2010
      %2012 = vmatmul.bf16.gmra.mxu0 %v1883
      %v2013 = vpop.f32.mrf.mxu0
      %v2014 = vadd.f32 0.0, %v2013
      %v2015 = vpop.f32.mrf.mxu0
      %v2016 = vadd.f32 0.0, %v2015
      %2017 = vmatmul.bf16.gmra.mxu0 %v1886
      %v2018 = vpop.f32.mrf.mxu0
      %v2019 = vadd.f32 0.0, %v2018
      %v2020 = vpop.f32.mrf.mxu0
      %v2021 = vadd.f32 0.0, %v2020
      %2022 = vmatmul.bf16.gmra.mxu0 %v1889
      %v2023 = vpop.f32.mrf.mxu0
      %v2024 = vadd.f32 0.0, %v2023
      %v2025 = vpop.f32.mrf.mxu0
      %v2026 = vadd.f32 0.0, %v2025
      %2027 = vmatmul.bf16.gmra.mxu0 %v1892
      %v2028 = vpop.f32.mrf.mxu0
      %v2029 = vadd.f32 0.0, %v2028
      %v2030 = vpop.f32.mrf.mxu0
      %v2031 = vadd.f32 0.0, %v2030
      %2032 = vmatmul.bf16.gmra.mxu0 %v1895
      %v2033 = vpop.f32.mrf.mxu0
      %v2034 = vadd.f32 0.0, %v2033
      %v2035 = vpop.f32.mrf.mxu0
      %v2036 = vadd.f32 0.0, %v2035
      %2037 = vmatmul.bf16.gmra.mxu0 %v1898
      %v2038 = vpop.f32.mrf.mxu0
      %v2039 = vadd.f32 0.0, %v2038
      %v2040 = vpop.f32.mrf.mxu0
      %v2041 = vadd.f32 0.0, %v2040
      %2042 = vmatmul.bf16.gmra.mxu0 %v1901
      %v2043 = vpop.f32.mrf.mxu0
      %v2044 = vadd.f32 0.0, %v2043
      %v2045 = vpop.f32.mrf.mxu0
      %v2046 = vadd.f32 0.0, %v2045
      %2047 = vmatmul.bf16.gmra.mxu0 %v1904
      %v2048 = vpop.f32.mrf.mxu0
      %v2049 = vadd.f32 0.0, %v2048
      %v2050 = vpop.f32.mrf.mxu0
      %v2051 = vadd.f32 0.0, %v2050
      %2052 = vmatmul.bf16.gmra.mxu0 %v1907
      %v2053 = vpop.f32.mrf.mxu0
      %v2054 = vadd.f32 0.0, %v2053
      %v2055 = vpop.f32.mrf.mxu0
      %v2056 = vadd.f32 0.0, %v2055
      %2057 = vmatmul.bf16.gmra.mxu0 %v1910
      %v2058 = vpop.f32.mrf.mxu0
      %v2059 = vadd.f32 0.0, %v2058
      %v2060 = vpop.f32.mrf.mxu0
      %v2061 = vadd.f32 0.0, %v2060
      %2062 = vmatmul.bf16.gmra.mxu0 %v1913
      %v2063 = vpop.f32.mrf.mxu0
      %v2064 = vadd.f32 0.0, %v2063
      %v2065 = vpop.f32.mrf.mxu0
      %v2066 = vadd.f32 0.0, %v2065
      %2067 = vmatmul.bf16.gmra.mxu0 %v1916
      %v2068 = vpop.f32.mrf.mxu0
      %v2069 = vadd.f32 0.0, %v2068
      %v2070 = vpop.f32.mrf.mxu0
      %v2071 = vadd.f32 0.0, %v2070
      %2072 = vmatmul.bf16.gmra.mxu0 %v1919
      %v2073 = vpop.f32.mrf.mxu0
      %v2074 = vadd.f32 0.0, %v2073
      %v2075 = vpop.f32.mrf.mxu0
      %v2076 = vadd.f32 0.0, %v2075
      %2077 = vmatmul.bf16.gmra.mxu0 %v1922
      %v2078 = vpop.f32.mrf.mxu0
      %v2079 = vadd.f32 0.0, %v2078
      %v2080 = vpop.f32.mrf.mxu0
      %v2081 = vadd.f32 0.0, %v2080
      %2082 = vmatmul.bf16.gmra.mxu0 %v1925
      %v2083 = vpop.f32.mrf.mxu0
      %v2084 = vadd.f32 0.0, %v2083
      %v2085 = vpop.f32.mrf.mxu0
      %v2086 = vadd.f32 0.0, %v2085
      %2087 = vmatmul.bf16.gmra.mxu0 %v1928
      %v2088 = vpop.f32.mrf.mxu0
      %v2089 = vadd.f32 0.0, %v2088
      %v2090 = vpop.f32.mrf.mxu0
      %v2091 = vadd.f32 0.0, %v2090
      %2092 = vmatmul.bf16.gmra.mxu0 %v1931
      %v2093 = vpop.f32.mrf.mxu0
      %v2094 = vadd.f32 0.0, %v2093
      %v2095 = vpop.f32.mrf.mxu0
      %v2096 = vadd.f32 0.0, %v2095
      %2097 = vmatmul.bf16.gmra.mxu0 %v1934
      %v2098 = vpop.f32.mrf.mxu0
      %v2099 = vadd.f32 0.0, %v2098
      %v2100 = vpop.f32.mrf.mxu0
      %v2101 = vadd.f32 0.0, %v2100
      %2102 = vmatmul.bf16.gmra.mxu0 %v1937
      %v2103 = vpop.f32.mrf.mxu0
      %v2104 = vadd.f32 0.0, %v2103
      %v2105 = vpop.f32.mrf.mxu0
      %v2106 = vadd.f32 0.0, %v2105
      %2107 = vmatmul.bf16.gmra.mxu0 %v1940
      %v2108 = vpop.f32.mrf.mxu0
      %v2109 = vadd.f32 0.0, %v2108
      %v2110 = vpop.f32.mrf.mxu0
      %v2111 = vadd.f32 0.0, %v2110
      %2112 = vmatmul.bf16.gmra.mxu0 %v1943
      %v2113 = vpop.f32.mrf.mxu0
      %v2114 = vadd.f32 0.0, %v2113
      %v2115 = vpop.f32.mrf.mxu0
      %v2116 = vadd.f32 0.0, %v2115
      %2117 = vmatmul.bf16.gmra.mxu0 %v1946
      %v2118 = vpop.f32.mrf.mxu0
      %v2119 = vadd.f32 0.0, %v2118
      %v2120 = vpop.f32.mrf.mxu0
      %v2121 = vadd.f32 0.0, %v2120
      %2122 = vmatmul.bf16.gmra.mxu0 %v1949
      %v2123 = vpop.f32.mrf.mxu0
      %v2124 = vadd.f32 0.0, %v2123
      %v2125 = vpop.f32.mrf.mxu0
      %v2126 = vadd.f32 0.0, %v2125
      %2127 = vdwg.mxu0
      %v2128 = vadd.f32 %v1553, %v1964
      %v2129 = vadd.f32 %v1554, %v1966
      %v2130 = vadd.f32 %v1555, %v1969
      %v2131 = vadd.f32 %v1556, %v1971
      %v2132 = vadd.f32 %v1557, %v1974
      %v2133 = vadd.f32 %v1558, %v1976
      %v2134 = vadd.f32 %v1559, %v1979
      %v2135 = vadd.f32 %v1560, %v1981
      %v2136 = vadd.f32 %v1561, %v1984
      %v2137 = vadd.f32 %v1562, %v1986
      %v2138 = vadd.f32 %v1563, %v1989
      %v2139 = vadd.f32 %v1564, %v1991
      %v2140 = vadd.f32 %v1565, %v1994
      %v2141 = vadd.f32 %v1566, %v1996
      %v2142 = vadd.f32 %v1567, %v1999
      %v2143 = vadd.f32 %v1568, %v2001
      %v2144 = vadd.f32 %v1569, %v2004
      %v2145 = vadd.f32 %v1570, %v2006
      %v2146 = vadd.f32 %v1571, %v2009
      %v2147 = vadd.f32 %v1572, %v2011
      %v2148 = vadd.f32 %v1573, %v2014
      %v2149 = vadd.f32 %v1574, %v2016
      %v2150 = vadd.f32 %v1575, %v2019
      %v2151 = vadd.f32 %v1576, %v2021
      %v2152 = vadd.f32 %v1577, %v2024
      %v2153 = vadd.f32 %v1578, %v2026
      %v2154 = vadd.f32 %v1579, %v2029
      %v2155 = vadd.f32 %v1580, %v2031
      %v2156 = vadd.f32 %v1581, %v2034
      %v2157 = vadd.f32 %v1582, %v2036
      %v2158 = vadd.f32 %v1583, %v2039
      %v2159 = vadd.f32 %v1584, %v2041
      %v2160 = vadd.f32 %v1585, %v2044
      %v2161 = vadd.f32 %v1586, %v2046
      %v2162 = vadd.f32 %v1587, %v2049
      %v2163 = vadd.f32 %v1588, %v2051
      %v2164 = vadd.f32 %v1589, %v2054
      %v2165 = vadd.f32 %v1590, %v2056
      %v2166 = vadd.f32 %v1591, %v2059
      %v2167 = vadd.f32 %v1592, %v2061
      %v2168 = vadd.f32 %v1593, %v2064
      %v2169 = vadd.f32 %v1594, %v2066
      %v2170 = vadd.f32 %v1595, %v2069
      %v2171 = vadd.f32 %v1596, %v2071
      %v2172 = vadd.f32 %v1597, %v2074
      %v2173 = vadd.f32 %v1598, %v2076
      %v2174 = vadd.f32 %v1599, %v2079
      %v2175 = vadd.f32 %v1600, %v2081
      %v2176 = vadd.f32 %v1601, %v2084
      %v2177 = vadd.f32 %v1602, %v2086
      %v2178 = vadd.f32 %v1603, %v2089
      %v2179 = vadd.f32 %v1604, %v2091
      %v2180 = vadd.f32 %v1605, %v2094
      %v2181 = vadd.f32 %v1606, %v2096
      %v2182 = vadd.f32 %v1607, %v2099
      %v2183 = vadd.f32 %v1608, %v2101
      %v2184 = vadd.f32 %v1609, %v2104
      %v2185 = vadd.f32 %v1610, %v2106
      %v2186 = vadd.f32 %v1611, %v2109
      %v2187 = vadd.f32 %v1612, %v2111
      %v2188 = vadd.f32 %v1613, %v2114
      %v2189 = vadd.f32 %v1614, %v2116
      %v2190 = vadd.f32 %v1615, %v2119
      %v2191 = vadd.f32 %v1616, %v2121
      %v2192 = vadd.f32 %v1617, %v2124
      %v2193 = vadd.f32 %v1618, %v2126
      %v2194 = vld [vmem:[%s165 + $0xc] sm:$0xf]
      %v2195 = vld [vmem:[%s165 + $0x10] sm:$0xf]
      %v2196 = vld [vmem:[%s165 + $0x14] sm:$0xf]
      %v2197 = vld [vmem:[%s165 + $0x18] sm:$0xf]
      %v2198 = vld [vmem:[%s165 + $0x1c] sm:$0xf]
      %v2199 = vld [vmem:[%s165 + $0x20] sm:$0xf]
      %v2200 = vld [vmem:[%s165 + $0x24] sm:$0xf]
      %v2201 = vld [vmem:[%s165 + $0x28] sm:$0xf]
      %v2202 = vld [vmem:[%s165 + $0x2c] sm:$0xf]
      %v2203 = vld [vmem:[%s165 + $0x30] sm:$0xf]
      %v2204 = vld [vmem:[%s165 + $0x34] sm:$0xf]
      %v2205 = vld [vmem:[%s165 + $0x38] sm:$0xf]
      %v2206 = vld [vmem:[%s165 + $0x3c] sm:$0xf]
      %v2207 = vld [vmem:[%s165 + $0x40] sm:$0xf]
      %v2208 = vld [vmem:[%s165 + $0x44] sm:$0xf]
      %v2209 = vld [vmem:[%s165 + $0x48] sm:$0xf]
      %v2210 = vld [vmem:[%s165 + $0x4c] sm:$0xf]
      %v2211 = vld [vmem:[%s165 + $0x50] sm:$0xf]
      %v2212 = vld [vmem:[%s165 + $0x54] sm:$0xf]
      %v2213 = vld [vmem:[%s165 + $0x58] sm:$0xf]
      %v2214 = vld [vmem:[%s165 + $0x5c] sm:$0xf]
      %v2215 = vld [vmem:[%s165 + $0x60] sm:$0xf]
      %v2216 = vld [vmem:[%s165 + $0x64] sm:$0xf]
      %v2217 = vld [vmem:[%s165 + $0x68] sm:$0xf]
      %v2218 = vld [vmem:[%s165 + $0x6c] sm:$0xf]
      %v2219 = vld [vmem:[%s165 + $0x70] sm:$0xf]
      %v2220 = vld [vmem:[%s165 + $0x74] sm:$0xf]
      %v2221 = vld [vmem:[%s165 + $0x78] sm:$0xf]
      %v2222 = vld [vmem:[%s165 + $0x7c] sm:$0xf]
      %v2223 = vld [vmem:[%s165 + $0x80] sm:$0xf]
      %v2224 = vld [vmem:[%s165 + $0x84] sm:$0xf]
      %v2225 = vld [vmem:[%s165 + $0x88] sm:$0xf]
      %v2226 = vld [vmem:[%s165 + $0x8c] sm:$0xf]
      %v2227 = vld [vmem:[%s165 + $0x90] sm:$0xf]
      %v2228 = vld [vmem:[%s165 + $0x94] sm:$0xf]
      %v2229 = vld [vmem:[%s165 + $0x98] sm:$0xf]
      %v2230 = vld [vmem:[%s165 + $0x9c] sm:$0xf]
      %v2231 = vld [vmem:[%s165 + $0xa0] sm:$0xf]
      %v2232 = vld [vmem:[%s165 + $0xa4] sm:$0xf]
      %v2233 = vld [vmem:[%s165 + $0xa8] sm:$0xf]
      %v2234 = vld [vmem:[%s165 + $0xac] sm:$0xf]
      %v2235 = vld [vmem:[%s165 + $0xb0] sm:$0xf]
      %v2236 = vld [vmem:[%s165 + $0xb4] sm:$0xf]
      %v2237 = vld [vmem:[%s165 + $0xb8] sm:$0xf]
      %v2238 = vld [vmem:[%s165 + $0xbc] sm:$0xf]
      %v2239 = vld [vmem:[%s165 + $0xc0] sm:$0xf]
      %v2240 = vld [vmem:[%s165 + $0xc4] sm:$0xf]
      %v2241 = vld [vmem:[%s165 + $0xc8] sm:$0xf]
      %v2242 = vld [vmem:[%s165 + $0xcc] sm:$0xf]
      %v2243 = vld [vmem:[%s165 + $0xd0] sm:$0xf]
      %v2244 = vld [vmem:[%s165 + $0xd4] sm:$0xf]
      %v2245 = vld [vmem:[%s165 + $0xd8] sm:$0xf]
      %v2246 = vld [vmem:[%s165 + $0xdc] sm:$0xf]
      %v2247 = vld [vmem:[%s165 + $0xe0] sm:$0xf]
      %v2248 = vld [vmem:[%s165 + $0xe4] sm:$0xf]
      %v2249 = vld [vmem:[%s165 + $0xe8] sm:$0xf]
      %v2250 = vld [vmem:[%s165 + $0xec] sm:$0xf]
      %v2251 = vld [vmem:[%s165 + $0xf0] sm:$0xf]
      %v2252 = vld [vmem:[%s165 + $0xf4] sm:$0xf]
      %v2253 = vld [vmem:[%s165 + $0xf8] sm:$0xf]
      %v2254 = vld [vmem:[%s165 + $0xfc] sm:$0xf]
      %v2255 = vld [vmem:[%s165 + $0x100] sm:$0xf]
      %v2256 = vld [vmem:[%s165 + $0x104] sm:$0xf]
      %v2257 = vld [vmem:[%s165 + $0x108] sm:$0xf]
      %v2258 = vld [vmem:[%s165 + $0x10c] sm:$0xf]
      %v2259 = vld [vmem:[%s165 + $0x110] sm:$0xf]
      %v2260 = vld [vmem:[%s165 + $0x114] sm:$0x1]
      %s2261 = scalar_lea.vmem %s1, 8
      %v2262 = vld [vmem:[%s2261] sm:$0x3]
      %v2330 = vunpack.c.l.b16 %v2194
      %v2331 = vunpack.c.l.b16 %v2195
      %v2332 = vunpack.c.l.b16 %v2196
      %v2333 = vunpack.c.l.b16 %v2197
      %v2334 = vunpack.c.l.b16 %v2198
      %v2335 = vunpack.c.l.b16 %v2199
      %v2336 = vunpack.c.l.b16 %v2200
      %v2337 = vunpack.c.l.b16 %v2201
      %v2338 = vunpack.c.l.b16 %v2202
      %v2339 = vunpack.c.l.b16 %v2203
      %v2340 = vunpack.c.l.b16 %v2204
      %v2341 = vunpack.c.l.b16 %v2205
      %v2342 = vunpack.c.l.b16 %v2206
      %v2343 = vunpack.c.l.b16 %v2207
      %v2344 = vunpack.c.l.b16 %v2208
      %v2345 = vunpack.c.l.b16 %v2209
      %v2346 = vunpack.c.l.b16 %v2210
      %v2347 = vunpack.c.l.b16 %v2211
      %v2348 = vunpack.c.l.b16 %v2212
      %v2349 = vunpack.c.l.b16 %v2213
      %v2350 = vunpack.c.l.b16 %v2214
      %v2351 = vunpack.c.l.b16 %v2215
      %v2352 = vunpack.c.l.b16 %v2216
      %v2353 = vunpack.c.l.b16 %v2217
      %v2354 = vunpack.c.l.b16 %v2218
      %v2355 = vunpack.c.l.b16 %v2219
      %v2356 = vunpack.c.l.b16 %v2220
      %v2357 = vunpack.c.l.b16 %v2221
      %v2358 = vunpack.c.l.b16 %v2222
      %v2359 = vunpack.c.l.b16 %v2223
      %v2360 = vunpack.c.l.b16 %v2224
      %v2361 = vunpack.c.l.b16 %v2225
      %v2362 = vunpack.c.l.b16 %v2226
      %v2363 = vunpack.c.l.b16 %v2227
      %v2364 = vunpack.c.l.b16 %v2228
      %v2365 = vunpack.c.l.b16 %v2229
      %v2366 = vunpack.c.l.b16 %v2230
      %v2367 = vunpack.c.l.b16 %v2231
      %v2368 = vunpack.c.l.b16 %v2232
      %v2369 = vunpack.c.l.b16 %v2233
      %v2370 = vunpack.c.l.b16 %v2234
      %v2371 = vunpack.c.l.b16 %v2235
      %v2372 = vunpack.c.l.b16 %v2236
      %v2373 = vunpack.c.l.b16 %v2237
      %v2374 = vunpack.c.l.b16 %v2238
      %v2375 = vunpack.c.l.b16 %v2239
      %v2376 = vunpack.c.l.b16 %v2240
      %v2377 = vunpack.c.l.b16 %v2241
      %v2378 = vunpack.c.l.b16 %v2242
      %v2379 = vunpack.c.l.b16 %v2243
      %v2380 = vunpack.c.l.b16 %v2244
      %v2381 = vunpack.c.l.b16 %v2245
      %v2382 = vunpack.c.l.b16 %v2246
      %v2383 = vunpack.c.l.b16 %v2247
      %v2384 = vunpack.c.l.b16 %v2248
      %v2385 = vunpack.c.l.b16 %v2249
      %v2386 = vunpack.c.l.b16 %v2250
      %v2387 = vunpack.c.l.b16 %v2251
      %v2388 = vunpack.c.l.b16 %v2252
      %v2389 = vunpack.c.l.b16 %v2253
      %v2390 = vunpack.c.l.b16 %v2254
      %v2391 = vunpack.c.l.b16 %v2255
      %v2392 = vunpack.c.l.b16 %v2256
      %v2393 = vunpack.c.l.b16 %v2257
      %v2394 = vunpack.c.l.b16 %v2258
      %v2395 = vunpack.c.l.b16 %v2259
      %v2396 = vunpack.c.l.b16 %v2260
      %v2397 = vpack.c.b16 %v2331, %v2330
      %v2398 = vpack.c.b16 %v2333, %v2332
      %v2399 = vpack.c.b16 %v2335, %v2334
      %v2400 = vpack.c.b16 %v2337, %v2336
      %v2401 = vpack.c.b16 %v2339, %v2338
      %v2402 = vpack.c.b16 %v2341, %v2340
      %v2403 = vpack.c.b16 %v2343, %v2342
      %v2404 = vpack.c.b16 %v2345, %v2344
      %v2405 = vpack.c.b16 %v2347, %v2346
      %v2406 = vpack.c.b16 %v2349, %v2348
      %v2407 = vpack.c.b16 %v2351, %v2350
      %v2408 = vpack.c.b16 %v2353, %v2352
      %v2409 = vpack.c.b16 %v2355, %v2354
      %v2410 = vpack.c.b16 %v2357, %v2356
      %v2411 = vpack.c.b16 %v2359, %v2358
      %v2412 = vpack.c.b16 %v2361, %v2360
      %v2413 = vpack.c.b16 %v2363, %v2362
      %v2414 = vpack.c.b16 %v2365, %v2364
      %v2415 = vpack.c.b16 %v2367, %v2366
      %v2416 = vpack.c.b16 %v2369, %v2368
      %v2417 = vpack.c.b16 %v2371, %v2370
      %v2418 = vpack.c.b16 %v2373, %v2372
      %v2419 = vpack.c.b16 %v2375, %v2374
      %v2420 = vpack.c.b16 %v2377, %v2376
      %v2421 = vpack.c.b16 %v2379, %v2378
      %v2422 = vpack.c.b16 %v2381, %v2380
      %v2423 = vpack.c.b16 %v2383, %v2382
      %v2424 = vpack.c.b16 %v2385, %v2384
      %v2425 = vpack.c.b16 %v2387, %v2386
      %v2426 = vpack.c.b16 %v2389, %v2388
      %v2427 = vpack.c.b16 %v2391, %v2390
      %v2428 = vpack.c.b16 %v2393, %v2392
      %v2429 = vpack.c.b16 %v2395, %v2394
      %v2430 = vpack.c.b16 %v2396, %v2396
      %v2432 = vshrl.u32 %v2397, 16
      %v2434 = vshll.u32 %v2397, 16
      %v2436 = vrot.slane %v2434, 1
      %v2437 = vor.u32 %v2432, %v2436
      %v2439 = vshll.u32 %v2398, 16
      %v2441 = vrot.slane %v2439, 1
      %v2442 = vsel %vm410, %v2437, %v2441
      %v2443 = vshrl.u32 %v2398, 16
      %v2445 = vor.u32 %v2443, %v2441
      %v2447 = vshll.u32 %v2399, 16
      %v2449 = vrot.slane %v2447, 1
      %v2450 = vsel %vm410, %v2445, %v2449
      %v2451 = vshrl.u32 %v2399, 16
      %v2453 = vor.u32 %v2451, %v2449
      %v2455 = vshll.u32 %v2400, 16
      %v2457 = vrot.slane %v2455, 1
      %v2458 = vsel %vm410, %v2453, %v2457
      %v2459 = vshrl.u32 %v2400, 16
      %v2461 = vor.u32 %v2459, %v2457
      %v2463 = vshll.u32 %v2401, 16
      %v2465 = vrot.slane %v2463, 1
      %v2466 = vsel %vm410, %v2461, %v2465
      %v2467 = vshrl.u32 %v2401, 16
      %v2469 = vor.u32 %v2467, %v2465
      %v2471 = vshll.u32 %v2402, 16
      %v2473 = vrot.slane %v2471, 1
      %v2474 = vsel %vm410, %v2469, %v2473
      %v2475 = vshrl.u32 %v2402, 16
      %v2477 = vor.u32 %v2475, %v2473
      %v2479 = vshll.u32 %v2403, 16
      %v2481 = vrot.slane %v2479, 1
      %v2482 = vsel %vm410, %v2477, %v2481
      %v2483 = vshrl.u32 %v2403, 16
      %v2485 = vor.u32 %v2483, %v2481
      %v2487 = vshll.u32 %v2404, 16
      %v2489 = vrot.slane %v2487, 1
      %v2490 = vsel %vm410, %v2485, %v2489
      %v2491 = vshrl.u32 %v2404, 16
      %v2493 = vor.u32 %v2491, %v2489
      %v2495 = vshll.u32 %v2405, 16
      %v2497 = vrot.slane %v2495, 1
      %v2498 = vsel %vm410, %v2493, %v2497
      %v2499 = vshrl.u32 %v2405, 16
      %v2501 = vor.u32 %v2499, %v2497
      %v2503 = vshll.u32 %v2406, 16
      %v2505 = vrot.slane %v2503, 1
      %v2506 = vsel %vm410, %v2501, %v2505
      %v2507 = vshrl.u32 %v2406, 16
      %v2509 = vor.u32 %v2507, %v2505
      %v2511 = vshll.u32 %v2407, 16
      %v2513 = vrot.slane %v2511, 1
      %v2514 = vsel %vm410, %v2509, %v2513
      %v2515 = vshrl.u32 %v2407, 16
      %v2517 = vor.u32 %v2515, %v2513
      %v2519 = vshll.u32 %v2408, 16
      %v2521 = vrot.slane %v2519, 1
      %v2522 = vsel %vm410, %v2517, %v2521
      %v2523 = vshrl.u32 %v2408, 16
      %v2525 = vor.u32 %v2523, %v2521
      %v2527 = vshll.u32 %v2409, 16
      %v2529 = vrot.slane %v2527, 1
      %v2530 = vsel %vm410, %v2525, %v2529
      %v2531 = vshrl.u32 %v2409, 16
      %v2533 = vor.u32 %v2531, %v2529
      %v2535 = vshll.u32 %v2410, 16
      %v2537 = vrot.slane %v2535, 1
      %v2538 = vsel %vm410, %v2533, %v2537
      %v2539 = vshrl.u32 %v2410, 16
      %v2541 = vor.u32 %v2539, %v2537
      %v2543 = vshll.u32 %v2411, 16
      %v2545 = vrot.slane %v2543, 1
      %v2546 = vsel %vm410, %v2541, %v2545
      %v2547 = vshrl.u32 %v2411, 16
      %v2549 = vor.u32 %v2547, %v2545
      %v2551 = vshll.u32 %v2412, 16
      %v2553 = vrot.slane %v2551, 1
      %v2554 = vsel %vm410, %v2549, %v2553
      %v2555 = vshrl.u32 %v2412, 16
      %v2557 = vor.u32 %v2555, %v2553
      %v2559 = vshll.u32 %v2413, 16
      %v2561 = vrot.slane %v2559, 1
      %v2562 = vsel %vm410, %v2557, %v2561
      %v2563 = vshrl.u32 %v2413, 16
      %v2565 = vor.u32 %v2563, %v2561
      %v2567 = vshll.u32 %v2414, 16
      %v2569 = vrot.slane %v2567, 1
      %v2570 = vsel %vm410, %v2565, %v2569
      %v2571 = vshrl.u32 %v2414, 16
      %v2573 = vor.u32 %v2571, %v2569
      %v2575 = vshll.u32 %v2415, 16
      %v2577 = vrot.slane %v2575, 1
      %v2578 = vsel %vm410, %v2573, %v2577
      %v2579 = vshrl.u32 %v2415, 16
      %v2581 = vor.u32 %v2579, %v2577
      %v2583 = vshll.u32 %v2416, 16
      %v2585 = vrot.slane %v2583, 1
      %v2586 = vsel %vm410, %v2581, %v2585
      %v2587 = vshrl.u32 %v2416, 16
      %v2589 = vor.u32 %v2587, %v2585
      %v2591 = vshll.u32 %v2417, 16
      %v2593 = vrot.slane %v2591, 1
      %v2594 = vsel %vm410, %v2589, %v2593
      %v2595 = vshrl.u32 %v2417, 16
      %v2597 = vor.u32 %v2595, %v2593
      %v2599 = vshll.u32 %v2418, 16
      %v2601 = vrot.slane %v2599, 1
      %v2602 = vsel %vm410, %v2597, %v2601
      %v2603 = vshrl.u32 %v2418, 16
      %v2605 = vor.u32 %v2603, %v2601
      %v2607 = vshll.u32 %v2419, 16
      %v2609 = vrot.slane %v2607, 1
      %v2610 = vsel %vm410, %v2605, %v2609
      %v2611 = vshrl.u32 %v2419, 16
      %v2613 = vor.u32 %v2611, %v2609
      %v2615 = vshll.u32 %v2420, 16
      %v2617 = vrot.slane %v2615, 1
      %v2618 = vsel %vm410, %v2613, %v2617
      %v2619 = vshrl.u32 %v2420, 16
      %v2621 = vor.u32 %v2619, %v2617
      %v2623 = vshll.u32 %v2421, 16
      %v2625 = vrot.slane %v2623, 1
      %v2626 = vsel %vm410, %v2621, %v2625
      %v2627 = vshrl.u32 %v2421, 16
      %v2629 = vor.u32 %v2627, %v2625
      %v2631 = vshll.u32 %v2422, 16
      %v2633 = vrot.slane %v2631, 1
      %v2634 = vsel %vm410, %v2629, %v2633
      %v2635 = vshrl.u32 %v2422, 16
      %v2637 = vor.u32 %v2635, %v2633
      %v2639 = vshll.u32 %v2423, 16
      %v2641 = vrot.slane %v2639, 1
      %v2642 = vsel %vm410, %v2637, %v2641
      %v2643 = vshrl.u32 %v2423, 16
      %v2645 = vor.u32 %v2643, %v2641
      %v2647 = vshll.u32 %v2424, 16
      %v2649 = vrot.slane %v2647, 1
      %v2650 = vsel %vm410, %v2645, %v2649
      %v2651 = vshrl.u32 %v2424, 16
      %v2653 = vor.u32 %v2651, %v2649
      %v2655 = vshll.u32 %v2425, 16
      %v2657 = vrot.slane %v2655, 1
      %v2658 = vsel %vm410, %v2653, %v2657
      %v2659 = vshrl.u32 %v2425, 16
      %v2661 = vor.u32 %v2659, %v2657
      %v2663 = vshll.u32 %v2426, 16
      %v2665 = vrot.slane %v2663, 1
      %v2666 = vsel %vm410, %v2661, %v2665
      %v2667 = vshrl.u32 %v2426, 16
      %v2669 = vor.u32 %v2667, %v2665
      %v2671 = vshll.u32 %v2427, 16
      %v2673 = vrot.slane %v2671, 1
      %v2674 = vsel %vm410, %v2669, %v2673
      %v2675 = vshrl.u32 %v2427, 16
      %v2677 = vor.u32 %v2675, %v2673
      %v2679 = vshll.u32 %v2428, 16
      %v2681 = vrot.slane %v2679, 1
      %v2682 = vsel %vm410, %v2677, %v2681
      %v2683 = vshrl.u32 %v2428, 16
      %v2685 = vor.u32 %v2683, %v2681
      %v2687 = vshll.u32 %v2429, 16
      %v2689 = vrot.slane %v2687, 1
      %v2690 = vsel %vm410, %v2685, %v2689
      %v2691 = vshrl.u32 %v2429, 16
      %v2693 = vor.u32 %v2691, %v2689
      %v2695 = vshll.u32 %v2430, 16
      %v2697 = vrot.slane %v2695, 1
      %v2698 = vsel %vm410, %v2693, %v2697
      %v2700 = vsel %vm679, %v2442, 0
      %v2703 = vsel %vm679, %v2450, 0
      %v2706 = vsel %vm679, %v2458, 0
      %v2709 = vsel %vm679, %v2466, 0
      %v2712 = vsel %vm679, %v2474, 0
      %v2715 = vsel %vm679, %v2482, 0
      %v2718 = vsel %vm679, %v2490, 0
      %v2721 = vsel %vm679, %v2498, 0
      %v2724 = vsel %vm679, %v2506, 0
      %v2727 = vsel %vm679, %v2514, 0
      %v2730 = vsel %vm679, %v2522, 0
      %v2733 = vsel %vm679, %v2530, 0
      %v2736 = vsel %vm679, %v2538, 0
      %v2739 = vsel %vm679, %v2546, 0
      %v2742 = vsel %vm679, %v2554, 0
      %v2745 = vsel %vm679, %v2562, 0
      %v2748 = vsel %vm679, %v2570, 0
      %v2751 = vsel %vm679, %v2578, 0
      %v2754 = vsel %vm679, %v2586, 0
      %v2757 = vsel %vm679, %v2594, 0
      %v2760 = vsel %vm679, %v2602, 0
      %v2763 = vsel %vm679, %v2610, 0
      %v2766 = vsel %vm679, %v2618, 0
      %v2769 = vsel %vm679, %v2626, 0
      %v2772 = vsel %vm679, %v2634, 0
      %v2775 = vsel %vm679, %v2642, 0
      %v2778 = vsel %vm679, %v2650, 0
      %v2781 = vsel %vm679, %v2658, 0
      %v2784 = vsel %vm679, %v2666, 0
      %v2787 = vsel %vm679, %v2674, 0
      %v2790 = vsel %vm679, %v2682, 0
      %v2793 = vsel %vm679, %v2690, 0
      %v2796 = vsel %vm679, %v2698, 0
      %v2799 = vand.u32 %v2262, %v782
      %2801 = vmatpush.bf16.msra.mxu0 0
      %2802 = vmatpush.bf16.msra.mxu0 0
      %2803 = vmatpush.bf16.msra.mxu0 0
      %2804 = vmatpush.bf16.msra.mxu0 0
      %2805 = vmatpush.bf16.msra.mxu0 0
      %2806 = vmatpush.bf16.msra.mxu0 0
      %2807 = vmatpush.bf16.msra.mxu0 0
      %2808 = vmatpush.bf16.msra.mxu0 %v2799
      %2809 = vmatmul.bf16.gmra.mxu0 %v2700
      %v2810 = vpop.f32.mrf.mxu0
      %v2811 = vadd.f32 0.0, %v2810
      %v2812 = vpop.f32.mrf.mxu0
      %v2813 = vadd.f32 0.0, %v2812
      %2814 = vmatmul.bf16.gmra.mxu0 %v2703
      %v2815 = vpop.f32.mrf.mxu0
      %v2816 = vadd.f32 0.0, %v2815
      %v2817 = vpop.f32.mrf.mxu0
      %v2818 = vadd.f32 0.0, %v2817
      %2819 = vmatmul.bf16.gmra.mxu0 %v2706
      %v2820 = vpop.f32.mrf.mxu0
      %v2821 = vadd.f32 0.0, %v2820
      %v2822 = vpop.f32.mrf.mxu0
      %v2823 = vadd.f32 0.0, %v2822
      %2824 = vmatmul.bf16.gmra.mxu0 %v2709
      %v2825 = vpop.f32.mrf.mxu0
      %v2826 = vadd.f32 0.0, %v2825
      %v2827 = vpop.f32.mrf.mxu0
      %v2828 = vadd.f32 0.0, %v2827
      %2829 = vmatmul.bf16.gmra.mxu0 %v2712
      %v2830 = vpop.f32.mrf.mxu0
      %v2831 = vadd.f32 0.0, %v2830
      %v2832 = vpop.f32.mrf.mxu0
      %v2833 = vadd.f32 0.0, %v2832
      %2834 = vmatmul.bf16.gmra.mxu0 %v2715
      %v2835 = vpop.f32.mrf.mxu0
      %v2836 = vadd.f32 0.0, %v2835
      %v2837 = vpop.f32.mrf.mxu0
      %v2838 = vadd.f32 0.0, %v2837
      %2839 = vmatmul.bf16.gmra.mxu0 %v2718
      %v2840 = vpop.f32.mrf.mxu0
      %v2841 = vadd.f32 0.0, %v2840
      %v2842 = vpop.f32.mrf.mxu0
      %v2843 = vadd.f32 0.0, %v2842
      %2844 = vmatmul.bf16.gmra.mxu0 %v2721
      %v2845 = vpop.f32.mrf.mxu0
      %v2846 = vadd.f32 0.0, %v2845
      %v2847 = vpop.f32.mrf.mxu0
      %v2848 = vadd.f32 0.0, %v2847
      %2849 = vmatmul.bf16.gmra.mxu0 %v2724
      %v2850 = vpop.f32.mrf.mxu0
      %v2851 = vadd.f32 0.0, %v2850
      %v2852 = vpop.f32.mrf.mxu0
      %v2853 = vadd.f32 0.0, %v2852
      %2854 = vmatmul.bf16.gmra.mxu0 %v2727
      %v2855 = vpop.f32.mrf.mxu0
      %v2856 = vadd.f32 0.0, %v2855
      %v2857 = vpop.f32.mrf.mxu0
      %v2858 = vadd.f32 0.0, %v2857
      %2859 = vmatmul.bf16.gmra.mxu0 %v2730
      %v2860 = vpop.f32.mrf.mxu0
      %v2861 = vadd.f32 0.0, %v2860
      %v2862 = vpop.f32.mrf.mxu0
      %v2863 = vadd.f32 0.0, %v2862
      %2864 = vmatmul.bf16.gmra.mxu0 %v2733
      %v2865 = vpop.f32.mrf.mxu0
      %v2866 = vadd.f32 0.0, %v2865
      %v2867 = vpop.f32.mrf.mxu0
      %v2868 = vadd.f32 0.0, %v2867
      %2869 = vmatmul.bf16.gmra.mxu0 %v2736
      %v2870 = vpop.f32.mrf.mxu0
      %v2871 = vadd.f32 0.0, %v2870
      %v2872 = vpop.f32.mrf.mxu0
      %v2873 = vadd.f32 0.0, %v2872
      %2874 = vmatmul.bf16.gmra.mxu0 %v2739
      %v2875 = vpop.f32.mrf.mxu0
      %v2876 = vadd.f32 0.0, %v2875
      %v2877 = vpop.f32.mrf.mxu0
      %v2878 = vadd.f32 0.0, %v2877
      %2879 = vmatmul.bf16.gmra.mxu0 %v2742
      %v2880 = vpop.f32.mrf.mxu0
      %v2881 = vadd.f32 0.0, %v2880
      %v2882 = vpop.f32.mrf.mxu0
      %v2883 = vadd.f32 0.0, %v2882
      %2884 = vmatmul.bf16.gmra.mxu0 %v2745
      %v2885 = vpop.f32.mrf.mxu0
      %v2886 = vadd.f32 0.0, %v2885
      %v2887 = vpop.f32.mrf.mxu0
      %v2888 = vadd.f32 0.0, %v2887
      %2889 = vmatmul.bf16.gmra.mxu0 %v2748
      %v2890 = vpop.f32.mrf.mxu0
      %v2891 = vadd.f32 0.0, %v2890
      %v2892 = vpop.f32.mrf.mxu0
      %v2893 = vadd.f32 0.0, %v2892
      %2894 = vmatmul.bf16.gmra.mxu0 %v2751
      %v2895 = vpop.f32.mrf.mxu0
      %v2896 = vadd.f32 0.0, %v2895
      %v2897 = vpop.f32.mrf.mxu0
      %v2898 = vadd.f32 0.0, %v2897
      %2899 = vmatmul.bf16.gmra.mxu0 %v2754
      %v2900 = vpop.f32.mrf.mxu0
      %v2901 = vadd.f32 0.0, %v2900
      %v2902 = vpop.f32.mrf.mxu0
      %v2903 = vadd.f32 0.0, %v2902
      %2904 = vmatmul.bf16.gmra.mxu0 %v2757
      %v2905 = vpop.f32.mrf.mxu0
      %v2906 = vadd.f32 0.0, %v2905
      %v2907 = vpop.f32.mrf.mxu0
      %v2908 = vadd.f32 0.0, %v2907
      %2909 = vmatmul.bf16.gmra.mxu0 %v2760
      %v2910 = vpop.f32.mrf.mxu0
      %v2911 = vadd.f32 0.0, %v2910
      %v2912 = vpop.f32.mrf.mxu0
      %v2913 = vadd.f32 0.0, %v2912
      %2914 = vmatmul.bf16.gmra.mxu0 %v2763
      %v2915 = vpop.f32.mrf.mxu0
      %v2916 = vadd.f32 0.0, %v2915
      %v2917 = vpop.f32.mrf.mxu0
      %v2918 = vadd.f32 0.0, %v2917
      %2919 = vmatmul.bf16.gmra.mxu0 %v2766
      %v2920 = vpop.f32.mrf.mxu0
      %v2921 = vadd.f32 0.0, %v2920
      %v2922 = vpop.f32.mrf.mxu0
      %v2923 = vadd.f32 0.0, %v2922
      %2924 = vmatmul.bf16.gmra.mxu0 %v2769
      %v2925 = vpop.f32.mrf.mxu0
      %v2926 = vadd.f32 0.0, %v2925
      %v2927 = vpop.f32.mrf.mxu0
      %v2928 = vadd.f32 0.0, %v2927
      %2929 = vmatmul.bf16.gmra.mxu0 %v2772
      %v2930 = vpop.f32.mrf.mxu0
      %v2931 = vadd.f32 0.0, %v2930
      %v2932 = vpop.f32.mrf.mxu0
      %v2933 = vadd.f32 0.0, %v2932
      %2934 = vmatmul.bf16.gmra.mxu0 %v2775
      %v2935 = vpop.f32.mrf.mxu0
      %v2936 = vadd.f32 0.0, %v2935
      %v2937 = vpop.f32.mrf.mxu0
      %v2938 = vadd.f32 0.0, %v2937
      %2939 = vmatmul.bf16.gmra.mxu0 %v2778
      %v2940 = vpop.f32.mrf.mxu0
      %v2941 = vadd.f32 0.0, %v2940
      %v2942 = vpop.f32.mrf.mxu0
      %v2943 = vadd.f32 0.0, %v2942
      %2944 = vmatmul.bf16.gmra.mxu0 %v2781
      %v2945 = vpop.f32.mrf.mxu0
      %v2946 = vadd.f32 0.0, %v2945
      %v2947 = vpop.f32.mrf.mxu0
      %v2948 = vadd.f32 0.0, %v2947
      %2949 = vmatmul.bf16.gmra.mxu0 %v2784
      %v2950 = vpop.f32.mrf.mxu0
      %v2951 = vadd.f32 0.0, %v2950
      %v2952 = vpop.f32.mrf.mxu0
      %v2953 = vadd.f32 0.0, %v2952
      %2954 = vmatmul.bf16.gmra.mxu0 %v2787
      %v2955 = vpop.f32.mrf.mxu0
      %v2956 = vadd.f32 0.0, %v2955
      %v2957 = vpop.f32.mrf.mxu0
      %v2958 = vadd.f32 0.0, %v2957
      %2959 = vmatmul.bf16.gmra.mxu0 %v2790
      %v2960 = vpop.f32.mrf.mxu0
      %v2961 = vadd.f32 0.0, %v2960
      %v2962 = vpop.f32.mrf.mxu0
      %v2963 = vadd.f32 0.0, %v2962
      %2964 = vmatmul.bf16.gmra.mxu0 %v2793
      %v2965 = vpop.f32.mrf.mxu0
      %v2966 = vadd.f32 0.0, %v2965
      %v2967 = vpop.f32.mrf.mxu0
      %v2968 = vadd.f32 0.0, %v2967
      %2969 = vmatmul.bf16.gmra.mxu0 %v2796
      %v2970 = vpop.f32.mrf.mxu0
      %v2971 = vadd.f32 0.0, %v2970
      %v2972 = vpop.f32.mrf.mxu0
      %v2973 = vadd.f32 0.0, %v2972
      %2974 = vdwg.mxu0
      %v2975 = vadd.f32 %v2128, %v2811
      %v2976 = vadd.f32 %v2129, %v2813
      %v2977 = vadd.f32 %v2130, %v2816
      %v2978 = vadd.f32 %v2131, %v2818
      %v2979 = vadd.f32 %v2132, %v2821
      %v2980 = vadd.f32 %v2133, %v2823
      %v2981 = vadd.f32 %v2134, %v2826
      %v2982 = vadd.f32 %v2135, %v2828
      %v2983 = vadd.f32 %v2136, %v2831
      %v2984 = vadd.f32 %v2137, %v2833
      %v2985 = vadd.f32 %v2138, %v2836
      %v2986 = vadd.f32 %v2139, %v2838
      %v2987 = vadd.f32 %v2140, %v2841
      %v2988 = vadd.f32 %v2141, %v2843
      %v2989 = vadd.f32 %v2142, %v2846
      %v2990 = vadd.f32 %v2143, %v2848
      %v2991 = vadd.f32 %v2144, %v2851
      %v2992 = vadd.f32 %v2145, %v2853
      %v2993 = vadd.f32 %v2146, %v2856
      %v2994 = vadd.f32 %v2147, %v2858
      %v2995 = vadd.f32 %v2148, %v2861
      %v2996 = vadd.f32 %v2149, %v2863
      %v2997 = vadd.f32 %v2150, %v2866
      %v2998 = vadd.f32 %v2151, %v2868
      %v2999 = vadd.f32 %v2152, %v2871
      %v3000 = vadd.f32 %v2153, %v2873
      %v3001 = vadd.f32 %v2154, %v2876
      %v3002 = vadd.f32 %v2155, %v2878
      %v3003 = vadd.f32 %v2156, %v2881
      %v3004 = vadd.f32 %v2157, %v2883
      %v3005 = vadd.f32 %v2158, %v2886
      %v3006 = vadd.f32 %v2159, %v2888
      %v3007 = vadd.f32 %v2160, %v2891
      %v3008 = vadd.f32 %v2161, %v2893
      %v3009 = vadd.f32 %v2162, %v2896
      %v3010 = vadd.f32 %v2163, %v2898
      %v3011 = vadd.f32 %v2164, %v2901
      %v3012 = vadd.f32 %v2165, %v2903
      %v3013 = vadd.f32 %v2166, %v2906
      %v3014 = vadd.f32 %v2167, %v2908
      %v3015 = vadd.f32 %v2168, %v2911
      %v3016 = vadd.f32 %v2169, %v2913
      %v3017 = vadd.f32 %v2170, %v2916
      %v3018 = vadd.f32 %v2171, %v2918
      %v3019 = vadd.f32 %v2172, %v2921
      %v3020 = vadd.f32 %v2173, %v2923
      %v3021 = vadd.f32 %v2174, %v2926
      %v3022 = vadd.f32 %v2175, %v2928
      %v3023 = vadd.f32 %v2176, %v2931
      %v3024 = vadd.f32 %v2177, %v2933
      %v3025 = vadd.f32 %v2178, %v2936
      %v3026 = vadd.f32 %v2179, %v2938
      %v3027 = vadd.f32 %v2180, %v2941
      %v3028 = vadd.f32 %v2181, %v2943
      %v3029 = vadd.f32 %v2182, %v2946
      %v3030 = vadd.f32 %v2183, %v2948
      %v3031 = vadd.f32 %v2184, %v2951
      %v3032 = vadd.f32 %v2185, %v2953
      %v3033 = vadd.f32 %v2186, %v2956
      %v3034 = vadd.f32 %v2187, %v2958
      %v3035 = vadd.f32 %v2188, %v2961
      %v3036 = vadd.f32 %v2189, %v2963
      %v3037 = vadd.f32 %v2190, %v2966
      %v3038 = vadd.f32 %v2191, %v2968
      %v3039 = vadd.f32 %v2192, %v2971
      %v3040 = vadd.f32 %v2193, %v2973
      %v3041 = vld [vmem:[%s165 + $0xc] sm:$0xe]
      %s3042 = scalar_lea.vmem %s1, 10
      %v3043 = vld [vmem:[%s3042] sm:$0x3]
      %v3045 = vunpack.c.l.b16 %v3041
      %v3046 = vpack.c.b16 %v2331, %v3045
      %v3047 = vrot.slane %v3046, 1
      %v3048 = vrot.slane %v2398, 1
      %v3049 = vsel %vm1209, %v3047, %v3048
      %v3050 = vrot.slane %v2399, 1
      %v3051 = vsel %vm1209, %v3048, %v3050
      %v3052 = vrot.slane %v2400, 1
      %v3053 = vsel %vm1209, %v3050, %v3052
      %v3054 = vrot.slane %v2401, 1
      %v3055 = vsel %vm1209, %v3052, %v3054
      %v3056 = vrot.slane %v2402, 1
      %v3057 = vsel %vm1209, %v3054, %v3056
      %v3058 = vrot.slane %v2403, 1
      %v3059 = vsel %vm1209, %v3056, %v3058
      %v3060 = vrot.slane %v2404, 1
      %v3061 = vsel %vm1209, %v3058, %v3060
      %v3062 = vrot.slane %v2405, 1
      %v3063 = vsel %vm1209, %v3060, %v3062
      %v3064 = vrot.slane %v2406, 1
      %v3065 = vsel %vm1209, %v3062, %v3064
      %v3066 = vrot.slane %v2407, 1
      %v3067 = vsel %vm1209, %v3064, %v3066
      %v3068 = vrot.slane %v2408, 1
      %v3069 = vsel %vm1209, %v3066, %v3068
      %v3070 = vrot.slane %v2409, 1
      %v3071 = vsel %vm1209, %v3068, %v3070
      %v3072 = vrot.slane %v2410, 1
      %v3073 = vsel %vm1209, %v3070, %v3072
      %v3074 = vrot.slane %v2411, 1
      %v3075 = vsel %vm1209, %v3072, %v3074
      %v3076 = vrot.slane %v2412, 1
      %v3077 = vsel %vm1209, %v3074, %v3076
      %v3078 = vrot.slane %v2413, 1
      %v3079 = vsel %vm1209, %v3076, %v3078
      %v3080 = vrot.slane %v2414, 1
      %v3081 = vsel %vm1209, %v3078, %v3080
      %v3082 = vrot.slane %v2415, 1
      %v3083 = vsel %vm1209, %v3080, %v3082
      %v3084 = vrot.slane %v2416, 1
      %v3085 = vsel %vm1209, %v3082, %v3084
      %v3086 = vrot.slane %v2417, 1
      %v3087 = vsel %vm1209, %v3084, %v3086
      %v3088 = vrot.slane %v2418, 1
      %v3089 = vsel %vm1209, %v3086, %v3088
      %v3090 = vrot.slane %v2419, 1
      %v3091 = vsel %vm1209, %v3088, %v3090
      %v3092 = vrot.slane %v2420, 1
      %v3093 = vsel %vm1209, %v3090, %v3092
      %v3094 = vrot.slane %v2421, 1
      %v3095 = vsel %vm1209, %v3092, %v3094
      %v3096 = vrot.slane %v2422, 1
      %v3097 = vsel %vm1209, %v3094, %v3096
      %v3098 = vrot.slane %v2423, 1
      %v3099 = vsel %vm1209, %v3096, %v3098
      %v3100 = vrot.slane %v2424, 1
      %v3101 = vsel %vm1209, %v3098, %v3100
      %v3102 = vrot.slane %v2425, 1
      %v3103 = vsel %vm1209, %v3100, %v3102
      %v3104 = vrot.slane %v2426, 1
      %v3105 = vsel %vm1209, %v3102, %v3104
      %v3106 = vrot.slane %v2427, 1
      %v3107 = vsel %vm1209, %v3104, %v3106
      %v3108 = vrot.slane %v2428, 1
      %v3109 = vsel %vm1209, %v3106, %v3108
      %v3110 = vrot.slane %v2429, 1
      %v3111 = vsel %vm1209, %v3108, %v3110
      %v3112 = vrot.slane %v2430, 1
      %v3113 = vsel %vm1209, %v3110, %v3112
      %v3115 = vsel %vm679, %v3049, 0
      %v3118 = vsel %vm679, %v3051, 0
      %v3121 = vsel %vm679, %v3053, 0
      %v3124 = vsel %vm679, %v3055, 0
      %v3127 = vsel %vm679, %v3057, 0
      %v3130 = vsel %vm679, %v3059, 0
      %v3133 = vsel %vm679, %v3061, 0
      %v3136 = vsel %vm679, %v3063, 0
      %v3139 = vsel %vm679, %v3065, 0
      %v3142 = vsel %vm679, %v3067, 0
      %v3145 = vsel %vm679, %v3069, 0
      %v3148 = vsel %vm679, %v3071, 0
      %v3151 = vsel %vm679, %v3073, 0
      %v3154 = vsel %vm679, %v3075, 0
      %v3157 = vsel %vm679, %v3077, 0
      %v3160 = vsel %vm679, %v3079, 0
      %v3163 = vsel %vm679, %v3081, 0
      %v3166 = vsel %vm679, %v3083, 0
      %v3169 = vsel %vm679, %v3085, 0
      %v3172 = vsel %vm679, %v3087, 0
      %v3175 = vsel %vm679, %v3089, 0
      %v3178 = vsel %vm679, %v3091, 0
      %v3181 = vsel %vm679, %v3093, 0
      %v3184 = vsel %vm679, %v3095, 0
      %v3187 = vsel %vm679, %v3097, 0
      %v3190 = vsel %vm679, %v3099, 0
      %v3193 = vsel %vm679, %v3101, 0
      %v3196 = vsel %vm679, %v3103, 0
      %v3199 = vsel %vm679, %v3105, 0
      %v3202 = vsel %vm679, %v3107, 0
      %v3205 = vsel %vm679, %v3109, 0
      %v3208 = vsel %vm679, %v3111, 0
      %v3211 = vsel %vm679, %v3113, 0
      %v3214 = vand.u32 %v3043, %v782
      %3216 = vmatpush.bf16.msra.mxu0 0
      %3217 = vmatpush.bf16.msra.mxu0 0
      %3218 = vmatpush.bf16.msra.mxu0 0
      %3219 = vmatpush.bf16.msra.mxu0 0
      %3220 = vmatpush.bf16.msra.mxu0 0
      %3221 = vmatpush.bf16.msra.mxu0 0
      %3222 = vmatpush.bf16.msra.mxu0 0
      %3223 = vmatpush.bf16.msra.mxu0 %v3214
      %3224 = vmatmul.bf16.gmra.mxu0 %v3115
      %v3225 = vpop.f32.mrf.mxu0
      %v3226 = vadd.f32 0.0, %v3225
      %v3227 = vpop.f32.mrf.mxu0
      %v3228 = vadd.f32 0.0, %v3227
      %3229 = vmatmul.bf16.gmra.mxu0 %v3118
      %v3230 = vpop.f32.mrf.mxu0
      %v3231 = vadd.f32 0.0, %v3230
      %v3232 = vpop.f32.mrf.mxu0
      %v3233 = vadd.f32 0.0, %v3232
      %3234 = vmatmul.bf16.gmra.mxu0 %v3121
      %v3235 = vpop.f32.mrf.mxu0
      %v3236 = vadd.f32 0.0, %v3235
      %v3237 = vpop.f32.mrf.mxu0
      %v3238 = vadd.f32 0.0, %v3237
      %3239 = vmatmul.bf16.gmra.mxu0 %v3124
      %v3240 = vpop.f32.mrf.mxu0
      %v3241 = vadd.f32 0.0, %v3240
      %v3242 = vpop.f32.mrf.mxu0
      %v3243 = vadd.f32 0.0, %v3242
      %3244 = vmatmul.bf16.gmra.mxu0 %v3127
      %v3245 = vpop.f32.mrf.mxu0
      %v3246 = vadd.f32 0.0, %v3245
      %v3247 = vpop.f32.mrf.mxu0
      %v3248 = vadd.f32 0.0, %v3247
      %3249 = vmatmul.bf16.gmra.mxu0 %v3130
      %v3250 = vpop.f32.mrf.mxu0
      %v3251 = vadd.f32 0.0, %v3250
      %v3252 = vpop.f32.mrf.mxu0
      %v3253 = vadd.f32 0.0, %v3252
      %3254 = vmatmul.bf16.gmra.mxu0 %v3133
      %v3255 = vpop.f32.mrf.mxu0
      %v3256 = vadd.f32 0.0, %v3255
      %v3257 = vpop.f32.mrf.mxu0
      %v3258 = vadd.f32 0.0, %v3257
      %3259 = vmatmul.bf16.gmra.mxu0 %v3136
      %v3260 = vpop.f32.mrf.mxu0
      %v3261 = vadd.f32 0.0, %v3260
      %v3262 = vpop.f32.mrf.mxu0
      %v3263 = vadd.f32 0.0, %v3262
      %3264 = vmatmul.bf16.gmra.mxu0 %v3139
      %v3265 = vpop.f32.mrf.mxu0
      %v3266 = vadd.f32 0.0, %v3265
      %v3267 = vpop.f32.mrf.mxu0
      %v3268 = vadd.f32 0.0, %v3267
      %3269 = vmatmul.bf16.gmra.mxu0 %v3142
      %v3270 = vpop.f32.mrf.mxu0
      %v3271 = vadd.f32 0.0, %v3270
      %v3272 = vpop.f32.mrf.mxu0
      %v3273 = vadd.f32 0.0, %v3272
      %3274 = vmatmul.bf16.gmra.mxu0 %v3145
      %v3275 = vpop.f32.mrf.mxu0
      %v3276 = vadd.f32 0.0, %v3275
      %v3277 = vpop.f32.mrf.mxu0
      %v3278 = vadd.f32 0.0, %v3277
      %3279 = vmatmul.bf16.gmra.mxu0 %v3148
      %v3280 = vpop.f32.mrf.mxu0
      %v3281 = vadd.f32 0.0, %v3280
      %v3282 = vpop.f32.mrf.mxu0
      %v3283 = vadd.f32 0.0, %v3282
      %3284 = vmatmul.bf16.gmra.mxu0 %v3151
      %v3285 = vpop.f32.mrf.mxu0
      %v3286 = vadd.f32 0.0, %v3285
      %v3287 = vpop.f32.mrf.mxu0
      %v3288 = vadd.f32 0.0, %v3287
      %3289 = vmatmul.bf16.gmra.mxu0 %v3154
      %v3290 = vpop.f32.mrf.mxu0
      %v3291 = vadd.f32 0.0, %v3290
      %v3292 = vpop.f32.mrf.mxu0
      %v3293 = vadd.f32 0.0, %v3292
      %3294 = vmatmul.bf16.gmra.mxu0 %v3157
      %v3295 = vpop.f32.mrf.mxu0
      %v3296 = vadd.f32 0.0, %v3295
      %v3297 = vpop.f32.mrf.mxu0
      %v3298 = vadd.f32 0.0, %v3297
      %3299 = vmatmul.bf16.gmra.mxu0 %v3160
      %v3300 = vpop.f32.mrf.mxu0
      %v3301 = vadd.f32 0.0, %v3300
      %v3302 = vpop.f32.mrf.mxu0
      %v3303 = vadd.f32 0.0, %v3302
      %3304 = vmatmul.bf16.gmra.mxu0 %v3163
      %v3305 = vpop.f32.mrf.mxu0
      %v3306 = vadd.f32 0.0, %v3305
      %v3307 = vpop.f32.mrf.mxu0
      %v3308 = vadd.f32 0.0, %v3307
      %3309 = vmatmul.bf16.gmra.mxu0 %v3166
      %v3310 = vpop.f32.mrf.mxu0
      %v3311 = vadd.f32 0.0, %v3310
      %v3312 = vpop.f32.mrf.mxu0
      %v3313 = vadd.f32 0.0, %v3312
      %3314 = vmatmul.bf16.gmra.mxu0 %v3169
      %v3315 = vpop.f32.mrf.mxu0
      %v3316 = vadd.f32 0.0, %v3315
      %v3317 = vpop.f32.mrf.mxu0
      %v3318 = vadd.f32 0.0, %v3317
      %3319 = vmatmul.bf16.gmra.mxu0 %v3172
      %v3320 = vpop.f32.mrf.mxu0
      %v3321 = vadd.f32 0.0, %v3320
      %v3322 = vpop.f32.mrf.mxu0
      %v3323 = vadd.f32 0.0, %v3322
      %3324 = vmatmul.bf16.gmra.mxu0 %v3175
      %v3325 = vpop.f32.mrf.mxu0
      %v3326 = vadd.f32 0.0, %v3325
      %v3327 = vpop.f32.mrf.mxu0
      %v3328 = vadd.f32 0.0, %v3327
      %3329 = vmatmul.bf16.gmra.mxu0 %v3178
      %v3330 = vpop.f32.mrf.mxu0
      %v3331 = vadd.f32 0.0, %v3330
      %v3332 = vpop.f32.mrf.mxu0
      %v3333 = vadd.f32 0.0, %v3332
      %3334 = vmatmul.bf16.gmra.mxu0 %v3181
      %v3335 = vpop.f32.mrf.mxu0
      %v3336 = vadd.f32 0.0, %v3335
      %v3337 = vpop.f32.mrf.mxu0
      %v3338 = vadd.f32 0.0, %v3337
      %3339 = vmatmul.bf16.gmra.mxu0 %v3184
      %v3340 = vpop.f32.mrf.mxu0
      %v3341 = vadd.f32 0.0, %v3340
      %v3342 = vpop.f32.mrf.mxu0
      %v3343 = vadd.f32 0.0, %v3342
      %3344 = vmatmul.bf16.gmra.mxu0 %v3187
      %v3345 = vpop.f32.mrf.mxu0
      %v3346 = vadd.f32 0.0, %v3345
      %v3347 = vpop.f32.mrf.mxu0
      %v3348 = vadd.f32 0.0, %v3347
      %3349 = vmatmul.bf16.gmra.mxu0 %v3190
      %v3350 = vpop.f32.mrf.mxu0
      %v3351 = vadd.f32 0.0, %v3350
      %v3352 = vpop.f32.mrf.mxu0
      %v3353 = vadd.f32 0.0, %v3352
      %3354 = vmatmul.bf16.gmra.mxu0 %v3193
      %v3355 = vpop.f32.mrf.mxu0
      %v3356 = vadd.f32 0.0, %v3355
      %v3357 = vpop.f32.mrf.mxu0
      %v3358 = vadd.f32 0.0, %v3357
      %3359 = vmatmul.bf16.gmra.mxu0 %v3196
      %v3360 = vpop.f32.mrf.mxu0
      %v3361 = vadd.f32 0.0, %v3360
      %v3362 = vpop.f32.mrf.mxu0
      %v3363 = vadd.f32 0.0, %v3362
      %3364 = vmatmul.bf16.gmra.mxu0 %v3199
      %v3365 = vpop.f32.mrf.mxu0
      %v3366 = vadd.f32 0.0, %v3365
      %v3367 = vpop.f32.mrf.mxu0
      %v3368 = vadd.f32 0.0, %v3367
      %3369 = vmatmul.bf16.gmra.mxu0 %v3202
      %v3370 = vpop.f32.mrf.mxu0
      %v3371 = vadd.f32 0.0, %v3370
      %v3372 = vpop.f32.mrf.mxu0
      %v3373 = vadd.f32 0.0, %v3372
      %3374 = vmatmul.bf16.gmra.mxu0 %v3205
      %v3375 = vpop.f32.mrf.mxu0
      %v3376 = vadd.f32 0.0, %v3375
      %v3377 = vpop.f32.mrf.mxu0
      %v3378 = vadd.f32 0.0, %v3377
      %3379 = vmatmul.bf16.gmra.mxu0 %v3208
      %v3380 = vpop.f32.mrf.mxu0
      %v3381 = vadd.f32 0.0, %v3380
      %v3382 = vpop.f32.mrf.mxu0
      %v3383 = vadd.f32 0.0, %v3382
      %3384 = vmatmul.bf16.gmra.mxu0 %v3211
      %v3385 = vpop.f32.mrf.mxu0
      %v3386 = vadd.f32 0.0, %v3385
      %v3387 = vpop.f32.mrf.mxu0
      %v3388 = vadd.f32 0.0, %v3387
      %3389 = vdwg.mxu0
      %v3390 = vadd.f32 %v2975, %v3226
      %v3391 = vadd.f32 %v2976, %v3228
      %v3392 = vadd.f32 %v2977, %v3231
      %v3393 = vadd.f32 %v2978, %v3233
      %v3394 = vadd.f32 %v2979, %v3236
      %v3395 = vadd.f32 %v2980, %v3238
      %v3396 = vadd.f32 %v2981, %v3241
      %v3397 = vadd.f32 %v2982, %v3243
      %v3398 = vadd.f32 %v2983, %v3246
      %v3399 = vadd.f32 %v2984, %v3248
      %v3400 = vadd.f32 %v2985, %v3251
      %v3401 = vadd.f32 %v2986, %v3253
      %v3402 = vadd.f32 %v2987, %v3256
      %v3403 = vadd.f32 %v2988, %v3258
      %v3404 = vadd.f32 %v2989, %v3261
      %v3405 = vadd.f32 %v2990, %v3263
      %v3406 = vadd.f32 %v2991, %v3266
      %v3407 = vadd.f32 %v2992, %v3268
      %v3408 = vadd.f32 %v2993, %v3271
      %v3409 = vadd.f32 %v2994, %v3273
      %v3410 = vadd.f32 %v2995, %v3276
      %v3411 = vadd.f32 %v2996, %v3278
      %v3412 = vadd.f32 %v2997, %v3281
      %v3413 = vadd.f32 %v2998, %v3283
      %v3414 = vadd.f32 %v2999, %v3286
      %v3415 = vadd.f32 %v3000, %v3288
      %v3416 = vadd.f32 %v3001, %v3291
      %v3417 = vadd.f32 %v3002, %v3293
      %v3418 = vadd.f32 %v3003, %v3296
      %v3419 = vadd.f32 %v3004, %v3298
      %v3420 = vadd.f32 %v3005, %v3301
      %v3421 = vadd.f32 %v3006, %v3303
      %v3422 = vadd.f32 %v3007, %v3306
      %v3423 = vadd.f32 %v3008, %v3308
      %v3424 = vadd.f32 %v3009, %v3311
      %v3425 = vadd.f32 %v3010, %v3313
      %v3426 = vadd.f32 %v3011, %v3316
      %v3427 = vadd.f32 %v3012, %v3318
      %v3428 = vadd.f32 %v3013, %v3321
      %v3429 = vadd.f32 %v3014, %v3323
      %v3430 = vadd.f32 %v3015, %v3326
      %v3431 = vadd.f32 %v3016, %v3328
      %v3432 = vadd.f32 %v3017, %v3331
      %v3433 = vadd.f32 %v3018, %v3333
      %v3434 = vadd.f32 %v3019, %v3336
      %v3435 = vadd.f32 %v3020, %v3338
      %v3436 = vadd.f32 %v3021, %v3341
      %v3437 = vadd.f32 %v3022, %v3343
      %v3438 = vadd.f32 %v3023, %v3346
      %v3439 = vadd.f32 %v3024, %v3348
      %v3440 = vadd.f32 %v3025, %v3351
      %v3441 = vadd.f32 %v3026, %v3353
      %v3442 = vadd.f32 %v3027, %v3356
      %v3443 = vadd.f32 %v3028, %v3358
      %v3444 = vadd.f32 %v3029, %v3361
      %v3445 = vadd.f32 %v3030, %v3363
      %v3446 = vadd.f32 %v3031, %v3366
      %v3447 = vadd.f32 %v3032, %v3368
      %v3448 = vadd.f32 %v3033, %v3371
      %v3449 = vadd.f32 %v3034, %v3373
      %v3450 = vadd.f32 %v3035, %v3376
      %v3451 = vadd.f32 %v3036, %v3378
      %v3452 = vadd.f32 %v3037, %v3381
      %v3453 = vadd.f32 %v3038, %v3383
      %v3454 = vadd.f32 %v3039, %v3386
      %v3455 = vadd.f32 %v3040, %v3388
      %v3456 = vld [vmem:[%s165 + $0x18] sm:$0xf]
      %v3457 = vld [vmem:[%s165 + $0x1c] sm:$0xf]
      %v3458 = vld [vmem:[%s165 + $0x20] sm:$0xf]
      %v3459 = vld [vmem:[%s165 + $0x24] sm:$0xf]
      %v3460 = vld [vmem:[%s165 + $0x28] sm:$0xf]
      %v3461 = vld [vmem:[%s165 + $0x2c] sm:$0xf]
      %v3462 = vld [vmem:[%s165 + $0x30] sm:$0xf]
      %v3463 = vld [vmem:[%s165 + $0x34] sm:$0xf]
      %v3464 = vld [vmem:[%s165 + $0x38] sm:$0xf]
      %v3465 = vld [vmem:[%s165 + $0x3c] sm:$0xf]
      %v3466 = vld [vmem:[%s165 + $0x40] sm:$0xf]
      %v3467 = vld [vmem:[%s165 + $0x44] sm:$0xf]
      %v3468 = vld [vmem:[%s165 + $0x48] sm:$0xf]
      %v3469 = vld [vmem:[%s165 + $0x4c] sm:$0xf]
      %v3470 = vld [vmem:[%s165 + $0x50] sm:$0xf]
      %v3471 = vld [vmem:[%s165 + $0x54] sm:$0xf]
      %v3472 = vld [vmem:[%s165 + $0x58] sm:$0xf]
      %v3473 = vld [vmem:[%s165 + $0x5c] sm:$0xf]
      %v3474 = vld [vmem:[%s165 + $0x60] sm:$0xf]
      %v3475 = vld [vmem:[%s165 + $0x64] sm:$0xf]
      %v3476 = vld [vmem:[%s165 + $0x68] sm:$0xf]
      %v3477 = vld [vmem:[%s165 + $0x6c] sm:$0xf]
      %v3478 = vld [vmem:[%s165 + $0x70] sm:$0xf]
      %v3479 = vld [vmem:[%s165 + $0x74] sm:$0xf]
      %v3480 = vld [vmem:[%s165 + $0x78] sm:$0xf]
      %v3481 = vld [vmem:[%s165 + $0x7c] sm:$0xf]
      %v3482 = vld [vmem:[%s165 + $0x80] sm:$0xf]
      %v3483 = vld [vmem:[%s165 + $0x84] sm:$0xf]
      %v3484 = vld [vmem:[%s165 + $0x88] sm:$0xf]
      %v3485 = vld [vmem:[%s165 + $0x8c] sm:$0xf]
      %v3486 = vld [vmem:[%s165 + $0x90] sm:$0xf]
      %v3487 = vld [vmem:[%s165 + $0x94] sm:$0xf]
      %v3488 = vld [vmem:[%s165 + $0x98] sm:$0xf]
      %v3489 = vld [vmem:[%s165 + $0x9c] sm:$0xf]
      %v3490 = vld [vmem:[%s165 + $0xa0] sm:$0xf]
      %v3491 = vld [vmem:[%s165 + $0xa4] sm:$0xf]
      %v3492 = vld [vmem:[%s165 + $0xa8] sm:$0xf]
      %v3493 = vld [vmem:[%s165 + $0xac] sm:$0xf]
      %v3494 = vld [vmem:[%s165 + $0xb0] sm:$0xf]
      %v3495 = vld [vmem:[%s165 + $0xb4] sm:$0xf]
      %v3496 = vld [vmem:[%s165 + $0xb8] sm:$0xf]
      %v3497 = vld [vmem:[%s165 + $0xbc] sm:$0xf]
      %v3498 = vld [vmem:[%s165 + $0xc0] sm:$0xf]
      %v3499 = vld [vmem:[%s165 + $0xc4] sm:$0xf]
      %v3500 = vld [vmem:[%s165 + $0xc8] sm:$0xf]
      %v3501 = vld [vmem:[%s165 + $0xcc] sm:$0xf]
      %v3502 = vld [vmem:[%s165 + $0xd0] sm:$0xf]
      %v3503 = vld [vmem:[%s165 + $0xd4] sm:$0xf]
      %v3504 = vld [vmem:[%s165 + $0xd8] sm:$0xf]
      %v3505 = vld [vmem:[%s165 + $0xdc] sm:$0xf]
      %v3506 = vld [vmem:[%s165 + $0xe0] sm:$0xf]
      %v3507 = vld [vmem:[%s165 + $0xe4] sm:$0xf]
      %v3508 = vld [vmem:[%s165 + $0xe8] sm:$0xf]
      %v3509 = vld [vmem:[%s165 + $0xec] sm:$0xf]
      %v3510 = vld [vmem:[%s165 + $0xf0] sm:$0xf]
      %v3511 = vld [vmem:[%s165 + $0xf4] sm:$0xf]
      %v3512 = vld [vmem:[%s165 + $0xf8] sm:$0xf]
      %v3513 = vld [vmem:[%s165 + $0xfc] sm:$0xf]
      %v3514 = vld [vmem:[%s165 + $0x100] sm:$0xf]
      %v3515 = vld [vmem:[%s165 + $0x104] sm:$0xf]
      %v3516 = vld [vmem:[%s165 + $0x108] sm:$0xf]
      %v3517 = vld [vmem:[%s165 + $0x10c] sm:$0xf]
      %v3518 = vld [vmem:[%s165 + $0x110] sm:$0xf]
      %v3519 = vld [vmem:[%s165 + $0x114] sm:$0xf]
      %v3520 = vld [vmem:[%s165 + $0x118] sm:$0xf]
      %v3521 = vld [vmem:[%s165 + $0x11c] sm:$0xf]
      %s3522 = scalar_lea.vmem %s1, 12
      %v3523 = vld [vmem:[%s3522] sm:$0x3]
      %v3590 = vunpack.c.l.b16 %v3456
      %v3591 = vunpack.c.l.b16 %v3457
      %v3592 = vunpack.c.l.b16 %v3458
      %v3593 = vunpack.c.l.b16 %v3459
      %v3594 = vunpack.c.l.b16 %v3460
      %v3595 = vunpack.c.l.b16 %v3461
      %v3596 = vunpack.c.l.b16 %v3462
      %v3597 = vunpack.c.l.b16 %v3463
      %v3598 = vunpack.c.l.b16 %v3464
      %v3599 = vunpack.c.l.b16 %v3465
      %v3600 = vunpack.c.l.b16 %v3466
      %v3601 = vunpack.c.l.b16 %v3467
      %v3602 = vunpack.c.l.b16 %v3468
      %v3603 = vunpack.c.l.b16 %v3469
      %v3604 = vunpack.c.l.b16 %v3470
      %v3605 = vunpack.c.l.b16 %v3471
      %v3606 = vunpack.c.l.b16 %v3472
      %v3607 = vunpack.c.l.b16 %v3473
      %v3608 = vunpack.c.l.b16 %v3474
      %v3609 = vunpack.c.l.b16 %v3475
      %v3610 = vunpack.c.l.b16 %v3476
      %v3611 = vunpack.c.l.b16 %v3477
      %v3612 = vunpack.c.l.b16 %v3478
      %v3613 = vunpack.c.l.b16 %v3479
      %v3614 = vunpack.c.l.b16 %v3480
      %v3615 = vunpack.c.l.b16 %v3481
      %v3616 = vunpack.c.l.b16 %v3482
      %v3617 = vunpack.c.l.b16 %v3483
      %v3618 = vunpack.c.l.b16 %v3484
      %v3619 = vunpack.c.l.b16 %v3485
      %v3620 = vunpack.c.l.b16 %v3486
      %v3621 = vunpack.c.l.b16 %v3487
      %v3622 = vunpack.c.l.b16 %v3488
      %v3623 = vunpack.c.l.b16 %v3489
      %v3624 = vunpack.c.l.b16 %v3490
      %v3625 = vunpack.c.l.b16 %v3491
      %v3626 = vunpack.c.l.b16 %v3492
      %v3627 = vunpack.c.l.b16 %v3493
      %v3628 = vunpack.c.l.b16 %v3494
      %v3629 = vunpack.c.l.b16 %v3495
      %v3630 = vunpack.c.l.b16 %v3496
      %v3631 = vunpack.c.l.b16 %v3497
      %v3632 = vunpack.c.l.b16 %v3498
      %v3633 = vunpack.c.l.b16 %v3499
      %v3634 = vunpack.c.l.b16 %v3500
      %v3635 = vunpack.c.l.b16 %v3501
      %v3636 = vunpack.c.l.b16 %v3502
      %v3637 = vunpack.c.l.b16 %v3503
      %v3638 = vunpack.c.l.b16 %v3504
      %v3639 = vunpack.c.l.b16 %v3505
      %v3640 = vunpack.c.l.b16 %v3506
      %v3641 = vunpack.c.l.b16 %v3507
      %v3642 = vunpack.c.l.b16 %v3508
      %v3643 = vunpack.c.l.b16 %v3509
      %v3644 = vunpack.c.l.b16 %v3510
      %v3645 = vunpack.c.l.b16 %v3511
      %v3646 = vunpack.c.l.b16 %v3512
      %v3647 = vunpack.c.l.b16 %v3513
      %v3648 = vunpack.c.l.b16 %v3514
      %v3649 = vunpack.c.l.b16 %v3515
      %v3650 = vunpack.c.l.b16 %v3516
      %v3651 = vunpack.c.l.b16 %v3517
      %v3652 = vunpack.c.l.b16 %v3518
      %v3653 = vunpack.c.l.b16 %v3519
      %v3654 = vunpack.c.l.b16 %v3520
      %v3655 = vunpack.c.l.b16 %v3521
      %v3656 = vpack.c.b16 %v3591, %v3590
      %v3657 = vpack.c.b16 %v3593, %v3592
      %v3658 = vpack.c.b16 %v3595, %v3594
      %v3659 = vpack.c.b16 %v3597, %v3596
      %v3660 = vpack.c.b16 %v3599, %v3598
      %v3661 = vpack.c.b16 %v3601, %v3600
      %v3662 = vpack.c.b16 %v3603, %v3602
      %v3663 = vpack.c.b16 %v3605, %v3604
      %v3664 = vpack.c.b16 %v3607, %v3606
      %v3665 = vpack.c.b16 %v3609, %v3608
      %v3666 = vpack.c.b16 %v3611, %v3610
      %v3667 = vpack.c.b16 %v3613, %v3612
      %v3668 = vpack.c.b16 %v3615, %v3614
      %v3669 = vpack.c.b16 %v3617, %v3616
      %v3670 = vpack.c.b16 %v3619, %v3618
      %v3671 = vpack.c.b16 %v3621, %v3620
      %v3672 = vpack.c.b16 %v3623, %v3622
      %v3673 = vpack.c.b16 %v3625, %v3624
      %v3674 = vpack.c.b16 %v3627, %v3626
      %v3675 = vpack.c.b16 %v3629, %v3628
      %v3676 = vpack.c.b16 %v3631, %v3630
      %v3677 = vpack.c.b16 %v3633, %v3632
      %v3678 = vpack.c.b16 %v3635, %v3634
      %v3679 = vpack.c.b16 %v3637, %v3636
      %v3680 = vpack.c.b16 %v3639, %v3638
      %v3681 = vpack.c.b16 %v3641, %v3640
      %v3682 = vpack.c.b16 %v3643, %v3642
      %v3683 = vpack.c.b16 %v3645, %v3644
      %v3684 = vpack.c.b16 %v3647, %v3646
      %v3685 = vpack.c.b16 %v3649, %v3648
      %v3686 = vpack.c.b16 %v3651, %v3650
      %v3687 = vpack.c.b16 %v3653, %v3652
      %v3688 = vpack.c.b16 %v3655, %v3654
      %v3690 = vsel %vm679, %v3656, 0
      %v3693 = vsel %vm679, %v3657, 0
      %v3696 = vsel %vm679, %v3658, 0
      %v3699 = vsel %vm679, %v3659, 0
      %v3702 = vsel %vm679, %v3660, 0
      %v3705 = vsel %vm679, %v3661, 0
      %v3708 = vsel %vm679, %v3662, 0
      %v3711 = vsel %vm679, %v3663, 0
      %v3714 = vsel %vm679, %v3664, 0
      %v3717 = vsel %vm679, %v3665, 0
      %v3720 = vsel %vm679, %v3666, 0
      %v3723 = vsel %vm679, %v3667, 0
      %v3726 = vsel %vm679, %v3668, 0
      %v3729 = vsel %vm679, %v3669, 0
      %v3732 = vsel %vm679, %v3670, 0
      %v3735 = vsel %vm679, %v3671, 0
      %v3738 = vsel %vm679, %v3672, 0
      %v3741 = vsel %vm679, %v3673, 0
      %v3744 = vsel %vm679, %v3674, 0
      %v3747 = vsel %vm679, %v3675, 0
      %v3750 = vsel %vm679, %v3676, 0
      %v3753 = vsel %vm679, %v3677, 0
      %v3756 = vsel %vm679, %v3678, 0
      %v3759 = vsel %vm679, %v3679, 0
      %v3762 = vsel %vm679, %v3680, 0
      %v3765 = vsel %vm679, %v3681, 0
      %v3768 = vsel %vm679, %v3682, 0
      %v3771 = vsel %vm679, %v3683, 0
      %v3774 = vsel %vm679, %v3684, 0
      %v3777 = vsel %vm679, %v3685, 0
      %v3780 = vsel %vm679, %v3686, 0
      %v3783 = vsel %vm679, %v3687, 0
      %v3786 = vsel %vm679, %v3688, 0
      %v3789 = vand.u32 %v3523, %v782
      %3791 = vmatpush.bf16.msra.mxu0 0
      %3792 = vmatpush.bf16.msra.mxu0 0
      %3793 = vmatpush.bf16.msra.mxu0 0
      %3794 = vmatpush.bf16.msra.mxu0 0
      %3795 = vmatpush.bf16.msra.mxu0 0
      %3796 = vmatpush.bf16.msra.mxu0 0
      %3797 = vmatpush.bf16.msra.mxu0 0
      %3798 = vmatpush.bf16.msra.mxu0 %v3789
      %3799 = vmatmul.bf16.gmra.mxu0 %v3690
      %v3800 = vpop.f32.mrf.mxu0
      %v3801 = vadd.f32 0.0, %v3800
      %v3802 = vpop.f32.mrf.mxu0
      %v3803 = vadd.f32 0.0, %v3802
      %3804 = vmatmul.bf16.gmra.mxu0 %v3693
      %v3805 = vpop.f32.mrf.mxu0
      %v3806 = vadd.f32 0.0, %v3805
      %v3807 = vpop.f32.mrf.mxu0
      %v3808 = vadd.f32 0.0, %v3807
      %3809 = vmatmul.bf16.gmra.mxu0 %v3696
      %v3810 = vpop.f32.mrf.mxu0
      %v3811 = vadd.f32 0.0, %v3810
      %v3812 = vpop.f32.mrf.mxu0
      %v3813 = vadd.f32 0.0, %v3812
      %3814 = vmatmul.bf16.gmra.mxu0 %v3699
      %v3815 = vpop.f32.mrf.mxu0
      %v3816 = vadd.f32 0.0, %v3815
      %v3817 = vpop.f32.mrf.mxu0
      %v3818 = vadd.f32 0.0, %v3817
      %3819 = vmatmul.bf16.gmra.mxu0 %v3702
      %v3820 = vpop.f32.mrf.mxu0
      %v3821 = vadd.f32 0.0, %v3820
      %v3822 = vpop.f32.mrf.mxu0
      %v3823 = vadd.f32 0.0, %v3822
      %3824 = vmatmul.bf16.gmra.mxu0 %v3705
      %v3825 = vpop.f32.mrf.mxu0
      %v3826 = vadd.f32 0.0, %v3825
      %v3827 = vpop.f32.mrf.mxu0
      %v3828 = vadd.f32 0.0, %v3827
      %3829 = vmatmul.bf16.gmra.mxu0 %v3708
      %v3830 = vpop.f32.mrf.mxu0
      %v3831 = vadd.f32 0.0, %v3830
      %v3832 = vpop.f32.mrf.mxu0
      %v3833 = vadd.f32 0.0, %v3832
      %3834 = vmatmul.bf16.gmra.mxu0 %v3711
      %v3835 = vpop.f32.mrf.mxu0
      %v3836 = vadd.f32 0.0, %v3835
      %v3837 = vpop.f32.mrf.mxu0
      %v3838 = vadd.f32 0.0, %v3837
      %3839 = vmatmul.bf16.gmra.mxu0 %v3714
      %v3840 = vpop.f32.mrf.mxu0
      %v3841 = vadd.f32 0.0, %v3840
      %v3842 = vpop.f32.mrf.mxu0
      %v3843 = vadd.f32 0.0, %v3842
      %3844 = vmatmul.bf16.gmra.mxu0 %v3717
      %v3845 = vpop.f32.mrf.mxu0
      %v3846 = vadd.f32 0.0, %v3845
      %v3847 = vpop.f32.mrf.mxu0
      %v3848 = vadd.f32 0.0, %v3847
      %3849 = vmatmul.bf16.gmra.mxu0 %v3720
      %v3850 = vpop.f32.mrf.mxu0
      %v3851 = vadd.f32 0.0, %v3850
      %v3852 = vpop.f32.mrf.mxu0
      %v3853 = vadd.f32 0.0, %v3852
      %3854 = vmatmul.bf16.gmra.mxu0 %v3723
      %v3855 = vpop.f32.mrf.mxu0
      %v3856 = vadd.f32 0.0, %v3855
      %v3857 = vpop.f32.mrf.mxu0
      %v3858 = vadd.f32 0.0, %v3857
      %3859 = vmatmul.bf16.gmra.mxu0 %v3726
      %v3860 = vpop.f32.mrf.mxu0
      %v3861 = vadd.f32 0.0, %v3860
      %v3862 = vpop.f32.mrf.mxu0
      %v3863 = vadd.f32 0.0, %v3862
      %3864 = vmatmul.bf16.gmra.mxu0 %v3729
      %v3865 = vpop.f32.mrf.mxu0
      %v3866 = vadd.f32 0.0, %v3865
      %v3867 = vpop.f32.mrf.mxu0
      %v3868 = vadd.f32 0.0, %v3867
      %3869 = vmatmul.bf16.gmra.mxu0 %v3732
      %v3870 = vpop.f32.mrf.mxu0
      %v3871 = vadd.f32 0.0, %v3870
      %v3872 = vpop.f32.mrf.mxu0
      %v3873 = vadd.f32 0.0, %v3872
      %3874 = vmatmul.bf16.gmra.mxu0 %v3735
      %v3875 = vpop.f32.mrf.mxu0
      %v3876 = vadd.f32 0.0, %v3875
      %v3877 = vpop.f32.mrf.mxu0
      %v3878 = vadd.f32 0.0, %v3877
      %3879 = vmatmul.bf16.gmra.mxu0 %v3738
      %v3880 = vpop.f32.mrf.mxu0
      %v3881 = vadd.f32 0.0, %v3880
      %v3882 = vpop.f32.mrf.mxu0
      %v3883 = vadd.f32 0.0, %v3882
      %3884 = vmatmul.bf16.gmra.mxu0 %v3741
      %v3885 = vpop.f32.mrf.mxu0
      %v3886 = vadd.f32 0.0, %v3885
      %v3887 = vpop.f32.mrf.mxu0
      %v3888 = vadd.f32 0.0, %v3887
      %3889 = vmatmul.bf16.gmra.mxu0 %v3744
      %v3890 = vpop.f32.mrf.mxu0
      %v3891 = vadd.f32 0.0, %v3890
      %v3892 = vpop.f32.mrf.mxu0
      %v3893 = vadd.f32 0.0, %v3892
      %3894 = vmatmul.bf16.gmra.mxu0 %v3747
      %v3895 = vpop.f32.mrf.mxu0
      %v3896 = vadd.f32 0.0, %v3895
      %v3897 = vpop.f32.mrf.mxu0
      %v3898 = vadd.f32 0.0, %v3897
      %3899 = vmatmul.bf16.gmra.mxu0 %v3750
      %v3900 = vpop.f32.mrf.mxu0
      %v3901 = vadd.f32 0.0, %v3900
      %v3902 = vpop.f32.mrf.mxu0
      %v3903 = vadd.f32 0.0, %v3902
      %3904 = vmatmul.bf16.gmra.mxu0 %v3753
      %v3905 = vpop.f32.mrf.mxu0
      %v3906 = vadd.f32 0.0, %v3905
      %v3907 = vpop.f32.mrf.mxu0
      %v3908 = vadd.f32 0.0, %v3907
      %3909 = vmatmul.bf16.gmra.mxu0 %v3756
      %v3910 = vpop.f32.mrf.mxu0
      %v3911 = vadd.f32 0.0, %v3910
      %v3912 = vpop.f32.mrf.mxu0
      %v3913 = vadd.f32 0.0, %v3912
      %3914 = vmatmul.bf16.gmra.mxu0 %v3759
      %v3915 = vpop.f32.mrf.mxu0
      %v3916 = vadd.f32 0.0, %v3915
      %v3917 = vpop.f32.mrf.mxu0
      %v3918 = vadd.f32 0.0, %v3917
      %3919 = vmatmul.bf16.gmra.mxu0 %v3762
      %v3920 = vpop.f32.mrf.mxu0
      %v3921 = vadd.f32 0.0, %v3920
      %v3922 = vpop.f32.mrf.mxu0
      %v3923 = vadd.f32 0.0, %v3922
      %3924 = vmatmul.bf16.gmra.mxu0 %v3765
      %v3925 = vpop.f32.mrf.mxu0
      %v3926 = vadd.f32 0.0, %v3925
      %v3927 = vpop.f32.mrf.mxu0
      %v3928 = vadd.f32 0.0, %v3927
      %3929 = vmatmul.bf16.gmra.mxu0 %v3768
      %v3930 = vpop.f32.mrf.mxu0
      %v3931 = vadd.f32 0.0, %v3930
      %v3932 = vpop.f32.mrf.mxu0
      %v3933 = vadd.f32 0.0, %v3932
      %3934 = vmatmul.bf16.gmra.mxu0 %v3771
      %v3935 = vpop.f32.mrf.mxu0
      %v3936 = vadd.f32 0.0, %v3935
      %v3937 = vpop.f32.mrf.mxu0
      %v3938 = vadd.f32 0.0, %v3937
      %3939 = vmatmul.bf16.gmra.mxu0 %v3774
      %v3940 = vpop.f32.mrf.mxu0
      %v3941 = vadd.f32 0.0, %v3940
      %v3942 = vpop.f32.mrf.mxu0
      %v3943 = vadd.f32 0.0, %v3942
      %3944 = vmatmul.bf16.gmra.mxu0 %v3777
      %v3945 = vpop.f32.mrf.mxu0
      %v3946 = vadd.f32 0.0, %v3945
      %v3947 = vpop.f32.mrf.mxu0
      %v3948 = vadd.f32 0.0, %v3947
      %3949 = vmatmul.bf16.gmra.mxu0 %v3780
      %v3950 = vpop.f32.mrf.mxu0
      %v3951 = vadd.f32 0.0, %v3950
      %v3952 = vpop.f32.mrf.mxu0
      %v3953 = vadd.f32 0.0, %v3952
      %3954 = vmatmul.bf16.gmra.mxu0 %v3783
      %v3955 = vpop.f32.mrf.mxu0
      %v3956 = vadd.f32 0.0, %v3955
      %v3957 = vpop.f32.mrf.mxu0
      %v3958 = vadd.f32 0.0, %v3957
      %3959 = vmatmul.bf16.gmra.mxu0 %v3786
      %v3960 = vpop.f32.mrf.mxu0
      %v3961 = vadd.f32 0.0, %v3960
      %v3962 = vpop.f32.mrf.mxu0
      %v3963 = vadd.f32 0.0, %v3962
      %3964 = vdwg.mxu0
      %v3965 = vadd.f32 %v3390, %v3801
      %v3966 = vadd.f32 %v3391, %v3803
      %v3967 = vadd.f32 %v3392, %v3806
      %v3968 = vadd.f32 %v3393, %v3808
      %v3969 = vadd.f32 %v3394, %v3811
      %v3970 = vadd.f32 %v3395, %v3813
      %v3971 = vadd.f32 %v3396, %v3816
      %v3972 = vadd.f32 %v3397, %v3818
      %v3973 = vadd.f32 %v3398, %v3821
      %v3974 = vadd.f32 %v3399, %v3823
      %v3975 = vadd.f32 %v3400, %v3826
      %v3976 = vadd.f32 %v3401, %v3828
      %v3977 = vadd.f32 %v3402, %v3831
      %v3978 = vadd.f32 %v3403, %v3833
      %v3979 = vadd.f32 %v3404, %v3836
      %v3980 = vadd.f32 %v3405, %v3838
      %v3981 = vadd.f32 %v3406, %v3841
      %v3982 = vadd.f32 %v3407, %v3843
      %v3983 = vadd.f32 %v3408, %v3846
      %v3984 = vadd.f32 %v3409, %v3848
      %v3985 = vadd.f32 %v3410, %v3851
      %v3986 = vadd.f32 %v3411, %v3853
      %v3987 = vadd.f32 %v3412, %v3856
      %v3988 = vadd.f32 %v3413, %v3858
      %v3989 = vadd.f32 %v3414, %v3861
      %v3990 = vadd.f32 %v3415, %v3863
      %v3991 = vadd.f32 %v3416, %v3866
      %v3992 = vadd.f32 %v3417, %v3868
      %v3993 = vadd.f32 %v3418, %v3871
      %v3994 = vadd.f32 %v3419, %v3873
      %v3995 = vadd.f32 %v3420, %v3876
      %v3996 = vadd.f32 %v3421, %v3878
      %v3997 = vadd.f32 %v3422, %v3881
      %v3998 = vadd.f32 %v3423, %v3883
      %v3999 = vadd.f32 %v3424, %v3886
      %v4000 = vadd.f32 %v3425, %v3888
      %v4001 = vadd.f32 %v3426, %v3891
      %v4002 = vadd.f32 %v3427, %v3893
      %v4003 = vadd.f32 %v3428, %v3896
      %v4004 = vadd.f32 %v3429, %v3898
      %v4005 = vadd.f32 %v3430, %v3901
      %v4006 = vadd.f32 %v3431, %v3903
      %v4007 = vadd.f32 %v3432, %v3906
      %v4008 = vadd.f32 %v3433, %v3908
      %v4009 = vadd.f32 %v3434, %v3911
      %v4010 = vadd.f32 %v3435, %v3913
      %v4011 = vadd.f32 %v3436, %v3916
      %v4012 = vadd.f32 %v3437, %v3918
      %v4013 = vadd.f32 %v3438, %v3921
      %v4014 = vadd.f32 %v3439, %v3923
      %v4015 = vadd.f32 %v3440, %v3926
      %v4016 = vadd.f32 %v3441, %v3928
      %v4017 = vadd.f32 %v3442, %v3931
      %v4018 = vadd.f32 %v3443, %v3933
      %v4019 = vadd.f32 %v3444, %v3936
      %v4020 = vadd.f32 %v3445, %v3938
      %v4021 = vadd.f32 %v3446, %v3941
      %v4022 = vadd.f32 %v3447, %v3943
      %v4023 = vadd.f32 %v3448, %v3946
      %v4024 = vadd.f32 %v3449, %v3948
      %v4025 = vadd.f32 %v3450, %v3951
      %v4026 = vadd.f32 %v3451, %v3953
      %v4027 = vadd.f32 %v3452, %v3956
      %v4028 = vadd.f32 %v3453, %v3958
      %v4029 = vadd.f32 %v3454, %v3961
      %v4030 = vadd.f32 %v3455, %v3963
      %v4031 = vld [vmem:[%s165 + $0x18] sm:$0xf]
      %v4032 = vld [vmem:[%s165 + $0x1c] sm:$0xf]
      %v4033 = vld [vmem:[%s165 + $0x20] sm:$0xf]
      %v4034 = vld [vmem:[%s165 + $0x24] sm:$0xf]
      %v4035 = vld [vmem:[%s165 + $0x28] sm:$0xf]
      %v4036 = vld [vmem:[%s165 + $0x2c] sm:$0xf]
      %v4037 = vld [vmem:[%s165 + $0x30] sm:$0xf]
      %v4038 = vld [vmem:[%s165 + $0x34] sm:$0xf]
      %v4039 = vld [vmem:[%s165 + $0x38] sm:$0xf]
      %v4040 = vld [vmem:[%s165 + $0x3c] sm:$0xf]
      %v4041 = vld [vmem:[%s165 + $0x40] sm:$0xf]
      %v4042 = vld [vmem:[%s165 + $0x44] sm:$0xf]
      %v4043 = vld [vmem:[%s165 + $0x48] sm:$0xf]
      %v4044 = vld [vmem:[%s165 + $0x4c] sm:$0xf]
      %v4045 = vld [vmem:[%s165 + $0x50] sm:$0xf]
      %v4046 = vld [vmem:[%s165 + $0x54] sm:$0xf]
      %v4047 = vld [vmem:[%s165 + $0x58] sm:$0xf]
      %v4048 = vld [vmem:[%s165 + $0x5c] sm:$0xf]
      %v4049 = vld [vmem:[%s165 + $0x60] sm:$0xf]
      %v4050 = vld [vmem:[%s165 + $0x64] sm:$0xf]
      %v4051 = vld [vmem:[%s165 + $0x68] sm:$0xf]
      %v4052 = vld [vmem:[%s165 + $0x6c] sm:$0xf]
      %v4053 = vld [vmem:[%s165 + $0x70] sm:$0xf]
      %v4054 = vld [vmem:[%s165 + $0x74] sm:$0xf]
      %v4055 = vld [vmem:[%s165 + $0x78] sm:$0xf]
      %v4056 = vld [vmem:[%s165 + $0x7c] sm:$0xf]
      %v4057 = vld [vmem:[%s165 + $0x80] sm:$0xf]
      %v4058 = vld [vmem:[%s165 + $0x84] sm:$0xf]
      %v4059 = vld [vmem:[%s165 + $0x88] sm:$0xf]
      %v4060 = vld [vmem:[%s165 + $0x8c] sm:$0xf]
      %v4061 = vld [vmem:[%s165 + $0x90] sm:$0xf]
      %v4062 = vld [vmem:[%s165 + $0x94] sm:$0xf]
      %v4063 = vld [vmem:[%s165 + $0x98] sm:$0xf]
      %v4064 = vld [vmem:[%s165 + $0x9c] sm:$0xf]
      %v4065 = vld [vmem:[%s165 + $0xa0] sm:$0xf]
      %v4066 = vld [vmem:[%s165 + $0xa4] sm:$0xf]
      %v4067 = vld [vmem:[%s165 + $0xa8] sm:$0xf]
      %v4068 = vld [vmem:[%s165 + $0xac] sm:$0xf]
      %v4069 = vld [vmem:[%s165 + $0xb0] sm:$0xf]
      %v4070 = vld [vmem:[%s165 + $0xb4] sm:$0xf]
      %v4071 = vld [vmem:[%s165 + $0xb8] sm:$0xf]
      %v4072 = vld [vmem:[%s165 + $0xbc] sm:$0xf]
      %v4073 = vld [vmem:[%s165 + $0xc0] sm:$0xf]
      %v4074 = vld [vmem:[%s165 + $0xc4] sm:$0xf]
      %v4075 = vld [vmem:[%s165 + $0xc8] sm:$0xf]
      %v4076 = vld [vmem:[%s165 + $0xcc] sm:$0xf]
      %v4077 = vld [vmem:[%s165 + $0xd0] sm:$0xf]
      %v4078 = vld [vmem:[%s165 + $0xd4] sm:$0xf]
      %v4079 = vld [vmem:[%s165 + $0xd8] sm:$0xf]
      %v4080 = vld [vmem:[%s165 + $0xdc] sm:$0xf]
      %v4081 = vld [vmem:[%s165 + $0xe0] sm:$0xf]
      %v4082 = vld [vmem:[%s165 + $0xe4] sm:$0xf]
      %v4083 = vld [vmem:[%s165 + $0xe8] sm:$0xf]
      %v4084 = vld [vmem:[%s165 + $0xec] sm:$0xf]
      %v4085 = vld [vmem:[%s165 + $0xf0] sm:$0xf]
      %v4086 = vld [vmem:[%s165 + $0xf4] sm:$0xf]
      %v4087 = vld [vmem:[%s165 + $0xf8] sm:$0xf]
      %v4088 = vld [vmem:[%s165 + $0xfc] sm:$0xf]
      %v4089 = vld [vmem:[%s165 + $0x100] sm:$0xf]
      %v4090 = vld [vmem:[%s165 + $0x104] sm:$0xf]
      %v4091 = vld [vmem:[%s165 + $0x108] sm:$0xf]
      %v4092 = vld [vmem:[%s165 + $0x10c] sm:$0xf]
      %v4093 = vld [vmem:[%s165 + $0x110] sm:$0xf]
      %v4094 = vld [vmem:[%s165 + $0x114] sm:$0xf]
      %v4095 = vld [vmem:[%s165 + $0x118] sm:$0xf]
      %v4096 = vld [vmem:[%s165 + $0x11c] sm:$0xf]
      %v4097 = vld [vmem:[%s165 + $0x120] sm:$0x1]
      %s4098 = scalar_lea.vmem %s1, 14
      %v4099 = vld [vmem:[%s4098] sm:$0x3]
      %v4167 = vunpack.c.l.b16 %v4031
      %v4168 = vunpack.c.l.b16 %v4032
      %v4169 = vunpack.c.l.b16 %v4033
      %v4170 = vunpack.c.l.b16 %v4034
      %v4171 = vunpack.c.l.b16 %v4035
      %v4172 = vunpack.c.l.b16 %v4036
      %v4173 = vunpack.c.l.b16 %v4037
      %v4174 = vunpack.c.l.b16 %v4038
      %v4175 = vunpack.c.l.b16 %v4039
      %v4176 = vunpack.c.l.b16 %v4040
      %v4177 = vunpack.c.l.b16 %v4041
      %v4178 = vunpack.c.l.b16 %v4042
      %v4179 = vunpack.c.l.b16 %v4043
      %v4180 = vunpack.c.l.b16 %v4044
      %v4181 = vunpack.c.l.b16 %v4045
      %v4182 = vunpack.c.l.b16 %v4046
      %v4183 = vunpack.c.l.b16 %v4047
      %v4184 = vunpack.c.l.b16 %v4048
      %v4185 = vunpack.c.l.b16 %v4049
      %v4186 = vunpack.c.l.b16 %v4050
      %v4187 = vunpack.c.l.b16 %v4051
      %v4188 = vunpack.c.l.b16 %v4052
      %v4189 = vunpack.c.l.b16 %v4053
      %v4190 = vunpack.c.l.b16 %v4054
      %v4191 = vunpack.c.l.b16 %v4055
      %v4192 = vunpack.c.l.b16 %v4056
      %v4193 = vunpack.c.l.b16 %v4057
      %v4194 = vunpack.c.l.b16 %v4058
      %v4195 = vunpack.c.l.b16 %v4059
      %v4196 = vunpack.c.l.b16 %v4060
      %v4197 = vunpack.c.l.b16 %v4061
      %v4198 = vunpack.c.l.b16 %v4062
      %v4199 = vunpack.c.l.b16 %v4063
      %v4200 = vunpack.c.l.b16 %v4064
      %v4201 = vunpack.c.l.b16 %v4065
      %v4202 = vunpack.c.l.b16 %v4066
      %v4203 = vunpack.c.l.b16 %v4067
      %v4204 = vunpack.c.l.b16 %v4068
      %v4205 = vunpack.c.l.b16 %v4069
      %v4206 = vunpack.c.l.b16 %v4070
      %v4207 = vunpack.c.l.b16 %v4071
      %v4208 = vunpack.c.l.b16 %v4072
      %v4209 = vunpack.c.l.b16 %v4073
      %v4210 = vunpack.c.l.b16 %v4074
      %v4211 = vunpack.c.l.b16 %v4075
      %v4212 = vunpack.c.l.b16 %v4076
      %v4213 = vunpack.c.l.b16 %v4077
      %v4214 = vunpack.c.l.b16 %v4078
      %v4215 = vunpack.c.l.b16 %v4079
      %v4216 = vunpack.c.l.b16 %v4080
      %v4217 = vunpack.c.l.b16 %v4081
      %v4218 = vunpack.c.l.b16 %v4082
      %v4219 = vunpack.c.l.b16 %v4083
      %v4220 = vunpack.c.l.b16 %v4084
      %v4221 = vunpack.c.l.b16 %v4085
      %v4222 = vunpack.c.l.b16 %v4086
      %v4223 = vunpack.c.l.b16 %v4087
      %v4224 = vunpack.c.l.b16 %v4088
      %v4225 = vunpack.c.l.b16 %v4089
      %v4226 = vunpack.c.l.b16 %v4090
      %v4227 = vunpack.c.l.b16 %v4091
      %v4228 = vunpack.c.l.b16 %v4092
      %v4229 = vunpack.c.l.b16 %v4093
      %v4230 = vunpack.c.l.b16 %v4094
      %v4231 = vunpack.c.l.b16 %v4095
      %v4232 = vunpack.c.l.b16 %v4096
      %v4233 = vunpack.c.l.b16 %v4097
      %v4234 = vpack.c.b16 %v4168, %v4167
      %v4235 = vpack.c.b16 %v4170, %v4169
      %v4236 = vpack.c.b16 %v4172, %v4171
      %v4237 = vpack.c.b16 %v4174, %v4173
      %v4238 = vpack.c.b16 %v4176, %v4175
      %v4239 = vpack.c.b16 %v4178, %v4177
      %v4240 = vpack.c.b16 %v4180, %v4179
      %v4241 = vpack.c.b16 %v4182, %v4181
      %v4242 = vpack.c.b16 %v4184, %v4183
      %v4243 = vpack.c.b16 %v4186, %v4185
      %v4244 = vpack.c.b16 %v4188, %v4187
      %v4245 = vpack.c.b16 %v4190, %v4189
      %v4246 = vpack.c.b16 %v4192, %v4191
      %v4247 = vpack.c.b16 %v4194, %v4193
      %v4248 = vpack.c.b16 %v4196, %v4195
      %v4249 = vpack.c.b16 %v4198, %v4197
      %v4250 = vpack.c.b16 %v4200, %v4199
      %v4251 = vpack.c.b16 %v4202, %v4201
      %v4252 = vpack.c.b16 %v4204, %v4203
      %v4253 = vpack.c.b16 %v4206, %v4205
      %v4254 = vpack.c.b16 %v4208, %v4207
      %v4255 = vpack.c.b16 %v4210, %v4209
      %v4256 = vpack.c.b16 %v4212, %v4211
      %v4257 = vpack.c.b16 %v4214, %v4213
      %v4258 = vpack.c.b16 %v4216, %v4215
      %v4259 = vpack.c.b16 %v4218, %v4217
      %v4260 = vpack.c.b16 %v4220, %v4219
      %v4261 = vpack.c.b16 %v4222, %v4221
      %v4262 = vpack.c.b16 %v4224, %v4223
      %v4263 = vpack.c.b16 %v4226, %v4225
      %v4264 = vpack.c.b16 %v4228, %v4227
      %v4265 = vpack.c.b16 %v4230, %v4229
      %v4266 = vpack.c.b16 %v4232, %v4231
      %v4267 = vpack.c.b16 %v4233, %v4233
      %v4269 = vshrl.u32 %v4234, 16
      %v4271 = vshll.u32 %v4234, 16
      %v4273 = vrot.slane %v4271, 1
      %v4274 = vor.u32 %v4269, %v4273
      %v4276 = vshll.u32 %v4235, 16
      %v4278 = vrot.slane %v4276, 1
      %v4279 = vsel %vm410, %v4274, %v4278
      %v4280 = vshrl.u32 %v4235, 16
      %v4282 = vor.u32 %v4280, %v4278
      %v4284 = vshll.u32 %v4236, 16
      %v4286 = vrot.slane %v4284, 1
      %v4287 = vsel %vm410, %v4282, %v4286
      %v4288 = vshrl.u32 %v4236, 16
      %v4290 = vor.u32 %v4288, %v4286
      %v4292 = vshll.u32 %v4237, 16
      %v4294 = vrot.slane %v4292, 1
      %v4295 = vsel %vm410, %v4290, %v4294
      %v4296 = vshrl.u32 %v4237, 16
      %v4298 = vor.u32 %v4296, %v4294
      %v4300 = vshll.u32 %v4238, 16
      %v4302 = vrot.slane %v4300, 1
      %v4303 = vsel %vm410, %v4298, %v4302
      %v4304 = vshrl.u32 %v4238, 16
      %v4306 = vor.u32 %v4304, %v4302
      %v4308 = vshll.u32 %v4239, 16
      %v4310 = vrot.slane %v4308, 1
      %v4311 = vsel %vm410, %v4306, %v4310
      %v4312 = vshrl.u32 %v4239, 16
      %v4314 = vor.u32 %v4312, %v4310
      %v4316 = vshll.u32 %v4240, 16
      %v4318 = vrot.slane %v4316, 1
      %v4319 = vsel %vm410, %v4314, %v4318
      %v4320 = vshrl.u32 %v4240, 16
      %v4322 = vor.u32 %v4320, %v4318
      %v4324 = vshll.u32 %v4241, 16
      %v4326 = vrot.slane %v4324, 1
      %v4327 = vsel %vm410, %v4322, %v4326
      %v4328 = vshrl.u32 %v4241, 16
      %v4330 = vor.u32 %v4328, %v4326
      %v4332 = vshll.u32 %v4242, 16
      %v4334 = vrot.slane %v4332, 1
      %v4335 = vsel %vm410, %v4330, %v4334
      %v4336 = vshrl.u32 %v4242, 16
      %v4338 = vor.u32 %v4336, %v4334
      %v4340 = vshll.u32 %v4243, 16
      %v4342 = vrot.slane %v4340, 1
      %v4343 = vsel %vm410, %v4338, %v4342
      %v4344 = vshrl.u32 %v4243, 16
      %v4346 = vor.u32 %v4344, %v4342
      %v4348 = vshll.u32 %v4244, 16
      %v4350 = vrot.slane %v4348, 1
      %v4351 = vsel %vm410, %v4346, %v4350
      %v4352 = vshrl.u32 %v4244, 16
      %v4354 = vor.u32 %v4352, %v4350
      %v4356 = vshll.u32 %v4245, 16
      %v4358 = vrot.slane %v4356, 1
      %v4359 = vsel %vm410, %v4354, %v4358
      %v4360 = vshrl.u32 %v4245, 16
      %v4362 = vor.u32 %v4360, %v4358
      %v4364 = vshll.u32 %v4246, 16
      %v4366 = vrot.slane %v4364, 1
      %v4367 = vsel %vm410, %v4362, %v4366
      %v4368 = vshrl.u32 %v4246, 16
      %v4370 = vor.u32 %v4368, %v4366
      %v4372 = vshll.u32 %v4247, 16
      %v4374 = vrot.slane %v4372, 1
      %v4375 = vsel %vm410, %v4370, %v4374
      %v4376 = vshrl.u32 %v4247, 16
      %v4378 = vor.u32 %v4376, %v4374
      %v4380 = vshll.u32 %v4248, 16
      %v4382 = vrot.slane %v4380, 1
      %v4383 = vsel %vm410, %v4378, %v4382
      %v4384 = vshrl.u32 %v4248, 16
      %v4386 = vor.u32 %v4384, %v4382
      %v4388 = vshll.u32 %v4249, 16
      %v4390 = vrot.slane %v4388, 1
      %v4391 = vsel %vm410, %v4386, %v4390
      %v4392 = vshrl.u32 %v4249, 16
      %v4394 = vor.u32 %v4392, %v4390
      %v4396 = vshll.u32 %v4250, 16
      %v4398 = vrot.slane %v4396, 1
      %v4399 = vsel %vm410, %v4394, %v4398
      %v4400 = vshrl.u32 %v4250, 16
      %v4402 = vor.u32 %v4400, %v4398
      %v4404 = vshll.u32 %v4251, 16
      %v4406 = vrot.slane %v4404, 1
      %v4407 = vsel %vm410, %v4402, %v4406
      %v4408 = vshrl.u32 %v4251, 16
      %v4410 = vor.u32 %v4408, %v4406
      %v4412 = vshll.u32 %v4252, 16
      %v4414 = vrot.slane %v4412, 1
      %v4415 = vsel %vm410, %v4410, %v4414
      %v4416 = vshrl.u32 %v4252, 16
      %v4418 = vor.u32 %v4416, %v4414
      %v4420 = vshll.u32 %v4253, 16
      %v4422 = vrot.slane %v4420, 1
      %v4423 = vsel %vm410, %v4418, %v4422
      %v4424 = vshrl.u32 %v4253, 16
      %v4426 = vor.u32 %v4424, %v4422
      %v4428 = vshll.u32 %v4254, 16
      %v4430 = vrot.slane %v4428, 1
      %v4431 = vsel %vm410, %v4426, %v4430
      %v4432 = vshrl.u32 %v4254, 16
      %v4434 = vor.u32 %v4432, %v4430
      %v4436 = vshll.u32 %v4255, 16
      %v4438 = vrot.slane %v4436, 1
      %v4439 = vsel %vm410, %v4434, %v4438
      %v4440 = vshrl.u32 %v4255, 16
      %v4442 = vor.u32 %v4440, %v4438
      %v4444 = vshll.u32 %v4256, 16
      %v4446 = vrot.slane %v4444, 1
      %v4447 = vsel %vm410, %v4442, %v4446
      %v4448 = vshrl.u32 %v4256, 16
      %v4450 = vor.u32 %v4448, %v4446
      %v4452 = vshll.u32 %v4257, 16
      %v4454 = vrot.slane %v4452, 1
      %v4455 = vsel %vm410, %v4450, %v4454
      %v4456 = vshrl.u32 %v4257, 16
      %v4458 = vor.u32 %v4456, %v4454
      %v4460 = vshll.u32 %v4258, 16
      %v4462 = vrot.slane %v4460, 1
      %v4463 = vsel %vm410, %v4458, %v4462
      %v4464 = vshrl.u32 %v4258, 16
      %v4466 = vor.u32 %v4464, %v4462
      %v4468 = vshll.u32 %v4259, 16
      %v4470 = vrot.slane %v4468, 1
      %v4471 = vsel %vm410, %v4466, %v4470
      %v4472 = vshrl.u32 %v4259, 16
      %v4474 = vor.u32 %v4472, %v4470
      %v4476 = vshll.u32 %v4260, 16
      %v4478 = vrot.slane %v4476, 1
      %v4479 = vsel %vm410, %v4474, %v4478
      %v4480 = vshrl.u32 %v4260, 16
      %v4482 = vor.u32 %v4480, %v4478
      %v4484 = vshll.u32 %v4261, 16
      %v4486 = vrot.slane %v4484, 1
      %v4487 = vsel %vm410, %v4482, %v4486
      %v4488 = vshrl.u32 %v4261, 16
      %v4490 = vor.u32 %v4488, %v4486
      %v4492 = vshll.u32 %v4262, 16
      %v4494 = vrot.slane %v4492, 1
      %v4495 = vsel %vm410, %v4490, %v4494
      %v4496 = vshrl.u32 %v4262, 16
      %v4498 = vor.u32 %v4496, %v4494
      %v4500 = vshll.u32 %v4263, 16
      %v4502 = vrot.slane %v4500, 1
      %v4503 = vsel %vm410, %v4498, %v4502
      %v4504 = vshrl.u32 %v4263, 16
      %v4506 = vor.u32 %v4504, %v4502
      %v4508 = vshll.u32 %v4264, 16
      %v4510 = vrot.slane %v4508, 1
      %v4511 = vsel %vm410, %v4506, %v4510
      %v4512 = vshrl.u32 %v4264, 16
      %v4514 = vor.u32 %v4512, %v4510
      %v4516 = vshll.u32 %v4265, 16
      %v4518 = vrot.slane %v4516, 1
      %v4519 = vsel %vm410, %v4514, %v4518
      %v4520 = vshrl.u32 %v4265, 16
      %v4522 = vor.u32 %v4520, %v4518
      %v4524 = vshll.u32 %v4266, 16
      %v4526 = vrot.slane %v4524, 1
      %v4527 = vsel %vm410, %v4522, %v4526
      %v4528 = vshrl.u32 %v4266, 16
      %v4530 = vor.u32 %v4528, %v4526
      %v4532 = vshll.u32 %v4267, 16
      %v4534 = vrot.slane %v4532, 1
      %v4535 = vsel %vm410, %v4530, %v4534
      %v4537 = vsel %vm679, %v4279, 0
      %v4540 = vsel %vm679, %v4287, 0
      %v4543 = vsel %vm679, %v4295, 0
      %v4546 = vsel %vm679, %v4303, 0
      %v4549 = vsel %vm679, %v4311, 0
      %v4552 = vsel %vm679, %v4319, 0
      %v4555 = vsel %vm679, %v4327, 0
      %v4558 = vsel %vm679, %v4335, 0
      %v4561 = vsel %vm679, %v4343, 0
      %v4564 = vsel %vm679, %v4351, 0
      %v4567 = vsel %vm679, %v4359, 0
      %v4570 = vsel %vm679, %v4367, 0
      %v4573 = vsel %vm679, %v4375, 0
      %v4576 = vsel %vm679, %v4383, 0
      %v4579 = vsel %vm679, %v4391, 0
      %v4582 = vsel %vm679, %v4399, 0
      %v4585 = vsel %vm679, %v4407, 0
      %v4588 = vsel %vm679, %v4415, 0
      %v4591 = vsel %vm679, %v4423, 0
      %v4594 = vsel %vm679, %v4431, 0
      %v4597 = vsel %vm679, %v4439, 0
      %v4600 = vsel %vm679, %v4447, 0
      %v4603 = vsel %vm679, %v4455, 0
      %v4606 = vsel %vm679, %v4463, 0
      %v4609 = vsel %vm679, %v4471, 0
      %v4612 = vsel %vm679, %v4479, 0
      %v4615 = vsel %vm679, %v4487, 0
      %v4618 = vsel %vm679, %v4495, 0
      %v4621 = vsel %vm679, %v4503, 0
      %v4624 = vsel %vm679, %v4511, 0
      %v4627 = vsel %vm679, %v4519, 0
      %v4630 = vsel %vm679, %v4527, 0
      %v4633 = vsel %vm679, %v4535, 0
      %v4636 = vand.u32 %v4099, %v782
      %4638 = vmatpush.bf16.msra.mxu0 0
      %4639 = vmatpush.bf16.msra.mxu0 0
      %4640 = vmatpush.bf16.msra.mxu0 0
      %4641 = vmatpush.bf16.msra.mxu0 0
      %4642 = vmatpush.bf16.msra.mxu0 0
      %4643 = vmatpush.bf16.msra.mxu0 0
      %4644 = vmatpush.bf16.msra.mxu0 0
      %4645 = vmatpush.bf16.msra.mxu0 %v4636
      %4646 = vmatmul.bf16.gmra.mxu0 %v4537
      %v4647 = vpop.f32.mrf.mxu0
      %v4648 = vadd.f32 0.0, %v4647
      %v4649 = vpop.f32.mrf.mxu0
      %v4650 = vadd.f32 0.0, %v4649
      %4651 = vmatmul.bf16.gmra.mxu0 %v4540
      %v4652 = vpop.f32.mrf.mxu0
      %v4653 = vadd.f32 0.0, %v4652
      %v4654 = vpop.f32.mrf.mxu0
      %v4655 = vadd.f32 0.0, %v4654
      %4656 = vmatmul.bf16.gmra.mxu0 %v4543
      %v4657 = vpop.f32.mrf.mxu0
      %v4658 = vadd.f32 0.0, %v4657
      %v4659 = vpop.f32.mrf.mxu0
      %v4660 = vadd.f32 0.0, %v4659
      %4661 = vmatmul.bf16.gmra.mxu0 %v4546
      %v4662 = vpop.f32.mrf.mxu0
      %v4663 = vadd.f32 0.0, %v4662
      %v4664 = vpop.f32.mrf.mxu0
      %v4665 = vadd.f32 0.0, %v4664
      %4666 = vmatmul.bf16.gmra.mxu0 %v4549
      %v4667 = vpop.f32.mrf.mxu0
      %v4668 = vadd.f32 0.0, %v4667
      %v4669 = vpop.f32.mrf.mxu0
      %v4670 = vadd.f32 0.0, %v4669
      %4671 = vmatmul.bf16.gmra.mxu0 %v4552
      %v4672 = vpop.f32.mrf.mxu0
      %v4673 = vadd.f32 0.0, %v4672
      %v4674 = vpop.f32.mrf.mxu0
      %v4675 = vadd.f32 0.0, %v4674
      %4676 = vmatmul.bf16.gmra.mxu0 %v4555
      %v4677 = vpop.f32.mrf.mxu0
      %v4678 = vadd.f32 0.0, %v4677
      %v4679 = vpop.f32.mrf.mxu0
      %v4680 = vadd.f32 0.0, %v4679
      %4681 = vmatmul.bf16.gmra.mxu0 %v4558
      %v4682 = vpop.f32.mrf.mxu0
      %v4683 = vadd.f32 0.0, %v4682
      %v4684 = vpop.f32.mrf.mxu0
      %v4685 = vadd.f32 0.0, %v4684
      %4686 = vmatmul.bf16.gmra.mxu0 %v4561
      %v4687 = vpop.f32.mrf.mxu0
      %v4688 = vadd.f32 0.0, %v4687
      %v4689 = vpop.f32.mrf.mxu0
      %v4690 = vadd.f32 0.0, %v4689
      %4691 = vmatmul.bf16.gmra.mxu0 %v4564
      %v4692 = vpop.f32.mrf.mxu0
      %v4693 = vadd.f32 0.0, %v4692
      %v4694 = vpop.f32.mrf.mxu0
      %v4695 = vadd.f32 0.0, %v4694
      %4696 = vmatmul.bf16.gmra.mxu0 %v4567
      %v4697 = vpop.f32.mrf.mxu0
      %v4698 = vadd.f32 0.0, %v4697
      %v4699 = vpop.f32.mrf.mxu0
      %v4700 = vadd.f32 0.0, %v4699
      %4701 = vmatmul.bf16.gmra.mxu0 %v4570
      %v4702 = vpop.f32.mrf.mxu0
      %v4703 = vadd.f32 0.0, %v4702
      %v4704 = vpop.f32.mrf.mxu0
      %v4705 = vadd.f32 0.0, %v4704
      %4706 = vmatmul.bf16.gmra.mxu0 %v4573
      %v4707 = vpop.f32.mrf.mxu0
      %v4708 = vadd.f32 0.0, %v4707
      %v4709 = vpop.f32.mrf.mxu0
      %v4710 = vadd.f32 0.0, %v4709
      %4711 = vmatmul.bf16.gmra.mxu0 %v4576
      %v4712 = vpop.f32.mrf.mxu0
      %v4713 = vadd.f32 0.0, %v4712
      %v4714 = vpop.f32.mrf.mxu0
      %v4715 = vadd.f32 0.0, %v4714
      %4716 = vmatmul.bf16.gmra.mxu0 %v4579
      %v4717 = vpop.f32.mrf.mxu0
      %v4718 = vadd.f32 0.0, %v4717
      %v4719 = vpop.f32.mrf.mxu0
      %v4720 = vadd.f32 0.0, %v4719
      %4721 = vmatmul.bf16.gmra.mxu0 %v4582
      %v4722 = vpop.f32.mrf.mxu0
      %v4723 = vadd.f32 0.0, %v4722
      %v4724 = vpop.f32.mrf.mxu0
      %v4725 = vadd.f32 0.0, %v4724
      %4726 = vmatmul.bf16.gmra.mxu0 %v4585
      %v4727 = vpop.f32.mrf.mxu0
      %v4728 = vadd.f32 0.0, %v4727
      %v4729 = vpop.f32.mrf.mxu0
      %v4730 = vadd.f32 0.0, %v4729
      %4731 = vmatmul.bf16.gmra.mxu0 %v4588
      %v4732 = vpop.f32.mrf.mxu0
      %v4733 = vadd.f32 0.0, %v4732
      %v4734 = vpop.f32.mrf.mxu0
      %v4735 = vadd.f32 0.0, %v4734
      %4736 = vmatmul.bf16.gmra.mxu0 %v4591
      %v4737 = vpop.f32.mrf.mxu0
      %v4738 = vadd.f32 0.0, %v4737
      %v4739 = vpop.f32.mrf.mxu0
      %v4740 = vadd.f32 0.0, %v4739
      %4741 = vmatmul.bf16.gmra.mxu0 %v4594
      %v4742 = vpop.f32.mrf.mxu0
      %v4743 = vadd.f32 0.0, %v4742
      %v4744 = vpop.f32.mrf.mxu0
      %v4745 = vadd.f32 0.0, %v4744
      %4746 = vmatmul.bf16.gmra.mxu0 %v4597
      %v4747 = vpop.f32.mrf.mxu0
      %v4748 = vadd.f32 0.0, %v4747
      %v4749 = vpop.f32.mrf.mxu0
      %v4750 = vadd.f32 0.0, %v4749
      %4751 = vmatmul.bf16.gmra.mxu0 %v4600
      %v4752 = vpop.f32.mrf.mxu0
      %v4753 = vadd.f32 0.0, %v4752
      %v4754 = vpop.f32.mrf.mxu0
      %v4755 = vadd.f32 0.0, %v4754
      %4756 = vmatmul.bf16.gmra.mxu0 %v4603
      %v4757 = vpop.f32.mrf.mxu0
      %v4758 = vadd.f32 0.0, %v4757
      %v4759 = vpop.f32.mrf.mxu0
      %v4760 = vadd.f32 0.0, %v4759
      %4761 = vmatmul.bf16.gmra.mxu0 %v4606
      %v4762 = vpop.f32.mrf.mxu0
      %v4763 = vadd.f32 0.0, %v4762
      %v4764 = vpop.f32.mrf.mxu0
      %v4765 = vadd.f32 0.0, %v4764
      %4766 = vmatmul.bf16.gmra.mxu0 %v4609
      %v4767 = vpop.f32.mrf.mxu0
      %v4768 = vadd.f32 0.0, %v4767
      %v4769 = vpop.f32.mrf.mxu0
      %v4770 = vadd.f32 0.0, %v4769
      %4771 = vmatmul.bf16.gmra.mxu0 %v4612
      %v4772 = vpop.f32.mrf.mxu0
      %v4773 = vadd.f32 0.0, %v4772
      %v4774 = vpop.f32.mrf.mxu0
      %v4775 = vadd.f32 0.0, %v4774
      %4776 = vmatmul.bf16.gmra.mxu0 %v4615
      %v4777 = vpop.f32.mrf.mxu0
      %v4778 = vadd.f32 0.0, %v4777
      %v4779 = vpop.f32.mrf.mxu0
      %v4780 = vadd.f32 0.0, %v4779
      %4781 = vmatmul.bf16.gmra.mxu0 %v4618
      %v4782 = vpop.f32.mrf.mxu0
      %v4783 = vadd.f32 0.0, %v4782
      %v4784 = vpop.f32.mrf.mxu0
      %v4785 = vadd.f32 0.0, %v4784
      %4786 = vmatmul.bf16.gmra.mxu0 %v4621
      %v4787 = vpop.f32.mrf.mxu0
      %v4788 = vadd.f32 0.0, %v4787
      %v4789 = vpop.f32.mrf.mxu0
      %v4790 = vadd.f32 0.0, %v4789
      %4791 = vmatmul.bf16.gmra.mxu0 %v4624
      %v4792 = vpop.f32.mrf.mxu0
      %v4793 = vadd.f32 0.0, %v4792
      %v4794 = vpop.f32.mrf.mxu0
      %v4795 = vadd.f32 0.0, %v4794
      %4796 = vmatmul.bf16.gmra.mxu0 %v4627
      %v4797 = vpop.f32.mrf.mxu0
      %v4798 = vadd.f32 0.0, %v4797
      %v4799 = vpop.f32.mrf.mxu0
      %v4800 = vadd.f32 0.0, %v4799
      %4801 = vmatmul.bf16.gmra.mxu0 %v4630
      %v4802 = vpop.f32.mrf.mxu0
      %v4803 = vadd.f32 0.0, %v4802
      %v4804 = vpop.f32.mrf.mxu0
      %v4805 = vadd.f32 0.0, %v4804
      %4806 = vmatmul.bf16.gmra.mxu0 %v4633
      %v4807 = vpop.f32.mrf.mxu0
      %v4808 = vadd.f32 0.0, %v4807
      %v4809 = vpop.f32.mrf.mxu0
      %v4810 = vadd.f32 0.0, %v4809
      %4811 = vdwg.mxu0
      %v4812 = vadd.f32 %v3965, %v4648
      %v4813 = vadd.f32 %v3966, %v4650
      %v4814 = vadd.f32 %v3967, %v4653
      %v4815 = vadd.f32 %v3968, %v4655
      %v4816 = vadd.f32 %v3969, %v4658
      %v4817 = vadd.f32 %v3970, %v4660
      %v4818 = vadd.f32 %v3971, %v4663
      %v4819 = vadd.f32 %v3972, %v4665
      %v4820 = vadd.f32 %v3973, %v4668
      %v4821 = vadd.f32 %v3974, %v4670
      %v4822 = vadd.f32 %v3975, %v4673
      %v4823 = vadd.f32 %v3976, %v4675
      %v4824 = vadd.f32 %v3977, %v4678
      %v4825 = vadd.f32 %v3978, %v4680
      %v4826 = vadd.f32 %v3979, %v4683
      %v4827 = vadd.f32 %v3980, %v4685
      %v4828 = vadd.f32 %v3981, %v4688
      %v4829 = vadd.f32 %v3982, %v4690
      %v4830 = vadd.f32 %v3983, %v4693
      %v4831 = vadd.f32 %v3984, %v4695
      %v4832 = vadd.f32 %v3985, %v4698
      %v4833 = vadd.f32 %v3986, %v4700
      %v4834 = vadd.f32 %v3987, %v4703
      %v4835 = vadd.f32 %v3988, %v4705
      %v4836 = vadd.f32 %v3989, %v4708
      %v4837 = vadd.f32 %v3990, %v4710
      %v4838 = vadd.f32 %v3991, %v4713
      %v4839 = vadd.f32 %v3992, %v4715
      %v4840 = vadd.f32 %v3993, %v4718
      %v4841 = vadd.f32 %v3994, %v4720
      %v4842 = vadd.f32 %v3995, %v4723
      %v4843 = vadd.f32 %v3996, %v4725
      %v4844 = vadd.f32 %v3997, %v4728
      %v4845 = vadd.f32 %v3998, %v4730
      %v4846 = vadd.f32 %v3999, %v4733
      %v4847 = vadd.f32 %v4000, %v4735
      %v4848 = vadd.f32 %v4001, %v4738
      %v4849 = vadd.f32 %v4002, %v4740
      %v4850 = vadd.f32 %v4003, %v4743
      %v4851 = vadd.f32 %v4004, %v4745
      %v4852 = vadd.f32 %v4005, %v4748
      %v4853 = vadd.f32 %v4006, %v4750
      %v4854 = vadd.f32 %v4007, %v4753
      %v4855 = vadd.f32 %v4008, %v4755
      %v4856 = vadd.f32 %v4009, %v4758
      %v4857 = vadd.f32 %v4010, %v4760
      %v4858 = vadd.f32 %v4011, %v4763
      %v4859 = vadd.f32 %v4012, %v4765
      %v4860 = vadd.f32 %v4013, %v4768
      %v4861 = vadd.f32 %v4014, %v4770
      %v4862 = vadd.f32 %v4015, %v4773
      %v4863 = vadd.f32 %v4016, %v4775
      %v4864 = vadd.f32 %v4017, %v4778
      %v4865 = vadd.f32 %v4018, %v4780
      %v4866 = vadd.f32 %v4019, %v4783
      %v4867 = vadd.f32 %v4020, %v4785
      %v4868 = vadd.f32 %v4021, %v4788
      %v4869 = vadd.f32 %v4022, %v4790
      %v4870 = vadd.f32 %v4023, %v4793
      %v4871 = vadd.f32 %v4024, %v4795
      %v4872 = vadd.f32 %v4025, %v4798
      %v4873 = vadd.f32 %v4026, %v4800
      %v4874 = vadd.f32 %v4027, %v4803
      %v4875 = vadd.f32 %v4028, %v4805
      %v4876 = vadd.f32 %v4029, %v4808
      %v4877 = vadd.f32 %v4030, %v4810
      %v4878 = vld [vmem:[%s165 + $0x18] sm:$0xe]
      %s4879 = scalar_lea.vmem %s1, 16
      %v4880 = vld [vmem:[%s4879] sm:$0x3]
      %v4882 = vunpack.c.l.b16 %v4878
      %v4883 = vpack.c.b16 %v4168, %v4882
      %v4884 = vrot.slane %v4883, 1
      %v4885 = vrot.slane %v4235, 1
      %v4886 = vsel %vm1209, %v4884, %v4885
      %v4887 = vrot.slane %v4236, 1
      %v4888 = vsel %vm1209, %v4885, %v4887
      %v4889 = vrot.slane %v4237, 1
      %v4890 = vsel %vm1209, %v4887, %v4889
      %v4891 = vrot.slane %v4238, 1
      %v4892 = vsel %vm1209, %v4889, %v4891
      %v4893 = vrot.slane %v4239, 1
      %v4894 = vsel %vm1209, %v4891, %v4893
      %v4895 = vrot.slane %v4240, 1
      %v4896 = vsel %vm1209, %v4893, %v4895
      %v4897 = vrot.slane %v4241, 1
      %v4898 = vsel %vm1209, %v4895, %v4897
      %v4899 = vrot.slane %v4242, 1
      %v4900 = vsel %vm1209, %v4897, %v4899
      %v4901 = vrot.slane %v4243, 1
      %v4902 = vsel %vm1209, %v4899, %v4901
      %v4903 = vrot.slane %v4244, 1
      %v4904 = vsel %vm1209, %v4901, %v4903
      %v4905 = vrot.slane %v4245, 1
      %v4906 = vsel %vm1209, %v4903, %v4905
      %v4907 = vrot.slane %v4246, 1
      %v4908 = vsel %vm1209, %v4905, %v4907
      %v4909 = vrot.slane %v4247, 1
      %v4910 = vsel %vm1209, %v4907, %v4909
      %v4911 = vrot.slane %v4248, 1
      %v4912 = vsel %vm1209, %v4909, %v4911
      %v4913 = vrot.slane %v4249, 1
      %v4914 = vsel %vm1209, %v4911, %v4913
      %v4915 = vrot.slane %v4250, 1
      %v4916 = vsel %vm1209, %v4913, %v4915
      %v4917 = vrot.slane %v4251, 1
      %v4918 = vsel %vm1209, %v4915, %v4917
      %v4919 = vrot.slane %v4252, 1
      %v4920 = vsel %vm1209, %v4917, %v4919
      %v4921 = vrot.slane %v4253, 1
      %v4922 = vsel %vm1209, %v4919, %v4921
      %v4923 = vrot.slane %v4254, 1
      %v4924 = vsel %vm1209, %v4921, %v4923
      %v4925 = vrot.slane %v4255, 1
      %v4926 = vsel %vm1209, %v4923, %v4925
      %v4927 = vrot.slane %v4256, 1
      %v4928 = vsel %vm1209, %v4925, %v4927
      %v4929 = vrot.slane %v4257, 1
      %v4930 = vsel %vm1209, %v4927, %v4929
      %v4931 = vrot.slane %v4258, 1
      %v4932 = vsel %vm1209, %v4929, %v4931
      %v4933 = vrot.slane %v4259, 1
      %v4934 = vsel %vm1209, %v4931, %v4933
      %v4935 = vrot.slane %v4260, 1
      %v4936 = vsel %vm1209, %v4933, %v4935
      %v4937 = vrot.slane %v4261, 1
      %v4938 = vsel %vm1209, %v4935, %v4937
      %v4939 = vrot.slane %v4262, 1
      %v4940 = vsel %vm1209, %v4937, %v4939
      %v4941 = vrot.slane %v4263, 1
      %v4942 = vsel %vm1209, %v4939, %v4941
      %v4943 = vrot.slane %v4264, 1
      %v4944 = vsel %vm1209, %v4941, %v4943
      %v4945 = vrot.slane %v4265, 1
      %v4946 = vsel %vm1209, %v4943, %v4945
      %v4947 = vrot.slane %v4266, 1
      %v4948 = vsel %vm1209, %v4945, %v4947
      %v4949 = vrot.slane %v4267, 1
      %v4950 = vsel %vm1209, %v4947, %v4949
      %v4952 = vsel %vm679, %v4886, 0
      %v4955 = vsel %vm679, %v4888, 0
      %v4958 = vsel %vm679, %v4890, 0
      %v4961 = vsel %vm679, %v4892, 0
      %v4964 = vsel %vm679, %v4894, 0
      %v4967 = vsel %vm679, %v4896, 0
      %v4970 = vsel %vm679, %v4898, 0
      %v4973 = vsel %vm679, %v4900, 0
      %v4976 = vsel %vm679, %v4902, 0
      %v4979 = vsel %vm679, %v4904, 0
      %v4982 = vsel %vm679, %v4906, 0
      %v4985 = vsel %vm679, %v4908, 0
      %v4988 = vsel %vm679, %v4910, 0
      %v4991 = vsel %vm679, %v4912, 0
      %v4994 = vsel %vm679, %v4914, 0
      %v4997 = vsel %vm679, %v4916, 0
      %v5000 = vsel %vm679, %v4918, 0
      %v5003 = vsel %vm679, %v4920, 0
      %v5006 = vsel %vm679, %v4922, 0
      %v5009 = vsel %vm679, %v4924, 0
      %v5012 = vsel %vm679, %v4926, 0
      %v5015 = vsel %vm679, %v4928, 0
      %v5018 = vsel %vm679, %v4930, 0
      %v5021 = vsel %vm679, %v4932, 0
      %v5024 = vsel %vm679, %v4934, 0
      %v5027 = vsel %vm679, %v4936, 0
      %v5030 = vsel %vm679, %v4938, 0
      %v5033 = vsel %vm679, %v4940, 0
      %v5036 = vsel %vm679, %v4942, 0
      %v5039 = vsel %vm679, %v4944, 0
      %v5042 = vsel %vm679, %v4946, 0
      %v5045 = vsel %vm679, %v4948, 0
      %v5048 = vsel %vm679, %v4950, 0
      %v5051 = vand.u32 %v4880, %v782
      %5053 = vmatpush.bf16.msra.mxu0 0
      %5054 = vmatpush.bf16.msra.mxu0 0
      %5055 = vmatpush.bf16.msra.mxu0 0
      %5056 = vmatpush.bf16.msra.mxu0 0
      %5057 = vmatpush.bf16.msra.mxu0 0
      %5058 = vmatpush.bf16.msra.mxu0 0
      %5059 = vmatpush.bf16.msra.mxu0 0
      %5060 = vmatpush.bf16.msra.mxu0 %v5051
      %5061 = vmatmul.bf16.gmra.mxu0 %v4952
      %v5062 = vpop.f32.mrf.mxu0
      %v5063 = vadd.f32 0.0, %v5062
      %v5064 = vpop.f32.mrf.mxu0
      %v5065 = vadd.f32 0.0, %v5064
      %5066 = vmatmul.bf16.gmra.mxu0 %v4955
      %v5067 = vpop.f32.mrf.mxu0
      %v5068 = vadd.f32 0.0, %v5067
      %v5069 = vpop.f32.mrf.mxu0
      %v5070 = vadd.f32 0.0, %v5069
      %5071 = vmatmul.bf16.gmra.mxu0 %v4958
      %v5072 = vpop.f32.mrf.mxu0
      %v5073 = vadd.f32 0.0, %v5072
      %v5074 = vpop.f32.mrf.mxu0
      %v5075 = vadd.f32 0.0, %v5074
      %5076 = vmatmul.bf16.gmra.mxu0 %v4961
      %v5077 = vpop.f32.mrf.mxu0
      %v5078 = vadd.f32 0.0, %v5077
      %v5079 = vpop.f32.mrf.mxu0
      %v5080 = vadd.f32 0.0, %v5079
      %5081 = vmatmul.bf16.gmra.mxu0 %v4964
      %v5082 = vpop.f32.mrf.mxu0
      %v5083 = vadd.f32 0.0, %v5082
      %v5084 = vpop.f32.mrf.mxu0
      %v5085 = vadd.f32 0.0, %v5084
      %5086 = vmatmul.bf16.gmra.mxu0 %v4967
      %v5087 = vpop.f32.mrf.mxu0
      %v5088 = vadd.f32 0.0, %v5087
      %v5089 = vpop.f32.mrf.mxu0
      %v5090 = vadd.f32 0.0, %v5089
      %5091 = vmatmul.bf16.gmra.mxu0 %v4970
      %v5092 = vpop.f32.mrf.mxu0
      %v5093 = vadd.f32 0.0, %v5092
      %v5094 = vpop.f32.mrf.mxu0
      %v5095 = vadd.f32 0.0, %v5094
      %5096 = vmatmul.bf16.gmra.mxu0 %v4973
      %v5097 = vpop.f32.mrf.mxu0
      %v5098 = vadd.f32 0.0, %v5097
      %v5099 = vpop.f32.mrf.mxu0
      %v5100 = vadd.f32 0.0, %v5099
      %5101 = vmatmul.bf16.gmra.mxu0 %v4976
      %v5102 = vpop.f32.mrf.mxu0
      %v5103 = vadd.f32 0.0, %v5102
      %v5104 = vpop.f32.mrf.mxu0
      %v5105 = vadd.f32 0.0, %v5104
      %5106 = vmatmul.bf16.gmra.mxu0 %v4979
      %v5107 = vpop.f32.mrf.mxu0
      %v5108 = vadd.f32 0.0, %v5107
      %v5109 = vpop.f32.mrf.mxu0
      %v5110 = vadd.f32 0.0, %v5109
      %5111 = vmatmul.bf16.gmra.mxu0 %v4982
      %v5112 = vpop.f32.mrf.mxu0
      %v5113 = vadd.f32 0.0, %v5112
      %v5114 = vpop.f32.mrf.mxu0
      %v5115 = vadd.f32 0.0, %v5114
      %5116 = vmatmul.bf16.gmra.mxu0 %v4985
      %v5117 = vpop.f32.mrf.mxu0
      %v5118 = vadd.f32 0.0, %v5117
      %v5119 = vpop.f32.mrf.mxu0
      %v5120 = vadd.f32 0.0, %v5119
      %5121 = vmatmul.bf16.gmra.mxu0 %v4988
      %v5122 = vpop.f32.mrf.mxu0
      %v5123 = vadd.f32 0.0, %v5122
      %v5124 = vpop.f32.mrf.mxu0
      %v5125 = vadd.f32 0.0, %v5124
      %5126 = vmatmul.bf16.gmra.mxu0 %v4991
      %v5127 = vpop.f32.mrf.mxu0
      %v5128 = vadd.f32 0.0, %v5127
      %v5129 = vpop.f32.mrf.mxu0
      %v5130 = vadd.f32 0.0, %v5129
      %5131 = vmatmul.bf16.gmra.mxu0 %v4994
      %v5132 = vpop.f32.mrf.mxu0
      %v5133 = vadd.f32 0.0, %v5132
      %v5134 = vpop.f32.mrf.mxu0
      %v5135 = vadd.f32 0.0, %v5134
      %5136 = vmatmul.bf16.gmra.mxu0 %v4997
      %v5137 = vpop.f32.mrf.mxu0
      %v5138 = vadd.f32 0.0, %v5137
      %v5139 = vpop.f32.mrf.mxu0
      %v5140 = vadd.f32 0.0, %v5139
      %5141 = vmatmul.bf16.gmra.mxu0 %v5000
      %v5142 = vpop.f32.mrf.mxu0
      %v5143 = vadd.f32 0.0, %v5142
      %v5144 = vpop.f32.mrf.mxu0
      %v5145 = vadd.f32 0.0, %v5144
      %5146 = vmatmul.bf16.gmra.mxu0 %v5003
      %v5147 = vpop.f32.mrf.mxu0
      %v5148 = vadd.f32 0.0, %v5147
      %v5149 = vpop.f32.mrf.mxu0
      %v5150 = vadd.f32 0.0, %v5149
      %5151 = vmatmul.bf16.gmra.mxu0 %v5006
      %v5152 = vpop.f32.mrf.mxu0
      %v5153 = vadd.f32 0.0, %v5152
      %v5154 = vpop.f32.mrf.mxu0
      %v5155 = vadd.f32 0.0, %v5154
      %5156 = vmatmul.bf16.gmra.mxu0 %v5009
      %v5157 = vpop.f32.mrf.mxu0
      %v5158 = vadd.f32 0.0, %v5157
      %v5159 = vpop.f32.mrf.mxu0
      %v5160 = vadd.f32 0.0, %v5159
      %5161 = vmatmul.bf16.gmra.mxu0 %v5012
      %v5162 = vpop.f32.mrf.mxu0
      %v5163 = vadd.f32 0.0, %v5162
      %v5164 = vpop.f32.mrf.mxu0
      %v5165 = vadd.f32 0.0, %v5164
      %5166 = vmatmul.bf16.gmra.mxu0 %v5015
      %v5167 = vpop.f32.mrf.mxu0
      %v5168 = vadd.f32 0.0, %v5167
      %v5169 = vpop.f32.mrf.mxu0
      %v5170 = vadd.f32 0.0, %v5169
      %5171 = vmatmul.bf16.gmra.mxu0 %v5018
      %v5172 = vpop.f32.mrf.mxu0
      %v5173 = vadd.f32 0.0, %v5172
      %v5174 = vpop.f32.mrf.mxu0
      %v5175 = vadd.f32 0.0, %v5174
      %5176 = vmatmul.bf16.gmra.mxu0 %v5021
      %v5177 = vpop.f32.mrf.mxu0
      %v5178 = vadd.f32 0.0, %v5177
      %v5179 = vpop.f32.mrf.mxu0
      %v5180 = vadd.f32 0.0, %v5179
      %5181 = vmatmul.bf16.gmra.mxu0 %v5024
      %v5182 = vpop.f32.mrf.mxu0
      %v5183 = vadd.f32 0.0, %v5182
      %v5184 = vpop.f32.mrf.mxu0
      %v5185 = vadd.f32 0.0, %v5184
      %5186 = vmatmul.bf16.gmra.mxu0 %v5027
      %v5187 = vpop.f32.mrf.mxu0
      %v5188 = vadd.f32 0.0, %v5187
      %v5189 = vpop.f32.mrf.mxu0
      %v5190 = vadd.f32 0.0, %v5189
      %5191 = vmatmul.bf16.gmra.mxu0 %v5030
      %v5192 = vpop.f32.mrf.mxu0
      %v5193 = vadd.f32 0.0, %v5192
      %v5194 = vpop.f32.mrf.mxu0
      %v5195 = vadd.f32 0.0, %v5194
      %5196 = vmatmul.bf16.gmra.mxu0 %v5033
      %v5197 = vpop.f32.mrf.mxu0
      %v5198 = vadd.f32 0.0, %v5197
      %v5199 = vpop.f32.mrf.mxu0
      %v5200 = vadd.f32 0.0, %v5199
      %5201 = vmatmul.bf16.gmra.mxu0 %v5036
      %v5202 = vpop.f32.mrf.mxu0
      %v5203 = vadd.f32 0.0, %v5202
      %v5204 = vpop.f32.mrf.mxu0
      %v5205 = vadd.f32 0.0, %v5204
      %5206 = vmatmul.bf16.gmra.mxu0 %v5039
      %v5207 = vpop.f32.mrf.mxu0
      %v5208 = vadd.f32 0.0, %v5207
      %v5209 = vpop.f32.mrf.mxu0
      %v5210 = vadd.f32 0.0, %v5209
      %5211 = vmatmul.bf16.gmra.mxu0 %v5042
      %v5212 = vpop.f32.mrf.mxu0
      %v5213 = vadd.f32 0.0, %v5212
      %v5214 = vpop.f32.mrf.mxu0
      %v5215 = vadd.f32 0.0, %v5214
      %5216 = vmatmul.bf16.gmra.mxu0 %v5045
      %v5217 = vpop.f32.mrf.mxu0
      %v5218 = vadd.f32 0.0, %v5217
      %v5219 = vpop.f32.mrf.mxu0
      %v5220 = vadd.f32 0.0, %v5219
      %5221 = vmatmul.bf16.gmra.mxu0 %v5048
      %v5222 = vpop.f32.mrf.mxu0
      %v5223 = vadd.f32 0.0, %v5222
      %v5224 = vpop.f32.mrf.mxu0
      %v5225 = vadd.f32 0.0, %v5224
      %5226 = vdwg.mxu0
      %v5227 = vadd.f32 %v4812, %v5063
      %v5228 = vadd.f32 %v4813, %v5065
      %v5229 = vadd.f32 %v4814, %v5068
      %v5230 = vadd.f32 %v4815, %v5070
      %v5231 = vadd.f32 %v4816, %v5073
      %v5232 = vadd.f32 %v4817, %v5075
      %v5233 = vadd.f32 %v4818, %v5078
      %v5234 = vadd.f32 %v4819, %v5080
      %v5235 = vadd.f32 %v4820, %v5083
      %v5236 = vadd.f32 %v4821, %v5085
      %v5237 = vadd.f32 %v4822, %v5088
      %v5238 = vadd.f32 %v4823, %v5090
      %v5239 = vadd.f32 %v4824, %v5093
      %v5240 = vadd.f32 %v4825, %v5095
      %v5241 = vadd.f32 %v4826, %v5098
      %v5242 = vadd.f32 %v4827, %v5100
      %v5243 = vadd.f32 %v4828, %v5103
      %v5244 = vadd.f32 %v4829, %v5105
      %v5245 = vadd.f32 %v4830, %v5108
      %v5246 = vadd.f32 %v4831, %v5110
      %v5247 = vadd.f32 %v4832, %v5113
      %v5248 = vadd.f32 %v4833, %v5115
      %v5249 = vadd.f32 %v4834, %v5118
      %v5250 = vadd.f32 %v4835, %v5120
      %v5251 = vadd.f32 %v4836, %v5123
      %v5252 = vadd.f32 %v4837, %v5125
      %v5253 = vadd.f32 %v4838, %v5128
      %v5254 = vadd.f32 %v4839, %v5130
      %v5255 = vadd.f32 %v4840, %v5133
      %v5256 = vadd.f32 %v4841, %v5135
      %v5257 = vadd.f32 %v4842, %v5138
      %v5258 = vadd.f32 %v4843, %v5140
      %v5259 = vadd.f32 %v4844, %v5143
      %v5260 = vadd.f32 %v4845, %v5145
      %v5261 = vadd.f32 %v4846, %v5148
      %v5262 = vadd.f32 %v4847, %v5150
      %v5263 = vadd.f32 %v4848, %v5153
      %v5264 = vadd.f32 %v4849, %v5155
      %v5265 = vadd.f32 %v4850, %v5158
      %v5266 = vadd.f32 %v4851, %v5160
      %v5267 = vadd.f32 %v4852, %v5163
      %v5268 = vadd.f32 %v4853, %v5165
      %v5269 = vadd.f32 %v4854, %v5168
      %v5270 = vadd.f32 %v4855, %v5170
      %v5271 = vadd.f32 %v4856, %v5173
      %v5272 = vadd.f32 %v4857, %v5175
      %v5273 = vadd.f32 %v4858, %v5178
      %v5274 = vadd.f32 %v4859, %v5180
      %v5275 = vadd.f32 %v4860, %v5183
      %v5276 = vadd.f32 %v4861, %v5185
      %v5277 = vadd.f32 %v4862, %v5188
      %v5278 = vadd.f32 %v4863, %v5190
      %v5279 = vadd.f32 %v4864, %v5193
      %v5280 = vadd.f32 %v4865, %v5195
      %v5281 = vadd.f32 %v4866, %v5198
      %v5282 = vadd.f32 %v4867, %v5200
      %v5283 = vadd.f32 %v4868, %v5203
      %v5284 = vadd.f32 %v4869, %v5205
      %v5285 = vadd.f32 %v4870, %v5208
      %v5286 = vadd.f32 %v4871, %v5210
      %v5287 = vadd.f32 %v4872, %v5213
      %v5288 = vadd.f32 %v4873, %v5215
      %v5289 = vadd.f32 %v4874, %v5218
      %v5290 = vadd.f32 %v4875, %v5220
      %v5291 = vadd.f32 %v4876, %v5223
      %v5292 = vadd.f32 %v4877, %v5225
      %v5293 = vld [vmem:[%s2] sm:$0x1]
      %v5295 = vperm.slane %v5293, 0
      %v5297 = vadd.f32 %v5227, %v5295
      %v5298 = vadd.f32 %v5228, %v5295
      %v5299 = vadd.f32 %v5229, %v5295
      %v5300 = vadd.f32 %v5230, %v5295
      %v5301 = vadd.f32 %v5231, %v5295
      %v5302 = vadd.f32 %v5232, %v5295
      %v5303 = vadd.f32 %v5233, %v5295
      %v5304 = vadd.f32 %v5234, %v5295
      %v5305 = vadd.f32 %v5235, %v5295
      %v5306 = vadd.f32 %v5236, %v5295
      %v5307 = vadd.f32 %v5237, %v5295
      %v5308 = vadd.f32 %v5238, %v5295
      %v5309 = vadd.f32 %v5239, %v5295
      %v5310 = vadd.f32 %v5240, %v5295
      %v5311 = vadd.f32 %v5241, %v5295
      %v5312 = vadd.f32 %v5242, %v5295
      %v5313 = vadd.f32 %v5243, %v5295
      %v5314 = vadd.f32 %v5244, %v5295
      %v5315 = vadd.f32 %v5245, %v5295
      %v5316 = vadd.f32 %v5246, %v5295
      %v5317 = vadd.f32 %v5247, %v5295
      %v5318 = vadd.f32 %v5248, %v5295
      %v5319 = vadd.f32 %v5249, %v5295
      %v5320 = vadd.f32 %v5250, %v5295
      %v5321 = vadd.f32 %v5251, %v5295
      %v5322 = vadd.f32 %v5252, %v5295
      %v5323 = vadd.f32 %v5253, %v5295
      %v5324 = vadd.f32 %v5254, %v5295
      %v5325 = vadd.f32 %v5255, %v5295
      %v5326 = vadd.f32 %v5256, %v5295
      %v5327 = vadd.f32 %v5257, %v5295
      %v5328 = vadd.f32 %v5258, %v5295
      %v5329 = vadd.f32 %v5259, %v5295
      %v5330 = vadd.f32 %v5260, %v5295
      %v5331 = vadd.f32 %v5261, %v5295
      %v5332 = vadd.f32 %v5262, %v5295
      %v5333 = vadd.f32 %v5263, %v5295
      %v5334 = vadd.f32 %v5264, %v5295
      %v5335 = vadd.f32 %v5265, %v5295
      %v5336 = vadd.f32 %v5266, %v5295
      %v5337 = vadd.f32 %v5267, %v5295
      %v5338 = vadd.f32 %v5268, %v5295
      %v5339 = vadd.f32 %v5269, %v5295
      %v5340 = vadd.f32 %v5270, %v5295
      %v5341 = vadd.f32 %v5271, %v5295
      %v5342 = vadd.f32 %v5272, %v5295
      %v5343 = vadd.f32 %v5273, %v5295
      %v5344 = vadd.f32 %v5274, %v5295
      %v5345 = vadd.f32 %v5275, %v5295
      %v5346 = vadd.f32 %v5276, %v5295
      %v5347 = vadd.f32 %v5277, %v5295
      %v5348 = vadd.f32 %v5278, %v5295
      %v5349 = vadd.f32 %v5279, %v5295
      %v5350 = vadd.f32 %v5280, %v5295
      %v5351 = vadd.f32 %v5281, %v5295
      %v5352 = vadd.f32 %v5282, %v5295
      %v5353 = vadd.f32 %v5283, %v5295
      %v5354 = vadd.f32 %v5284, %v5295
      %v5355 = vadd.f32 %v5285, %v5295
      %v5356 = vadd.f32 %v5286, %v5295
      %v5357 = vadd.f32 %v5287, %v5295
      %v5358 = vadd.f32 %v5288, %v5295
      %v5359 = vadd.f32 %v5289, %v5295
      %v5360 = vadd.f32 %v5290, %v5295
      %v5361 = vadd.f32 %v5291, %v5295
      %v5362 = vadd.f32 %v5292, %v5295
      %v5363 = vmax.f32 %v5297, 0.0
      %v5364 = vmax.f32 %v5298, 0.0
      %v5365 = vmax.f32 %v5299, 0.0
      %v5366 = vmax.f32 %v5300, 0.0
      %v5367 = vmax.f32 %v5301, 0.0
      %v5368 = vmax.f32 %v5302, 0.0
      %v5369 = vmax.f32 %v5303, 0.0
      %v5370 = vmax.f32 %v5304, 0.0
      %v5371 = vmax.f32 %v5305, 0.0
      %v5372 = vmax.f32 %v5306, 0.0
      %v5373 = vmax.f32 %v5307, 0.0
      %v5374 = vmax.f32 %v5308, 0.0
      %v5375 = vmax.f32 %v5309, 0.0
      %v5376 = vmax.f32 %v5310, 0.0
      %v5377 = vmax.f32 %v5311, 0.0
      %v5378 = vmax.f32 %v5312, 0.0
      %v5379 = vmax.f32 %v5313, 0.0
      %v5380 = vmax.f32 %v5314, 0.0
      %v5381 = vmax.f32 %v5315, 0.0
      %v5382 = vmax.f32 %v5316, 0.0
      %v5383 = vmax.f32 %v5317, 0.0
      %v5384 = vmax.f32 %v5318, 0.0
      %v5385 = vmax.f32 %v5319, 0.0
      %v5386 = vmax.f32 %v5320, 0.0
      %v5387 = vmax.f32 %v5321, 0.0
      %v5388 = vmax.f32 %v5322, 0.0
      %v5389 = vmax.f32 %v5323, 0.0
      %v5390 = vmax.f32 %v5324, 0.0
      %v5391 = vmax.f32 %v5325, 0.0
      %v5392 = vmax.f32 %v5326, 0.0
      %v5393 = vmax.f32 %v5327, 0.0
      %v5394 = vmax.f32 %v5328, 0.0
      %v5395 = vmax.f32 %v5329, 0.0
      %v5396 = vmax.f32 %v5330, 0.0
      %v5397 = vmax.f32 %v5331, 0.0
      %v5398 = vmax.f32 %v5332, 0.0
      %v5399 = vmax.f32 %v5333, 0.0
      %v5400 = vmax.f32 %v5334, 0.0
      %v5401 = vmax.f32 %v5335, 0.0
      %v5402 = vmax.f32 %v5336, 0.0
      %v5403 = vmax.f32 %v5337, 0.0
      %v5404 = vmax.f32 %v5338, 0.0
      %v5405 = vmax.f32 %v5339, 0.0
      %v5406 = vmax.f32 %v5340, 0.0
      %v5407 = vmax.f32 %v5341, 0.0
      %v5408 = vmax.f32 %v5342, 0.0
      %v5409 = vmax.f32 %v5343, 0.0
      %v5410 = vmax.f32 %v5344, 0.0
      %v5411 = vmax.f32 %v5345, 0.0
      %v5412 = vmax.f32 %v5346, 0.0
      %v5413 = vmax.f32 %v5347, 0.0
      %v5414 = vmax.f32 %v5348, 0.0
      %v5415 = vmax.f32 %v5349, 0.0
      %v5416 = vmax.f32 %v5350, 0.0
      %v5417 = vmax.f32 %v5351, 0.0
      %v5418 = vmax.f32 %v5352, 0.0
      %v5419 = vmax.f32 %v5353, 0.0
      %v5420 = vmax.f32 %v5354, 0.0
      %v5421 = vmax.f32 %v5355, 0.0
      %v5422 = vmax.f32 %v5356, 0.0
      %v5423 = vmax.f32 %v5357, 0.0
      %v5424 = vmax.f32 %v5358, 0.0
      %v5425 = vmax.f32 %v5359, 0.0
      %v5426 = vmax.f32 %v5360, 0.0
      %v5427 = vmax.f32 %v5361, 0.0
      %v5428 = vmax.f32 %v5362, 0.0
      %v5429 = vmin.f32 %v5363, 6.0
      %v5430 = vmin.f32 %v5364, 6.0
      %v5431 = vmin.f32 %v5365, 6.0
      %v5432 = vmin.f32 %v5366, 6.0
      %v5433 = vmin.f32 %v5367, 6.0
      %v5434 = vmin.f32 %v5368, 6.0
      %v5435 = vmin.f32 %v5369, 6.0
      %v5436 = vmin.f32 %v5370, 6.0
      %v5437 = vmin.f32 %v5371, 6.0
      %v5438 = vmin.f32 %v5372, 6.0
      %v5439 = vmin.f32 %v5373, 6.0
      %v5440 = vmin.f32 %v5374, 6.0
      %v5441 = vmin.f32 %v5375, 6.0
      %v5442 = vmin.f32 %v5376, 6.0
      %v5443 = vmin.f32 %v5377, 6.0
      %v5444 = vmin.f32 %v5378, 6.0
      %v5445 = vmin.f32 %v5379, 6.0
      %v5446 = vmin.f32 %v5380, 6.0
      %v5447 = vmin.f32 %v5381, 6.0
      %v5448 = vmin.f32 %v5382, 6.0
      %v5449 = vmin.f32 %v5383, 6.0
      %v5450 = vmin.f32 %v5384, 6.0
      %v5451 = vmin.f32 %v5385, 6.0
      %v5452 = vmin.f32 %v5386, 6.0
      %v5453 = vmin.f32 %v5387, 6.0
      %v5454 = vmin.f32 %v5388, 6.0
      %v5455 = vmin.f32 %v5389, 6.0
      %v5456 = vmin.f32 %v5390, 6.0
      %v5457 = vmin.f32 %v5391, 6.0
      %v5458 = vmin.f32 %v5392, 6.0
      %v5459 = vmin.f32 %v5393, 6.0
      %v5460 = vmin.f32 %v5394, 6.0
      %v5461 = vmin.f32 %v5395, 6.0
      %v5462 = vmin.f32 %v5396, 6.0
      %v5463 = vmin.f32 %v5397, 6.0
      %v5464 = vmin.f32 %v5398, 6.0
      %v5465 = vmin.f32 %v5399, 6.0
      %v5466 = vmin.f32 %v5400, 6.0
      %v5467 = vmin.f32 %v5401, 6.0
      %v5468 = vmin.f32 %v5402, 6.0
      %v5469 = vmin.f32 %v5403, 6.0
      %v5470 = vmin.f32 %v5404, 6.0
      %v5471 = vmin.f32 %v5405, 6.0
      %v5472 = vmin.f32 %v5406, 6.0
      %v5473 = vmin.f32 %v5407, 6.0
      %v5474 = vmin.f32 %v5408, 6.0
      %v5475 = vmin.f32 %v5409, 6.0
      %v5476 = vmin.f32 %v5410, 6.0
      %v5477 = vmin.f32 %v5411, 6.0
      %v5478 = vmin.f32 %v5412, 6.0
      %v5479 = vmin.f32 %v5413, 6.0
      %v5480 = vmin.f32 %v5414, 6.0
      %v5481 = vmin.f32 %v5415, 6.0
      %v5482 = vmin.f32 %v5416, 6.0
      %v5483 = vmin.f32 %v5417, 6.0
      %v5484 = vmin.f32 %v5418, 6.0
      %v5485 = vmin.f32 %v5419, 6.0
      %v5486 = vmin.f32 %v5420, 6.0
      %v5487 = vmin.f32 %v5421, 6.0
      %v5488 = vmin.f32 %v5422, 6.0
      %v5489 = vmin.f32 %v5423, 6.0
      %v5490 = vmin.f32 %v5424, 6.0
      %v5491 = vmin.f32 %v5425, 6.0
      %v5492 = vmin.f32 %v5426, 6.0
      %v5493 = vmin.f32 %v5427, 6.0
      %v5494 = vmin.f32 %v5428, 6.0
      %v5495 = vmul.f32 %v5429, 42.5
      %v5496 = vmul.f32 %v5430, 42.5
      %v5497 = vmul.f32 %v5431, 42.5
      %v5498 = vmul.f32 %v5432, 42.5
      %v5499 = vmul.f32 %v5433, 42.5
      %v5500 = vmul.f32 %v5434, 42.5
      %v5501 = vmul.f32 %v5435, 42.5
      %v5502 = vmul.f32 %v5436, 42.5
      %v5503 = vmul.f32 %v5437, 42.5
      %v5504 = vmul.f32 %v5438, 42.5
      %v5505 = vmul.f32 %v5439, 42.5
      %v5506 = vmul.f32 %v5440, 42.5
      %v5507 = vmul.f32 %v5441, 42.5
      %v5508 = vmul.f32 %v5442, 42.5
      %v5509 = vmul.f32 %v5443, 42.5
      %v5510 = vmul.f32 %v5444, 42.5
      %v5511 = vmul.f32 %v5445, 42.5
      %v5512 = vmul.f32 %v5446, 42.5
      %v5513 = vmul.f32 %v5447, 42.5
      %v5514 = vmul.f32 %v5448, 42.5
      %v5515 = vmul.f32 %v5449, 42.5
      %v5516 = vmul.f32 %v5450, 42.5
      %v5517 = vmul.f32 %v5451, 42.5
      %v5518 = vmul.f32 %v5452, 42.5
      %v5519 = vmul.f32 %v5453, 42.5
      %v5520 = vmul.f32 %v5454, 42.5
      %v5521 = vmul.f32 %v5455, 42.5
      %v5522 = vmul.f32 %v5456, 42.5
      %v5523 = vmul.f32 %v5457, 42.5
      %v5524 = vmul.f32 %v5458, 42.5
      %v5525 = vmul.f32 %v5459, 42.5
      %v5526 = vmul.f32 %v5460, 42.5
      %v5527 = vmul.f32 %v5461, 42.5
      %v5528 = vmul.f32 %v5462, 42.5
      %v5529 = vmul.f32 %v5463, 42.5
      %v5530 = vmul.f32 %v5464, 42.5
      %v5531 = vmul.f32 %v5465, 42.5
      %v5532 = vmul.f32 %v5466, 42.5
      %v5533 = vmul.f32 %v5467, 42.5
      %v5534 = vmul.f32 %v5468, 42.5
      %v5535 = vmul.f32 %v5469, 42.5
      %v5536 = vmul.f32 %v5470, 42.5
      %v5537 = vmul.f32 %v5471, 42.5
      %v5538 = vmul.f32 %v5472, 42.5
      %v5539 = vmul.f32 %v5473, 42.5
      %v5540 = vmul.f32 %v5474, 42.5
      %v5541 = vmul.f32 %v5475, 42.5
      %v5542 = vmul.f32 %v5476, 42.5
      %v5543 = vmul.f32 %v5477, 42.5
      %v5544 = vmul.f32 %v5478, 42.5
      %v5545 = vmul.f32 %v5479, 42.5
      %v5546 = vmul.f32 %v5480, 42.5
      %v5547 = vmul.f32 %v5481, 42.5
      %v5548 = vmul.f32 %v5482, 42.5
      %v5549 = vmul.f32 %v5483, 42.5
      %v5550 = vmul.f32 %v5484, 42.5
      %v5551 = vmul.f32 %v5485, 42.5
      %v5552 = vmul.f32 %v5486, 42.5
      %v5553 = vmul.f32 %v5487, 42.5
      %v5554 = vmul.f32 %v5488, 42.5
      %v5555 = vmul.f32 %v5489, 42.5
      %v5556 = vmul.f32 %v5490, 42.5
      %v5557 = vmul.f32 %v5491, 42.5
      %v5558 = vmul.f32 %v5492, 42.5
      %v5559 = vmul.f32 %v5493, 42.5
      %v5560 = vmul.f32 %v5494, 42.5
      %v5561 = vround.ne.pseudo %v5495
      %v5562 = vround.ne.pseudo %v5496
      %v5563 = vround.ne.pseudo %v5497
      %v5564 = vround.ne.pseudo %v5498
      %v5565 = vround.ne.pseudo %v5499
      %v5566 = vround.ne.pseudo %v5500
      %v5567 = vround.ne.pseudo %v5501
      %v5568 = vround.ne.pseudo %v5502
      %v5569 = vround.ne.pseudo %v5503
      %v5570 = vround.ne.pseudo %v5504
      %v5571 = vround.ne.pseudo %v5505
      %v5572 = vround.ne.pseudo %v5506
      %v5573 = vround.ne.pseudo %v5507
      %v5574 = vround.ne.pseudo %v5508
      %v5575 = vround.ne.pseudo %v5509
      %v5576 = vround.ne.pseudo %v5510
      %v5577 = vround.ne.pseudo %v5511
      %v5578 = vround.ne.pseudo %v5512
      %v5579 = vround.ne.pseudo %v5513
      %v5580 = vround.ne.pseudo %v5514
      %v5581 = vround.ne.pseudo %v5515
      %v5582 = vround.ne.pseudo %v5516
      %v5583 = vround.ne.pseudo %v5517
      %v5584 = vround.ne.pseudo %v5518
      %v5585 = vround.ne.pseudo %v5519
      %v5586 = vround.ne.pseudo %v5520
      %v5587 = vround.ne.pseudo %v5521
      %v5588 = vround.ne.pseudo %v5522
      %v5589 = vround.ne.pseudo %v5523
      %v5590 = vround.ne.pseudo %v5524
      %v5591 = vround.ne.pseudo %v5525
      %v5592 = vround.ne.pseudo %v5526
      %v5593 = vround.ne.pseudo %v5527
      %v5594 = vround.ne.pseudo %v5528
      %v5595 = vround.ne.pseudo %v5529
      %v5596 = vround.ne.pseudo %v5530
      %v5597 = vround.ne.pseudo %v5531
      %v5598 = vround.ne.pseudo %v5532
      %v5599 = vround.ne.pseudo %v5533
      %v5600 = vround.ne.pseudo %v5534
      %v5601 = vround.ne.pseudo %v5535
      %v5602 = vround.ne.pseudo %v5536
      %v5603 = vround.ne.pseudo %v5537
      %v5604 = vround.ne.pseudo %v5538
      %v5605 = vround.ne.pseudo %v5539
      %v5606 = vround.ne.pseudo %v5540
      %v5607 = vround.ne.pseudo %v5541
      %v5608 = vround.ne.pseudo %v5542
      %v5609 = vround.ne.pseudo %v5543
      %v5610 = vround.ne.pseudo %v5544
      %v5611 = vround.ne.pseudo %v5545
      %v5612 = vround.ne.pseudo %v5546
      %v5613 = vround.ne.pseudo %v5547
      %v5614 = vround.ne.pseudo %v5548
      %v5615 = vround.ne.pseudo %v5549
      %v5616 = vround.ne.pseudo %v5550
      %v5617 = vround.ne.pseudo %v5551
      %v5618 = vround.ne.pseudo %v5552
      %v5619 = vround.ne.pseudo %v5553
      %v5620 = vround.ne.pseudo %v5554
      %v5621 = vround.ne.pseudo %v5555
      %v5622 = vround.ne.pseudo %v5556
      %v5623 = vround.ne.pseudo %v5557
      %v5624 = vround.ne.pseudo %v5558
      %v5625 = vround.ne.pseudo %v5559
      %v5626 = vround.ne.pseudo %v5560
      %v5627 = vmul.f32 %v5561, 0.023529412
      %v5628 = vmul.f32 %v5562, 0.023529412
      %v5629 = vmul.f32 %v5563, 0.023529412
      %v5630 = vmul.f32 %v5564, 0.023529412
      %v5631 = vmul.f32 %v5565, 0.023529412
      %v5632 = vmul.f32 %v5566, 0.023529412
      %v5633 = vmul.f32 %v5567, 0.023529412
      %v5634 = vmul.f32 %v5568, 0.023529412
      %v5635 = vmul.f32 %v5569, 0.023529412
      %v5636 = vmul.f32 %v5570, 0.023529412
      %v5637 = vmul.f32 %v5571, 0.023529412
      %v5638 = vmul.f32 %v5572, 0.023529412
      %v5639 = vmul.f32 %v5573, 0.023529412
      %v5640 = vmul.f32 %v5574, 0.023529412
      %v5641 = vmul.f32 %v5575, 0.023529412
      %v5642 = vmul.f32 %v5576, 0.023529412
      %v5643 = vmul.f32 %v5577, 0.023529412
      %v5644 = vmul.f32 %v5578, 0.023529412
      %v5645 = vmul.f32 %v5579, 0.023529412
      %v5646 = vmul.f32 %v5580, 0.023529412
      %v5647 = vmul.f32 %v5581, 0.023529412
      %v5648 = vmul.f32 %v5582, 0.023529412
      %v5649 = vmul.f32 %v5583, 0.023529412
      %v5650 = vmul.f32 %v5584, 0.023529412
      %v5651 = vmul.f32 %v5585, 0.023529412
      %v5652 = vmul.f32 %v5586, 0.023529412
      %v5653 = vmul.f32 %v5587, 0.023529412
      %v5654 = vmul.f32 %v5588, 0.023529412
      %v5655 = vmul.f32 %v5589, 0.023529412
      %v5656 = vmul.f32 %v5590, 0.023529412
      %v5657 = vmul.f32 %v5591, 0.023529412
      %v5658 = vmul.f32 %v5592, 0.023529412
      %v5659 = vmul.f32 %v5593, 0.023529412
      %v5660 = vmul.f32 %v5594, 0.023529412
      %v5661 = vmul.f32 %v5595, 0.023529412
      %v5662 = vmul.f32 %v5596, 0.023529412
      %v5663 = vmul.f32 %v5597, 0.023529412
      %v5664 = vmul.f32 %v5598, 0.023529412
      %v5665 = vmul.f32 %v5599, 0.023529412
      %v5666 = vmul.f32 %v5600, 0.023529412
      %v5667 = vmul.f32 %v5601, 0.023529412
      %v5668 = vmul.f32 %v5602, 0.023529412
      %v5669 = vmul.f32 %v5603, 0.023529412
      %v5670 = vmul.f32 %v5604, 0.023529412
      %v5671 = vmul.f32 %v5605, 0.023529412
      %v5672 = vmul.f32 %v5606, 0.023529412
      %v5673 = vmul.f32 %v5607, 0.023529412
      %v5674 = vmul.f32 %v5608, 0.023529412
      %v5675 = vmul.f32 %v5609, 0.023529412
      %v5676 = vmul.f32 %v5610, 0.023529412
      %v5677 = vmul.f32 %v5611, 0.023529412
      %v5678 = vmul.f32 %v5612, 0.023529412
      %v5679 = vmul.f32 %v5613, 0.023529412
      %v5680 = vmul.f32 %v5614, 0.023529412
      %v5681 = vmul.f32 %v5615, 0.023529412
      %v5682 = vmul.f32 %v5616, 0.023529412
      %v5683 = vmul.f32 %v5617, 0.023529412
      %v5684 = vmul.f32 %v5618, 0.023529412
      %v5685 = vmul.f32 %v5619, 0.023529412
      %v5686 = vmul.f32 %v5620, 0.023529412
      %v5687 = vmul.f32 %v5621, 0.023529412
      %v5688 = vmul.f32 %v5622, 0.023529412
      %v5689 = vmul.f32 %v5623, 0.023529412
      %v5690 = vmul.f32 %v5624, 0.023529412
      %v5691 = vmul.f32 %v5625, 0.023529412
      %v5692 = vmul.f32 %v5626, 0.023529412
      %v5693 = vpack.c.bf16 %v5627, %v5627
      %v5694 = vpack.c.bf16 %v5628, %v5628
      %v5695 = vpack.c.bf16 %v5629, %v5629
      %v5696 = vpack.c.bf16 %v5630, %v5630
      %v5697 = vpack.c.bf16 %v5631, %v5631
      %v5698 = vpack.c.bf16 %v5632, %v5632
      %v5699 = vpack.c.bf16 %v5633, %v5633
      %v5700 = vpack.c.bf16 %v5634, %v5634
      %v5701 = vpack.c.bf16 %v5635, %v5635
      %v5702 = vpack.c.bf16 %v5636, %v5636
      %v5703 = vpack.c.bf16 %v5637, %v5637
      %v5704 = vpack.c.bf16 %v5638, %v5638
      %v5705 = vpack.c.bf16 %v5639, %v5639
      %v5706 = vpack.c.bf16 %v5640, %v5640
      %v5707 = vpack.c.bf16 %v5641, %v5641
      %v5708 = vpack.c.bf16 %v5642, %v5642
      %v5709 = vpack.c.bf16 %v5643, %v5643
      %v5710 = vpack.c.bf16 %v5644, %v5644
      %v5711 = vpack.c.bf16 %v5645, %v5645
      %v5712 = vpack.c.bf16 %v5646, %v5646
      %v5713 = vpack.c.bf16 %v5647, %v5647
      %v5714 = vpack.c.bf16 %v5648, %v5648
      %v5715 = vpack.c.bf16 %v5649, %v5649
      %v5716 = vpack.c.bf16 %v5650, %v5650
      %v5717 = vpack.c.bf16 %v5651, %v5651
      %v5718 = vpack.c.bf16 %v5652, %v5652
      %v5719 = vpack.c.bf16 %v5653, %v5653
      %v5720 = vpack.c.bf16 %v5654, %v5654
      %v5721 = vpack.c.bf16 %v5655, %v5655
      %v5722 = vpack.c.bf16 %v5656, %v5656
      %v5723 = vpack.c.bf16 %v5657, %v5657
      %v5724 = vpack.c.bf16 %v5658, %v5658
      %v5725 = vpack.c.bf16 %v5659, %v5659
      %v5726 = vpack.c.bf16 %v5660, %v5660
      %v5727 = vpack.c.bf16 %v5661, %v5661
      %v5728 = vpack.c.bf16 %v5662, %v5662
      %v5729 = vpack.c.bf16 %v5663, %v5663
      %v5730 = vpack.c.bf16 %v5664, %v5664
      %v5731 = vpack.c.bf16 %v5665, %v5665
      %v5732 = vpack.c.bf16 %v5666, %v5666
      %v5733 = vpack.c.bf16 %v5667, %v5667
      %v5734 = vpack.c.bf16 %v5668, %v5668
      %v5735 = vpack.c.bf16 %v5669, %v5669
      %v5736 = vpack.c.bf16 %v5670, %v5670
      %v5737 = vpack.c.bf16 %v5671, %v5671
      %v5738 = vpack.c.bf16 %v5672, %v5672
      %v5739 = vpack.c.bf16 %v5673, %v5673
      %v5740 = vpack.c.bf16 %v5674, %v5674
      %v5741 = vpack.c.bf16 %v5675, %v5675
      %v5742 = vpack.c.bf16 %v5676, %v5676
      %v5743 = vpack.c.bf16 %v5677, %v5677
      %v5744 = vpack.c.bf16 %v5678, %v5678
      %v5745 = vpack.c.bf16 %v5679, %v5679
      %v5746 = vpack.c.bf16 %v5680, %v5680
      %v5747 = vpack.c.bf16 %v5681, %v5681
      %v5748 = vpack.c.bf16 %v5682, %v5682
      %v5749 = vpack.c.bf16 %v5683, %v5683
      %v5750 = vpack.c.bf16 %v5684, %v5684
      %v5751 = vpack.c.bf16 %v5685, %v5685
      %v5752 = vpack.c.bf16 %v5686, %v5686
      %v5753 = vpack.c.bf16 %v5687, %v5687
      %v5754 = vpack.c.bf16 %v5688, %v5688
      %v5755 = vpack.c.bf16 %v5689, %v5689
      %v5756 = vpack.c.bf16 %v5690, %v5690
      %v5757 = vpack.c.bf16 %v5691, %v5691
      %v5758 = vpack.c.bf16 %v5692, %v5692
      %vm5759 = vcmask 76800
      %5760 = vst.msk [vmem:[%s170] sm:$0xf] %vm5759, %v5693
      %5761 = vst.msk [vmem:[%s170 + $0x4] sm:$0xf] %vm5759, %v5694
      %5762 = vst.msk [vmem:[%s170 + $0x8] sm:$0xf] %vm5759, %v5695
      %5763 = vst.msk [vmem:[%s170 + $0xc] sm:$0xf] %vm5759, %v5696
      %5764 = vst.msk [vmem:[%s170 + $0x10] sm:$0xf] %vm5759, %v5697
      %5765 = vst.msk [vmem:[%s170 + $0x14] sm:$0xf] %vm5759, %v5698
      %5766 = vst.msk [vmem:[%s170 + $0x18] sm:$0xf] %vm5759, %v5699
      %5767 = vst.msk [vmem:[%s170 + $0x1c] sm:$0xf] %vm5759, %v5700
      %5768 = vst.msk [vmem:[%s170 + $0x20] sm:$0xf] %vm5759, %v5701
      %5769 = vst.msk [vmem:[%s170 + $0x24] sm:$0xf] %vm5759, %v5702
      %5770 = vst.msk [vmem:[%s170 + $0x28] sm:$0xf] %vm5759, %v5703
      %5771 = vst.msk [vmem:[%s170 + $0x2c] sm:$0xf] %vm5759, %v5704
      %5772 = vst.msk [vmem:[%s170 + $0x30] sm:$0xf] %vm5759, %v5705
      %5773 = vst.msk [vmem:[%s170 + $0x34] sm:$0xf] %vm5759, %v5706
      %5774 = vst.msk [vmem:[%s170 + $0x38] sm:$0xf] %vm5759, %v5707
      %5775 = vst.msk [vmem:[%s170 + $0x3c] sm:$0xf] %vm5759, %v5708
      %5776 = vst.msk [vmem:[%s170 + $0x40] sm:$0xf] %vm5759, %v5709
      %5777 = vst.msk [vmem:[%s170 + $0x44] sm:$0xf] %vm5759, %v5710
      %5778 = vst.msk [vmem:[%s170 + $0x48] sm:$0xf] %vm5759, %v5711
      %5779 = vst.msk [vmem:[%s170 + $0x4c] sm:$0xf] %vm5759, %v5712
      %5780 = vst.msk [vmem:[%s170 + $0x50] sm:$0xf] %vm5759, %v5713
      %5781 = vst.msk [vmem:[%s170 + $0x54] sm:$0xf] %vm5759, %v5714
      %5782 = vst.msk [vmem:[%s170 + $0x58] sm:$0xf] %vm5759, %v5715
      %5783 = vst.msk [vmem:[%s170 + $0x5c] sm:$0xf] %vm5759, %v5716
      %5784 = vst.msk [vmem:[%s170 + $0x60] sm:$0xf] %vm5759, %v5717
      %5785 = vst.msk [vmem:[%s170 + $0x64] sm:$0xf] %vm5759, %v5718
      %5786 = vst.msk [vmem:[%s170 + $0x68] sm:$0xf] %vm5759, %v5719
      %5787 = vst.msk [vmem:[%s170 + $0x6c] sm:$0xf] %vm5759, %v5720
      %5788 = vst.msk [vmem:[%s170 + $0x70] sm:$0xf] %vm5759, %v5721
      %5789 = vst.msk [vmem:[%s170 + $0x74] sm:$0xf] %vm5759, %v5722
      %5790 = vst.msk [vmem:[%s170 + $0x78] sm:$0xf] %vm5759, %v5723
      %5791 = vst.msk [vmem:[%s170 + $0x7c] sm:$0xf] %vm5759, %v5724
      %5792 = vst.msk [vmem:[%s170 + $0x80] sm:$0xf] %vm5759, %v5725
      %5793 = vst.msk [vmem:[%s170 + $0x84] sm:$0xf] %vm5759, %v5726
      %5794 = vst.msk [vmem:[%s170 + $0x88] sm:$0xf] %vm5759, %v5727
      %5795 = vst.msk [vmem:[%s170 + $0x8c] sm:$0xf] %vm5759, %v5728
      %5796 = vst.msk [vmem:[%s170 + $0x90] sm:$0xf] %vm5759, %v5729
      %5797 = vst.msk [vmem:[%s170 + $0x94] sm:$0xf] %vm5759, %v5730
      %5798 = vst.msk [vmem:[%s170 + $0x98] sm:$0xf] %vm5759, %v5731
      %5799 = vst.msk [vmem:[%s170 + $0x9c] sm:$0xf] %vm5759, %v5732
      %5800 = vst.msk [vmem:[%s170 + $0xa0] sm:$0xf] %vm5759, %v5733
      %5801 = vst.msk [vmem:[%s170 + $0xa4] sm:$0xf] %vm5759, %v5734
      %5802 = vst.msk [vmem:[%s170 + $0xa8] sm:$0xf] %vm5759, %v5735
      %5803 = vst.msk [vmem:[%s170 + $0xac] sm:$0xf] %vm5759, %v5736
      %5804 = vst.msk [vmem:[%s170 + $0xb0] sm:$0xf] %vm5759, %v5737
      %5805 = vst.msk [vmem:[%s170 + $0xb4] sm:$0xf] %vm5759, %v5738
      %5806 = vst.msk [vmem:[%s170 + $0xb8] sm:$0xf] %vm5759, %v5739
      %5807 = vst.msk [vmem:[%s170 + $0xbc] sm:$0xf] %vm5759, %v5740
      %5808 = vst.msk [vmem:[%s170 + $0xc0] sm:$0xf] %vm5759, %v5741
      %5809 = vst.msk [vmem:[%s170 + $0xc4] sm:$0xf] %vm5759, %v5742
      %5810 = vst.msk [vmem:[%s170 + $0xc8] sm:$0xf] %vm5759, %v5743
      %5811 = vst.msk [vmem:[%s170 + $0xcc] sm:$0xf] %vm5759, %v5744
      %5812 = vst.msk [vmem:[%s170 + $0xd0] sm:$0xf] %vm5759, %v5745
      %5813 = vst.msk [vmem:[%s170 + $0xd4] sm:$0xf] %vm5759, %v5746
      %5814 = vst.msk [vmem:[%s170 + $0xd8] sm:$0xf] %vm5759, %v5747
      %5815 = vst.msk [vmem:[%s170 + $0xdc] sm:$0xf] %vm5759, %v5748
      %5816 = vst.msk [vmem:[%s170 + $0xe0] sm:$0xf] %vm5759, %v5749
      %5817 = vst.msk [vmem:[%s170 + $0xe4] sm:$0xf] %vm5759, %v5750
      %5818 = vst.msk [vmem:[%s170 + $0xe8] sm:$0xf] %vm5759, %v5751
      %5819 = vst.msk [vmem:[%s170 + $0xec] sm:$0xf] %vm5759, %v5752
      %5820 = vst.msk [vmem:[%s170 + $0xf0] sm:$0xf] %vm5759, %v5753
      %5821 = vst.msk [vmem:[%s170 + $0xf4] sm:$0xf] %vm5759, %v5754
      %5822 = vst.msk [vmem:[%s170 + $0xf8] sm:$0xf] %vm5759, %v5755
      %5823 = vst.msk [vmem:[%s170 + $0xfc] sm:$0xf] %vm5759, %v5756
      %5824 = vst.msk [vmem:[%s170 + $0x100] sm:$0xf] %vm5759, %v5757
      %5825 = vst.msk [vmem:[%s170 + $0x104] sm:$0xf] %vm5759, %v5758
      %p5826 = scmp.lt.s32.totalorder %s14, 1
      %s5827 = scalar_select %p5826, %s14, 1
      %s5828 = smul.addr %s5827, 66
      %s5829 = smul.addr %s5828, 4
      %s5830 = scalar_lea.vmem %s3, %s5829
      // Predicated region
      $region33: #{pnet_forward.4} parent=31 // pred_check
        %p5831 = pneg %p100
      $region34: #{pnet_forward.4} parent=31 // pred_check_branch
        %5833 = sbr.rel (%p5831) target = $region36
      $region35: #{pnet_forward.4} parent=31 // pred_region
        _
      $region36: #{pnet_forward.4} parent=31 // pred_fallthru
        _
    $region32: #{pnet_forward.4} parent=5 // pred_fallthru
      _
    %p5834 = scmp.le.s32.totalorder 2, %s9
    // Predicated region
    $region37: #{pnet_forward.4} parent=5 // pred_check
      %p5835 = pneg %p5834
    $region38: #{pnet_forward.4} parent=5 // pred_check_branch
      %5837 = sbr.rel (%p5835) target = $region40
    $region39: #{pnet_forward.4} parent=5 // pred_region
      %s5838 = ssub.s32 %s9, 2
      // Predicated region
      $region41: #{pnet_forward.4} parent=39 // pred_check
        %p5839 = pneg %p106
      $region42: #{pnet_forward.4} parent=39 // pred_check_branch
        %5841 = sbr.rel (%p5839) target = $region44
      $region43: #{pnet_forward.4} parent=39 // pred_region
        %p5842 = scmp.lt.s32.totalorder %s15, 1
        %s5843 = scalar_select %p5842, %s15, 1
        %s5844 = smul.addr %s5843, 66
        %s5845 = smul.addr %s5844, 4
        %s5846 = scalar_lea.vmem %s3, %s5845
      $region44: #{pnet_forward.4} parent=39 // pred_fallthru
        _
    $region40: #{pnet_forward.4} parent=5 // pred_fallthru
      _
  $region6: #{pnet_forward.4} parent=0 // loop_footer
    %s13 = sadd.s32 1, %s9
  $region7: #{pnet_forward.4} parent=0 // loop_footer_branch
    %8 = sbr.rel target = $region3
  $region8: #{pnet_forward.4} parent=0 // loop_exit
    _

</llo_original>
